<compile_context>
chip_gen: v6e
topology: v6e:2x2x1
jax: 0.10.0
libtpu: 0.0.40
codegen_flags: <defaults>
</compile_context>

<pallas_src>
import jax
import jax.numpy as jnp
from jax import lax
from jax.experimental import pallas as pl
from jax.experimental.pallas import tpu as pltpu

# ----------------------------- model hyper-params -----------------------------
USER = 8
ITEM = 8
N_NODES = USER + ITEM
LATDIM = 32
NUM_HEADS = 4
HEAD_DIM = LATDIM // NUM_HEADS
HYPER_NUM = 8
GCN_HOPS = 2
DFF = 4 * LATDIM
LN_EPS = 1e-5
LANE = 128

# ----------------------------- slab row layouts --------------------------------
def _offsets(layout):
    offs, o = {}, 0
    for name, rows in layout:
        offs[name] = (o, rows)
        o += rows
    return offs, o


# "narrow" slab: last dim = LATDIM (32).  Every block is a multiple of 8 rows
# and starts at a multiple-of-8 offset -> tile-aligned in-kernel slices.
_S32_LAYOUT = (
    ("embeds0", N_NODES), ("uHyper", HYPER_NUM), ("iHyper", HYPER_NUM),
    ("wo_u", LATDIM), ("wo_i", LATDIM),
    ("bo_u", USER), ("bo_i", ITEM),
    ("w2_u", DFF), ("w2_i", DFF),
    ("b2_u", USER), ("b2_i", ITEM),
    ("g1_u", USER), ("g1_i", ITEM),
    ("be1_u", USER), ("be1_i", ITEM),
    ("g2_u", USER), ("g2_i", ITEM),
    ("be2_u", USER), ("be2_i", ITEM),
)
S32_OFF, S32_ROWS = _offsets(_S32_LAYOUT)          # (448, 32)

# lane-dense slab: last dim = 128 (FFN up-proj + fused QKV padded 96 -> 128).
_S128_LAYOUT = (
    ("w1_u", LATDIM), ("w1_i", LATDIM),
    ("b1_u", USER), ("b1_i", ITEM),
    ("wqkv_u", LATDIM), ("wqkv_i", LATDIM),
    ("bqkv_u", USER), ("bqkv_i", ITEM),
)
S128_OFF, S128_ROWS = _offsets(_S128_LAYOUT)       # (160, 128)

OUT_ROWS = N_NODES + USER + ITEM                    # (32, 32) output slab


# ----------------------------- BlockSpec helper --------------------------------
def full_spec(shape):
    nd = len(shape)
    return pl.BlockSpec(shape, lambda *_, _nd=nd: (0,) * _nd)


# ----------------------------- fused forward kernel ----------------------------
def _layernorm(x, gamma, beta):
    mu = jnp.mean(x, axis=-1, keepdims=True)
    var = jnp.mean((x - mu) ** 2, axis=-1, keepdims=True)
    return (x - mu) * lax.rsqrt(var + LN_EPS) * gamma + beta


def _fused_forward_kernel(adj_ref, s32_ref, s128_ref, out_ref):
    def s32(name):
        o, n = S32_OFF[name]
        return s32_ref[o:o + n, :]

    def s128(name):
        o, n = S128_OFF[name]
        return s128_ref[o:o + n, :]

    def xf_branch(x, sfx):
        """Post-norm transformer encoder layer; sfx='u' user / 'i' item."""
        # fused QKV projection (lane-padded to 128; 1/sqrt(hd) folded into Q)
        qkv = jnp.dot(x, s128("wqkv_" + sfx),
                      preferred_element_type=jnp.float32) + s128("bqkv_" + sfx)
        q = qkv[:, 0:LATDIM]
        k = qkv[:, LATDIM:2 * LATDIM]
        v = qkv[:, 2 * LATDIM:3 * LATDIM]

        wo = s32("wo_" + sfx)
        attn = s32("bo_" + sfx)          # accumulator seeded with output bias
        for h in range(NUM_HEADS):       # statically unrolled, 2-D slices only
            lo = h * HEAD_DIM
            hi = lo + HEAD_DIM
            qh = q[:, lo:hi]
            kh = k[:, lo:hi]
            vh = v[:, lo:hi]
            s = lax.dot_general(qh, kh, (((1,), (1,)), ((), ())),
                                preferred_element_type=jnp.float32)   # qh @ kh.T
            s = s - jnp.max(s, axis=-1, keepdims=True)
            e = jnp.exp(s)
            p = e / jnp.sum(e, axis=-1, keepdims=True)                 # exact softmax
            head = jnp.dot(p, vh, preferred_element_type=jnp.float32)
            # per-head accumulation against wo row-slice (no lane concat)
            attn = attn + jnp.dot(head, wo[lo:hi, :],
                                  preferred_element_type=jnp.float32)

        # residual + layernorm 1
        x1 = _layernorm(x + attn, s32("g1_" + sfx), s32("be1_" + sfx))

        # feed-forward (ReLU)
        h1 = jnp.maximum(
            jnp.dot(x1, s128("w1_" + sfx),
                    preferred_element_type=jnp.float32) + s128("b1_" + sfx), 0.0)
        ff = jnp.dot(h1, s32("w2_" + sfx),
                     preferred_element_type=jnp.float32) + s32("b2_" + sfx)

        # residual + layernorm 2
        return _layernorm(x1 + ff, s32("g2_" + sfx), s32("be2_" + sfx))

    adj = adj_ref[...]
    embeds0 = s32("embeds0")             # (N, D) = concat(uEmbeds, iEmbeds)

    lat = embeds0
    acc = embeds0                        # running sum(lats)
    for _ in range(GCN_HOPS):
        temlat = jnp.dot(adj, lat, preferred_element_type=jnp.float32)   # gcnLayer
        u = xf_branch(temlat[:USER, :], "u")
        it = xf_branch(temlat[USER:, :], "i")
        lat = jnp.concatenate([u, it], axis=0)
        acc = acc + lat

    # hgnnLayer, re-associated: (acc_h @ H.T) @ H  ==  acc_h @ (H.T @ H)
    uh = s32("uHyper")
    ih = s32("iHyper")
    pu = lax.dot_general(acc[:USER, :], uh, (((1,), (1,)), ((), ())),
                         preferred_element_type=jnp.float32)           # (8, 8)
    pi = lax.dot_general(acc[USER:, :], ih, (((1,), (1,)), ((), ())),
                         preferred_element_type=jnp.float32)

    # single lane-contiguous output slab: 1 writeback DMA instead of 3
    out_ref[0:N_NODES, :] = acc
    out_ref[N_NODES:N_NODES + USER, :] = jnp.dot(
        pu, uh, preferred_element_type=jnp.float32)
    out_ref[N_NODES + USER:OUT_ROWS, :] = jnp.dot(
        pi, ih, preferred_element_type=jnp.float32)


# ----------------------------- forward wrapper ----------------------------------
def model_forward(adj, slab32, slab128):
    out = pl.pallas_call(
        _fused_forward_kernel,
        out_shape=jax.ShapeDtypeStruct((OUT_ROWS, LATDIM), jnp.float32),
        grid=(1,),
        in_specs=[full_spec(adj.shape),
                  full_spec((S32_ROWS, LATDIM)),
                  full_spec((S128_ROWS, LANE))],
        out_specs=full_spec((OUT_ROWS, LATDIM)),
        compiler_params=pltpu.CompilerParams(
            dimension_semantics=("arbitrary",)),
    )(adj, slab32, slab128)
    embeds = out[:N_NODES]
    hyperU = out[N_NODES:N_NODES + USER]
    hyperI = out[N_NODES + USER:]
    return embeds, hyperU, hyperI


# ----------------------------- parameter init / packing -------------------------
def xavier_uniform(key, shape):
    fan_in, fan_out = shape[-2], shape[-1]
    bound = (6.0 / (fan_in + fan_out)) ** 0.5
    return jax.random.uniform(key, shape, jnp.float32, -bound, bound)


def init_transformer_params(key):
    ks = jax.random.split(key, 6)
    wq = xavier_uniform(ks[0], (LATDIM, LATDIM))
    wk = xavier_uniform(ks[1], (LATDIM, LATDIM))
    wv = xavier_uniform(ks[2], (LATDIM, LATDIM))
    return {
        "wqkv": jnp.concatenate([wq, wk, wv], axis=1),     # (D, 3D) fused QKV
        "bqkv": jnp.zeros((1, 3 * LATDIM), jnp.float32),
        "wo": xavier_uniform(ks[3], (LATDIM, LATDIM)),
        "bo": jnp.zeros((1, LATDIM), jnp.float32),
        "w1": xavier_uniform(ks[4], (LATDIM, DFF)),
        "b1": jnp.zeros((1, DFF), jnp.float32),
        "w2": xavier_uniform(ks[5], (DFF, LATDIM)),
        "b2": jnp.zeros((1, LATDIM), jnp.float32),
        "g1": jnp.ones((1, LATDIM), jnp.float32),
        "be1": jnp.zeros((1, LATDIM), jnp.float32),
        "g2": jnp.ones((1, LATDIM), jnp.float32),
        "be2": jnp.zeros((1, LATDIM), jnp.float32),
    }


def init_model_params(key):
    k = jax.random.split(key, 6)
    return {
        "uEmbeds": xavier_uniform(k[0], (USER, LATDIM)),
        "iEmbeds": xavier_uniform(k[1], (ITEM, LATDIM)),
        "uHyper": xavier_uniform(k[2], (HYPER_NUM, LATDIM)),
        "iHyper": xavier_uniform(k[3], (HYPER_NUM, LATDIM)),
        "user_xf": init_transformer_params(k[4]),
        "item_xf": init_transformer_params(k[5]),
    }


def pack_params(params):
    """One-time host-side packing of all parameters into two f32 slabs."""
    scale = HEAD_DIM ** -0.5
    # fold the attention scale into the Q columns of the fused QKV weight/bias
    qkv_scale = jnp.concatenate(
        [jnp.full((1, LATDIM), scale, jnp.float32),
         jnp.ones((1, 2 * LATDIM), jnp.float32)], axis=1)

    def bc(x, rows):                     # pre-broadcast (1,C) bias -> (rows,C)
        return jnp.broadcast_to(x, (rows, x.shape[-1]))

    def pad_lanes(x):                    # lane-pad to 128 with zeros
        return jnp.pad(x, ((0, 0), (0, LANE - x.shape[-1])))

    u, i = params["user_xf"], params["item_xf"]

    parts32 = {
        "embeds0": jnp.concatenate([params["uEmbeds"], params["iEmbeds"]], 0),
        "uHyper": params["uHyper"],
        "iHyper": params["iHyper"],
        "wo_u": u["wo"], "wo_i": i["wo"],
        "bo_u": bc(u["bo"], USER), "bo_i": bc(i["bo"], ITEM),
        "w2_u": u["w2"], "w2_i": i["w2"],
        "b2_u": bc(u["b2"], USER), "b2_i": bc(i["b2"], ITEM),
        "g1_u": bc(u["g1"], USER), "g1_i": bc(i["g1"], ITEM),
        "be1_u": bc(u["be1"], USER), "be1_i": bc(i["be1"], ITEM),
        "g2_u": bc(u["g2"], USER), "g2_i": bc(i["g2"], ITEM),
        "be2_u": bc(u["be2"], USER), "be2_i": bc(i["be2"], ITEM),
    }
    slab32 = jnp.concatenate([parts32[n] for n, _ in _S32_LAYOUT], axis=0)

    parts128 = {
        "w1_u": u["w1"], "w1_i": i["w1"],
        "b1_u": bc(u["b1"], USER), "b1_i": bc(i["b1"], ITEM),
        "wqkv_u": pad_lanes(u["wqkv"] * qkv_scale),
        "wqkv_i": pad_lanes(i["wqkv"] * qkv_scale),
        "bqkv_u": pad_lanes(bc(u["bqkv"] * qkv_scale, USER)),
        "bqkv_i": pad_lanes(bc(i["bqkv"] * qkv_scale, ITEM)),
    }
    slab128 = jnp.concatenate([parts128[n] for n, _ in _S128_LAYOUT], axis=0)

    assert slab32.shape == (S32_ROWS, LATDIM)
    assert slab128.shape == (S128_ROWS, LANE)
    return slab32, slab128


# ----------------------------- pure-JAX reference --------------------------------
def reference_forward(adj, params):
    def layernorm(x, g, b):
        mu = jnp.mean(x, axis=-1, keepdims=True)
        var = jnp.mean((x - mu) ** 2, axis=-1, keepdims=True)
        return (x - mu) * lax.rsqrt(var + LN_EPS) * g + b

    def xf(x, p):
        qkv = x @ p["wqkv"] + p["bqkv"]
        q = qkv[:, :LATDIM]
        k = qkv[:, LATDIM:2 * LATDIM]
        v = qkv[:, 2 * LATDIM:]
        heads = []
        for h in range(NUM_HEADS):
            sl = slice(h * HEAD_DIM, (h + 1) * HEAD_DIM)
            s = (q[:, sl] @ k[:, sl].T) * (HEAD_DIM ** -0.5)
            heads.append(jax.nn.softmax(s, axis=-1) @ v[:, sl])
        attn = jnp.concatenate(heads, axis=1) @ p["wo"] + p["bo"]
        x1 = layernorm(x + attn, p["g1"], p["be1"])
        ff = jax.nn.relu(x1 @ p["w1"] + p["b1"]) @ p["w2"] + p["b2"]
        return layernorm(x1 + ff, p["g2"], p["be2"])

    embeds = jnp.concatenate([params["uEmbeds"], params["iEmbeds"]], axis=0)
    lats = [embeds]
    for _ in range(GCN_HOPS):
        tem = adj @ lats[-1]
        lats.append(jnp.concatenate(
            [xf(tem[:USER], params["user_xf"]),
             xf(tem[USER:], params["item_xf"])], axis=0))
    e = sum(lats)
    hu = e[:USER] @ (params["uHyper"].T @ params["uHyper"])
    hi = e[USER:] @ (params["iHyper"].T @ params["iHyper"])
    return e, hu, hi


# ----------------------------- main ---------------------------------------------
if __name__ == "__main__":
    key = jax.random.PRNGKey(0)
    k_params, k_adj = jax.random.split(key)

    params = init_model_params(k_params)
    slab32, slab128 = pack_params(params)

    # deterministic dense "adjacency": bipartite user-item links, symmetric,
    # degree-normalized (stand-in for the sparse matrix fed to t.spmm).
    mask = (jax.random.uniform(k_adj, (USER, ITEM)) > 0.5).astype(jnp.float32)
    adj = jnp.zeros((N_NODES, N_NODES), jnp.float32)
    adj = adj.at[:USER, USER:].set(mask)
    adj = adj.at[USER:, :USER].set(mask.T)
    deg = jnp.maximum(adj.sum(axis=1, keepdims=True), 1.0)
    adj = adj / deg

    fwd = jax.jit(model_forward)
    embeds, hyperU, hyperI = fwd(adj, slab32, slab128)
    jax.block_until_ready((embeds, hyperU, hyperI))

    assert embeds.shape == (N_NODES, LATDIM)
    assert hyperU.shape == (USER, LATDIM)
    assert hyperI.shape == (ITEM, LATDIM)

    # verify against a pure-JAX reference (tolerance covers MXU f32 rounding)
    with jax.default_matmul_precision("highest"):
        ref_e, ref_u, ref_i = reference_forward(adj, params)
    for got, ref in ((embeds, ref_e), (hyperU, ref_u), (hyperI, ref_i)):
        assert bool(jnp.all(jnp.isfinite(got)))
        err = float(jnp.max(jnp.abs(got - ref)))
        assert err < 5e-2, f"mismatch vs reference: max abs err {err}"

    print("KERNEL_OK")
</pallas_src>

<mosaic_0001>
module attributes {stable_mosaic.version = 11 : i64} {
  func.func @_fused_forward_kernel(%arg0: i32, %arg1: memref<16x16xf32, #tpu.memory_space<vmem>>, %arg2: memref<448x32xf32, #tpu.memory_space<vmem>>, %arg3: memref<160x128xf32, #tpu.memory_space<vmem>>, %arg4: memref<32x32xf32, #tpu.memory_space<vmem>>) attributes {dimension_semantics = [#tpu.dimension_semantics<arbitrary>], iteration_bounds = array<i64: 1>, scalar_prefetch = 0 : i64, scratch_operands = 0 : i64, tpu.core_type = #tpu.core_type<tc>, window_params = [{pipeline_mode = #tpu.pipeline_mode<synchronous>, transform_indices = @transform_0, window_bounds = array<i64: 16, 16>}, {pipeline_mode = #tpu.pipeline_mode<synchronous>, transform_indices = @transform_1, window_bounds = array<i64: 448, 32>}, {pipeline_mode = #tpu.pipeline_mode<synchronous>, transform_indices = @transform_2, window_bounds = array<i64: 160, 128>}, {pipeline_mode = #tpu.pipeline_mode<synchronous>, transform_indices = @transform_3, window_bounds = array<i64: 32, 32>}]} {
    %c0 = arith.constant 0 : index
    %c0_0 = arith.constant 0 : index
    %0 = vector.load %arg1[%c0, %c0_0] : memref<16x16xf32, #tpu.memory_space<vmem>>, vector<16x16xf32>
    %c0_1 = arith.constant 0 : index
    %c0_2 = arith.constant 0 : index
    %1 = vector.load %arg2[%c0_1, %c0_2] : memref<448x32xf32, #tpu.memory_space<vmem>>, vector<16x32xf32>
    %cst = arith.constant dense<0.000000e+00> : vector<16x32xf32>
    %2 = tpu.matmul %0, %1, %cst {dimension_numbers = #tpu.dot_dimension_numbers<[1], [0], [0], [1], [0, 0, 1, 1], [], []>} : vector<16x16xf32>, vector<16x32xf32>, vector<16x32xf32> -> vector<16x32xf32>
    %3 = vector.extract_strided_slice %2 {offsets = [0, 0], sizes = [8, 32], strides = [1, 1]} : vector<16x32xf32> to vector<8x32xf32>
    %c80 = arith.constant 80 : index
    %c0_3 = arith.constant 0 : index
    %4 = vector.load %arg3[%c80, %c0_3] : memref<160x128xf32, #tpu.memory_space<vmem>>, vector<32x128xf32>
    %cst_4 = arith.constant dense<0.000000e+00> : vector<8x128xf32>
    %5 = tpu.matmul %3, %4, %cst_4 {dimension_numbers = #tpu.dot_dimension_numbers<[1], [0], [0], [1], [0, 0, 1, 1], [], []>} : vector<8x32xf32>, vector<32x128xf32>, vector<8x128xf32> -> vector<8x128xf32>
    %c144 = arith.constant 144 : index
    %c0_5 = arith.constant 0 : index
    %6 = vector.load %arg3[%c144, %c0_5] : memref<160x128xf32, #tpu.memory_space<vmem>>, vector<8x128xf32>
    %7 = arith.addf %5, %6 : vector<8x128xf32>
    %8 = vector.extract_strided_slice %7 {offsets = [0, 0], sizes = [8, 32], strides = [1, 1]} : vector<8x128xf32> to vector<8x32xf32>
    %9 = vector.extract_strided_slice %7 {offsets = [0, 32], sizes = [8, 32], strides = [1, 1]} : vector<8x128xf32> to vector<8x32xf32>
    %10 = vector.extract_strided_slice %7 {offsets = [0, 64], sizes = [8, 32], strides = [1, 1]} : vector<8x128xf32> to vector<8x32xf32>
    %c32 = arith.constant 32 : index
    %c0_6 = arith.constant 0 : index
    %11 = vector.load %arg2[%c32, %c0_6] : memref<448x32xf32, #tpu.memory_space<vmem>>, vector<32x32xf32>
    %c96 = arith.constant 96 : index
    %c0_7 = arith.constant 0 : index
    %12 = vector.load %arg2[%c96, %c0_7] : memref<448x32xf32, #tpu.memory_space<vmem>>, vector<8x32xf32>
    %13 = vector.extract_strided_slice %8 {offsets = [0, 0], sizes = [8, 8], strides = [1, 1]} : vector<8x32xf32> to vector<8x8xf32>
    %14 = vector.extract_strided_slice %9 {offsets = [0, 0], sizes = [8, 8], strides = [1, 1]} : vector<8x32xf32> to vector<8x8xf32>
    %15 = vector.extract_strided_slice %10 {offsets = [0, 0], sizes = [8, 8], strides = [1, 1]} : vector<8x32xf32> to vector<8x8xf32>
    %cst_8 = arith.constant dense<0.000000e+00> : vector<8x8xf32>
    %16 = tpu.matmul %13, %14, %cst_8 {dimension_numbers = #tpu.dot_dimension_numbers<[1], [1], [0], [0], [0, 0, 1, 0], [], []>} : vector<8x8xf32>, vector<8x8xf32>, vector<8x8xf32> -> vector<8x8xf32>
    %cst_9 = arith.constant dense<0xFF800000> : vector<8xf32>
    %17 = vector.multi_reduction <maximumf>, %16, %cst_9 [1] : vector<8x8xf32> to vector<8xf32>
    %18 = vector.shape_cast %17 : vector<8xf32> to vector<8x1xf32>
    %19 = vector.broadcast %18 : vector<8x1xf32> to vector<8x8xf32>
    %20 = arith.subf %16, %19 : vector<8x8xf32>
    %21 = math.exp %20 : vector<8x8xf32>
    %cst_10 = arith.constant dense<0.000000e+00> : vector<8xf32>
    %22 = vector.multi_reduction <add>, %21, %cst_10 [1] : vector<8x8xf32> to vector<8xf32>
    %23 = vector.shape_cast %22 : vector<8xf32> to vector<8x1xf32>
    %24 = vector.broadcast %23 : vector<8x1xf32> to vector<8x8xf32>
    %25 = arith.divf %21, %24 : vector<8x8xf32>
    %cst_11 = arith.constant dense<0.000000e+00> : vector<8x8xf32>
    %26 = tpu.matmul %25, %15, %cst_11 {dimension_numbers = #tpu.dot_dimension_numbers<[1], [0], [0], [1], [0, 0, 1, 1], [], []>} : vector<8x8xf32>, vector<8x8xf32>, vector<8x8xf32> -> vector<8x8xf32>
    %27 = vector.extract_strided_slice %11 {offsets = [0, 0], sizes = [8, 32], strides = [1, 1]} : vector<32x32xf32> to vector<8x32xf32>
    %cst_12 = arith.constant dense<0.000000e+00> : vector<8x32xf32>
    %28 = tpu.matmul %26, %27, %cst_12 {dimension_numbers = #tpu.dot_dimension_numbers<[1], [0], [0], [1], [0, 0, 1, 1], [], []>} : vector<8x8xf32>, vector<8x32xf32>, vector<8x32xf32> -> vector<8x32xf32>
    %29 = arith.addf %12, %28 : vector<8x32xf32>
    %30 = vector.extract_strided_slice %8 {offsets = [0, 8], sizes = [8, 8], strides = [1, 1]} : vector<8x32xf32> to vector<8x8xf32>
    %31 = vector.extract_strided_slice %9 {offsets = [0, 8], sizes = [8, 8], strides = [1, 1]} : vector<8x32xf32> to vector<8x8xf32>
    %32 = vector.extract_strided_slice %10 {offsets = [0, 8], sizes = [8, 8], strides = [1, 1]} : vector<8x32xf32> to vector<8x8xf32>
    %cst_13 = arith.constant dense<0.000000e+00> : vector<8x8xf32>
    %33 = tpu.matmul %30, %31, %cst_13 {dimension_numbers = #tpu.dot_dimension_numbers<[1], [1], [0], [0], [0, 0, 1, 0], [], []>} : vector<8x8xf32>, vector<8x8xf32>, vector<8x8xf32> -> vector<8x8xf32>
    %cst_14 = arith.constant dense<0xFF800000> : vector<8xf32>
    %34 = vector.multi_reduction <maximumf>, %33, %cst_14 [1] : vector<8x8xf32> to vector<8xf32>
    %35 = vector.shape_cast %34 : vector<8xf32> to vector<8x1xf32>
    %36 = vector.broadcast %35 : vector<8x1xf32> to vector<8x8xf32>
    %37 = arith.subf %33, %36 : vector<8x8xf32>
    %38 = math.exp %37 : vector<8x8xf32>
    %cst_15 = arith.constant dense<0.000000e+00> : vector<8xf32>
    %39 = vector.multi_reduction <add>, %38, %cst_15 [1] : vector<8x8xf32> to vector<8xf32>
    %40 = vector.shape_cast %39 : vector<8xf32> to vector<8x1xf32>
    %41 = vector.broadcast %40 : vector<8x1xf32> to vector<8x8xf32>
    %42 = arith.divf %38, %41 : vector<8x8xf32>
    %cst_16 = arith.constant dense<0.000000e+00> : vector<8x8xf32>
    %43 = tpu.matmul %42, %32, %cst_16 {dimension_numbers = #tpu.dot_dimension_numbers<[1], [0], [0], [1], [0, 0, 1, 1], [], []>} : vector<8x8xf32>, vector<8x8xf32>, vector<8x8xf32> -> vector<8x8xf32>
    %44 = vector.extract_strided_slice %11 {offsets = [8, 0], sizes = [8, 32], strides = [1, 1]} : vector<32x32xf32> to vector<8x32xf32>
    %cst_17 = arith.constant dense<0.000000e+00> : vector<8x32xf32>
    %45 = tpu.matmul %43, %44, %cst_17 {dimension_numbers = #tpu.dot_dimension_numbers<[1], [0], [0], [1], [0, 0, 1, 1], [], []>} : vector<8x8xf32>, vector<8x32xf32>, vector<8x32xf32> -> vector<8x32xf32>
    %46 = arith.addf %29, %45 : vector<8x32xf32>
    %47 = vector.extract_strided_slice %8 {offsets = [0, 16], sizes = [8, 8], strides = [1, 1]} : vector<8x32xf32> to vector<8x8xf32>
    %48 = vector.extract_strided_slice %9 {offsets = [0, 16], sizes = [8, 8], strides = [1, 1]} : vector<8x32xf32> to vector<8x8xf32>
    %49 = vector.extract_strided_slice %10 {offsets = [0, 16], sizes = [8, 8], strides = [1, 1]} : vector<8x32xf32> to vector<8x8xf32>
    %cst_18 = arith.constant dense<0.000000e+00> : vector<8x8xf32>
    %50 = tpu.matmul %47, %48, %cst_18 {dimension_numbers = #tpu.dot_dimension_numbers<[1], [1], [0], [0], [0, 0, 1, 0], [], []>} : vector<8x8xf32>, vector<8x8xf32>, vector<8x8xf32> -> vector<8x8xf32>
    %cst_19 = arith.constant dense<0xFF800000> : vector<8xf32>
    %51 = vector.multi_reduction <maximumf>, %50, %cst_19 [1] : vector<8x8xf32> to vector<8xf32>
    %52 = vector.shape_cast %51 : vector<8xf32> to vector<8x1xf32>
    %53 = vector.broadcast %52 : vector<8x1xf32> to vector<8x8xf32>
    %54 = arith.subf %50, %53 : vector<8x8xf32>
    %55 = math.exp %54 : vector<8x8xf32>
    %cst_20 = arith.constant dense<0.000000e+00> : vector<8xf32>
    %56 = vector.multi_reduction <add>, %55, %cst_20 [1] : vector<8x8xf32> to vector<8xf32>
    %57 = vector.shape_cast %56 : vector<8xf32> to vector<8x1xf32>
    %58 = vector.broadcast %57 : vector<8x1xf32> to vector<8x8xf32>
    %59 = arith.divf %55, %58 : vector<8x8xf32>
    %cst_21 = arith.constant dense<0.000000e+00> : vector<8x8xf32>
    %60 = tpu.matmul %59, %49, %cst_21 {dimension_numbers = #tpu.dot_dimension_numbers<[1], [0], [0], [1], [0, 0, 1, 1], [], []>} : vector<8x8xf32>, vector<8x8xf32>, vector<8x8xf32> -> vector<8x8xf32>
    %61 = vector.extract_strided_slice %11 {offsets = [16, 0], sizes = [8, 32], strides = [1, 1]} : vector<32x32xf32> to vector<8x32xf32>
    %cst_22 = arith.constant dense<0.000000e+00> : vector<8x32xf32>
    %62 = tpu.matmul %60, %61, %cst_22 {dimension_numbers = #tpu.dot_dimension_numbers<[1], [0], [0], [1], [0, 0, 1, 1], [], []>} : vector<8x8xf32>, vector<8x32xf32>, vector<8x32xf32> -> vector<8x32xf32>
    %63 = arith.addf %46, %62 : vector<8x32xf32>
    %64 = vector.extract_strided_slice %8 {offsets = [0, 24], sizes = [8, 8], strides = [1, 1]} : vector<8x32xf32> to vector<8x8xf32>
    %65 = vector.extract_strided_slice %9 {offsets = [0, 24], sizes = [8, 8], strides = [1, 1]} : vector<8x32xf32> to vector<8x8xf32>
    %66 = vector.extract_strided_slice %10 {offsets = [0, 24], sizes = [8, 8], strides = [1, 1]} : vector<8x32xf32> to vector<8x8xf32>
    %cst_23 = arith.constant dense<0.000000e+00> : vector<8x8xf32>
    %67 = tpu.matmul %64, %65, %cst_23 {dimension_numbers = #tpu.dot_dimension_numbers<[1], [1], [0], [0], [0, 0, 1, 0], [], []>} : vector<8x8xf32>, vector<8x8xf32>, vector<8x8xf32> -> vector<8x8xf32>
    %cst_24 = arith.constant dense<0xFF800000> : vector<8xf32>
    %68 = vector.multi_reduction <maximumf>, %67, %cst_24 [1] : vector<8x8xf32> to vector<8xf32>
    %69 = vector.shape_cast %68 : vector<8xf32> to vector<8x1xf32>
    %70 = vector.broadcast %69 : vector<8x1xf32> to vector<8x8xf32>
    %71 = arith.subf %67, %70 : vector<8x8xf32>
    %72 = math.exp %71 : vector<8x8xf32>
    %cst_25 = arith.constant dense<0.000000e+00> : vector<8xf32>
    %73 = vector.multi_reduction <add>, %72, %cst_25 [1] : vector<8x8xf32> to vector<8xf32>
    %74 = vector.shape_cast %73 : vector<8xf32> to vector<8x1xf32>
    %75 = vector.broadcast %74 : vector<8x1xf32> to vector<8x8xf32>
    %76 = arith.divf %72, %75 : vector<8x8xf32>
    %cst_26 = arith.constant dense<0.000000e+00> : vector<8x8xf32>
    %77 = tpu.matmul %76, %66, %cst_26 {dimension_numbers = #tpu.dot_dimension_numbers<[1], [0], [0], [1], [0, 0, 1, 1], [], []>} : vector<8x8xf32>, vector<8x8xf32>, vector<8x8xf32> -> vector<8x8xf32>
    %78 = vector.extract_strided_slice %11 {offsets = [24, 0], sizes = [8, 32], strides = [1, 1]} : vector<32x32xf32> to vector<8x32xf32>
    %cst_27 = arith.constant dense<0.000000e+00> : vector<8x32xf32>
    %79 = tpu.matmul %77, %78, %cst_27 {dimension_numbers = #tpu.dot_dimension_numbers<[1], [0], [0], [1], [0, 0, 1, 1], [], []>} : vector<8x8xf32>, vector<8x32xf32>, vector<8x32xf32> -> vector<8x32xf32>
    %80 = arith.addf %63, %79 : vector<8x32xf32>
    %81 = arith.addf %3, %80 : vector<8x32xf32>
    %c384 = arith.constant 384 : index
    %c0_28 = arith.constant 0 : index
    %82 = vector.load %arg2[%c384, %c0_28] : memref<448x32xf32, #tpu.memory_space<vmem>>, vector<8x32xf32>
    %c400 = arith.constant 400 : index
    %c0_29 = arith.constant 0 : index
    %83 = vector.load %arg2[%c400, %c0_29] : memref<448x32xf32, #tpu.memory_space<vmem>>, vector<8x32xf32>
    %cst_30 = arith.constant dense<0.000000e+00> : vector<8xf32>
    %84 = vector.multi_reduction <add>, %81, %cst_30 [1] : vector<8x32xf32> to vector<8xf32>
    %85 = vector.shape_cast %84 : vector<8xf32> to vector<8x1xf32>
    %cst_31 = arith.constant 3.200000e+01 : f32
    %86 = vector.broadcast %cst_31 : f32 to vector<8x1xf32>
    %87 = arith.divf %85, %86 : vector<8x1xf32>
    %88 = vector.broadcast %87 : vector<8x1xf32> to vector<8x32xf32>
    %89 = arith.subf %81, %88 : vector<8x32xf32>
    %90 = arith.mulf %89, %89 : vector<8x32xf32>
    %cst_32 = arith.constant dense<0.000000e+00> : vector<8xf32>
    %91 = vector.multi_reduction <add>, %90, %cst_32 [1] : vector<8x32xf32> to vector<8xf32>
    %92 = vector.shape_cast %91 : vector<8xf32> to vector<8x1xf32>
    %cst_33 = arith.constant 3.200000e+01 : f32
    %93 = vector.broadcast %cst_33 : f32 to vector<8x1xf32>
    %94 = arith.divf %92, %93 : vector<8x1xf32>
    %95 = vector.broadcast %87 : vector<8x1xf32> to vector<8x32xf32>
    %96 = arith.subf %81, %95 : vector<8x32xf32>
    %cst_34 = arith.constant 9.99999974E-6 : f32
    %97 = vector.broadcast %cst_34 : f32 to vector<8x1xf32>
    %98 = arith.addf %94, %97 : vector<8x1xf32>
    %99 = math.rsqrt %98 : vector<8x1xf32>
    %100 = vector.broadcast %99 : vector<8x1xf32> to vector<8x32xf32>
    %101 = arith.mulf %96, %100 : vector<8x32xf32>
    %102 = arith.mulf %101, %82 : vector<8x32xf32>
    %103 = arith.addf %102, %83 : vector<8x32xf32>
    %c0_35 = arith.constant 0 : index
    %c0_36 = arith.constant 0 : index
    %104 = vector.load %arg3[%c0_35, %c0_36] : memref<160x128xf32, #tpu.memory_space<vmem>>, vector<32x128xf32>
    %cst_37 = arith.constant dense<0.000000e+00> : vector<8x128xf32>
    %105 = tpu.matmul %103, %104, %cst_37 {dimension_numbers = #tpu.dot_dimension_numbers<[1], [0], [0], [1], [0, 0, 1, 1], [], []>} : vector<8x32xf32>, vector<32x128xf32>, vector<8x128xf32> -> vector<8x128xf32>
    %c64 = arith.constant 64 : index
    %c0_38 = arith.constant 0 : index
    %106 = vector.load %arg3[%c64, %c0_38] : memref<160x128xf32, #tpu.memory_space<vmem>>, vector<8x128xf32>
    %107 = arith.addf %105, %106 : vector<8x128xf32>
    %cst_39 = arith.constant 0.000000e+00 : f32
    %108 = vector.broadcast %cst_39 : f32 to vector<8x128xf32>
    %109 = arith.maximumf %107, %108 : vector<8x128xf32>
    %c112 = arith.constant 112 : index
    %c0_40 = arith.constant 0 : index
    %110 = vector.load %arg2[%c112, %c0_40] : memref<448x32xf32, #tpu.memory_space<vmem>>, vector<128x32xf32>
    %cst_41 = arith.constant dense<0.000000e+00> : vector<8x32xf32>
    %111 = tpu.matmul %109, %110, %cst_41 {dimension_numbers = #tpu.dot_dimension_numbers<[1], [0], [0], [1], [0, 0, 1, 1], [], []>} : vector<8x128xf32>, vector<128x32xf32>, vector<8x32xf32> -> vector<8x32xf32>
    %c368 = arith.constant 368 : index
    %c0_42 = arith.constant 0 : index
    %112 = vector.load %arg2[%c368, %c0_42] : memref<448x32xf32, #tpu.memory_space<vmem>>, vector<8x32xf32>
    %113 = arith.addf %111, %112 : vector<8x32xf32>
    %114 = arith.addf %103, %113 : vector<8x32xf32>
    %c416 = arith.constant 416 : index
    %c0_43 = arith.constant 0 : index
    %115 = vector.load %arg2[%c416, %c0_43] : memref<448x32xf32, #tpu.memory_space<vmem>>, vector<8x32xf32>
    %c432 = arith.constant 432 : index
    %c0_44 = arith.constant 0 : index
    %116 = vector.load %arg2[%c432, %c0_44] : memref<448x32xf32, #tpu.memory_space<vmem>>, vector<8x32xf32>
    %cst_45 = arith.constant dense<0.000000e+00> : vector<8xf32>
    %117 = vector.multi_reduction <add>, %114, %cst_45 [1] : vector<8x32xf32> to vector<8xf32>
    %118 = vector.shape_cast %117 : vector<8xf32> to vector<8x1xf32>
    %cst_46 = arith.constant 3.200000e+01 : f32
    %119 = vector.broadcast %cst_46 : f32 to vector<8x1xf32>
    %120 = arith.divf %118, %119 : vector<8x1xf32>
    %121 = vector.broadcast %120 : vector<8x1xf32> to vector<8x32xf32>
    %122 = arith.subf %114, %121 : vector<8x32xf32>
    %123 = arith.mulf %122, %122 : vector<8x32xf32>
    %cst_47 = arith.constant dense<0.000000e+00> : vector<8xf32>
    %124 = vector.multi_reduction <add>, %123, %cst_47 [1] : vector<8x32xf32> to vector<8xf32>
    %125 = vector.shape_cast %124 : vector<8xf32> to vector<8x1xf32>
    %cst_48 = arith.constant 3.200000e+01 : f32
    %126 = vector.broadcast %cst_48 : f32 to vector<8x1xf32>
    %127 = arith.divf %125, %126 : vector<8x1xf32>
    %128 = vector.broadcast %120 : vector<8x1xf32> to vector<8x32xf32>
    %129 = arith.subf %114, %128 : vector<8x32xf32>
    %cst_49 = arith.constant 9.99999974E-6 : f32
    %130 = vector.broadcast %cst_49 : f32 to vector<8x1xf32>
    %131 = arith.addf %127, %130 : vector<8x1xf32>
    %132 = math.rsqrt %131 : vector<8x1xf32>
    %133 = vector.broadcast %132 : vector<8x1xf32> to vector<8x32xf32>
    %134 = arith.mulf %129, %133 : vector<8x32xf32>
    %135 = arith.mulf %134, %115 : vector<8x32xf32>
    %136 = arith.addf %135, %116 : vector<8x32xf32>
    %137 = vector.extract_strided_slice %2 {offsets = [8, 0], sizes = [8, 32], strides = [1, 1]} : vector<16x32xf32> to vector<8x32xf32>
    %c112_50 = arith.constant 112 : index
    %c0_51 = arith.constant 0 : index
    %138 = vector.load %arg3[%c112_50, %c0_51] : memref<160x128xf32, #tpu.memory_space<vmem>>, vector<32x128xf32>
    %cst_52 = arith.constant dense<0.000000e+00> : vector<8x128xf32>
    %139 = tpu.matmul %137, %138, %cst_52 {dimension_numbers = #tpu.dot_dimension_numbers<[1], [0], [0], [1], [0, 0, 1, 1], [], []>} : vector<8x32xf32>, vector<32x128xf32>, vector<8x128xf32> -> vector<8x128xf32>
    %c152 = arith.constant 152 : index
    %c0_53 = arith.constant 0 : index
    %140 = vector.load %arg3[%c152, %c0_53] : memref<160x128xf32, #tpu.memory_space<vmem>>, vector<8x128xf32>
    %141 = arith.addf %139, %140 : vector<8x128xf32>
    %142 = vector.extract_strided_slice %141 {offsets = [0, 0], sizes = [8, 32], strides = [1, 1]} : vector<8x128xf32> to vector<8x32xf32>
    %143 = vector.extract_strided_slice %141 {offsets = [0, 32], sizes = [8, 32], strides = [1, 1]} : vector<8x128xf32> to vector<8x32xf32>
    %144 = vector.extract_strided_slice %141 {offsets = [0, 64], sizes = [8, 32], strides = [1, 1]} : vector<8x128xf32> to vector<8x32xf32>
    %c64_54 = arith.constant 64 : index
    %c0_55 = arith.constant 0 : index
    %145 = vector.load %arg2[%c64_54, %c0_55] : memref<448x32xf32, #tpu.memory_space<vmem>>, vector<32x32xf32>
    %c104 = arith.constant 104 : index
    %c0_56 = arith.constant 0 : index
    %146 = vector.load %arg2[%c104, %c0_56] : memref<448x32xf32, #tpu.memory_space<vmem>>, vector<8x32xf32>
    %147 = vector.extract_strided_slice %142 {offsets = [0, 0], sizes = [8, 8], strides = [1, 1]} : vector<8x32xf32> to vector<8x8xf32>
    %148 = vector.extract_strided_slice %143 {offsets = [0, 0], sizes = [8, 8], strides = [1, 1]} : vector<8x32xf32> to vector<8x8xf32>
    %149 = vector.extract_strided_slice %144 {offsets = [0, 0], sizes = [8, 8], strides = [1, 1]} : vector<8x32xf32> to vector<8x8xf32>
    %cst_57 = arith.constant dense<0.000000e+00> : vector<8x8xf32>
    %150 = tpu.matmul %147, %148, %cst_57 {dimension_numbers = #tpu.dot_dimension_numbers<[1], [1], [0], [0], [0, 0, 1, 0], [], []>} : vector<8x8xf32>, vector<8x8xf32>, vector<8x8xf32> -> vector<8x8xf32>
    %cst_58 = arith.constant dense<0xFF800000> : vector<8xf32>
    %151 = vector.multi_reduction <maximumf>, %150, %cst_58 [1] : vector<8x8xf32> to vector<8xf32>
    %152 = vector.shape_cast %151 : vector<8xf32> to vector<8x1xf32>
    %153 = vector.broadcast %152 : vector<8x1xf32> to vector<8x8xf32>
    %154 = arith.subf %150, %153 : vector<8x8xf32>
    %155 = math.exp %154 : vector<8x8xf32>
    %cst_59 = arith.constant dense<0.000000e+00> : vector<8xf32>
    %156 = vector.multi_reduction <add>, %155, %cst_59 [1] : vector<8x8xf32> to vector<8xf32>
    %157 = vector.shape_cast %156 : vector<8xf32> to vector<8x1xf32>
    %158 = vector.broadcast %157 : vector<8x1xf32> to vector<8x8xf32>
    %159 = arith.divf %155, %158 : vector<8x8xf32>
    %cst_60 = arith.constant dense<0.000000e+00> : vector<8x8xf32>
    %160 = tpu.matmul %159, %149, %cst_60 {dimension_numbers = #tpu.dot_dimension_numbers<[1], [0], [0], [1], [0, 0, 1, 1], [], []>} : vector<8x8xf32>, vector<8x8xf32>, vector<8x8xf32> -> vector<8x8xf32>
    %161 = vector.extract_strided_slice %145 {offsets = [0, 0], sizes = [8, 32], strides = [1, 1]} : vector<32x32xf32> to vector<8x32xf32>
    %cst_61 = arith.constant dense<0.000000e+00> : vector<8x32xf32>
    %162 = tpu.matmul %160, %161, %cst_61 {dimension_numbers = #tpu.dot_dimension_numbers<[1], [0], [0], [1], [0, 0, 1, 1], [], []>} : vector<8x8xf32>, vector<8x32xf32>, vector<8x32xf32> -> vector<8x32xf32>
    %163 = arith.addf %146, %162 : vector<8x32xf32>
    %164 = vector.extract_strided_slice %142 {offsets = [0, 8], sizes = [8, 8], strides = [1, 1]} : vector<8x32xf32> to vector<8x8xf32>
    %165 = vector.extract_strided_slice %143 {offsets = [0, 8], sizes = [8, 8], strides = [1, 1]} : vector<8x32xf32> to vector<8x8xf32>
    %166 = vector.extract_strided_slice %144 {offsets = [0, 8], sizes = [8, 8], strides = [1, 1]} : vector<8x32xf32> to vector<8x8xf32>
    %cst_62 = arith.constant dense<0.000000e+00> : vector<8x8xf32>
    %167 = tpu.matmul %164, %165, %cst_62 {dimension_numbers = #tpu.dot_dimension_numbers<[1], [1], [0], [0], [0, 0, 1, 0], [], []>} : vector<8x8xf32>, vector<8x8xf32>, vector<8x8xf32> -> vector<8x8xf32>
    %cst_63 = arith.constant dense<0xFF800000> : vector<8xf32>
    %168 = vector.multi_reduction <maximumf>, %167, %cst_63 [1] : vector<8x8xf32> to vector<8xf32>
    %169 = vector.shape_cast %168 : vector<8xf32> to vector<8x1xf32>
    %170 = vector.broadcast %169 : vector<8x1xf32> to vector<8x8xf32>
    %171 = arith.subf %167, %170 : vector<8x8xf32>
    %172 = math.exp %171 : vector<8x8xf32>
    %cst_64 = arith.constant dense<0.000000e+00> : vector<8xf32>
    %173 = vector.multi_reduction <add>, %172, %cst_64 [1] : vector<8x8xf32> to vector<8xf32>
    %174 = vector.shape_cast %173 : vector<8xf32> to vector<8x1xf32>
    %175 = vector.broadcast %174 : vector<8x1xf32> to vector<8x8xf32>
    %176 = arith.divf %172, %175 : vector<8x8xf32>
    %cst_65 = arith.constant dense<0.000000e+00> : vector<8x8xf32>
    %177 = tpu.matmul %176, %166, %cst_65 {dimension_numbers = #tpu.dot_dimension_numbers<[1], [0], [0], [1], [0, 0, 1, 1], [], []>} : vector<8x8xf32>, vector<8x8xf32>, vector<8x8xf32> -> vector<8x8xf32>
    %178 = vector.extract_strided_slice %145 {offsets = [8, 0], sizes = [8, 32], strides = [1, 1]} : vector<32x32xf32> to vector<8x32xf32>
    %cst_66 = arith.constant dense<0.000000e+00> : vector<8x32xf32>
    %179 = tpu.matmul %177, %178, %cst_66 {dimension_numbers = #tpu.dot_dimension_numbers<[1], [0], [0], [1], [0, 0, 1, 1], [], []>} : vector<8x8xf32>, vector<8x32xf32>, vector<8x32xf32> -> vector<8x32xf32>
    %180 = arith.addf %163, %179 : vector<8x32xf32>
    %181 = vector.extract_strided_slice %142 {offsets = [0, 16], sizes = [8, 8], strides = [1, 1]} : vector<8x32xf32> to vector<8x8xf32>
    %182 = vector.extract_strided_slice %143 {offsets = [0, 16], sizes = [8, 8], strides = [1, 1]} : vector<8x32xf32> to vector<8x8xf32>
    %183 = vector.extract_strided_slice %144 {offsets = [0, 16], sizes = [8, 8], strides = [1, 1]} : vector<8x32xf32> to vector<8x8xf32>
    %cst_67 = arith.constant dense<0.000000e+00> : vector<8x8xf32>
    %184 = tpu.matmul %181, %182, %cst_67 {dimension_numbers = #tpu.dot_dimension_numbers<[1], [1], [0], [0], [0, 0, 1, 0], [], []>} : vector<8x8xf32>, vector<8x8xf32>, vector<8x8xf32> -> vector<8x8xf32>
    %cst_68 = arith.constant dense<0xFF800000> : vector<8xf32>
    %185 = vector.multi_reduction <maximumf>, %184, %cst_68 [1] : vector<8x8xf32> to vector<8xf32>
    %186 = vector.shape_cast %185 : vector<8xf32> to vector<8x1xf32>
    %187 = vector.broadcast %186 : vector<8x1xf32> to vector<8x8xf32>
    %188 = arith.subf %184, %187 : vector<8x8xf32>
    %189 = math.exp %188 : vector<8x8xf32>
    %cst_69 = arith.constant dense<0.000000e+00> : vector<8xf32>
    %190 = vector.multi_reduction <add>, %189, %cst_69 [1] : vector<8x8xf32> to vector<8xf32>
    %191 = vector.shape_cast %190 : vector<8xf32> to vector<8x1xf32>
    %192 = vector.broadcast %191 : vector<8x1xf32> to vector<8x8xf32>
    %193 = arith.divf %189, %192 : vector<8x8xf32>
    %cst_70 = arith.constant dense<0.000000e+00> : vector<8x8xf32>
    %194 = tpu.matmul %193, %183, %cst_70 {dimension_numbers = #tpu.dot_dimension_numbers<[1], [0], [0], [1], [0, 0, 1, 1], [], []>} : vector<8x8xf32>, vector<8x8xf32>, vector<8x8xf32> -> vector<8x8xf32>
    %195 = vector.extract_strided_slice %145 {offsets = [16, 0], sizes = [8, 32], strides = [1, 1]} : vector<32x32xf32> to vector<8x32xf32>
    %cst_71 = arith.constant dense<0.000000e+00> : vector<8x32xf32>
    %196 = tpu.matmul %194, %195, %cst_71 {dimension_numbers = #tpu.dot_dimension_numbers<[1], [0], [0], [1], [0, 0, 1, 1], [], []>} : vector<8x8xf32>, vector<8x32xf32>, vector<8x32xf32> -> vector<8x32xf32>
    %197 = arith.addf %180, %196 : vector<8x32xf32>
    %198 = vector.extract_strided_slice %142 {offsets = [0, 24], sizes = [8, 8], strides = [1, 1]} : vector<8x32xf32> to vector<8x8xf32>
    %199 = vector.extract_strided_slice %143 {offsets = [0, 24], sizes = [8, 8], strides = [1, 1]} : vector<8x32xf32> to vector<8x8xf32>
    %200 = vector.extract_strided_slice %144 {offsets = [0, 24], sizes = [8, 8], strides = [1, 1]} : vector<8x32xf32> to vector<8x8xf32>
    %cst_72 = arith.constant dense<0.000000e+00> : vector<8x8xf32>
    %201 = tpu.matmul %198, %199, %cst_72 {dimension_numbers = #tpu.dot_dimension_numbers<[1], [1], [0], [0], [0, 0, 1, 0], [], []>} : vector<8x8xf32>, vector<8x8xf32>, vector<8x8xf32> -> vector<8x8xf32>
    %cst_73 = arith.constant dense<0xFF800000> : vector<8xf32>
    %202 = vector.multi_reduction <maximumf>, %201, %cst_73 [1] : vector<8x8xf32> to vector<8xf32>
    %203 = vector.shape_cast %202 : vector<8xf32> to vector<8x1xf32>
    %204 = vector.broadcast %203 : vector<8x1xf32> to vector<8x8xf32>
    %205 = arith.subf %201, %204 : vector<8x8xf32>
    %206 = math.exp %205 : vector<8x8xf32>
    %cst_74 = arith.constant dense<0.000000e+00> : vector<8xf32>
    %207 = vector.multi_reduction <add>, %206, %cst_74 [1] : vector<8x8xf32> to vector<8xf32>
    %208 = vector.shape_cast %207 : vector<8xf32> to vector<8x1xf32>
    %209 = vector.broadcast %208 : vector<8x1xf32> to vector<8x8xf32>
    %210 = arith.divf %206, %209 : vector<8x8xf32>
    %cst_75 = arith.constant dense<0.000000e+00> : vector<8x8xf32>
    %211 = tpu.matmul %210, %200, %cst_75 {dimension_numbers = #tpu.dot_dimension_numbers<[1], [0], [0], [1], [0, 0, 1, 1], [], []>} : vector<8x8xf32>, vector<8x8xf32>, vector<8x8xf32> -> vector<8x8xf32>
    %212 = vector.extract_strided_slice %145 {offsets = [24, 0], sizes = [8, 32], strides = [1, 1]} : vector<32x32xf32> to vector<8x32xf32>
    %cst_76 = arith.constant dense<0.000000e+00> : vector<8x32xf32>
    %213 = tpu.matmul %211, %212, %cst_76 {dimension_numbers = #tpu.dot_dimension_numbers<[1], [0], [0], [1], [0, 0, 1, 1], [], []>} : vector<8x8xf32>, vector<8x32xf32>, vector<8x32xf32> -> vector<8x32xf32>
    %214 = arith.addf %197, %213 : vector<8x32xf32>
    %215 = arith.addf %137, %214 : vector<8x32xf32>
    %c392 = arith.constant 392 : index
    %c0_77 = arith.constant 0 : index
    %216 = vector.load %arg2[%c392, %c0_77] : memref<448x32xf32, #tpu.memory_space<vmem>>, vector<8x32xf32>
    %c408 = arith.constant 408 : index
    %c0_78 = arith.constant 0 : index
    %217 = vector.load %arg2[%c408, %c0_78] : memref<448x32xf32, #tpu.memory_space<vmem>>, vector<8x32xf32>
    %cst_79 = arith.constant dense<0.000000e+00> : vector<8xf32>
    %218 = vector.multi_reduction <add>, %215, %cst_79 [1] : vector<8x32xf32> to vector<8xf32>
    %219 = vector.shape_cast %218 : vector<8xf32> to vector<8x1xf32>
    %cst_80 = arith.constant 3.200000e+01 : f32
    %220 = vector.broadcast %cst_80 : f32 to vector<8x1xf32>
    %221 = arith.divf %219, %220 : vector<8x1xf32>
    %222 = vector.broadcast %221 : vector<8x1xf32> to vector<8x32xf32>
    %223 = arith.subf %215, %222 : vector<8x32xf32>
    %224 = arith.mulf %223, %223 : vector<8x32xf32>
    %cst_81 = arith.constant dense<0.000000e+00> : vector<8xf32>
    %225 = vector.multi_reduction <add>, %224, %cst_81 [1] : vector<8x32xf32> to vector<8xf32>
    %226 = vector.shape_cast %225 : vector<8xf32> to vector<8x1xf32>
    %cst_82 = arith.constant 3.200000e+01 : f32
    %227 = vector.broadcast %cst_82 : f32 to vector<8x1xf32>
    %228 = arith.divf %226, %227 : vector<8x1xf32>
    %229 = vector.broadcast %221 : vector<8x1xf32> to vector<8x32xf32>
    %230 = arith.subf %215, %229 : vector<8x32xf32>
    %cst_83 = arith.constant 9.99999974E-6 : f32
    %231 = vector.broadcast %cst_83 : f32 to vector<8x1xf32>
    %232 = arith.addf %228, %231 : vector<8x1xf32>
    %233 = math.rsqrt %232 : vector<8x1xf32>
    %234 = vector.broadcast %233 : vector<8x1xf32> to vector<8x32xf32>
    %235 = arith.mulf %230, %234 : vector<8x32xf32>
    %236 = arith.mulf %235, %216 : vector<8x32xf32>
    %237 = arith.addf %236, %217 : vector<8x32xf32>
    %c32_84 = arith.constant 32 : index
    %c0_85 = arith.constant 0 : index
    %238 = vector.load %arg3[%c32_84, %c0_85] : memref<160x128xf32, #tpu.memory_space<vmem>>, vector<32x128xf32>
    %cst_86 = arith.constant dense<0.000000e+00> : vector<8x128xf32>
    %239 = tpu.matmul %237, %238, %cst_86 {dimension_numbers = #tpu.dot_dimension_numbers<[1], [0], [0], [1], [0, 0, 1, 1], [], []>} : vector<8x32xf32>, vector<32x128xf32>, vector<8x128xf32> -> vector<8x128xf32>
    %c72 = arith.constant 72 : index
    %c0_87 = arith.constant 0 : index
    %240 = vector.load %arg3[%c72, %c0_87] : memref<160x128xf32, #tpu.memory_space<vmem>>, vector<8x128xf32>
    %241 = arith.addf %239, %240 : vector<8x128xf32>
    %cst_88 = arith.constant 0.000000e+00 : f32
    %242 = vector.broadcast %cst_88 : f32 to vector<8x128xf32>
    %243 = arith.maximumf %241, %242 : vector<8x128xf32>
    %c240 = arith.constant 240 : index
    %c0_89 = arith.constant 0 : index
    %244 = vector.load %arg2[%c240, %c0_89] : memref<448x32xf32, #tpu.memory_space<vmem>>, vector<128x32xf32>
    %cst_90 = arith.constant dense<0.000000e+00> : vector<8x32xf32>
    %245 = tpu.matmul %243, %244, %cst_90 {dimension_numbers = #tpu.dot_dimension_numbers<[1], [0], [0], [1], [0, 0, 1, 1], [], []>} : vector<8x128xf32>, vector<128x32xf32>, vector<8x32xf32> -> vector<8x32xf32>
    %c376 = arith.constant 376 : index
    %c0_91 = arith.constant 0 : index
    %246 = vector.load %arg2[%c376, %c0_91] : memref<448x32xf32, #tpu.memory_space<vmem>>, vector<8x32xf32>
    %247 = arith.addf %245, %246 : vector<8x32xf32>
    %248 = arith.addf %237, %247 : vector<8x32xf32>
    %c424 = arith.constant 424 : index
    %c0_92 = arith.constant 0 : index
    %249 = vector.load %arg2[%c424, %c0_92] : memref<448x32xf32, #tpu.memory_space<vmem>>, vector<8x32xf32>
    %c440 = arith.constant 440 : index
    %c0_93 = arith.constant 0 : index
    %250 = vector.load %arg2[%c440, %c0_93] : memref<448x32xf32, #tpu.memory_space<vmem>>, vector<8x32xf32>
    %cst_94 = arith.constant dense<0.000000e+00> : vector<8xf32>
    %251 = vector.multi_reduction <add>, %248, %cst_94 [1] : vector<8x32xf32> to vector<8xf32>
    %252 = vector.shape_cast %251 : vector<8xf32> to vector<8x1xf32>
    %cst_95 = arith.constant 3.200000e+01 : f32
    %253 = vector.broadcast %cst_95 : f32 to vector<8x1xf32>
    %254 = arith.divf %252, %253 : vector<8x1xf32>
    %255 = vector.broadcast %254 : vector<8x1xf32> to vector<8x32xf32>
    %256 = arith.subf %248, %255 : vector<8x32xf32>
    %257 = arith.mulf %256, %256 : vector<8x32xf32>
    %cst_96 = arith.constant dense<0.000000e+00> : vector<8xf32>
    %258 = vector.multi_reduction <add>, %257, %cst_96 [1] : vector<8x32xf32> to vector<8xf32>
    %259 = vector.shape_cast %258 : vector<8xf32> to vector<8x1xf32>
    %cst_97 = arith.constant 3.200000e+01 : f32
    %260 = vector.broadcast %cst_97 : f32 to vector<8x1xf32>
    %261 = arith.divf %259, %260 : vector<8x1xf32>
    %262 = vector.broadcast %254 : vector<8x1xf32> to vector<8x32xf32>
    %263 = arith.subf %248, %262 : vector<8x32xf32>
    %cst_98 = arith.constant 9.99999974E-6 : f32
    %264 = vector.broadcast %cst_98 : f32 to vector<8x1xf32>
    %265 = arith.addf %261, %264 : vector<8x1xf32>
    %266 = math.rsqrt %265 : vector<8x1xf32>
    %267 = vector.broadcast %266 : vector<8x1xf32> to vector<8x32xf32>
    %268 = arith.mulf %263, %267 : vector<8x32xf32>
    %269 = arith.mulf %268, %249 : vector<8x32xf32>
    %270 = arith.addf %269, %250 : vector<8x32xf32>
    %271 = tpu.concatenate %136, %270 in 0 : vector<8x32xf32>, vector<8x32xf32> -> vector<16x32xf32>
    %272 = arith.addf %1, %271 : vector<16x32xf32>
    %cst_99 = arith.constant dense<0.000000e+00> : vector<16x32xf32>
    %273 = tpu.matmul %0, %271, %cst_99 {dimension_numbers = #tpu.dot_dimension_numbers<[1], [0], [0], [1], [0, 0, 1, 1], [], []>} : vector<16x16xf32>, vector<16x32xf32>, vector<16x32xf32> -> vector<16x32xf32>
    %274 = vector.extract_strided_slice %273 {offsets = [0, 0], sizes = [8, 32], strides = [1, 1]} : vector<16x32xf32> to vector<8x32xf32>
    %c80_100 = arith.constant 80 : index
    %c0_101 = arith.constant 0 : index
    %275 = vector.load %arg3[%c80_100, %c0_101] : memref<160x128xf32, #tpu.memory_space<vmem>>, vector<32x128xf32>
    %cst_102 = arith.constant dense<0.000000e+00> : vector<8x128xf32>
    %276 = tpu.matmul %274, %275, %cst_102 {dimension_numbers = #tpu.dot_dimension_numbers<[1], [0], [0], [1], [0, 0, 1, 1], [], []>} : vector<8x32xf32>, vector<32x128xf32>, vector<8x128xf32> -> vector<8x128xf32>
    %c144_103 = arith.constant 144 : index
    %c0_104 = arith.constant 0 : index
    %277 = vector.load %arg3[%c144_103, %c0_104] : memref<160x128xf32, #tpu.memory_space<vmem>>, vector<8x128xf32>
    %278 = arith.addf %276, %277 : vector<8x128xf32>
    %279 = vector.extract_strided_slice %278 {offsets = [0, 0], sizes = [8, 32], strides = [1, 1]} : vector<8x128xf32> to vector<8x32xf32>
    %280 = vector.extract_strided_slice %278 {offsets = [0, 32], sizes = [8, 32], strides = [1, 1]} : vector<8x128xf32> to vector<8x32xf32>
    %281 = vector.extract_strided_slice %278 {offsets = [0, 64], sizes = [8, 32], strides = [1, 1]} : vector<8x128xf32> to vector<8x32xf32>
    %c32_105 = arith.constant 32 : index
    %c0_106 = arith.constant 0 : index
    %282 = vector.load %arg2[%c32_105, %c0_106] : memref<448x32xf32, #tpu.memory_space<vmem>>, vector<32x32xf32>
    %c96_107 = arith.constant 96 : index
    %c0_108 = arith.constant 0 : index
    %283 = vector.load %arg2[%c96_107, %c0_108] : memref<448x32xf32, #tpu.memory_space<vmem>>, vector<8x32xf32>
    %284 = vector.extract_strided_slice %279 {offsets = [0, 0], sizes = [8, 8], strides = [1, 1]} : vector<8x32xf32> to vector<8x8xf32>
    %285 = vector.extract_strided_slice %280 {offsets = [0, 0], sizes = [8, 8], strides = [1, 1]} : vector<8x32xf32> to vector<8x8xf32>
    %286 = vector.extract_strided_slice %281 {offsets = [0, 0], sizes = [8, 8], strides = [1, 1]} : vector<8x32xf32> to vector<8x8xf32>
    %cst_109 = arith.constant dense<0.000000e+00> : vector<8x8xf32>
    %287 = tpu.matmul %284, %285, %cst_109 {dimension_numbers = #tpu.dot_dimension_numbers<[1], [1], [0], [0], [0, 0, 1, 0], [], []>} : vector<8x8xf32>, vector<8x8xf32>, vector<8x8xf32> -> vector<8x8xf32>
    %cst_110 = arith.constant dense<0xFF800000> : vector<8xf32>
    %288 = vector.multi_reduction <maximumf>, %287, %cst_110 [1] : vector<8x8xf32> to vector<8xf32>
    %289 = vector.shape_cast %288 : vector<8xf32> to vector<8x1xf32>
    %290 = vector.broadcast %289 : vector<8x1xf32> to vector<8x8xf32>
    %291 = arith.subf %287, %290 : vector<8x8xf32>
    %292 = math.exp %291 : vector<8x8xf32>
    %cst_111 = arith.constant dense<0.000000e+00> : vector<8xf32>
    %293 = vector.multi_reduction <add>, %292, %cst_111 [1] : vector<8x8xf32> to vector<8xf32>
    %294 = vector.shape_cast %293 : vector<8xf32> to vector<8x1xf32>
    %295 = vector.broadcast %294 : vector<8x1xf32> to vector<8x8xf32>
    %296 = arith.divf %292, %295 : vector<8x8xf32>
    %cst_112 = arith.constant dense<0.000000e+00> : vector<8x8xf32>
    %297 = tpu.matmul %296, %286, %cst_112 {dimension_numbers = #tpu.dot_dimension_numbers<[1], [0], [0], [1], [0, 0, 1, 1], [], []>} : vector<8x8xf32>, vector<8x8xf32>, vector<8x8xf32> -> vector<8x8xf32>
    %298 = vector.extract_strided_slice %282 {offsets = [0, 0], sizes = [8, 32], strides = [1, 1]} : vector<32x32xf32> to vector<8x32xf32>
    %cst_113 = arith.constant dense<0.000000e+00> : vector<8x32xf32>
    %299 = tpu.matmul %297, %298, %cst_113 {dimension_numbers = #tpu.dot_dimension_numbers<[1], [0], [0], [1], [0, 0, 1, 1], [], []>} : vector<8x8xf32>, vector<8x32xf32>, vector<8x32xf32> -> vector<8x32xf32>
    %300 = arith.addf %283, %299 : vector<8x32xf32>
    %301 = vector.extract_strided_slice %279 {offsets = [0, 8], sizes = [8, 8], strides = [1, 1]} : vector<8x32xf32> to vector<8x8xf32>
    %302 = vector.extract_strided_slice %280 {offsets = [0, 8], sizes = [8, 8], strides = [1, 1]} : vector<8x32xf32> to vector<8x8xf32>
    %303 = vector.extract_strided_slice %281 {offsets = [0, 8], sizes = [8, 8], strides = [1, 1]} : vector<8x32xf32> to vector<8x8xf32>
    %cst_114 = arith.constant dense<0.000000e+00> : vector<8x8xf32>
    %304 = tpu.matmul %301, %302, %cst_114 {dimension_numbers = #tpu.dot_dimension_numbers<[1], [1], [0], [0], [0, 0, 1, 0], [], []>} : vector<8x8xf32>, vector<8x8xf32>, vector<8x8xf32> -> vector<8x8xf32>
    %cst_115 = arith.constant dense<0xFF800000> : vector<8xf32>
    %305 = vector.multi_reduction <maximumf>, %304, %cst_115 [1] : vector<8x8xf32> to vector<8xf32>
    %306 = vector.shape_cast %305 : vector<8xf32> to vector<8x1xf32>
    %307 = vector.broadcast %306 : vector<8x1xf32> to vector<8x8xf32>
    %308 = arith.subf %304, %307 : vector<8x8xf32>
    %309 = math.exp %308 : vector<8x8xf32>
    %cst_116 = arith.constant dense<0.000000e+00> : vector<8xf32>
    %310 = vector.multi_reduction <add>, %309, %cst_116 [1] : vector<8x8xf32> to vector<8xf32>
    %311 = vector.shape_cast %310 : vector<8xf32> to vector<8x1xf32>
    %312 = vector.broadcast %311 : vector<8x1xf32> to vector<8x8xf32>
    %313 = arith.divf %309, %312 : vector<8x8xf32>
    %cst_117 = arith.constant dense<0.000000e+00> : vector<8x8xf32>
    %314 = tpu.matmul %313, %303, %cst_117 {dimension_numbers = #tpu.dot_dimension_numbers<[1], [0], [0], [1], [0, 0, 1, 1], [], []>} : vector<8x8xf32>, vector<8x8xf32>, vector<8x8xf32> -> vector<8x8xf32>
    %315 = vector.extract_strided_slice %282 {offsets = [8, 0], sizes = [8, 32], strides = [1, 1]} : vector<32x32xf32> to vector<8x32xf32>
    %cst_118 = arith.constant dense<0.000000e+00> : vector<8x32xf32>
    %316 = tpu.matmul %314, %315, %cst_118 {dimension_numbers = #tpu.dot_dimension_numbers<[1], [0], [0], [1], [0, 0, 1, 1], [], []>} : vector<8x8xf32>, vector<8x32xf32>, vector<8x32xf32> -> vector<8x32xf32>
    %317 = arith.addf %300, %316 : vector<8x32xf32>
    %318 = vector.extract_strided_slice %279 {offsets = [0, 16], sizes = [8, 8], strides = [1, 1]} : vector<8x32xf32> to vector<8x8xf32>
    %319 = vector.extract_strided_slice %280 {offsets = [0, 16], sizes = [8, 8], strides = [1, 1]} : vector<8x32xf32> to vector<8x8xf32>
    %320 = vector.extract_strided_slice %281 {offsets = [0, 16], sizes = [8, 8], strides = [1, 1]} : vector<8x32xf32> to vector<8x8xf32>
    %cst_119 = arith.constant dense<0.000000e+00> : vector<8x8xf32>
    %321 = tpu.matmul %318, %319, %cst_119 {dimension_numbers = #tpu.dot_dimension_numbers<[1], [1], [0], [0], [0, 0, 1, 0], [], []>} : vector<8x8xf32>, vector<8x8xf32>, vector<8x8xf32> -> vector<8x8xf32>
    %cst_120 = arith.constant dense<0xFF800000> : vector<8xf32>
    %322 = vector.multi_reduction <maximumf>, %321, %cst_120 [1] : vector<8x8xf32> to vector<8xf32>
    %323 = vector.shape_cast %322 : vector<8xf32> to vector<8x1xf32>
    %324 = vector.broadcast %323 : vector<8x1xf32> to vector<8x8xf32>
    %325 = arith.subf %321, %324 : vector<8x8xf32>
    %326 = math.exp %325 : vector<8x8xf32>
    %cst_121 = arith.constant dense<0.000000e+00> : vector<8xf32>
    %327 = vector.multi_reduction <add>, %326, %cst_121 [1] : vector<8x8xf32> to vector<8xf32>
    %328 = vector.shape_cast %327 : vector<8xf32> to vector<8x1xf32>
    %329 = vector.broadcast %328 : vector<8x1xf32> to vector<8x8xf32>
    %330 = arith.divf %326, %329 : vector<8x8xf32>
    %cst_122 = arith.constant dense<0.000000e+00> : vector<8x8xf32>
    %331 = tpu.matmul %330, %320, %cst_122 {dimension_numbers = #tpu.dot_dimension_numbers<[1], [0], [0], [1], [0, 0, 1, 1], [], []>} : vector<8x8xf32>, vector<8x8xf32>, vector<8x8xf32> -> vector<8x8xf32>
    %332 = vector.extract_strided_slice %282 {offsets = [16, 0], sizes = [8, 32], strides = [1, 1]} : vector<32x32xf32> to vector<8x32xf32>
    %cst_123 = arith.constant dense<0.000000e+00> : vector<8x32xf32>
    %333 = tpu.matmul %331, %332, %cst_123 {dimension_numbers = #tpu.dot_dimension_numbers<[1], [0], [0], [1], [0, 0, 1, 1], [], []>} : vector<8x8xf32>, vector<8x32xf32>, vector<8x32xf32> -> vector<8x32xf32>
    %334 = arith.addf %317, %333 : vector<8x32xf32>
    %335 = vector.extract_strided_slice %279 {offsets = [0, 24], sizes = [8, 8], strides = [1, 1]} : vector<8x32xf32> to vector<8x8xf32>
    %336 = vector.extract_strided_slice %280 {offsets = [0, 24], sizes = [8, 8], strides = [1, 1]} : vector<8x32xf32> to vector<8x8xf32>
    %337 = vector.extract_strided_slice %281 {offsets = [0, 24], sizes = [8, 8], strides = [1, 1]} : vector<8x32xf32> to vector<8x8xf32>
    %cst_124 = arith.constant dense<0.000000e+00> : vector<8x8xf32>
    %338 = tpu.matmul %335, %336, %cst_124 {dimension_numbers = #tpu.dot_dimension_numbers<[1], [1], [0], [0], [0, 0, 1, 0], [], []>} : vector<8x8xf32>, vector<8x8xf32>, vector<8x8xf32> -> vector<8x8xf32>
    %cst_125 = arith.constant dense<0xFF800000> : vector<8xf32>
    %339 = vector.multi_reduction <maximumf>, %338, %cst_125 [1] : vector<8x8xf32> to vector<8xf32>
    %340 = vector.shape_cast %339 : vector<8xf32> to vector<8x1xf32>
    %341 = vector.broadcast %340 : vector<8x1xf32> to vector<8x8xf32>
    %342 = arith.subf %338, %341 : vector<8x8xf32>
    %343 = math.exp %342 : vector<8x8xf32>
    %cst_126 = arith.constant dense<0.000000e+00> : vector<8xf32>
    %344 = vector.multi_reduction <add>, %343, %cst_126 [1] : vector<8x8xf32> to vector<8xf32>
    %345 = vector.shape_cast %344 : vector<8xf32> to vector<8x1xf32>
    %346 = vector.broadcast %345 : vector<8x1xf32> to vector<8x8xf32>
    %347 = arith.divf %343, %346 : vector<8x8xf32>
    %cst_127 = arith.constant dense<0.000000e+00> : vector<8x8xf32>
    %348 = tpu.matmul %347, %337, %cst_127 {dimension_numbers = #tpu.dot_dimension_numbers<[1], [0], [0], [1], [0, 0, 1, 1], [], []>} : vector<8x8xf32>, vector<8x8xf32>, vector<8x8xf32> -> vector<8x8xf32>
    %349 = vector.extract_strided_slice %282 {offsets = [24, 0], sizes = [8, 32], strides = [1, 1]} : vector<32x32xf32> to vector<8x32xf32>
    %cst_128 = arith.constant dense<0.000000e+00> : vector<8x32xf32>
    %350 = tpu.matmul %348, %349, %cst_128 {dimension_numbers = #tpu.dot_dimension_numbers<[1], [0], [0], [1], [0, 0, 1, 1], [], []>} : vector<8x8xf32>, vector<8x32xf32>, vector<8x32xf32> -> vector<8x32xf32>
    %351 = arith.addf %334, %350 : vector<8x32xf32>
    %352 = arith.addf %274, %351 : vector<8x32xf32>
    %c384_129 = arith.constant 384 : index
    %c0_130 = arith.constant 0 : index
    %353 = vector.load %arg2[%c384_129, %c0_130] : memref<448x32xf32, #tpu.memory_space<vmem>>, vector<8x32xf32>
    %c400_131 = arith.constant 400 : index
    %c0_132 = arith.constant 0 : index
    %354 = vector.load %arg2[%c400_131, %c0_132] : memref<448x32xf32, #tpu.memory_space<vmem>>, vector<8x32xf32>
    %cst_133 = arith.constant dense<0.000000e+00> : vector<8xf32>
    %355 = vector.multi_reduction <add>, %352, %cst_133 [1] : vector<8x32xf32> to vector<8xf32>
    %356 = vector.shape_cast %355 : vector<8xf32> to vector<8x1xf32>
    %cst_134 = arith.constant 3.200000e+01 : f32
    %357 = vector.broadcast %cst_134 : f32 to vector<8x1xf32>
    %358 = arith.divf %356, %357 : vector<8x1xf32>
    %359 = vector.broadcast %358 : vector<8x1xf32> to vector<8x32xf32>
    %360 = arith.subf %352, %359 : vector<8x32xf32>
    %361 = arith.mulf %360, %360 : vector<8x32xf32>
    %cst_135 = arith.constant dense<0.000000e+00> : vector<8xf32>
    %362 = vector.multi_reduction <add>, %361, %cst_135 [1] : vector<8x32xf32> to vector<8xf32>
    %363 = vector.shape_cast %362 : vector<8xf32> to vector<8x1xf32>
    %cst_136 = arith.constant 3.200000e+01 : f32
    %364 = vector.broadcast %cst_136 : f32 to vector<8x1xf32>
    %365 = arith.divf %363, %364 : vector<8x1xf32>
    %366 = vector.broadcast %358 : vector<8x1xf32> to vector<8x32xf32>
    %367 = arith.subf %352, %366 : vector<8x32xf32>
    %cst_137 = arith.constant 9.99999974E-6 : f32
    %368 = vector.broadcast %cst_137 : f32 to vector<8x1xf32>
    %369 = arith.addf %365, %368 : vector<8x1xf32>
    %370 = math.rsqrt %369 : vector<8x1xf32>
    %371 = vector.broadcast %370 : vector<8x1xf32> to vector<8x32xf32>
    %372 = arith.mulf %367, %371 : vector<8x32xf32>
    %373 = arith.mulf %372, %353 : vector<8x32xf32>
    %374 = arith.addf %373, %354 : vector<8x32xf32>
    %c0_138 = arith.constant 0 : index
    %c0_139 = arith.constant 0 : index
    %375 = vector.load %arg3[%c0_138, %c0_139] : memref<160x128xf32, #tpu.memory_space<vmem>>, vector<32x128xf32>
    %cst_140 = arith.constant dense<0.000000e+00> : vector<8x128xf32>
    %376 = tpu.matmul %374, %375, %cst_140 {dimension_numbers = #tpu.dot_dimension_numbers<[1], [0], [0], [1], [0, 0, 1, 1], [], []>} : vector<8x32xf32>, vector<32x128xf32>, vector<8x128xf32> -> vector<8x128xf32>
    %c64_141 = arith.constant 64 : index
    %c0_142 = arith.constant 0 : index
    %377 = vector.load %arg3[%c64_141, %c0_142] : memref<160x128xf32, #tpu.memory_space<vmem>>, vector<8x128xf32>
    %378 = arith.addf %376, %377 : vector<8x128xf32>
    %cst_143 = arith.constant 0.000000e+00 : f32
    %379 = vector.broadcast %cst_143 : f32 to vector<8x128xf32>
    %380 = arith.maximumf %378, %379 : vector<8x128xf32>
    %c112_144 = arith.constant 112 : index
    %c0_145 = arith.constant 0 : index
    %381 = vector.load %arg2[%c112_144, %c0_145] : memref<448x32xf32, #tpu.memory_space<vmem>>, vector<128x32xf32>
    %cst_146 = arith.constant dense<0.000000e+00> : vector<8x32xf32>
    %382 = tpu.matmul %380, %381, %cst_146 {dimension_numbers = #tpu.dot_dimension_numbers<[1], [0], [0], [1], [0, 0, 1, 1], [], []>} : vector<8x128xf32>, vector<128x32xf32>, vector<8x32xf32> -> vector<8x32xf32>
    %c368_147 = arith.constant 368 : index
    %c0_148 = arith.constant 0 : index
    %383 = vector.load %arg2[%c368_147, %c0_148] : memref<448x32xf32, #tpu.memory_space<vmem>>, vector<8x32xf32>
    %384 = arith.addf %382, %383 : vector<8x32xf32>
    %385 = arith.addf %374, %384 : vector<8x32xf32>
    %c416_149 = arith.constant 416 : index
    %c0_150 = arith.constant 0 : index
    %386 = vector.load %arg2[%c416_149, %c0_150] : memref<448x32xf32, #tpu.memory_space<vmem>>, vector<8x32xf32>
    %c432_151 = arith.constant 432 : index
    %c0_152 = arith.constant 0 : index
    %387 = vector.load %arg2[%c432_151, %c0_152] : memref<448x32xf32, #tpu.memory_space<vmem>>, vector<8x32xf32>
    %cst_153 = arith.constant dense<0.000000e+00> : vector<8xf32>
    %388 = vector.multi_reduction <add>, %385, %cst_153 [1] : vector<8x32xf32> to vector<8xf32>
    %389 = vector.shape_cast %388 : vector<8xf32> to vector<8x1xf32>
    %cst_154 = arith.constant 3.200000e+01 : f32
    %390 = vector.broadcast %cst_154 : f32 to vector<8x1xf32>
    %391 = arith.divf %389, %390 : vector<8x1xf32>
    %392 = vector.broadcast %391 : vector<8x1xf32> to vector<8x32xf32>
    %393 = arith.subf %385, %392 : vector<8x32xf32>
    %394 = arith.mulf %393, %393 : vector<8x32xf32>
    %cst_155 = arith.constant dense<0.000000e+00> : vector<8xf32>
    %395 = vector.multi_reduction <add>, %394, %cst_155 [1] : vector<8x32xf32> to vector<8xf32>
    %396 = vector.shape_cast %395 : vector<8xf32> to vector<8x1xf32>
    %cst_156 = arith.constant 3.200000e+01 : f32
    %397 = vector.broadcast %cst_156 : f32 to vector<8x1xf32>
    %398 = arith.divf %396, %397 : vector<8x1xf32>
    %399 = vector.broadcast %391 : vector<8x1xf32> to vector<8x32xf32>
    %400 = arith.subf %385, %399 : vector<8x32xf32>
    %cst_157 = arith.constant 9.99999974E-6 : f32
    %401 = vector.broadcast %cst_157 : f32 to vector<8x1xf32>
    %402 = arith.addf %398, %401 : vector<8x1xf32>
    %403 = math.rsqrt %402 : vector<8x1xf32>
    %404 = vector.broadcast %403 : vector<8x1xf32> to vector<8x32xf32>
    %405 = arith.mulf %400, %404 : vector<8x32xf32>
    %406 = arith.mulf %405, %386 : vector<8x32xf32>
    %407 = arith.addf %406, %387 : vector<8x32xf32>
    %408 = vector.extract_strided_slice %273 {offsets = [8, 0], sizes = [8, 32], strides = [1, 1]} : vector<16x32xf32> to vector<8x32xf32>
    %c112_158 = arith.constant 112 : index
    %c0_159 = arith.constant 0 : index
    %409 = vector.load %arg3[%c112_158, %c0_159] : memref<160x128xf32, #tpu.memory_space<vmem>>, vector<32x128xf32>
    %cst_160 = arith.constant dense<0.000000e+00> : vector<8x128xf32>
    %410 = tpu.matmul %408, %409, %cst_160 {dimension_numbers = #tpu.dot_dimension_numbers<[1], [0], [0], [1], [0, 0, 1, 1], [], []>} : vector<8x32xf32>, vector<32x128xf32>, vector<8x128xf32> -> vector<8x128xf32>
    %c152_161 = arith.constant 152 : index
    %c0_162 = arith.constant 0 : index
    %411 = vector.load %arg3[%c152_161, %c0_162] : memref<160x128xf32, #tpu.memory_space<vmem>>, vector<8x128xf32>
    %412 = arith.addf %410, %411 : vector<8x128xf32>
    %413 = vector.extract_strided_slice %412 {offsets = [0, 0], sizes = [8, 32], strides = [1, 1]} : vector<8x128xf32> to vector<8x32xf32>
    %414 = vector.extract_strided_slice %412 {offsets = [0, 32], sizes = [8, 32], strides = [1, 1]} : vector<8x128xf32> to vector<8x32xf32>
    %415 = vector.extract_strided_slice %412 {offsets = [0, 64], sizes = [8, 32], strides = [1, 1]} : vector<8x128xf32> to vector<8x32xf32>
    %c64_163 = arith.constant 64 : index
    %c0_164 = arith.constant 0 : index
    %416 = vector.load %arg2[%c64_163, %c0_164] : memref<448x32xf32, #tpu.memory_space<vmem>>, vector<32x32xf32>
    %c104_165 = arith.constant 104 : index
    %c0_166 = arith.constant 0 : index
    %417 = vector.load %arg2[%c104_165, %c0_166] : memref<448x32xf32, #tpu.memory_space<vmem>>, vector<8x32xf32>
    %418 = vector.extract_strided_slice %413 {offsets = [0, 0], sizes = [8, 8], strides = [1, 1]} : vector<8x32xf32> to vector<8x8xf32>
    %419 = vector.extract_strided_slice %414 {offsets = [0, 0], sizes = [8, 8], strides = [1, 1]} : vector<8x32xf32> to vector<8x8xf32>
    %420 = vector.extract_strided_slice %415 {offsets = [0, 0], sizes = [8, 8], strides = [1, 1]} : vector<8x32xf32> to vector<8x8xf32>
    %cst_167 = arith.constant dense<0.000000e+00> : vector<8x8xf32>
    %421 = tpu.matmul %418, %419, %cst_167 {dimension_numbers = #tpu.dot_dimension_numbers<[1], [1], [0], [0], [0, 0, 1, 0], [], []>} : vector<8x8xf32>, vector<8x8xf32>, vector<8x8xf32> -> vector<8x8xf32>
    %cst_168 = arith.constant dense<0xFF800000> : vector<8xf32>
    %422 = vector.multi_reduction <maximumf>, %421, %cst_168 [1] : vector<8x8xf32> to vector<8xf32>
    %423 = vector.shape_cast %422 : vector<8xf32> to vector<8x1xf32>
    %424 = vector.broadcast %423 : vector<8x1xf32> to vector<8x8xf32>
    %425 = arith.subf %421, %424 : vector<8x8xf32>
    %426 = math.exp %425 : vector<8x8xf32>
    %cst_169 = arith.constant dense<0.000000e+00> : vector<8xf32>
    %427 = vector.multi_reduction <add>, %426, %cst_169 [1] : vector<8x8xf32> to vector<8xf32>
    %428 = vector.shape_cast %427 : vector<8xf32> to vector<8x1xf32>
    %429 = vector.broadcast %428 : vector<8x1xf32> to vector<8x8xf32>
    %430 = arith.divf %426, %429 : vector<8x8xf32>
    %cst_170 = arith.constant dense<0.000000e+00> : vector<8x8xf32>
    %431 = tpu.matmul %430, %420, %cst_170 {dimension_numbers = #tpu.dot_dimension_numbers<[1], [0], [0], [1], [0, 0, 1, 1], [], []>} : vector<8x8xf32>, vector<8x8xf32>, vector<8x8xf32> -> vector<8x8xf32>
    %432 = vector.extract_strided_slice %416 {offsets = [0, 0], sizes = [8, 32], strides = [1, 1]} : vector<32x32xf32> to vector<8x32xf32>
    %cst_171 = arith.constant dense<0.000000e+00> : vector<8x32xf32>
    %433 = tpu.matmul %431, %432, %cst_171 {dimension_numbers = #tpu.dot_dimension_numbers<[1], [0], [0], [1], [0, 0, 1, 1], [], []>} : vector<8x8xf32>, vector<8x32xf32>, vector<8x32xf32> -> vector<8x32xf32>
    %434 = arith.addf %417, %433 : vector<8x32xf32>
    %435 = vector.extract_strided_slice %413 {offsets = [0, 8], sizes = [8, 8], strides = [1, 1]} : vector<8x32xf32> to vector<8x8xf32>
    %436 = vector.extract_strided_slice %414 {offsets = [0, 8], sizes = [8, 8], strides = [1, 1]} : vector<8x32xf32> to vector<8x8xf32>
    %437 = vector.extract_strided_slice %415 {offsets = [0, 8], sizes = [8, 8], strides = [1, 1]} : vector<8x32xf32> to vector<8x8xf32>
    %cst_172 = arith.constant dense<0.000000e+00> : vector<8x8xf32>
    %438 = tpu.matmul %435, %436, %cst_172 {dimension_numbers = #tpu.dot_dimension_numbers<[1], [1], [0], [0], [0, 0, 1, 0], [], []>} : vector<8x8xf32>, vector<8x8xf32>, vector<8x8xf32> -> vector<8x8xf32>
    %cst_173 = arith.constant dense<0xFF800000> : vector<8xf32>
    %439 = vector.multi_reduction <maximumf>, %438, %cst_173 [1] : vector<8x8xf32> to vector<8xf32>
    %440 = vector.shape_cast %439 : vector<8xf32> to vector<8x1xf32>
    %441 = vector.broadcast %440 : vector<8x1xf32> to vector<8x8xf32>
    %442 = arith.subf %438, %441 : vector<8x8xf32>
    %443 = math.exp %442 : vector<8x8xf32>
    %cst_174 = arith.constant dense<0.000000e+00> : vector<8xf32>
    %444 = vector.multi_reduction <add>, %443, %cst_174 [1] : vector<8x8xf32> to vector<8xf32>
    %445 = vector.shape_cast %444 : vector<8xf32> to vector<8x1xf32>
    %446 = vector.broadcast %445 : vector<8x1xf32> to vector<8x8xf32>
    %447 = arith.divf %443, %446 : vector<8x8xf32>
    %cst_175 = arith.constant dense<0.000000e+00> : vector<8x8xf32>
    %448 = tpu.matmul %447, %437, %cst_175 {dimension_numbers = #tpu.dot_dimension_numbers<[1], [0], [0], [1], [0, 0, 1, 1], [], []>} : vector<8x8xf32>, vector<8x8xf32>, vector<8x8xf32> -> vector<8x8xf32>
    %449 = vector.extract_strided_slice %416 {offsets = [8, 0], sizes = [8, 32], strides = [1, 1]} : vector<32x32xf32> to vector<8x32xf32>
    %cst_176 = arith.constant dense<0.000000e+00> : vector<8x32xf32>
    %450 = tpu.matmul %448, %449, %cst_176 {dimension_numbers = #tpu.dot_dimension_numbers<[1], [0], [0], [1], [0, 0, 1, 1], [], []>} : vector<8x8xf32>, vector<8x32xf32>, vector<8x32xf32> -> vector<8x32xf32>
    %451 = arith.addf %434, %450 : vector<8x32xf32>
    %452 = vector.extract_strided_slice %413 {offsets = [0, 16], sizes = [8, 8], strides = [1, 1]} : vector<8x32xf32> to vector<8x8xf32>
    %453 = vector.extract_strided_slice %414 {offsets = [0, 16], sizes = [8, 8], strides = [1, 1]} : vector<8x32xf32> to vector<8x8xf32>
    %454 = vector.extract_strided_slice %415 {offsets = [0, 16], sizes = [8, 8], strides = [1, 1]} : vector<8x32xf32> to vector<8x8xf32>
    %cst_177 = arith.constant dense<0.000000e+00> : vector<8x8xf32>
    %455 = tpu.matmul %452, %453, %cst_177 {dimension_numbers = #tpu.dot_dimension_numbers<[1], [1], [0], [0], [0, 0, 1, 0], [], []>} : vector<8x8xf32>, vector<8x8xf32>, vector<8x8xf32> -> vector<8x8xf32>
    %cst_178 = arith.constant dense<0xFF800000> : vector<8xf32>
    %456 = vector.multi_reduction <maximumf>, %455, %cst_178 [1] : vector<8x8xf32> to vector<8xf32>
    %457 = vector.shape_cast %456 : vector<8xf32> to vector<8x1xf32>
    %458 = vector.broadcast %457 : vector<8x1xf32> to vector<8x8xf32>
    %459 = arith.subf %455, %458 : vector<8x8xf32>
    %460 = math.exp %459 : vector<8x8xf32>
    %cst_179 = arith.constant dense<0.000000e+00> : vector<8xf32>
    %461 = vector.multi_reduction <add>, %460, %cst_179 [1] : vector<8x8xf32> to vector<8xf32>
    %462 = vector.shape_cast %461 : vector<8xf32> to vector<8x1xf32>
    %463 = vector.broadcast %462 : vector<8x1xf32> to vector<8x8xf32>
    %464 = arith.divf %460, %463 : vector<8x8xf32>
    %cst_180 = arith.constant dense<0.000000e+00> : vector<8x8xf32>
    %465 = tpu.matmul %464, %454, %cst_180 {dimension_numbers = #tpu.dot_dimension_numbers<[1], [0], [0], [1], [0, 0, 1, 1], [], []>} : vector<8x8xf32>, vector<8x8xf32>, vector<8x8xf32> -> vector<8x8xf32>
    %466 = vector.extract_strided_slice %416 {offsets = [16, 0], sizes = [8, 32], strides = [1, 1]} : vector<32x32xf32> to vector<8x32xf32>
    %cst_181 = arith.constant dense<0.000000e+00> : vector<8x32xf32>
    %467 = tpu.matmul %465, %466, %cst_181 {dimension_numbers = #tpu.dot_dimension_numbers<[1], [0], [0], [1], [0, 0, 1, 1], [], []>} : vector<8x8xf32>, vector<8x32xf32>, vector<8x32xf32> -> vector<8x32xf32>
    %468 = arith.addf %451, %467 : vector<8x32xf32>
    %469 = vector.extract_strided_slice %413 {offsets = [0, 24], sizes = [8, 8], strides = [1, 1]} : vector<8x32xf32> to vector<8x8xf32>
    %470 = vector.extract_strided_slice %414 {offsets = [0, 24], sizes = [8, 8], strides = [1, 1]} : vector<8x32xf32> to vector<8x8xf32>
    %471 = vector.extract_strided_slice %415 {offsets = [0, 24], sizes = [8, 8], strides = [1, 1]} : vector<8x32xf32> to vector<8x8xf32>
    %cst_182 = arith.constant dense<0.000000e+00> : vector<8x8xf32>
    %472 = tpu.matmul %469, %470, %cst_182 {dimension_numbers = #tpu.dot_dimension_numbers<[1], [1], [0], [0], [0, 0, 1, 0], [], []>} : vector<8x8xf32>, vector<8x8xf32>, vector<8x8xf32> -> vector<8x8xf32>
    %cst_183 = arith.constant dense<0xFF800000> : vector<8xf32>
    %473 = vector.multi_reduction <maximumf>, %472, %cst_183 [1] : vector<8x8xf32> to vector<8xf32>
    %474 = vector.shape_cast %473 : vector<8xf32> to vector<8x1xf32>
    %475 = vector.broadcast %474 : vector<8x1xf32> to vector<8x8xf32>
    %476 = arith.subf %472, %475 : vector<8x8xf32>
    %477 = math.exp %476 : vector<8x8xf32>
    %cst_184 = arith.constant dense<0.000000e+00> : vector<8xf32>
    %478 = vector.multi_reduction <add>, %477, %cst_184 [1] : vector<8x8xf32> to vector<8xf32>
    %479 = vector.shape_cast %478 : vector<8xf32> to vector<8x1xf32>
    %480 = vector.broadcast %479 : vector<8x1xf32> to vector<8x8xf32>
    %481 = arith.divf %477, %480 : vector<8x8xf32>
    %cst_185 = arith.constant dense<0.000000e+00> : vector<8x8xf32>
    %482 = tpu.matmul %481, %471, %cst_185 {dimension_numbers = #tpu.dot_dimension_numbers<[1], [0], [0], [1], [0, 0, 1, 1], [], []>} : vector<8x8xf32>, vector<8x8xf32>, vector<8x8xf32> -> vector<8x8xf32>
    %483 = vector.extract_strided_slice %416 {offsets = [24, 0], sizes = [8, 32], strides = [1, 1]} : vector<32x32xf32> to vector<8x32xf32>
    %cst_186 = arith.constant dense<0.000000e+00> : vector<8x32xf32>
    %484 = tpu.matmul %482, %483, %cst_186 {dimension_numbers = #tpu.dot_dimension_numbers<[1], [0], [0], [1], [0, 0, 1, 1], [], []>} : vector<8x8xf32>, vector<8x32xf32>, vector<8x32xf32> -> vector<8x32xf32>
    %485 = arith.addf %468, %484 : vector<8x32xf32>
    %486 = arith.addf %408, %485 : vector<8x32xf32>
    %c392_187 = arith.constant 392 : index
    %c0_188 = arith.constant 0 : index
    %487 = vector.load %arg2[%c392_187, %c0_188] : memref<448x32xf32, #tpu.memory_space<vmem>>, vector<8x32xf32>
    %c408_189 = arith.constant 408 : index
    %c0_190 = arith.constant 0 : index
    %488 = vector.load %arg2[%c408_189, %c0_190] : memref<448x32xf32, #tpu.memory_space<vmem>>, vector<8x32xf32>
    %cst_191 = arith.constant dense<0.000000e+00> : vector<8xf32>
    %489 = vector.multi_reduction <add>, %486, %cst_191 [1] : vector<8x32xf32> to vector<8xf32>
    %490 = vector.shape_cast %489 : vector<8xf32> to vector<8x1xf32>
    %cst_192 = arith.constant 3.200000e+01 : f32
    %491 = vector.broadcast %cst_192 : f32 to vector<8x1xf32>
    %492 = arith.divf %490, %491 : vector<8x1xf32>
    %493 = vector.broadcast %492 : vector<8x1xf32> to vector<8x32xf32>
    %494 = arith.subf %486, %493 : vector<8x32xf32>
    %495 = arith.mulf %494, %494 : vector<8x32xf32>
    %cst_193 = arith.constant dense<0.000000e+00> : vector<8xf32>
    %496 = vector.multi_reduction <add>, %495, %cst_193 [1] : vector<8x32xf32> to vector<8xf32>
    %497 = vector.shape_cast %496 : vector<8xf32> to vector<8x1xf32>
    %cst_194 = arith.constant 3.200000e+01 : f32
    %498 = vector.broadcast %cst_194 : f32 to vector<8x1xf32>
    %499 = arith.divf %497, %498 : vector<8x1xf32>
    %500 = vector.broadcast %492 : vector<8x1xf32> to vector<8x32xf32>
    %501 = arith.subf %486, %500 : vector<8x32xf32>
    %cst_195 = arith.constant 9.99999974E-6 : f32
    %502 = vector.broadcast %cst_195 : f32 to vector<8x1xf32>
    %503 = arith.addf %499, %502 : vector<8x1xf32>
    %504 = math.rsqrt %503 : vector<8x1xf32>
    %505 = vector.broadcast %504 : vector<8x1xf32> to vector<8x32xf32>
    %506 = arith.mulf %501, %505 : vector<8x32xf32>
    %507 = arith.mulf %506, %487 : vector<8x32xf32>
    %508 = arith.addf %507, %488 : vector<8x32xf32>
    %c32_196 = arith.constant 32 : index
    %c0_197 = arith.constant 0 : index
    %509 = vector.load %arg3[%c32_196, %c0_197] : memref<160x128xf32, #tpu.memory_space<vmem>>, vector<32x128xf32>
    %cst_198 = arith.constant dense<0.000000e+00> : vector<8x128xf32>
    %510 = tpu.matmul %508, %509, %cst_198 {dimension_numbers = #tpu.dot_dimension_numbers<[1], [0], [0], [1], [0, 0, 1, 1], [], []>} : vector<8x32xf32>, vector<32x128xf32>, vector<8x128xf32> -> vector<8x128xf32>
    %c72_199 = arith.constant 72 : index
    %c0_200 = arith.constant 0 : index
    %511 = vector.load %arg3[%c72_199, %c0_200] : memref<160x128xf32, #tpu.memory_space<vmem>>, vector<8x128xf32>
    %512 = arith.addf %510, %511 : vector<8x128xf32>
    %cst_201 = arith.constant 0.000000e+00 : f32
    %513 = vector.broadcast %cst_201 : f32 to vector<8x128xf32>
    %514 = arith.maximumf %512, %513 : vector<8x128xf32>
    %c240_202 = arith.constant 240 : index
    %c0_203 = arith.constant 0 : index
    %515 = vector.load %arg2[%c240_202, %c0_203] : memref<448x32xf32, #tpu.memory_space<vmem>>, vector<128x32xf32>
    %cst_204 = arith.constant dense<0.000000e+00> : vector<8x32xf32>
    %516 = tpu.matmul %514, %515, %cst_204 {dimension_numbers = #tpu.dot_dimension_numbers<[1], [0], [0], [1], [0, 0, 1, 1], [], []>} : vector<8x128xf32>, vector<128x32xf32>, vector<8x32xf32> -> vector<8x32xf32>
    %c376_205 = arith.constant 376 : index
    %c0_206 = arith.constant 0 : index
    %517 = vector.load %arg2[%c376_205, %c0_206] : memref<448x32xf32, #tpu.memory_space<vmem>>, vector<8x32xf32>
    %518 = arith.addf %516, %517 : vector<8x32xf32>
    %519 = arith.addf %508, %518 : vector<8x32xf32>
    %c424_207 = arith.constant 424 : index
    %c0_208 = arith.constant 0 : index
    %520 = vector.load %arg2[%c424_207, %c0_208] : memref<448x32xf32, #tpu.memory_space<vmem>>, vector<8x32xf32>
    %c440_209 = arith.constant 440 : index
    %c0_210 = arith.constant 0 : index
    %521 = vector.load %arg2[%c440_209, %c0_210] : memref<448x32xf32, #tpu.memory_space<vmem>>, vector<8x32xf32>
    %cst_211 = arith.constant dense<0.000000e+00> : vector<8xf32>
    %522 = vector.multi_reduction <add>, %519, %cst_211 [1] : vector<8x32xf32> to vector<8xf32>
    %523 = vector.shape_cast %522 : vector<8xf32> to vector<8x1xf32>
    %cst_212 = arith.constant 3.200000e+01 : f32
    %524 = vector.broadcast %cst_212 : f32 to vector<8x1xf32>
    %525 = arith.divf %523, %524 : vector<8x1xf32>
    %526 = vector.broadcast %525 : vector<8x1xf32> to vector<8x32xf32>
    %527 = arith.subf %519, %526 : vector<8x32xf32>
    %528 = arith.mulf %527, %527 : vector<8x32xf32>
    %cst_213 = arith.constant dense<0.000000e+00> : vector<8xf32>
    %529 = vector.multi_reduction <add>, %528, %cst_213 [1] : vector<8x32xf32> to vector<8xf32>
    %530 = vector.shape_cast %529 : vector<8xf32> to vector<8x1xf32>
    %cst_214 = arith.constant 3.200000e+01 : f32
    %531 = vector.broadcast %cst_214 : f32 to vector<8x1xf32>
    %532 = arith.divf %530, %531 : vector<8x1xf32>
    %533 = vector.broadcast %525 : vector<8x1xf32> to vector<8x32xf32>
    %534 = arith.subf %519, %533 : vector<8x32xf32>
    %cst_215 = arith.constant 9.99999974E-6 : f32
    %535 = vector.broadcast %cst_215 : f32 to vector<8x1xf32>
    %536 = arith.addf %532, %535 : vector<8x1xf32>
    %537 = math.rsqrt %536 : vector<8x1xf32>
    %538 = vector.broadcast %537 : vector<8x1xf32> to vector<8x32xf32>
    %539 = arith.mulf %534, %538 : vector<8x32xf32>
    %540 = arith.mulf %539, %520 : vector<8x32xf32>
    %541 = arith.addf %540, %521 : vector<8x32xf32>
    %542 = tpu.concatenate %407, %541 in 0 : vector<8x32xf32>, vector<8x32xf32> -> vector<16x32xf32>
    %543 = arith.addf %272, %542 : vector<16x32xf32>
    %c16 = arith.constant 16 : index
    %c0_216 = arith.constant 0 : index
    %544 = vector.load %arg2[%c16, %c0_216] : memref<448x32xf32, #tpu.memory_space<vmem>>, vector<8x32xf32>
    %c24 = arith.constant 24 : index
    %c0_217 = arith.constant 0 : index
    %545 = vector.load %arg2[%c24, %c0_217] : memref<448x32xf32, #tpu.memory_space<vmem>>, vector<8x32xf32>
    %546 = vector.extract_strided_slice %543 {offsets = [0, 0], sizes = [8, 32], strides = [1, 1]} : vector<16x32xf32> to vector<8x32xf32>
    %cst_218 = arith.constant dense<0.000000e+00> : vector<8x8xf32>
    %547 = tpu.matmul %546, %544, %cst_218 {dimension_numbers = #tpu.dot_dimension_numbers<[1], [1], [0], [0], [0, 0, 1, 0], [], []>} : vector<8x32xf32>, vector<8x32xf32>, vector<8x8xf32> -> vector<8x8xf32>
    %548 = vector.extract_strided_slice %543 {offsets = [8, 0], sizes = [8, 32], strides = [1, 1]} : vector<16x32xf32> to vector<8x32xf32>
    %cst_219 = arith.constant dense<0.000000e+00> : vector<8x8xf32>
    %549 = tpu.matmul %548, %545, %cst_219 {dimension_numbers = #tpu.dot_dimension_numbers<[1], [1], [0], [0], [0, 0, 1, 0], [], []>} : vector<8x32xf32>, vector<8x32xf32>, vector<8x8xf32> -> vector<8x8xf32>
    %c0_220 = arith.constant 0 : index
    %c0_221 = arith.constant 0 : index
    %550 = vector.load %arg4[%c0_220, %c0_221] : memref<32x32xf32, #tpu.memory_space<vmem>>, vector<16x32xf32>
    tpu.vector_store %arg4[%c0_220, %c0_221], %543 {strides = array<i32>} : memref<32x32xf32, #tpu.memory_space<vmem>>, vector<16x32xf32>,
    %cst_222 = arith.constant dense<0.000000e+00> : vector<8x32xf32>
    %551 = tpu.matmul %547, %544, %cst_222 {dimension_numbers = #tpu.dot_dimension_numbers<[1], [0], [0], [1], [0, 0, 1, 1], [], []>} : vector<8x8xf32>, vector<8x32xf32>, vector<8x32xf32> -> vector<8x32xf32>
    %c16_223 = arith.constant 16 : index
    %c0_224 = arith.constant 0 : index
    %552 = vector.load %arg4[%c16_223, %c0_224] : memref<32x32xf32, #tpu.memory_space<vmem>>, vector<8x32xf32>
    tpu.vector_store %arg4[%c16_223, %c0_224], %551 {strides = array<i32>} : memref<32x32xf32, #tpu.memory_space<vmem>>, vector<8x32xf32>,
    %cst_225 = arith.constant dense<0.000000e+00> : vector<8x32xf32>
    %553 = tpu.matmul %549, %545, %cst_225 {dimension_numbers = #tpu.dot_dimension_numbers<[1], [0], [0], [1], [0, 0, 1, 1], [], []>} : vector<8x8xf32>, vector<8x32xf32>, vector<8x32xf32> -> vector<8x32xf32>
    %c24_226 = arith.constant 24 : index
    %c0_227 = arith.constant 0 : index
    %554 = vector.load %arg4[%c24_226, %c0_227] : memref<32x32xf32, #tpu.memory_space<vmem>>, vector<8x32xf32>
    tpu.vector_store %arg4[%c24_226, %c0_227], %553 {strides = array<i32>} : memref<32x32xf32, #tpu.memory_space<vmem>>, vector<8x32xf32>,
    return
  }
  func.func @transform_0(%arg0: i32) -> (i32, i32) {
    %c0_i32 = arith.constant 0 : i32
    %c0_i32_0 = arith.constant 0 : i32
    %c0_i32_1 = arith.constant 0 : i32
    return %c0_i32, %c0_i32_0 : i32, i32
  }
  func.func @transform_1(%arg0: i32) -> (i32, i32) {
    %c0_i32 = arith.constant 0 : i32
    %c0_i32_0 = arith.constant 0 : i32
    %c0_i32_1 = arith.constant 0 : i32
    return %c0_i32, %c0_i32_0 : i32, i32
  }
  func.func @transform_2(%arg0: i32) -> (i32, i32) {
    %c0_i32 = arith.constant 0 : i32
    %c0_i32_0 = arith.constant 0 : i32
    %c0_i32_1 = arith.constant 0 : i32
    return %c0_i32, %c0_i32_0 : i32, i32
  }
  func.func @transform_3(%arg0: i32) -> (i32, i32) {
    %c0_i32 = arith.constant 0 : i32
    %c0_i32_0 = arith.constant 0 : i32
    %c0_i32_1 = arith.constant 0 : i32
    return %c0_i32, %c0_i32_0 : i32, i32
  }
}

</mosaic_0001>

<llo_original>
// kernel: model_forward.1
$region0: #{model_forward.1}
  #allocation0 [shape = 'u32[]', space=smem, size = 0x4, offset = 0x4, fixed_abs, tag = 'smem constant byte address 0x4 - core index']
  #allocation1 [shape = 'u32[144,128]{1,0:T(1,128)}', space=vmem, size = 0x12000, scoped, tag = 'internal scratch']
  %s0 = inlined_call_operand.vmem [shape: f32[16,16], index: 0, kind: input, shape index: {}]
  %s1 = inlined_call_operand.vmem [shape: f32[448,32], index: 1, kind: input, shape index: {}]
  %s2 = inlined_call_operand.vmem [shape: f32[160,128], index: 2, kind: input, shape index: {}]
  %s3 = inlined_call_operand.vmem [shape: f32[32,32], index: 3, kind: output, shape index: {}]
  %s4 = sld [smem:[#allocation0]]
  $region22: #{model_forward.1} parent=0
    _
  %s6 = ssub.s32 1, %s4
  %s7 = scalar_select 0, %s6, %s4
  // Predicated region
  $region2: #{model_forward.1} parent=0 // pred_check
    _
  $region3: #{model_forward.1} parent=0 // pred_check_branch
    %9 = sbr.rel (0) target = $region5
  $region4: #{model_forward.1} parent=0 // pred_region
    _
  $region5: #{model_forward.1} parent=0 // pred_fallthru
    _
  // Predicated region
  $region6: #{model_forward.1} parent=0 // pred_check
    _
  $region7: #{model_forward.1} parent=0 // pred_check_branch
    %11 = sbr.rel (0) target = $region9
  $region8: #{model_forward.1} parent=0 // pred_region
    _
  $region9: #{model_forward.1} parent=0 // pred_fallthru
    _
  // Predicated region
  $region10: #{model_forward.1} parent=0 // pred_check
    _
  $region11: #{model_forward.1} parent=0 // pred_check_branch
    %13 = sbr.rel (0) target = $region13
  $region12: #{model_forward.1} parent=0 // pred_region
    _
  $region13: #{model_forward.1} parent=0 // pred_fallthru
    _
  %v14 = vld [vmem:[%s0] sm:$0xff]
  %v15 = vld [vmem:[%s0 + $0x8] sm:$0xff]
  %v16 = vld [vmem:[%s1] sm:$0xff]
  %v17 = vld [vmem:[%s1 + $0x8] sm:$0xff]
  %vm18 = vcmask 130048
  %v20 = vsel %vm18, %v14, 0
  %v23 = vsel %vm18, %v15, 0
  %25 = vmatprep.subr.mxu0 0.0
  %26 = vmatpush1.msra.mxu0 0.0
  %27 = vmatprep.subr.mxu0 0.0
  %28 = vmatpush1.msra.mxu0 0.0
  %29 = vmatprep.subr.mxu0 0.0
  %30 = vmatpush1.msra.mxu0 0.0
  %31 = vmatprep.subr.mxu0 0.0
  %32 = vmatpush1.msra.mxu0 0.0
  %33 = vmatprep.subr.mxu0 0.0
  %34 = vmatpush1.msra.mxu0 0.0
  %35 = vmatprep.subr.mxu0 0.0
  %36 = vmatpush1.msra.mxu0 0.0
  %37 = vmatprep.subr.mxu0 0.0
  %38 = vmatpush1.msra.mxu0 0.0
  %39 = vmatprep.subr.mxu0 0.0
  %40 = vmatpush1.msra.mxu0 0.0
  %41 = vmatprep.subr.mxu0 0.0
  %42 = vmatpush1.msra.mxu0 0.0
  %43 = vmatprep.subr.mxu0 0.0
  %44 = vmatpush1.msra.mxu0 0.0
  %45 = vmatprep.subr.mxu0 0.0
  %46 = vmatpush1.msra.mxu0 0.0
  %47 = vmatprep.subr.mxu0 0.0
  %48 = vmatpush1.msra.mxu0 0.0
  %49 = vmatprep.subr.mxu0 0.0
  %50 = vmatpush1.msra.mxu0 0.0
  %51 = vmatprep.subr.mxu0 0.0
  %52 = vmatpush1.msra.mxu0 0.0
  %53 = vmatprep.subr.mxu0 0.0
  %54 = vmatpush1.msra.mxu0 %v17
  %55 = vmatprep.subr.mxu0 0.0
  %56 = vmatpush1.msra.mxu0 %v16
  %57 = vmatprep.subr.mxu0 0.0
  %58 = vmatpush2.msra.mxu0 0.0
  %59 = vmatprep.subr.mxu0 0.0
  %60 = vmatpush2.msra.mxu0 0.0
  %61 = vmatprep.subr.mxu0 0.0
  %62 = vmatpush2.msra.mxu0 0.0
  %63 = vmatprep.subr.mxu0 0.0
  %64 = vmatpush2.msra.mxu0 0.0
  %65 = vmatprep.subr.mxu0 0.0
  %66 = vmatpush2.msra.mxu0 0.0
  %67 = vmatprep.subr.mxu0 0.0
  %68 = vmatpush2.msra.mxu0 0.0
  %69 = vmatprep.subr.mxu0 0.0
  %70 = vmatpush2.msra.mxu0 0.0
  %71 = vmatprep.subr.mxu0 0.0
  %72 = vmatpush2.msra.mxu0 0.0
  %73 = vmatprep.subr.mxu0 0.0
  %74 = vmatpush2.msra.mxu0 0.0
  %75 = vmatprep.subr.mxu0 0.0
  %76 = vmatpush2.msra.mxu0 0.0
  %77 = vmatprep.subr.mxu0 0.0
  %78 = vmatpush2.msra.mxu0 0.0
  %79 = vmatprep.subr.mxu0 0.0
  %80 = vmatpush2.msra.mxu0 0.0
  %81 = vmatprep.subr.mxu0 0.0
  %82 = vmatpush2.msra.mxu0 0.0
  %83 = vmatprep.subr.mxu0 0.0
  %84 = vmatpush2.msra.mxu0 0.0
  %85 = vmatprep.subr.mxu0 0.0
  %86 = vmatpush2.msra.mxu0 0.0
  %87 = vmatprep.subr.mxu0 0.0
  %88 = vmatpush2.msra.mxu0 0.0
  %89 = vmatprep.mubr.f32.mxu0 0.0
  %90 = vmatmul.mubr.f32.gmra.mxu0 %v20
  %v91 = vpop.f32.mrf.mxu0
  %v92 = vadd.f32 0.0, %v91
  %v93 = vpop.f32.mrf.mxu0
  %94 = vmatprep.mubr.f32.mxu0 0.0
  %95 = vmatmul.mubr.f32.gmra.mxu0 %v23
  %v96 = vpop.f32.mrf.mxu0
  %v97 = vadd.f32 0.0, %v96
  %v98 = vpop.f32.mrf.mxu0
  %99 = vdwg.mxu0
  %v100 = vld [vmem:[%s2 + $0x50] sm:$0xff]
  %v101 = vld [vmem:[%s2 + $0x58] sm:$0xff]
  %v102 = vld [vmem:[%s2 + $0x60] sm:$0xff]
  %v103 = vld [vmem:[%s2 + $0x68] sm:$0xff]
  %v104 = vld [vmem:[%s2 + $0x90] sm:$0xff]
  %vm105 = vcmask 261120
  %v107 = vsel %vm105, %v92, 0
  %109 = vmatprep.subr.mxu0 0.0
  %110 = vmatpush1.msra.mxu0 0.0
  %111 = vmatprep.subr.mxu0 0.0
  %112 = vmatpush1.msra.mxu0 0.0
  %113 = vmatprep.subr.mxu0 0.0
  %114 = vmatpush1.msra.mxu0 0.0
  %115 = vmatprep.subr.mxu0 0.0
  %116 = vmatpush1.msra.mxu0 0.0
  %117 = vmatprep.subr.mxu0 0.0
  %118 = vmatpush1.msra.mxu0 0.0
  %119 = vmatprep.subr.mxu0 0.0
  %120 = vmatpush1.msra.mxu0 0.0
  %121 = vmatprep.subr.mxu0 0.0
  %122 = vmatpush1.msra.mxu0 0.0
  %123 = vmatprep.subr.mxu0 0.0
  %124 = vmatpush1.msra.mxu0 0.0
  %125 = vmatprep.subr.mxu0 0.0
  %126 = vmatpush1.msra.mxu0 0.0
  %127 = vmatprep.subr.mxu0 0.0
  %128 = vmatpush1.msra.mxu0 0.0
  %129 = vmatprep.subr.mxu0 0.0
  %130 = vmatpush1.msra.mxu0 0.0
  %131 = vmatprep.subr.mxu0 0.0
  %132 = vmatpush1.msra.mxu0 0.0
  %133 = vmatprep.subr.mxu0 0.0
  %134 = vmatpush1.msra.mxu0 %v103
  %135 = vmatprep.subr.mxu0 0.0
  %136 = vmatpush1.msra.mxu0 %v102
  %137 = vmatprep.subr.mxu0 0.0
  %138 = vmatpush1.msra.mxu0 %v101
  %139 = vmatprep.subr.mxu0 0.0
  %140 = vmatpush1.msra.mxu0 %v100
  %141 = vmatprep.subr.mxu0 0.0
  %142 = vmatpush2.msra.mxu0 0.0
  %143 = vmatprep.subr.mxu0 0.0
  %144 = vmatpush2.msra.mxu0 0.0
  %145 = vmatprep.subr.mxu0 0.0
  %146 = vmatpush2.msra.mxu0 0.0
  %147 = vmatprep.subr.mxu0 0.0
  %148 = vmatpush2.msra.mxu0 0.0
  %149 = vmatprep.subr.mxu0 0.0
  %150 = vmatpush2.msra.mxu0 0.0
  %151 = vmatprep.subr.mxu0 0.0
  %152 = vmatpush2.msra.mxu0 0.0
  %153 = vmatprep.subr.mxu0 0.0
  %154 = vmatpush2.msra.mxu0 0.0
  %155 = vmatprep.subr.mxu0 0.0
  %156 = vmatpush2.msra.mxu0 0.0
  %157 = vmatprep.subr.mxu0 0.0
  %158 = vmatpush2.msra.mxu0 0.0
  %159 = vmatprep.subr.mxu0 0.0
  %160 = vmatpush2.msra.mxu0 0.0
  %161 = vmatprep.subr.mxu0 0.0
  %162 = vmatpush2.msra.mxu0 0.0
  %163 = vmatprep.subr.mxu0 0.0
  %164 = vmatpush2.msra.mxu0 0.0
  %165 = vmatprep.subr.mxu0 0.0
  %166 = vmatpush2.msra.mxu0 0.0
  %167 = vmatprep.subr.mxu0 0.0
  %168 = vmatpush2.msra.mxu0 0.0
  %169 = vmatprep.subr.mxu0 0.0
  %170 = vmatpush2.msra.mxu0 0.0
  %171 = vmatprep.subr.mxu0 0.0
  %172 = vmatpush2.msra.mxu0 0.0
  %173 = vmatprep.mubr.f32.mxu0 0.0
  %174 = vmatmul.mubr.f32.gmra.mxu0 %v107
  %v175 = vpop.f32.mrf.mxu0
  %v176 = vadd.f32 %v104, %v175
  %v177 = vpop.f32.mrf.mxu0
  %178 = vdwg.mxu0
  %v179 = vld [vmem:[%s1 + $0x20] sm:$0xff]
  %v180 = vld [vmem:[%s1 + $0x28] sm:$0xff]
  %v181 = vld [vmem:[%s1 + $0x30] sm:$0xff]
  %v182 = vld [vmem:[%s1 + $0x38] sm:$0xff]
  %v183 = vld [vmem:[%s1 + $0x60] sm:$0xff]
  %185 = vrot.lane.b32.xlu0 %v176, 96
  %v186 = vpop.permute.xlu0 %185
  %vm187 = vcmask 64512
  %v188 = vsel %vm187, %v176, 0
  %v190 = vsel %vm187, %v186, 0
  %192 = vmatprep.subr.mxu0 0.0
  %193 = vmatpush1.xpose.msra.mxu0 0.0
  %194 = vmatprep.subr.mxu0 0.0
  %195 = vmatpush1.xpose.msra.mxu0 0.0
  %196 = vmatprep.subr.mxu0 0.0
  %197 = vmatpush1.xpose.msra.mxu0 0.0
  %198 = vmatprep.subr.mxu0 0.0
  %199 = vmatpush1.xpose.msra.mxu0 0.0
  %200 = vmatprep.subr.mxu0 0.0
  %201 = vmatpush1.xpose.msra.mxu0 0.0
  %202 = vmatprep.subr.mxu0 0.0
  %203 = vmatpush1.xpose.msra.mxu0 0.0
  %204 = vmatprep.subr.mxu0 0.0
  %205 = vmatpush1.xpose.msra.mxu0 0.0
  %206 = vmatprep.subr.mxu0 0.0
  %207 = vmatpush1.xpose.msra.mxu0 0.0
  %208 = vmatprep.subr.mxu0 0.0
  %209 = vmatpush1.xpose.msra.mxu0 0.0
  %210 = vmatprep.subr.mxu0 0.0
  %211 = vmatpush1.xpose.msra.mxu0 0.0
  %212 = vmatprep.subr.mxu0 0.0
  %213 = vmatpush1.xpose.msra.mxu0 0.0
  %214 = vmatprep.subr.mxu0 0.0
  %215 = vmatpush1.xpose.msra.mxu0 0.0
  %216 = vmatprep.subr.mxu0 0.0
  %217 = vmatpush1.xpose.msra.mxu0 0.0
  %218 = vmatprep.subr.mxu0 0.0
  %219 = vmatpush1.xpose.msra.mxu0 0.0
  %220 = vmatprep.subr.mxu0 0.0
  %221 = vmatpush1.xpose.msra.mxu0 0.0
  %222 = vmatprep.subr.mxu0 0.0
  %223 = vmatpush1.xpose.msra.mxu0 %v190
  %224 = vmatprep.subr.mxu0 0.0
  %225 = vmatpush2.xpose.msra.mxu0 0.0
  %226 = vmatprep.subr.mxu0 0.0
  %227 = vmatpush2.xpose.msra.mxu0 0.0
  %228 = vmatprep.subr.mxu0 0.0
  %229 = vmatpush2.xpose.msra.mxu0 0.0
  %230 = vmatprep.subr.mxu0 0.0
  %231 = vmatpush2.xpose.msra.mxu0 0.0
  %232 = vmatprep.subr.mxu0 0.0
  %233 = vmatpush2.xpose.msra.mxu0 0.0
  %234 = vmatprep.subr.mxu0 0.0
  %235 = vmatpush2.xpose.msra.mxu0 0.0
  %236 = vmatprep.subr.mxu0 0.0
  %237 = vmatpush2.xpose.msra.mxu0 0.0
  %238 = vmatprep.subr.mxu0 0.0
  %239 = vmatpush2.xpose.msra.mxu0 0.0
  %240 = vmatprep.subr.mxu0 0.0
  %241 = vmatpush2.xpose.msra.mxu0 0.0
  %242 = vmatprep.subr.mxu0 0.0
  %243 = vmatpush2.xpose.msra.mxu0 0.0
  %244 = vmatprep.subr.mxu0 0.0
  %245 = vmatpush2.xpose.msra.mxu0 0.0
  %246 = vmatprep.subr.mxu0 0.0
  %247 = vmatpush2.xpose.msra.mxu0 0.0
  %248 = vmatprep.subr.mxu0 0.0
  %249 = vmatpush2.xpose.msra.mxu0 0.0
  %250 = vmatprep.subr.mxu0 0.0
  %251 = vmatpush2.xpose.msra.mxu0 0.0
  %252 = vmatprep.subr.mxu0 0.0
  %253 = vmatpush2.xpose.msra.mxu0 0.0
  %254 = vmatprep.subr.mxu0 0.0
  %255 = vmatpush2.xpose.msra.mxu0 0.0
  %256 = vmatprep.mubr.f32.mxu0 0.0
  %257 = vmatmul.mubr.f32.gmra.mxu0 %v188
  %v258 = vpop.f32.mrf.mxu0
  %v259 = vadd.f32 0.0, %v258
  %v260 = vpop.f32.mrf.mxu0
  %261 = vdwg.mxu0
  %v262 = vsel %vm187, %v259, -inf
  %263 = vmax.xlane.f32.xlu0 %v262
  %v264 = vpop.xlane.xlu0 %263
  %v265 = vsub.f32 %v259, %v264
  %v266 = vmul.f32 %v265, 1.442695
  %v267 = vpow.pop %v266
  %v268 = vsel %vm187, %v267, 0.0
  %269 = vadd.xlane.f32.xlu0 %v268
  %v270 = vpop.xlane.xlu0 %269
  %v271 = vrcp.pop %v270
  %v272 = vmul.f32 %v267, %v271
  %273 = vrot.lane.b32.xlu0 %v176, 64
  %v274 = vpop.permute.xlu0 %273
  %v277 = vsel %vm187, %v272, 0
  %279 = vmatprep.subr.mxu0 0.0
  %280 = vmatpush1.msra.mxu0 0.0
  %281 = vmatprep.subr.mxu0 0.0
  %282 = vmatpush1.msra.mxu0 0.0
  %283 = vmatprep.subr.mxu0 0.0
  %284 = vmatpush1.msra.mxu0 0.0
  %285 = vmatprep.subr.mxu0 0.0
  %286 = vmatpush1.msra.mxu0 0.0
  %287 = vmatprep.subr.mxu0 0.0
  %288 = vmatpush1.msra.mxu0 0.0
  %289 = vmatprep.subr.mxu0 0.0
  %290 = vmatpush1.msra.mxu0 0.0
  %291 = vmatprep.subr.mxu0 0.0
  %292 = vmatpush1.msra.mxu0 0.0
  %293 = vmatprep.subr.mxu0 0.0
  %294 = vmatpush1.msra.mxu0 0.0
  %295 = vmatprep.subr.mxu0 0.0
  %296 = vmatpush1.msra.mxu0 0.0
  %297 = vmatprep.subr.mxu0 0.0
  %298 = vmatpush1.msra.mxu0 0.0
  %299 = vmatprep.subr.mxu0 0.0
  %300 = vmatpush1.msra.mxu0 0.0
  %301 = vmatprep.subr.mxu0 0.0
  %302 = vmatpush1.msra.mxu0 0.0
  %303 = vmatprep.subr.mxu0 0.0
  %304 = vmatpush1.msra.mxu0 0.0
  %305 = vmatprep.subr.mxu0 0.0
  %306 = vmatpush1.msra.mxu0 0.0
  %307 = vmatprep.subr.mxu0 0.0
  %308 = vmatpush1.msra.mxu0 0.0
  %309 = vmatprep.subr.mxu0 0.0
  %310 = vmatpush1.msra.mxu0 %v274
  %311 = vmatprep.subr.mxu0 0.0
  %312 = vmatpush2.msra.mxu0 0.0
  %313 = vmatprep.subr.mxu0 0.0
  %314 = vmatpush2.msra.mxu0 0.0
  %315 = vmatprep.subr.mxu0 0.0
  %316 = vmatpush2.msra.mxu0 0.0
  %317 = vmatprep.subr.mxu0 0.0
  %318 = vmatpush2.msra.mxu0 0.0
  %319 = vmatprep.subr.mxu0 0.0
  %320 = vmatpush2.msra.mxu0 0.0
  %321 = vmatprep.subr.mxu0 0.0
  %322 = vmatpush2.msra.mxu0 0.0
  %323 = vmatprep.subr.mxu0 0.0
  %324 = vmatpush2.msra.mxu0 0.0
  %325 = vmatprep.subr.mxu0 0.0
  %326 = vmatpush2.msra.mxu0 0.0
  %327 = vmatprep.subr.mxu0 0.0
  %328 = vmatpush2.msra.mxu0 0.0
  %329 = vmatprep.subr.mxu0 0.0
  %330 = vmatpush2.msra.mxu0 0.0
  %331 = vmatprep.subr.mxu0 0.0
  %332 = vmatpush2.msra.mxu0 0.0
  %333 = vmatprep.subr.mxu0 0.0
  %334 = vmatpush2.msra.mxu0 0.0
  %335 = vmatprep.subr.mxu0 0.0
  %336 = vmatpush2.msra.mxu0 0.0
  %337 = vmatprep.subr.mxu0 0.0
  %338 = vmatpush2.msra.mxu0 0.0
  %339 = vmatprep.subr.mxu0 0.0
  %340 = vmatpush2.msra.mxu0 0.0
  %341 = vmatprep.subr.mxu0 0.0
  %342 = vmatpush2.msra.mxu0 0.0
  %343 = vmatprep.mubr.f32.mxu0 0.0
  %344 = vmatmul.mubr.f32.gmra.mxu0 %v277
  %v345 = vpop.f32.mrf.mxu0
  %v346 = vadd.f32 0.0, %v345
  %v347 = vpop.f32.mrf.mxu0
  %348 = vdwg.mxu0
  %v350 = vsel %vm187, %v346, 0
  %352 = vmatprep.subr.mxu0 0.0
  %353 = vmatpush1.msra.mxu0 0.0
  %354 = vmatprep.subr.mxu0 0.0
  %355 = vmatpush1.msra.mxu0 0.0
  %356 = vmatprep.subr.mxu0 0.0
  %357 = vmatpush1.msra.mxu0 0.0
  %358 = vmatprep.subr.mxu0 0.0
  %359 = vmatpush1.msra.mxu0 0.0
  %360 = vmatprep.subr.mxu0 0.0
  %361 = vmatpush1.msra.mxu0 0.0
  %362 = vmatprep.subr.mxu0 0.0
  %363 = vmatpush1.msra.mxu0 0.0
  %364 = vmatprep.subr.mxu0 0.0
  %365 = vmatpush1.msra.mxu0 0.0
  %366 = vmatprep.subr.mxu0 0.0
  %367 = vmatpush1.msra.mxu0 0.0
  %368 = vmatprep.subr.mxu0 0.0
  %369 = vmatpush1.msra.mxu0 0.0
  %370 = vmatprep.subr.mxu0 0.0
  %371 = vmatpush1.msra.mxu0 0.0
  %372 = vmatprep.subr.mxu0 0.0
  %373 = vmatpush1.msra.mxu0 0.0
  %374 = vmatprep.subr.mxu0 0.0
  %375 = vmatpush1.msra.mxu0 0.0
  %376 = vmatprep.subr.mxu0 0.0
  %377 = vmatpush1.msra.mxu0 0.0
  %378 = vmatprep.subr.mxu0 0.0
  %379 = vmatpush1.msra.mxu0 0.0
  %380 = vmatprep.subr.mxu0 0.0
  %381 = vmatpush1.msra.mxu0 0.0
  %382 = vmatprep.subr.mxu0 0.0
  %383 = vmatpush1.msra.mxu0 %v179
  %384 = vmatprep.subr.mxu0 0.0
  %385 = vmatpush2.msra.mxu0 0.0
  %386 = vmatprep.subr.mxu0 0.0
  %387 = vmatpush2.msra.mxu0 0.0
  %388 = vmatprep.subr.mxu0 0.0
  %389 = vmatpush2.msra.mxu0 0.0
  %390 = vmatprep.subr.mxu0 0.0
  %391 = vmatpush2.msra.mxu0 0.0
  %392 = vmatprep.subr.mxu0 0.0
  %393 = vmatpush2.msra.mxu0 0.0
  %394 = vmatprep.subr.mxu0 0.0
  %395 = vmatpush2.msra.mxu0 0.0
  %396 = vmatprep.subr.mxu0 0.0
  %397 = vmatpush2.msra.mxu0 0.0
  %398 = vmatprep.subr.mxu0 0.0
  %399 = vmatpush2.msra.mxu0 0.0
  %400 = vmatprep.subr.mxu0 0.0
  %401 = vmatpush2.msra.mxu0 0.0
  %402 = vmatprep.subr.mxu0 0.0
  %403 = vmatpush2.msra.mxu0 0.0
  %404 = vmatprep.subr.mxu0 0.0
  %405 = vmatpush2.msra.mxu0 0.0
  %406 = vmatprep.subr.mxu0 0.0
  %407 = vmatpush2.msra.mxu0 0.0
  %408 = vmatprep.subr.mxu0 0.0
  %409 = vmatpush2.msra.mxu0 0.0
  %410 = vmatprep.subr.mxu0 0.0
  %411 = vmatpush2.msra.mxu0 0.0
  %412 = vmatprep.subr.mxu0 0.0
  %413 = vmatpush2.msra.mxu0 0.0
  %414 = vmatprep.subr.mxu0 0.0
  %415 = vmatpush2.msra.mxu0 0.0
  %416 = vmatprep.mubr.f32.mxu0 0.0
  %417 = vmatmul.mubr.f32.gmra.mxu0 %v350
  %v418 = vpop.f32.mrf.mxu0
  %v419 = vadd.f32 0.0, %v418
  %v420 = vpop.f32.mrf.mxu0
  %421 = vdwg.mxu0
  %v422 = vadd.f32 %v183, %v419
  %423 = vrot.lane.b32.xlu0 %v176, 120
  %v424 = vpop.permute.xlu0 %423
  %425 = vrot.lane.b32.xlu0 %v176, 88
  %v426 = vpop.permute.xlu0 %425
  %v427 = vsel %vm187, %v424, 0
  %v429 = vsel %vm187, %v426, 0
  %431 = vmatprep.subr.mxu0 0.0
  %432 = vmatpush1.xpose.msra.mxu0 0.0
  %433 = vmatprep.subr.mxu0 0.0
  %434 = vmatpush1.xpose.msra.mxu0 0.0
  %435 = vmatprep.subr.mxu0 0.0
  %436 = vmatpush1.xpose.msra.mxu0 0.0
  %437 = vmatprep.subr.mxu0 0.0
  %438 = vmatpush1.xpose.msra.mxu0 0.0
  %439 = vmatprep.subr.mxu0 0.0
  %440 = vmatpush1.xpose.msra.mxu0 0.0
  %441 = vmatprep.subr.mxu0 0.0
  %442 = vmatpush1.xpose.msra.mxu0 0.0
  %443 = vmatprep.subr.mxu0 0.0
  %444 = vmatpush1.xpose.msra.mxu0 0.0
  %445 = vmatprep.subr.mxu0 0.0
  %446 = vmatpush1.xpose.msra.mxu0 0.0
  %447 = vmatprep.subr.mxu0 0.0
  %448 = vmatpush1.xpose.msra.mxu0 0.0
  %449 = vmatprep.subr.mxu0 0.0
  %450 = vmatpush1.xpose.msra.mxu0 0.0
  %451 = vmatprep.subr.mxu0 0.0
  %452 = vmatpush1.xpose.msra.mxu0 0.0
  %453 = vmatprep.subr.mxu0 0.0
  %454 = vmatpush1.xpose.msra.mxu0 0.0
  %455 = vmatprep.subr.mxu0 0.0
  %456 = vmatpush1.xpose.msra.mxu0 0.0
  %457 = vmatprep.subr.mxu0 0.0
  %458 = vmatpush1.xpose.msra.mxu0 0.0
  %459 = vmatprep.subr.mxu0 0.0
  %460 = vmatpush1.xpose.msra.mxu0 0.0
  %461 = vmatprep.subr.mxu0 0.0
  %462 = vmatpush1.xpose.msra.mxu0 %v429
  %463 = vmatprep.subr.mxu0 0.0
  %464 = vmatpush2.xpose.msra.mxu0 0.0
  %465 = vmatprep.subr.mxu0 0.0
  %466 = vmatpush2.xpose.msra.mxu0 0.0
  %467 = vmatprep.subr.mxu0 0.0
  %468 = vmatpush2.xpose.msra.mxu0 0.0
  %469 = vmatprep.subr.mxu0 0.0
  %470 = vmatpush2.xpose.msra.mxu0 0.0
  %471 = vmatprep.subr.mxu0 0.0
  %472 = vmatpush2.xpose.msra.mxu0 0.0
  %473 = vmatprep.subr.mxu0 0.0
  %474 = vmatpush2.xpose.msra.mxu0 0.0
  %475 = vmatprep.subr.mxu0 0.0
  %476 = vmatpush2.xpose.msra.mxu0 0.0
  %477 = vmatprep.subr.mxu0 0.0
  %478 = vmatpush2.xpose.msra.mxu0 0.0
  %479 = vmatprep.subr.mxu0 0.0
  %480 = vmatpush2.xpose.msra.mxu0 0.0
  %481 = vmatprep.subr.mxu0 0.0
  %482 = vmatpush2.xpose.msra.mxu0 0.0
  %483 = vmatprep.subr.mxu0 0.0
  %484 = vmatpush2.xpose.msra.mxu0 0.0
  %485 = vmatprep.subr.mxu0 0.0
  %486 = vmatpush2.xpose.msra.mxu0 0.0
  %487 = vmatprep.subr.mxu0 0.0
  %488 = vmatpush2.xpose.msra.mxu0 0.0
  %489 = vmatprep.subr.mxu0 0.0
  %490 = vmatpush2.xpose.msra.mxu0 0.0
  %491 = vmatprep.subr.mxu0 0.0
  %492 = vmatpush2.xpose.msra.mxu0 0.0
  %493 = vmatprep.subr.mxu0 0.0
  %494 = vmatpush2.xpose.msra.mxu0 0.0
  %495 = vmatprep.mubr.f32.mxu0 0.0
  %496 = vmatmul.mubr.f32.gmra.mxu0 %v427
  %v497 = vpop.f32.mrf.mxu0
  %v498 = vadd.f32 0.0, %v497
  %v499 = vpop.f32.mrf.mxu0
  %500 = vdwg.mxu0
  %v501 = vsel %vm187, %v498, -inf
  %502 = vmax.xlane.f32.xlu0 %v501
  %v503 = vpop.xlane.xlu0 %502
  %v504 = vsub.f32 %v498, %v503
  %v505 = vmul.f32 %v504, 1.442695
  %v506 = vpow.pop %v505
  %v507 = vsel %vm187, %v506, 0.0
  %508 = vadd.xlane.f32.xlu0 %v507
  %v509 = vpop.xlane.xlu0 %508
  %v510 = vrcp.pop %v509
  %v511 = vmul.f32 %v506, %v510
  %512 = vrot.lane.b32.xlu0 %v176, 56
  %v513 = vpop.permute.xlu0 %512
  %v516 = vsel %vm187, %v511, 0
  %518 = vmatprep.subr.mxu0 0.0
  %519 = vmatpush1.msra.mxu0 0.0
  %520 = vmatprep.subr.mxu0 0.0
  %521 = vmatpush1.msra.mxu0 0.0
  %522 = vmatprep.subr.mxu0 0.0
  %523 = vmatpush1.msra.mxu0 0.0
  %524 = vmatprep.subr.mxu0 0.0
  %525 = vmatpush1.msra.mxu0 0.0
  %526 = vmatprep.subr.mxu0 0.0
  %527 = vmatpush1.msra.mxu0 0.0
  %528 = vmatprep.subr.mxu0 0.0
  %529 = vmatpush1.msra.mxu0 0.0
  %530 = vmatprep.subr.mxu0 0.0
  %531 = vmatpush1.msra.mxu0 0.0
  %532 = vmatprep.subr.mxu0 0.0
  %533 = vmatpush1.msra.mxu0 0.0
  %534 = vmatprep.subr.mxu0 0.0
  %535 = vmatpush1.msra.mxu0 0.0
  %536 = vmatprep.subr.mxu0 0.0
  %537 = vmatpush1.msra.mxu0 0.0
  %538 = vmatprep.subr.mxu0 0.0
  %539 = vmatpush1.msra.mxu0 0.0
  %540 = vmatprep.subr.mxu0 0.0
  %541 = vmatpush1.msra.mxu0 0.0
  %542 = vmatprep.subr.mxu0 0.0
  %543 = vmatpush1.msra.mxu0 0.0
  %544 = vmatprep.subr.mxu0 0.0
  %545 = vmatpush1.msra.mxu0 0.0
  %546 = vmatprep.subr.mxu0 0.0
  %547 = vmatpush1.msra.mxu0 0.0
  %548 = vmatprep.subr.mxu0 0.0
  %549 = vmatpush1.msra.mxu0 %v513
  %550 = vmatprep.subr.mxu0 0.0
  %551 = vmatpush2.msra.mxu0 0.0
  %552 = vmatprep.subr.mxu0 0.0
  %553 = vmatpush2.msra.mxu0 0.0
  %554 = vmatprep.subr.mxu0 0.0
  %555 = vmatpush2.msra.mxu0 0.0
  %556 = vmatprep.subr.mxu0 0.0
  %557 = vmatpush2.msra.mxu0 0.0
  %558 = vmatprep.subr.mxu0 0.0
  %559 = vmatpush2.msra.mxu0 0.0
  %560 = vmatprep.subr.mxu0 0.0
  %561 = vmatpush2.msra.mxu0 0.0
  %562 = vmatprep.subr.mxu0 0.0
  %563 = vmatpush2.msra.mxu0 0.0
  %564 = vmatprep.subr.mxu0 0.0
  %565 = vmatpush2.msra.mxu0 0.0
  %566 = vmatprep.subr.mxu0 0.0
  %567 = vmatpush2.msra.mxu0 0.0
  %568 = vmatprep.subr.mxu0 0.0
  %569 = vmatpush2.msra.mxu0 0.0
  %570 = vmatprep.subr.mxu0 0.0
  %571 = vmatpush2.msra.mxu0 0.0
  %572 = vmatprep.subr.mxu0 0.0
  %573 = vmatpush2.msra.mxu0 0.0
  %574 = vmatprep.subr.mxu0 0.0
  %575 = vmatpush2.msra.mxu0 0.0
  %576 = vmatprep.subr.mxu0 0.0
  %577 = vmatpush2.msra.mxu0 0.0
  %578 = vmatprep.subr.mxu0 0.0
  %579 = vmatpush2.msra.mxu0 0.0
  %580 = vmatprep.subr.mxu0 0.0
  %581 = vmatpush2.msra.mxu0 0.0
  %582 = vmatprep.mubr.f32.mxu0 0.0
  %583 = vmatmul.mubr.f32.gmra.mxu0 %v516
  %v584 = vpop.f32.mrf.mxu0
  %v585 = vadd.f32 0.0, %v584
  %v586 = vpop.f32.mrf.mxu0
  %587 = vdwg.mxu0
  %v589 = vsel %vm187, %v585, 0
  %591 = vmatprep.subr.mxu0 0.0
  %592 = vmatpush1.msra.mxu0 0.0
  %593 = vmatprep.subr.mxu0 0.0
  %594 = vmatpush1.msra.mxu0 0.0
  %595 = vmatprep.subr.mxu0 0.0
  %596 = vmatpush1.msra.mxu0 0.0
  %597 = vmatprep.subr.mxu0 0.0
  %598 = vmatpush1.msra.mxu0 0.0
  %599 = vmatprep.subr.mxu0 0.0
  %600 = vmatpush1.msra.mxu0 0.0
  %601 = vmatprep.subr.mxu0 0.0
  %602 = vmatpush1.msra.mxu0 0.0
  %603 = vmatprep.subr.mxu0 0.0
  %604 = vmatpush1.msra.mxu0 0.0
  %605 = vmatprep.subr.mxu0 0.0
  %606 = vmatpush1.msra.mxu0 0.0
  %607 = vmatprep.subr.mxu0 0.0
  %608 = vmatpush1.msra.mxu0 0.0
  %609 = vmatprep.subr.mxu0 0.0
  %610 = vmatpush1.msra.mxu0 0.0
  %611 = vmatprep.subr.mxu0 0.0
  %612 = vmatpush1.msra.mxu0 0.0
  %613 = vmatprep.subr.mxu0 0.0
  %614 = vmatpush1.msra.mxu0 0.0
  %615 = vmatprep.subr.mxu0 0.0
  %616 = vmatpush1.msra.mxu0 0.0
  %617 = vmatprep.subr.mxu0 0.0
  %618 = vmatpush1.msra.mxu0 0.0
  %619 = vmatprep.subr.mxu0 0.0
  %620 = vmatpush1.msra.mxu0 0.0
  %621 = vmatprep.subr.mxu0 0.0
  %622 = vmatpush1.msra.mxu0 %v180
  %623 = vmatprep.subr.mxu0 0.0
  %624 = vmatpush2.msra.mxu0 0.0
  %625 = vmatprep.subr.mxu0 0.0
  %626 = vmatpush2.msra.mxu0 0.0
  %627 = vmatprep.subr.mxu0 0.0
  %628 = vmatpush2.msra.mxu0 0.0
  %629 = vmatprep.subr.mxu0 0.0
  %630 = vmatpush2.msra.mxu0 0.0
  %631 = vmatprep.subr.mxu0 0.0
  %632 = vmatpush2.msra.mxu0 0.0
  %633 = vmatprep.subr.mxu0 0.0
  %634 = vmatpush2.msra.mxu0 0.0
  %635 = vmatprep.subr.mxu0 0.0
  %636 = vmatpush2.msra.mxu0 0.0
  %637 = vmatprep.subr.mxu0 0.0
  %638 = vmatpush2.msra.mxu0 0.0
  %639 = vmatprep.subr.mxu0 0.0
  %640 = vmatpush2.msra.mxu0 0.0
  %641 = vmatprep.subr.mxu0 0.0
  %642 = vmatpush2.msra.mxu0 0.0
  %643 = vmatprep.subr.mxu0 0.0
  %644 = vmatpush2.msra.mxu0 0.0
  %645 = vmatprep.subr.mxu0 0.0
  %646 = vmatpush2.msra.mxu0 0.0
  %647 = vmatprep.subr.mxu0 0.0
  %648 = vmatpush2.msra.mxu0 0.0
  %649 = vmatprep.subr.mxu0 0.0
  %650 = vmatpush2.msra.mxu0 0.0
  %651 = vmatprep.subr.mxu0 0.0
  %652 = vmatpush2.msra.mxu0 0.0
  %653 = vmatprep.subr.mxu0 0.0
  %654 = vmatpush2.msra.mxu0 0.0
  %655 = vmatprep.mubr.f32.mxu0 0.0
  %656 = vmatmul.mubr.f32.gmra.mxu0 %v589
  %v657 = vpop.f32.mrf.mxu0
  %v658 = vadd.f32 0.0, %v657
  %v659 = vpop.f32.mrf.mxu0
  %660 = vdwg.mxu0
  %v661 = vadd.f32 %v422, %v658
  %662 = vrot.lane.b32.xlu0 %v176, 112
  %v663 = vpop.permute.xlu0 %662
  %664 = vrot.lane.b32.xlu0 %v176, 80
  %v665 = vpop.permute.xlu0 %664
  %v666 = vsel %vm187, %v663, 0
  %v668 = vsel %vm187, %v665, 0
  %670 = vmatprep.subr.mxu0 0.0
  %671 = vmatpush1.xpose.msra.mxu0 0.0
  %672 = vmatprep.subr.mxu0 0.0
  %673 = vmatpush1.xpose.msra.mxu0 0.0
  %674 = vmatprep.subr.mxu0 0.0
  %675 = vmatpush1.xpose.msra.mxu0 0.0
  %676 = vmatprep.subr.mxu0 0.0
  %677 = vmatpush1.xpose.msra.mxu0 0.0
  %678 = vmatprep.subr.mxu0 0.0
  %679 = vmatpush1.xpose.msra.mxu0 0.0
  %680 = vmatprep.subr.mxu0 0.0
  %681 = vmatpush1.xpose.msra.mxu0 0.0
  %682 = vmatprep.subr.mxu0 0.0
  %683 = vmatpush1.xpose.msra.mxu0 0.0
  %684 = vmatprep.subr.mxu0 0.0
  %685 = vmatpush1.xpose.msra.mxu0 0.0
  %686 = vmatprep.subr.mxu0 0.0
  %687 = vmatpush1.xpose.msra.mxu0 0.0
  %688 = vmatprep.subr.mxu0 0.0
  %689 = vmatpush1.xpose.msra.mxu0 0.0
  %690 = vmatprep.subr.mxu0 0.0
  %691 = vmatpush1.xpose.msra.mxu0 0.0
  %692 = vmatprep.subr.mxu0 0.0
  %693 = vmatpush1.xpose.msra.mxu0 0.0
  %694 = vmatprep.subr.mxu0 0.0
  %695 = vmatpush1.xpose.msra.mxu0 0.0
  %696 = vmatprep.subr.mxu0 0.0
  %697 = vmatpush1.xpose.msra.mxu0 0.0
  %698 = vmatprep.subr.mxu0 0.0
  %699 = vmatpush1.xpose.msra.mxu0 0.0
  %700 = vmatprep.subr.mxu0 0.0
  %701 = vmatpush1.xpose.msra.mxu0 %v668
  %702 = vmatprep.subr.mxu0 0.0
  %703 = vmatpush2.xpose.msra.mxu0 0.0
  %704 = vmatprep.subr.mxu0 0.0
  %705 = vmatpush2.xpose.msra.mxu0 0.0
  %706 = vmatprep.subr.mxu0 0.0
  %707 = vmatpush2.xpose.msra.mxu0 0.0
  %708 = vmatprep.subr.mxu0 0.0
  %709 = vmatpush2.xpose.msra.mxu0 0.0
  %710 = vmatprep.subr.mxu0 0.0
  %711 = vmatpush2.xpose.msra.mxu0 0.0
  %712 = vmatprep.subr.mxu0 0.0
  %713 = vmatpush2.xpose.msra.mxu0 0.0
  %714 = vmatprep.subr.mxu0 0.0
  %715 = vmatpush2.xpose.msra.mxu0 0.0
  %716 = vmatprep.subr.mxu0 0.0
  %717 = vmatpush2.xpose.msra.mxu0 0.0
  %718 = vmatprep.subr.mxu0 0.0
  %719 = vmatpush2.xpose.msra.mxu0 0.0
  %720 = vmatprep.subr.mxu0 0.0
  %721 = vmatpush2.xpose.msra.mxu0 0.0
  %722 = vmatprep.subr.mxu0 0.0
  %723 = vmatpush2.xpose.msra.mxu0 0.0
  %724 = vmatprep.subr.mxu0 0.0
  %725 = vmatpush2.xpose.msra.mxu0 0.0
  %726 = vmatprep.subr.mxu0 0.0
  %727 = vmatpush2.xpose.msra.mxu0 0.0
  %728 = vmatprep.subr.mxu0 0.0
  %729 = vmatpush2.xpose.msra.mxu0 0.0
  %730 = vmatprep.subr.mxu0 0.0
  %731 = vmatpush2.xpose.msra.mxu0 0.0
  %732 = vmatprep.subr.mxu0 0.0
  %733 = vmatpush2.xpose.msra.mxu0 0.0
  %734 = vmatprep.mubr.f32.mxu0 0.0
  %735 = vmatmul.mubr.f32.gmra.mxu0 %v666
  %v736 = vpop.f32.mrf.mxu0
  %v737 = vadd.f32 0.0, %v736
  %v738 = vpop.f32.mrf.mxu0
  %739 = vdwg.mxu0
  %v740 = vsel %vm187, %v737, -inf
  %741 = vmax.xlane.f32.xlu0 %v740
  %v742 = vpop.xlane.xlu0 %741
  %v743 = vsub.f32 %v737, %v742
  %v744 = vmul.f32 %v743, 1.442695
  %v745 = vpow.pop %v744
  %v746 = vsel %vm187, %v745, 0.0
  %747 = vadd.xlane.f32.xlu0 %v746
  %v748 = vpop.xlane.xlu0 %747
  %v749 = vrcp.pop %v748
  %v750 = vmul.f32 %v745, %v749
  %751 = vrot.lane.b32.xlu0 %v176, 48
  %v752 = vpop.permute.xlu0 %751
  %v755 = vsel %vm187, %v750, 0
  %757 = vmatprep.subr.mxu0 0.0
  %758 = vmatpush1.msra.mxu0 0.0
  %759 = vmatprep.subr.mxu0 0.0
  %760 = vmatpush1.msra.mxu0 0.0
  %761 = vmatprep.subr.mxu0 0.0
  %762 = vmatpush1.msra.mxu0 0.0
  %763 = vmatprep.subr.mxu0 0.0
  %764 = vmatpush1.msra.mxu0 0.0
  %765 = vmatprep.subr.mxu0 0.0
  %766 = vmatpush1.msra.mxu0 0.0
  %767 = vmatprep.subr.mxu0 0.0
  %768 = vmatpush1.msra.mxu0 0.0
  %769 = vmatprep.subr.mxu0 0.0
  %770 = vmatpush1.msra.mxu0 0.0
  %771 = vmatprep.subr.mxu0 0.0
  %772 = vmatpush1.msra.mxu0 0.0
  %773 = vmatprep.subr.mxu0 0.0
  %774 = vmatpush1.msra.mxu0 0.0
  %775 = vmatprep.subr.mxu0 0.0
  %776 = vmatpush1.msra.mxu0 0.0
  %777 = vmatprep.subr.mxu0 0.0
  %778 = vmatpush1.msra.mxu0 0.0
  %779 = vmatprep.subr.mxu0 0.0
  %780 = vmatpush1.msra.mxu0 0.0
  %781 = vmatprep.subr.mxu0 0.0
  %782 = vmatpush1.msra.mxu0 0.0
  %783 = vmatprep.subr.mxu0 0.0
  %784 = vmatpush1.msra.mxu0 0.0
  %785 = vmatprep.subr.mxu0 0.0
  %786 = vmatpush1.msra.mxu0 0.0
  %787 = vmatprep.subr.mxu0 0.0
  %788 = vmatpush1.msra.mxu0 %v752
  %789 = vmatprep.subr.mxu0 0.0
  %790 = vmatpush2.msra.mxu0 0.0
  %791 = vmatprep.subr.mxu0 0.0
  %792 = vmatpush2.msra.mxu0 0.0
  %793 = vmatprep.subr.mxu0 0.0
  %794 = vmatpush2.msra.mxu0 0.0
  %795 = vmatprep.subr.mxu0 0.0
  %796 = vmatpush2.msra.mxu0 0.0
  %797 = vmatprep.subr.mxu0 0.0
  %798 = vmatpush2.msra.mxu0 0.0
  %799 = vmatprep.subr.mxu0 0.0
  %800 = vmatpush2.msra.mxu0 0.0
  %801 = vmatprep.subr.mxu0 0.0
  %802 = vmatpush2.msra.mxu0 0.0
  %803 = vmatprep.subr.mxu0 0.0
  %804 = vmatpush2.msra.mxu0 0.0
  %805 = vmatprep.subr.mxu0 0.0
  %806 = vmatpush2.msra.mxu0 0.0
  %807 = vmatprep.subr.mxu0 0.0
  %808 = vmatpush2.msra.mxu0 0.0
  %809 = vmatprep.subr.mxu0 0.0
  %810 = vmatpush2.msra.mxu0 0.0
  %811 = vmatprep.subr.mxu0 0.0
  %812 = vmatpush2.msra.mxu0 0.0
  %813 = vmatprep.subr.mxu0 0.0
  %814 = vmatpush2.msra.mxu0 0.0
  %815 = vmatprep.subr.mxu0 0.0
  %816 = vmatpush2.msra.mxu0 0.0
  %817 = vmatprep.subr.mxu0 0.0
  %818 = vmatpush2.msra.mxu0 0.0
  %819 = vmatprep.subr.mxu0 0.0
  %820 = vmatpush2.msra.mxu0 0.0
  %821 = vmatprep.mubr.f32.mxu0 0.0
  %822 = vmatmul.mubr.f32.gmra.mxu0 %v755
  %v823 = vpop.f32.mrf.mxu0
  %v824 = vadd.f32 0.0, %v823
  %v825 = vpop.f32.mrf.mxu0
  %826 = vdwg.mxu0
  %v828 = vsel %vm187, %v824, 0
  %830 = vmatprep.subr.mxu0 0.0
  %831 = vmatpush1.msra.mxu0 0.0
  %832 = vmatprep.subr.mxu0 0.0
  %833 = vmatpush1.msra.mxu0 0.0
  %834 = vmatprep.subr.mxu0 0.0
  %835 = vmatpush1.msra.mxu0 0.0
  %836 = vmatprep.subr.mxu0 0.0
  %837 = vmatpush1.msra.mxu0 0.0
  %838 = vmatprep.subr.mxu0 0.0
  %839 = vmatpush1.msra.mxu0 0.0
  %840 = vmatprep.subr.mxu0 0.0
  %841 = vmatpush1.msra.mxu0 0.0
  %842 = vmatprep.subr.mxu0 0.0
  %843 = vmatpush1.msra.mxu0 0.0
  %844 = vmatprep.subr.mxu0 0.0
  %845 = vmatpush1.msra.mxu0 0.0
  %846 = vmatprep.subr.mxu0 0.0
  %847 = vmatpush1.msra.mxu0 0.0
  %848 = vmatprep.subr.mxu0 0.0
  %849 = vmatpush1.msra.mxu0 0.0
  %850 = vmatprep.subr.mxu0 0.0
  %851 = vmatpush1.msra.mxu0 0.0
  %852 = vmatprep.subr.mxu0 0.0
  %853 = vmatpush1.msra.mxu0 0.0
  %854 = vmatprep.subr.mxu0 0.0
  %855 = vmatpush1.msra.mxu0 0.0
  %856 = vmatprep.subr.mxu0 0.0
  %857 = vmatpush1.msra.mxu0 0.0
  %858 = vmatprep.subr.mxu0 0.0
  %859 = vmatpush1.msra.mxu0 0.0
  %860 = vmatprep.subr.mxu0 0.0
  %861 = vmatpush1.msra.mxu0 %v181
  %862 = vmatprep.subr.mxu0 0.0
  %863 = vmatpush2.msra.mxu0 0.0
  %864 = vmatprep.subr.mxu0 0.0
  %865 = vmatpush2.msra.mxu0 0.0
  %866 = vmatprep.subr.mxu0 0.0
  %867 = vmatpush2.msra.mxu0 0.0
  %868 = vmatprep.subr.mxu0 0.0
  %869 = vmatpush2.msra.mxu0 0.0
  %870 = vmatprep.subr.mxu0 0.0
  %871 = vmatpush2.msra.mxu0 0.0
  %872 = vmatprep.subr.mxu0 0.0
  %873 = vmatpush2.msra.mxu0 0.0
  %874 = vmatprep.subr.mxu0 0.0
  %875 = vmatpush2.msra.mxu0 0.0
  %876 = vmatprep.subr.mxu0 0.0
  %877 = vmatpush2.msra.mxu0 0.0
  %878 = vmatprep.subr.mxu0 0.0
  %879 = vmatpush2.msra.mxu0 0.0
  %880 = vmatprep.subr.mxu0 0.0
  %881 = vmatpush2.msra.mxu0 0.0
  %882 = vmatprep.subr.mxu0 0.0
  %883 = vmatpush2.msra.mxu0 0.0
  %884 = vmatprep.subr.mxu0 0.0
  %885 = vmatpush2.msra.mxu0 0.0
  %886 = vmatprep.subr.mxu0 0.0
  %887 = vmatpush2.msra.mxu0 0.0
  %888 = vmatprep.subr.mxu0 0.0
  %889 = vmatpush2.msra.mxu0 0.0
  %890 = vmatprep.subr.mxu0 0.0
  %891 = vmatpush2.msra.mxu0 0.0
  %892 = vmatprep.subr.mxu0 0.0
  %893 = vmatpush2.msra.mxu0 0.0
  %894 = vmatprep.mubr.f32.mxu0 0.0
  %895 = vmatmul.mubr.f32.gmra.mxu0 %v828
  %v896 = vpop.f32.mrf.mxu0
  %v897 = vadd.f32 0.0, %v896
  %v898 = vpop.f32.mrf.mxu0
  %899 = vdwg.mxu0
  %v900 = vadd.f32 %v661, %v897
  %901 = vrot.lane.b32.xlu0 %v176, 104
  %v902 = vpop.permute.xlu0 %901
  %903 = vrot.lane.b32.xlu0 %v176, 72
  %v904 = vpop.permute.xlu0 %903
  %v905 = vsel %vm187, %v902, 0
  %v907 = vsel %vm187, %v904, 0
  %909 = vmatprep.subr.mxu0 0.0
  %910 = vmatpush1.xpose.msra.mxu0 0.0
  %911 = vmatprep.subr.mxu0 0.0
  %912 = vmatpush1.xpose.msra.mxu0 0.0
  %913 = vmatprep.subr.mxu0 0.0
  %914 = vmatpush1.xpose.msra.mxu0 0.0
  %915 = vmatprep.subr.mxu0 0.0
  %916 = vmatpush1.xpose.msra.mxu0 0.0
  %917 = vmatprep.subr.mxu0 0.0
  %918 = vmatpush1.xpose.msra.mxu0 0.0
  %919 = vmatprep.subr.mxu0 0.0
  %920 = vmatpush1.xpose.msra.mxu0 0.0
  %921 = vmatprep.subr.mxu0 0.0
  %922 = vmatpush1.xpose.msra.mxu0 0.0
  %923 = vmatprep.subr.mxu0 0.0
  %924 = vmatpush1.xpose.msra.mxu0 0.0
  %925 = vmatprep.subr.mxu0 0.0
  %926 = vmatpush1.xpose.msra.mxu0 0.0
  %927 = vmatprep.subr.mxu0 0.0
  %928 = vmatpush1.xpose.msra.mxu0 0.0
  %929 = vmatprep.subr.mxu0 0.0
  %930 = vmatpush1.xpose.msra.mxu0 0.0
  %931 = vmatprep.subr.mxu0 0.0
  %932 = vmatpush1.xpose.msra.mxu0 0.0
  %933 = vmatprep.subr.mxu0 0.0
  %934 = vmatpush1.xpose.msra.mxu0 0.0
  %935 = vmatprep.subr.mxu0 0.0
  %936 = vmatpush1.xpose.msra.mxu0 0.0
  %937 = vmatprep.subr.mxu0 0.0
  %938 = vmatpush1.xpose.msra.mxu0 0.0
  %939 = vmatprep.subr.mxu0 0.0
  %940 = vmatpush1.xpose.msra.mxu0 %v907
  %941 = vmatprep.subr.mxu0 0.0
  %942 = vmatpush2.xpose.msra.mxu0 0.0
  %943 = vmatprep.subr.mxu0 0.0
  %944 = vmatpush2.xpose.msra.mxu0 0.0
  %945 = vmatprep.subr.mxu0 0.0
  %946 = vmatpush2.xpose.msra.mxu0 0.0
  %947 = vmatprep.subr.mxu0 0.0
  %948 = vmatpush2.xpose.msra.mxu0 0.0
  %949 = vmatprep.subr.mxu0 0.0
  %950 = vmatpush2.xpose.msra.mxu0 0.0
  %951 = vmatprep.subr.mxu0 0.0
  %952 = vmatpush2.xpose.msra.mxu0 0.0
  %953 = vmatprep.subr.mxu0 0.0
  %954 = vmatpush2.xpose.msra.mxu0 0.0
  %955 = vmatprep.subr.mxu0 0.0
  %956 = vmatpush2.xpose.msra.mxu0 0.0
  %957 = vmatprep.subr.mxu0 0.0
  %958 = vmatpush2.xpose.msra.mxu0 0.0
  %959 = vmatprep.subr.mxu0 0.0
  %960 = vmatpush2.xpose.msra.mxu0 0.0
  %961 = vmatprep.subr.mxu0 0.0
  %962 = vmatpush2.xpose.msra.mxu0 0.0
  %963 = vmatprep.subr.mxu0 0.0
  %964 = vmatpush2.xpose.msra.mxu0 0.0
  %965 = vmatprep.subr.mxu0 0.0
  %966 = vmatpush2.xpose.msra.mxu0 0.0
  %967 = vmatprep.subr.mxu0 0.0
  %968 = vmatpush2.xpose.msra.mxu0 0.0
  %969 = vmatprep.subr.mxu0 0.0
  %970 = vmatpush2.xpose.msra.mxu0 0.0
  %971 = vmatprep.subr.mxu0 0.0
  %972 = vmatpush2.xpose.msra.mxu0 0.0
  %973 = vmatprep.mubr.f32.mxu0 0.0
  %974 = vmatmul.mubr.f32.gmra.mxu0 %v905
  %v975 = vpop.f32.mrf.mxu0
  %v976 = vadd.f32 0.0, %v975
  %v977 = vpop.f32.mrf.mxu0
  %978 = vdwg.mxu0
  %v979 = vsel %vm187, %v976, -inf
  %980 = vmax.xlane.f32.xlu0 %v979
  %v981 = vpop.xlane.xlu0 %980
  %v982 = vsub.f32 %v976, %v981
  %v983 = vmul.f32 %v982, 1.442695
  %v984 = vpow.pop %v983
  %v985 = vsel %vm187, %v984, 0.0
  %986 = vadd.xlane.f32.xlu0 %v985
  %v987 = vpop.xlane.xlu0 %986
  %v988 = vrcp.pop %v987
  %v989 = vmul.f32 %v984, %v988
  %990 = vrot.lane.b32.xlu0 %v176, 40
  %v991 = vpop.permute.xlu0 %990
  %v994 = vsel %vm187, %v989, 0
  %996 = vmatprep.subr.mxu0 0.0
  %997 = vmatpush1.msra.mxu0 0.0
  %998 = vmatprep.subr.mxu0 0.0
  %999 = vmatpush1.msra.mxu0 0.0
  %1000 = vmatprep.subr.mxu0 0.0
  %1001 = vmatpush1.msra.mxu0 0.0
  %1002 = vmatprep.subr.mxu0 0.0
  %1003 = vmatpush1.msra.mxu0 0.0
  %1004 = vmatprep.subr.mxu0 0.0
  %1005 = vmatpush1.msra.mxu0 0.0
  %1006 = vmatprep.subr.mxu0 0.0
  %1007 = vmatpush1.msra.mxu0 0.0
  %1008 = vmatprep.subr.mxu0 0.0
  %1009 = vmatpush1.msra.mxu0 0.0
  %1010 = vmatprep.subr.mxu0 0.0
  %1011 = vmatpush1.msra.mxu0 0.0
  %1012 = vmatprep.subr.mxu0 0.0
  %1013 = vmatpush1.msra.mxu0 0.0
  %1014 = vmatprep.subr.mxu0 0.0
  %1015 = vmatpush1.msra.mxu0 0.0
  %1016 = vmatprep.subr.mxu0 0.0
  %1017 = vmatpush1.msra.mxu0 0.0
  %1018 = vmatprep.subr.mxu0 0.0
  %1019 = vmatpush1.msra.mxu0 0.0
  %1020 = vmatprep.subr.mxu0 0.0
  %1021 = vmatpush1.msra.mxu0 0.0
  %1022 = vmatprep.subr.mxu0 0.0
  %1023 = vmatpush1.msra.mxu0 0.0
  %1024 = vmatprep.subr.mxu0 0.0
  %1025 = vmatpush1.msra.mxu0 0.0
  %1026 = vmatprep.subr.mxu0 0.0
  %1027 = vmatpush1.msra.mxu0 %v991
  %1028 = vmatprep.subr.mxu0 0.0
  %1029 = vmatpush2.msra.mxu0 0.0
  %1030 = vmatprep.subr.mxu0 0.0
  %1031 = vmatpush2.msra.mxu0 0.0
  %1032 = vmatprep.subr.mxu0 0.0
  %1033 = vmatpush2.msra.mxu0 0.0
  %1034 = vmatprep.subr.mxu0 0.0
  %1035 = vmatpush2.msra.mxu0 0.0
  %1036 = vmatprep.subr.mxu0 0.0
  %1037 = vmatpush2.msra.mxu0 0.0
  %1038 = vmatprep.subr.mxu0 0.0
  %1039 = vmatpush2.msra.mxu0 0.0
  %1040 = vmatprep.subr.mxu0 0.0
  %1041 = vmatpush2.msra.mxu0 0.0
  %1042 = vmatprep.subr.mxu0 0.0
  %1043 = vmatpush2.msra.mxu0 0.0
  %1044 = vmatprep.subr.mxu0 0.0
  %1045 = vmatpush2.msra.mxu0 0.0
  %1046 = vmatprep.subr.mxu0 0.0
  %1047 = vmatpush2.msra.mxu0 0.0
  %1048 = vmatprep.subr.mxu0 0.0
  %1049 = vmatpush2.msra.mxu0 0.0
  %1050 = vmatprep.subr.mxu0 0.0
  %1051 = vmatpush2.msra.mxu0 0.0
  %1052 = vmatprep.subr.mxu0 0.0
  %1053 = vmatpush2.msra.mxu0 0.0
  %1054 = vmatprep.subr.mxu0 0.0
  %1055 = vmatpush2.msra.mxu0 0.0
  %1056 = vmatprep.subr.mxu0 0.0
  %1057 = vmatpush2.msra.mxu0 0.0
  %1058 = vmatprep.subr.mxu0 0.0
  %1059 = vmatpush2.msra.mxu0 0.0
  %1060 = vmatprep.mubr.f32.mxu0 0.0
  %1061 = vmatmul.mubr.f32.gmra.mxu0 %v994
  %v1062 = vpop.f32.mrf.mxu0
  %v1063 = vadd.f32 0.0, %v1062
  %v1064 = vpop.f32.mrf.mxu0
  %1065 = vdwg.mxu0
  %v1067 = vsel %vm187, %v1063, 0
  %1069 = vmatprep.subr.mxu0 0.0
  %1070 = vmatpush1.msra.mxu0 0.0
  %1071 = vmatprep.subr.mxu0 0.0
  %1072 = vmatpush1.msra.mxu0 0.0
  %1073 = vmatprep.subr.mxu0 0.0
  %1074 = vmatpush1.msra.mxu0 0.0
  %1075 = vmatprep.subr.mxu0 0.0
  %1076 = vmatpush1.msra.mxu0 0.0
  %1077 = vmatprep.subr.mxu0 0.0
  %1078 = vmatpush1.msra.mxu0 0.0
  %1079 = vmatprep.subr.mxu0 0.0
  %1080 = vmatpush1.msra.mxu0 0.0
  %1081 = vmatprep.subr.mxu0 0.0
  %1082 = vmatpush1.msra.mxu0 0.0
  %1083 = vmatprep.subr.mxu0 0.0
  %1084 = vmatpush1.msra.mxu0 0.0
  %1085 = vmatprep.subr.mxu0 0.0
  %1086 = vmatpush1.msra.mxu0 0.0
  %1087 = vmatprep.subr.mxu0 0.0
  %1088 = vmatpush1.msra.mxu0 0.0
  %1089 = vmatprep.subr.mxu0 0.0
  %1090 = vmatpush1.msra.mxu0 0.0
  %1091 = vmatprep.subr.mxu0 0.0
  %1092 = vmatpush1.msra.mxu0 0.0
  %1093 = vmatprep.subr.mxu0 0.0
  %1094 = vmatpush1.msra.mxu0 0.0
  %1095 = vmatprep.subr.mxu0 0.0
  %1096 = vmatpush1.msra.mxu0 0.0
  %1097 = vmatprep.subr.mxu0 0.0
  %1098 = vmatpush1.msra.mxu0 0.0
  %1099 = vmatprep.subr.mxu0 0.0
  %1100 = vmatpush1.msra.mxu0 %v182
  %1101 = vmatprep.subr.mxu0 0.0
  %1102 = vmatpush2.msra.mxu0 0.0
  %1103 = vmatprep.subr.mxu0 0.0
  %1104 = vmatpush2.msra.mxu0 0.0
  %1105 = vmatprep.subr.mxu0 0.0
  %1106 = vmatpush2.msra.mxu0 0.0
  %1107 = vmatprep.subr.mxu0 0.0
  %1108 = vmatpush2.msra.mxu0 0.0
  %1109 = vmatprep.subr.mxu0 0.0
  %1110 = vmatpush2.msra.mxu0 0.0
  %1111 = vmatprep.subr.mxu0 0.0
  %1112 = vmatpush2.msra.mxu0 0.0
  %1113 = vmatprep.subr.mxu0 0.0
  %1114 = vmatpush2.msra.mxu0 0.0
  %1115 = vmatprep.subr.mxu0 0.0
  %1116 = vmatpush2.msra.mxu0 0.0
  %1117 = vmatprep.subr.mxu0 0.0
  %1118 = vmatpush2.msra.mxu0 0.0
  %1119 = vmatprep.subr.mxu0 0.0
  %1120 = vmatpush2.msra.mxu0 0.0
  %1121 = vmatprep.subr.mxu0 0.0
  %1122 = vmatpush2.msra.mxu0 0.0
  %1123 = vmatprep.subr.mxu0 0.0
  %1124 = vmatpush2.msra.mxu0 0.0
  %1125 = vmatprep.subr.mxu0 0.0
  %1126 = vmatpush2.msra.mxu0 0.0
  %1127 = vmatprep.subr.mxu0 0.0
  %1128 = vmatpush2.msra.mxu0 0.0
  %1129 = vmatprep.subr.mxu0 0.0
  %1130 = vmatpush2.msra.mxu0 0.0
  %1131 = vmatprep.subr.mxu0 0.0
  %1132 = vmatpush2.msra.mxu0 0.0
  %1133 = vmatprep.mubr.f32.mxu0 0.0
  %1134 = vmatmul.mubr.f32.gmra.mxu0 %v1067
  %v1135 = vpop.f32.mrf.mxu0
  %v1136 = vadd.f32 0.0, %v1135
  %v1137 = vpop.f32.mrf.mxu0
  %1138 = vdwg.mxu0
  %v1139 = vadd.f32 %v900, %v1136
  %v1140 = vadd.f32 %v92, %v1139
  %v1141 = vld [vmem:[%s1 + $0x180] sm:$0xff]
  %v1142 = vld [vmem:[%s1 + $0x190] sm:$0xff]
  %v1143 = vsel %vm105, %v1140, 0.0
  %1144 = vadd.xlane.f32.xlu0 %v1143
  %v1145 = vpop.xlane.xlu0 %1144
  %v1146 = vrcp.pop 32.0
  %v1147 = vmul.f32 %v1145, %v1146
  %v1148 = vsub.f32 %v1140, %v1147
  %v1149 = vmul.f32 %v1148, %v1148
  %v1150 = vsel %vm105, %v1149, 0.0
  %1151 = vadd.xlane.f32.xlu0 %v1150
  %v1152 = vpop.xlane.xlu0 %1151
  %v1153 = vmul.f32 %v1152, %v1146
  %v1154 = vadd.f32 %v1153, 1e-05
  %v1155 = vrsqrt.pop %v1154
  %v1156 = vmul.f32 %v1148, %v1155
  %v1157 = vmul.f32 %v1156, %v1141
  %v1158 = vadd.f32 %v1157, %v1142
  %v1159 = vld [vmem:[%s2] sm:$0xff]
  %v1160 = vld [vmem:[%s2 + $0x8] sm:$0xff]
  %v1161 = vld [vmem:[%s2 + $0x10] sm:$0xff]
  %v1162 = vld [vmem:[%s2 + $0x18] sm:$0xff]
  %v1163 = vld [vmem:[%s2 + $0x40] sm:$0xff]
  %v1165 = vsel %vm105, %v1158, 0
  %1167 = vmatprep.subr.mxu0 0.0
  %1168 = vmatpush1.msra.mxu0 0.0
  %1169 = vmatprep.subr.mxu0 0.0
  %1170 = vmatpush1.msra.mxu0 0.0
  %1171 = vmatprep.subr.mxu0 0.0
  %1172 = vmatpush1.msra.mxu0 0.0
  %1173 = vmatprep.subr.mxu0 0.0
  %1174 = vmatpush1.msra.mxu0 0.0
  %1175 = vmatprep.subr.mxu0 0.0
  %1176 = vmatpush1.msra.mxu0 0.0
  %1177 = vmatprep.subr.mxu0 0.0
  %1178 = vmatpush1.msra.mxu0 0.0
  %1179 = vmatprep.subr.mxu0 0.0
  %1180 = vmatpush1.msra.mxu0 0.0
  %1181 = vmatprep.subr.mxu0 0.0
  %1182 = vmatpush1.msra.mxu0 0.0
  %1183 = vmatprep.subr.mxu0 0.0
  %1184 = vmatpush1.msra.mxu0 0.0
  %1185 = vmatprep.subr.mxu0 0.0
  %1186 = vmatpush1.msra.mxu0 0.0
  %1187 = vmatprep.subr.mxu0 0.0
  %1188 = vmatpush1.msra.mxu0 0.0
  %1189 = vmatprep.subr.mxu0 0.0
  %1190 = vmatpush1.msra.mxu0 0.0
  %1191 = vmatprep.subr.mxu0 0.0
  %1192 = vmatpush1.msra.mxu0 %v1162
  %1193 = vmatprep.subr.mxu0 0.0
  %1194 = vmatpush1.msra.mxu0 %v1161
  %1195 = vmatprep.subr.mxu0 0.0
  %1196 = vmatpush1.msra.mxu0 %v1160
  %1197 = vmatprep.subr.mxu0 0.0
  %1198 = vmatpush1.msra.mxu0 %v1159
  %1199 = vmatprep.subr.mxu0 0.0
  %1200 = vmatpush2.msra.mxu0 0.0
  %1201 = vmatprep.subr.mxu0 0.0
  %1202 = vmatpush2.msra.mxu0 0.0
  %1203 = vmatprep.subr.mxu0 0.0
  %1204 = vmatpush2.msra.mxu0 0.0
  %1205 = vmatprep.subr.mxu0 0.0
  %1206 = vmatpush2.msra.mxu0 0.0
  %1207 = vmatprep.subr.mxu0 0.0
  %1208 = vmatpush2.msra.mxu0 0.0
  %1209 = vmatprep.subr.mxu0 0.0
  %1210 = vmatpush2.msra.mxu0 0.0
  %1211 = vmatprep.subr.mxu0 0.0
  %1212 = vmatpush2.msra.mxu0 0.0
  %1213 = vmatprep.subr.mxu0 0.0
  %1214 = vmatpush2.msra.mxu0 0.0
  %1215 = vmatprep.subr.mxu0 0.0
  %1216 = vmatpush2.msra.mxu0 0.0
  %1217 = vmatprep.subr.mxu0 0.0
  %1218 = vmatpush2.msra.mxu0 0.0
  %1219 = vmatprep.subr.mxu0 0.0
  %1220 = vmatpush2.msra.mxu0 0.0
  %1221 = vmatprep.subr.mxu0 0.0
  %1222 = vmatpush2.msra.mxu0 0.0
  %1223 = vmatprep.subr.mxu0 0.0
  %1224 = vmatpush2.msra.mxu0 0.0
  %1225 = vmatprep.subr.mxu0 0.0
  %1226 = vmatpush2.msra.mxu0 0.0
  %1227 = vmatprep.subr.mxu0 0.0
  %1228 = vmatpush2.msra.mxu0 0.0
  %1229 = vmatprep.subr.mxu0 0.0
  %1230 = vmatpush2.msra.mxu0 0.0
  %1231 = vmatprep.mubr.f32.mxu0 0.0
  %1232 = vmatmul.mubr.f32.gmra.mxu0 %v1165
  %v1233 = vpop.f32.mrf.mxu0
  %v1234 = vadd.f32 %v1163, %v1233
  %v1235 = vpop.f32.mrf.mxu0
  %1236 = vdwg.mxu0
  %v1237 = vmax.f32 %v1234, 0.0
  %v1238 = vld [vmem:[%s1 + $0x70] sm:$0xff]
  %v1239 = vld [vmem:[%s1 + $0x78] sm:$0xff]
  %v1240 = vld [vmem:[%s1 + $0x80] sm:$0xff]
  %v1241 = vld [vmem:[%s1 + $0x88] sm:$0xff]
  %v1242 = vld [vmem:[%s1 + $0x90] sm:$0xff]
  %v1243 = vld [vmem:[%s1 + $0x98] sm:$0xff]
  %v1244 = vld [vmem:[%s1 + $0xa0] sm:$0xff]
  %v1245 = vld [vmem:[%s1 + $0xa8] sm:$0xff]
  %v1246 = vld [vmem:[%s1 + $0xb0] sm:$0xff]
  %v1247 = vld [vmem:[%s1 + $0xb8] sm:$0xff]
  %v1248 = vld [vmem:[%s1 + $0xc0] sm:$0xff]
  %v1249 = vld [vmem:[%s1 + $0xc8] sm:$0xff]
  %v1250 = vld [vmem:[%s1 + $0xd0] sm:$0xff]
  %v1251 = vld [vmem:[%s1 + $0xd8] sm:$0xff]
  %v1252 = vld [vmem:[%s1 + $0xe0] sm:$0xff]
  %v1253 = vld [vmem:[%s1 + $0xe8] sm:$0xff]
  %v1254 = vld [vmem:[%s1 + $0x170] sm:$0xff]
  %1255 = vmatprep.subr.mxu0 0.0
  %1256 = vmatpush1.msra.mxu0 %v1253
  %1257 = vmatprep.subr.mxu0 0.0
  %1258 = vmatpush1.msra.mxu0 %v1252
  %1259 = vmatprep.subr.mxu0 0.0
  %1260 = vmatpush1.msra.mxu0 %v1251
  %1261 = vmatprep.subr.mxu0 0.0
  %1262 = vmatpush1.msra.mxu0 %v1250
  %1263 = vmatprep.subr.mxu0 0.0
  %1264 = vmatpush1.msra.mxu0 %v1249
  %1265 = vmatprep.subr.mxu0 0.0
  %1266 = vmatpush1.msra.mxu0 %v1248
  %1267 = vmatprep.subr.mxu0 0.0
  %1268 = vmatpush1.msra.mxu0 %v1247
  %1269 = vmatprep.subr.mxu0 0.0
  %1270 = vmatpush1.msra.mxu0 %v1246
  %1271 = vmatprep.subr.mxu0 0.0
  %1272 = vmatpush1.msra.mxu0 %v1245
  %1273 = vmatprep.subr.mxu0 0.0
  %1274 = vmatpush1.msra.mxu0 %v1244
  %1275 = vmatprep.subr.mxu0 0.0
  %1276 = vmatpush1.msra.mxu0 %v1243
  %1277 = vmatprep.subr.mxu0 0.0
  %1278 = vmatpush1.msra.mxu0 %v1242
  %1279 = vmatprep.subr.mxu0 0.0
  %1280 = vmatpush1.msra.mxu0 %v1241
  %1281 = vmatprep.subr.mxu0 0.0
  %1282 = vmatpush1.msra.mxu0 %v1240
  %1283 = vmatprep.subr.mxu0 0.0
  %1284 = vmatpush1.msra.mxu0 %v1239
  %1285 = vmatprep.subr.mxu0 0.0
  %1286 = vmatpush1.msra.mxu0 %v1238
  %1287 = vmatprep.subr.mxu0 0.0
  %1288 = vmatpush2.msra.mxu0 0.0
  %1289 = vmatprep.subr.mxu0 0.0
  %1290 = vmatpush2.msra.mxu0 0.0
  %1291 = vmatprep.subr.mxu0 0.0
  %1292 = vmatpush2.msra.mxu0 0.0
  %1293 = vmatprep.subr.mxu0 0.0
  %1294 = vmatpush2.msra.mxu0 0.0
  %1295 = vmatprep.subr.mxu0 0.0
  %1296 = vmatpush2.msra.mxu0 0.0
  %1297 = vmatprep.subr.mxu0 0.0
  %1298 = vmatpush2.msra.mxu0 0.0
  %1299 = vmatprep.subr.mxu0 0.0
  %1300 = vmatpush2.msra.mxu0 0.0
  %1301 = vmatprep.subr.mxu0 0.0
  %1302 = vmatpush2.msra.mxu0 0.0
  %1303 = vmatprep.subr.mxu0 0.0
  %1304 = vmatpush2.msra.mxu0 0.0
  %1305 = vmatprep.subr.mxu0 0.0
  %1306 = vmatpush2.msra.mxu0 0.0
  %1307 = vmatprep.subr.mxu0 0.0
  %1308 = vmatpush2.msra.mxu0 0.0
  %1309 = vmatprep.subr.mxu0 0.0
  %1310 = vmatpush2.msra.mxu0 0.0
  %1311 = vmatprep.subr.mxu0 0.0
  %1312 = vmatpush2.msra.mxu0 0.0
  %1313 = vmatprep.subr.mxu0 0.0
  %1314 = vmatpush2.msra.mxu0 0.0
  %1315 = vmatprep.subr.mxu0 0.0
  %1316 = vmatpush2.msra.mxu0 0.0
  %1317 = vmatprep.subr.mxu0 0.0
  %1318 = vmatpush2.msra.mxu0 0.0
  %1319 = vmatprep.mubr.f32.mxu0 0.0
  %1320 = vmatmul.mubr.f32.gmra.mxu0 %v1237
  %v1321 = vpop.f32.mrf.mxu0
  %v1322 = vadd.f32 %v1254, %v1321
  %v1323 = vpop.f32.mrf.mxu0
  %1324 = vdwg.mxu0
  %v1325 = vadd.f32 %v1158, %v1322
  %v1326 = vld [vmem:[%s1 + $0x1a0] sm:$0xff]
  %v1327 = vld [vmem:[%s1 + $0x1b0] sm:$0xff]
  %v1328 = vsel %vm105, %v1325, 0.0
  %1329 = vadd.xlane.f32.xlu0 %v1328
  %v1330 = vpop.xlane.xlu0 %1329
  %v1331 = vmul.f32 %v1330, %v1146
  %v1332 = vsub.f32 %v1325, %v1331
  %v1333 = vmul.f32 %v1332, %v1332
  %v1334 = vsel %vm105, %v1333, 0.0
  %1335 = vadd.xlane.f32.xlu0 %v1334
  %v1336 = vpop.xlane.xlu0 %1335
  %v1337 = vmul.f32 %v1336, %v1146
  %v1338 = vadd.f32 %v1337, 1e-05
  %v1339 = vrsqrt.pop %v1338
  %v1340 = vmul.f32 %v1332, %v1339
  %v1341 = vmul.f32 %v1340, %v1326
  %v1342 = vadd.f32 %v1341, %v1327
  %v1343 = vld [vmem:[%s2 + $0x70] sm:$0xff]
  %v1344 = vld [vmem:[%s2 + $0x78] sm:$0xff]
  %v1345 = vld [vmem:[%s2 + $0x80] sm:$0xff]
  %v1346 = vld [vmem:[%s2 + $0x88] sm:$0xff]
  %v1347 = vld [vmem:[%s2 + $0x98] sm:$0xff]
  %v1349 = vsel %vm105, %v97, 0
  %1351 = vmatprep.subr.mxu0 0.0
  %1352 = vmatpush1.msra.mxu0 0.0
  %1353 = vmatprep.subr.mxu0 0.0
  %1354 = vmatpush1.msra.mxu0 0.0
  %1355 = vmatprep.subr.mxu0 0.0
  %1356 = vmatpush1.msra.mxu0 0.0
  %1357 = vmatprep.subr.mxu0 0.0
  %1358 = vmatpush1.msra.mxu0 0.0
  %1359 = vmatprep.subr.mxu0 0.0
  %1360 = vmatpush1.msra.mxu0 0.0
  %1361 = vmatprep.subr.mxu0 0.0
  %1362 = vmatpush1.msra.mxu0 0.0
  %1363 = vmatprep.subr.mxu0 0.0
  %1364 = vmatpush1.msra.mxu0 0.0
  %1365 = vmatprep.subr.mxu0 0.0
  %1366 = vmatpush1.msra.mxu0 0.0
  %1367 = vmatprep.subr.mxu0 0.0
  %1368 = vmatpush1.msra.mxu0 0.0
  %1369 = vmatprep.subr.mxu0 0.0
  %1370 = vmatpush1.msra.mxu0 0.0
  %1371 = vmatprep.subr.mxu0 0.0
  %1372 = vmatpush1.msra.mxu0 0.0
  %1373 = vmatprep.subr.mxu0 0.0
  %1374 = vmatpush1.msra.mxu0 0.0
  %1375 = vmatprep.subr.mxu0 0.0
  %1376 = vmatpush1.msra.mxu0 %v1346
  %1377 = vmatprep.subr.mxu0 0.0
  %1378 = vmatpush1.msra.mxu0 %v1345
  %1379 = vmatprep.subr.mxu0 0.0
  %1380 = vmatpush1.msra.mxu0 %v1344
  %1381 = vmatprep.subr.mxu0 0.0
  %1382 = vmatpush1.msra.mxu0 %v1343
  %1383 = vmatprep.subr.mxu0 0.0
  %1384 = vmatpush2.msra.mxu0 0.0
  %1385 = vmatprep.subr.mxu0 0.0
  %1386 = vmatpush2.msra.mxu0 0.0
  %1387 = vmatprep.subr.mxu0 0.0
  %1388 = vmatpush2.msra.mxu0 0.0
  %1389 = vmatprep.subr.mxu0 0.0
  %1390 = vmatpush2.msra.mxu0 0.0
  %1391 = vmatprep.subr.mxu0 0.0
  %1392 = vmatpush2.msra.mxu0 0.0
  %1393 = vmatprep.subr.mxu0 0.0
  %1394 = vmatpush2.msra.mxu0 0.0
  %1395 = vmatprep.subr.mxu0 0.0
  %1396 = vmatpush2.msra.mxu0 0.0
  %1397 = vmatprep.subr.mxu0 0.0
  %1398 = vmatpush2.msra.mxu0 0.0
  %1399 = vmatprep.subr.mxu0 0.0
  %1400 = vmatpush2.msra.mxu0 0.0
  %1401 = vmatprep.subr.mxu0 0.0
  %1402 = vmatpush2.msra.mxu0 0.0
  %1403 = vmatprep.subr.mxu0 0.0
  %1404 = vmatpush2.msra.mxu0 0.0
  %1405 = vmatprep.subr.mxu0 0.0
  %1406 = vmatpush2.msra.mxu0 0.0
  %1407 = vmatprep.subr.mxu0 0.0
  %1408 = vmatpush2.msra.mxu0 0.0
  %1409 = vmatprep.subr.mxu0 0.0
  %1410 = vmatpush2.msra.mxu0 0.0
  %1411 = vmatprep.subr.mxu0 0.0
  %1412 = vmatpush2.msra.mxu0 0.0
  %1413 = vmatprep.subr.mxu0 0.0
  %1414 = vmatpush2.msra.mxu0 0.0
  %1415 = vmatprep.mubr.f32.mxu0 0.0
  %1416 = vmatmul.mubr.f32.gmra.mxu0 %v1349
  %v1417 = vpop.f32.mrf.mxu0
  %v1418 = vadd.f32 %v1347, %v1417
  %v1419 = vpop.f32.mrf.mxu0
  %1420 = vdwg.mxu0
  %v1421 = vld [vmem:[%s1 + $0x40] sm:$0xff]
  %v1422 = vld [vmem:[%s1 + $0x48] sm:$0xff]
  %v1423 = vld [vmem:[%s1 + $0x50] sm:$0xff]
  %v1424 = vld [vmem:[%s1 + $0x58] sm:$0xff]
  %v1425 = vld [vmem:[%s1 + $0x68] sm:$0xff]
  %1427 = vrot.lane.b32.xlu0 %v1418, 96
  %v1428 = vpop.permute.xlu0 %1427
  %v1429 = vsel %vm187, %v1418, 0
  %v1431 = vsel %vm187, %v1428, 0
  %1433 = vmatprep.subr.mxu0 0.0
  %1434 = vmatpush1.xpose.msra.mxu0 0.0
  %1435 = vmatprep.subr.mxu0 0.0
  %1436 = vmatpush1.xpose.msra.mxu0 0.0
  %1437 = vmatprep.subr.mxu0 0.0
  %1438 = vmatpush1.xpose.msra.mxu0 0.0
  %1439 = vmatprep.subr.mxu0 0.0
  %1440 = vmatpush1.xpose.msra.mxu0 0.0
  %1441 = vmatprep.subr.mxu0 0.0
  %1442 = vmatpush1.xpose.msra.mxu0 0.0
  %1443 = vmatprep.subr.mxu0 0.0
  %1444 = vmatpush1.xpose.msra.mxu0 0.0
  %1445 = vmatprep.subr.mxu0 0.0
  %1446 = vmatpush1.xpose.msra.mxu0 0.0
  %1447 = vmatprep.subr.mxu0 0.0
  %1448 = vmatpush1.xpose.msra.mxu0 0.0
  %1449 = vmatprep.subr.mxu0 0.0
  %1450 = vmatpush1.xpose.msra.mxu0 0.0
  %1451 = vmatprep.subr.mxu0 0.0
  %1452 = vmatpush1.xpose.msra.mxu0 0.0
  %1453 = vmatprep.subr.mxu0 0.0
  %1454 = vmatpush1.xpose.msra.mxu0 0.0
  %1455 = vmatprep.subr.mxu0 0.0
  %1456 = vmatpush1.xpose.msra.mxu0 0.0
  %1457 = vmatprep.subr.mxu0 0.0
  %1458 = vmatpush1.xpose.msra.mxu0 0.0
  %1459 = vmatprep.subr.mxu0 0.0
  %1460 = vmatpush1.xpose.msra.mxu0 0.0
  %1461 = vmatprep.subr.mxu0 0.0
  %1462 = vmatpush1.xpose.msra.mxu0 0.0
  %1463 = vmatprep.subr.mxu0 0.0
  %1464 = vmatpush1.xpose.msra.mxu0 %v1431
  %1465 = vmatprep.subr.mxu0 0.0
  %1466 = vmatpush2.xpose.msra.mxu0 0.0
  %1467 = vmatprep.subr.mxu0 0.0
  %1468 = vmatpush2.xpose.msra.mxu0 0.0
  %1469 = vmatprep.subr.mxu0 0.0
  %1470 = vmatpush2.xpose.msra.mxu0 0.0
  %1471 = vmatprep.subr.mxu0 0.0
  %1472 = vmatpush2.xpose.msra.mxu0 0.0
  %1473 = vmatprep.subr.mxu0 0.0
  %1474 = vmatpush2.xpose.msra.mxu0 0.0
  %1475 = vmatprep.subr.mxu0 0.0
  %1476 = vmatpush2.xpose.msra.mxu0 0.0
  %1477 = vmatprep.subr.mxu0 0.0
  %1478 = vmatpush2.xpose.msra.mxu0 0.0
  %1479 = vmatprep.subr.mxu0 0.0
  %1480 = vmatpush2.xpose.msra.mxu0 0.0
  %1481 = vmatprep.subr.mxu0 0.0
  %1482 = vmatpush2.xpose.msra.mxu0 0.0
  %1483 = vmatprep.subr.mxu0 0.0
  %1484 = vmatpush2.xpose.msra.mxu0 0.0
  %1485 = vmatprep.subr.mxu0 0.0
  %1486 = vmatpush2.xpose.msra.mxu0 0.0
  %1487 = vmatprep.subr.mxu0 0.0
  %1488 = vmatpush2.xpose.msra.mxu0 0.0
  %1489 = vmatprep.subr.mxu0 0.0
  %1490 = vmatpush2.xpose.msra.mxu0 0.0
  %1491 = vmatprep.subr.mxu0 0.0
  %1492 = vmatpush2.xpose.msra.mxu0 0.0
  %1493 = vmatprep.subr.mxu0 0.0
  %1494 = vmatpush2.xpose.msra.mxu0 0.0
  %1495 = vmatprep.subr.mxu0 0.0
  %1496 = vmatpush2.xpose.msra.mxu0 0.0
  %1497 = vmatprep.mubr.f32.mxu0 0.0
  %1498 = vmatmul.mubr.f32.gmra.mxu0 %v1429
  %v1499 = vpop.f32.mrf.mxu0
  %v1500 = vadd.f32 0.0, %v1499
  %v1501 = vpop.f32.mrf.mxu0
  %1502 = vdwg.mxu0
  %v1503 = vsel %vm187, %v1500, -inf
  %1504 = vmax.xlane.f32.xlu0 %v1503
  %v1505 = vpop.xlane.xlu0 %1504
  %v1506 = vsub.f32 %v1500, %v1505
  %v1507 = vmul.f32 %v1506, 1.442695
  %v1508 = vpow.pop %v1507
  %v1509 = vsel %vm187, %v1508, 0.0
  %1510 = vadd.xlane.f32.xlu0 %v1509
  %v1511 = vpop.xlane.xlu0 %1510
  %v1512 = vrcp.pop %v1511
  %v1513 = vmul.f32 %v1508, %v1512
  %1514 = vrot.lane.b32.xlu0 %v1418, 64
  %v1515 = vpop.permute.xlu0 %1514
  %v1518 = vsel %vm187, %v1513, 0
  %1520 = vmatprep.subr.mxu0 0.0
  %1521 = vmatpush1.msra.mxu0 0.0
  %1522 = vmatprep.subr.mxu0 0.0
  %1523 = vmatpush1.msra.mxu0 0.0
  %1524 = vmatprep.subr.mxu0 0.0
  %1525 = vmatpush1.msra.mxu0 0.0
  %1526 = vmatprep.subr.mxu0 0.0
  %1527 = vmatpush1.msra.mxu0 0.0
  %1528 = vmatprep.subr.mxu0 0.0
  %1529 = vmatpush1.msra.mxu0 0.0
  %1530 = vmatprep.subr.mxu0 0.0
  %1531 = vmatpush1.msra.mxu0 0.0
  %1532 = vmatprep.subr.mxu0 0.0
  %1533 = vmatpush1.msra.mxu0 0.0
  %1534 = vmatprep.subr.mxu0 0.0
  %1535 = vmatpush1.msra.mxu0 0.0
  %1536 = vmatprep.subr.mxu0 0.0
  %1537 = vmatpush1.msra.mxu0 0.0
  %1538 = vmatprep.subr.mxu0 0.0
  %1539 = vmatpush1.msra.mxu0 0.0
  %1540 = vmatprep.subr.mxu0 0.0
  %1541 = vmatpush1.msra.mxu0 0.0
  %1542 = vmatprep.subr.mxu0 0.0
  %1543 = vmatpush1.msra.mxu0 0.0
  %1544 = vmatprep.subr.mxu0 0.0
  %1545 = vmatpush1.msra.mxu0 0.0
  %1546 = vmatprep.subr.mxu0 0.0
  %1547 = vmatpush1.msra.mxu0 0.0
  %1548 = vmatprep.subr.mxu0 0.0
  %1549 = vmatpush1.msra.mxu0 0.0
  %1550 = vmatprep.subr.mxu0 0.0
  %1551 = vmatpush1.msra.mxu0 %v1515
  %1552 = vmatprep.subr.mxu0 0.0
  %1553 = vmatpush2.msra.mxu0 0.0
  %1554 = vmatprep.subr.mxu0 0.0
  %1555 = vmatpush2.msra.mxu0 0.0
  %1556 = vmatprep.subr.mxu0 0.0
  %1557 = vmatpush2.msra.mxu0 0.0
  %1558 = vmatprep.subr.mxu0 0.0
  %1559 = vmatpush2.msra.mxu0 0.0
  %1560 = vmatprep.subr.mxu0 0.0
  %1561 = vmatpush2.msra.mxu0 0.0
  %1562 = vmatprep.subr.mxu0 0.0
  %1563 = vmatpush2.msra.mxu0 0.0
  %1564 = vmatprep.subr.mxu0 0.0
  %1565 = vmatpush2.msra.mxu0 0.0
  %1566 = vmatprep.subr.mxu0 0.0
  %1567 = vmatpush2.msra.mxu0 0.0
  %1568 = vmatprep.subr.mxu0 0.0
  %1569 = vmatpush2.msra.mxu0 0.0
  %1570 = vmatprep.subr.mxu0 0.0
  %1571 = vmatpush2.msra.mxu0 0.0
  %1572 = vmatprep.subr.mxu0 0.0
  %1573 = vmatpush2.msra.mxu0 0.0
  %1574 = vmatprep.subr.mxu0 0.0
  %1575 = vmatpush2.msra.mxu0 0.0
  %1576 = vmatprep.subr.mxu0 0.0
  %1577 = vmatpush2.msra.mxu0 0.0
  %1578 = vmatprep.subr.mxu0 0.0
  %1579 = vmatpush2.msra.mxu0 0.0
  %1580 = vmatprep.subr.mxu0 0.0
  %1581 = vmatpush2.msra.mxu0 0.0
  %1582 = vmatprep.subr.mxu0 0.0
  %1583 = vmatpush2.msra.mxu0 0.0
  %1584 = vmatprep.mubr.f32.mxu0 0.0
  %1585 = vmatmul.mubr.f32.gmra.mxu0 %v1518
  %v1586 = vpop.f32.mrf.mxu0
  %v1587 = vadd.f32 0.0, %v1586
  %v1588 = vpop.f32.mrf.mxu0
  %1589 = vdwg.mxu0
  %v1591 = vsel %vm187, %v1587, 0
  %1593 = vmatprep.subr.mxu0 0.0
  %1594 = vmatpush1.msra.mxu0 0.0
  %1595 = vmatprep.subr.mxu0 0.0
  %1596 = vmatpush1.msra.mxu0 0.0
  %1597 = vmatprep.subr.mxu0 0.0
  %1598 = vmatpush1.msra.mxu0 0.0
  %1599 = vmatprep.subr.mxu0 0.0
  %1600 = vmatpush1.msra.mxu0 0.0
  %1601 = vmatprep.subr.mxu0 0.0
  %1602 = vmatpush1.msra.mxu0 0.0
  %1603 = vmatprep.subr.mxu0 0.0
  %1604 = vmatpush1.msra.mxu0 0.0
  %1605 = vmatprep.subr.mxu0 0.0
  %1606 = vmatpush1.msra.mxu0 0.0
  %1607 = vmatprep.subr.mxu0 0.0
  %1608 = vmatpush1.msra.mxu0 0.0
  %1609 = vmatprep.subr.mxu0 0.0
  %1610 = vmatpush1.msra.mxu0 0.0
  %1611 = vmatprep.subr.mxu0 0.0
  %1612 = vmatpush1.msra.mxu0 0.0
  %1613 = vmatprep.subr.mxu0 0.0
  %1614 = vmatpush1.msra.mxu0 0.0
  %1615 = vmatprep.subr.mxu0 0.0
  %1616 = vmatpush1.msra.mxu0 0.0
  %1617 = vmatprep.subr.mxu0 0.0
  %1618 = vmatpush1.msra.mxu0 0.0
  %1619 = vmatprep.subr.mxu0 0.0
  %1620 = vmatpush1.msra.mxu0 0.0
  %1621 = vmatprep.subr.mxu0 0.0
  %1622 = vmatpush1.msra.mxu0 0.0
  %1623 = vmatprep.subr.mxu0 0.0
  %1624 = vmatpush1.msra.mxu0 %v1421
  %1625 = vmatprep.subr.mxu0 0.0
  %1626 = vmatpush2.msra.mxu0 0.0
  %1627 = vmatprep.subr.mxu0 0.0
  %1628 = vmatpush2.msra.mxu0 0.0
  %1629 = vmatprep.subr.mxu0 0.0
  %1630 = vmatpush2.msra.mxu0 0.0
  %1631 = vmatprep.subr.mxu0 0.0
  %1632 = vmatpush2.msra.mxu0 0.0
  %1633 = vmatprep.subr.mxu0 0.0
  %1634 = vmatpush2.msra.mxu0 0.0
  %1635 = vmatprep.subr.mxu0 0.0
  %1636 = vmatpush2.msra.mxu0 0.0
  %1637 = vmatprep.subr.mxu0 0.0
  %1638 = vmatpush2.msra.mxu0 0.0
  %1639 = vmatprep.subr.mxu0 0.0
  %1640 = vmatpush2.msra.mxu0 0.0
  %1641 = vmatprep.subr.mxu0 0.0
  %1642 = vmatpush2.msra.mxu0 0.0
  %1643 = vmatprep.subr.mxu0 0.0
  %1644 = vmatpush2.msra.mxu0 0.0
  %1645 = vmatprep.subr.mxu0 0.0
  %1646 = vmatpush2.msra.mxu0 0.0
  %1647 = vmatprep.subr.mxu0 0.0
  %1648 = vmatpush2.msra.mxu0 0.0
  %1649 = vmatprep.subr.mxu0 0.0
  %1650 = vmatpush2.msra.mxu0 0.0
  %1651 = vmatprep.subr.mxu0 0.0
  %1652 = vmatpush2.msra.mxu0 0.0
  %1653 = vmatprep.subr.mxu0 0.0
  %1654 = vmatpush2.msra.mxu0 0.0
  %1655 = vmatprep.subr.mxu0 0.0
  %1656 = vmatpush2.msra.mxu0 0.0
  %1657 = vmatprep.mubr.f32.mxu0 0.0
  %1658 = vmatmul.mubr.f32.gmra.mxu0 %v1591
  %v1659 = vpop.f32.mrf.mxu0
  %v1660 = vadd.f32 0.0, %v1659
  %v1661 = vpop.f32.mrf.mxu0
  %1662 = vdwg.mxu0
  %v1663 = vadd.f32 %v1425, %v1660
  %1664 = vrot.lane.b32.xlu0 %v1418, 120
  %v1665 = vpop.permute.xlu0 %1664
  %1666 = vrot.lane.b32.xlu0 %v1418, 88
  %v1667 = vpop.permute.xlu0 %1666
  %v1668 = vsel %vm187, %v1665, 0
  %v1670 = vsel %vm187, %v1667, 0
  %1672 = vmatprep.subr.mxu0 0.0
  %1673 = vmatpush1.xpose.msra.mxu0 0.0
  %1674 = vmatprep.subr.mxu0 0.0
  %1675 = vmatpush1.xpose.msra.mxu0 0.0
  %1676 = vmatprep.subr.mxu0 0.0
  %1677 = vmatpush1.xpose.msra.mxu0 0.0
  %1678 = vmatprep.subr.mxu0 0.0
  %1679 = vmatpush1.xpose.msra.mxu0 0.0
  %1680 = vmatprep.subr.mxu0 0.0
  %1681 = vmatpush1.xpose.msra.mxu0 0.0
  %1682 = vmatprep.subr.mxu0 0.0
  %1683 = vmatpush1.xpose.msra.mxu0 0.0
  %1684 = vmatprep.subr.mxu0 0.0
  %1685 = vmatpush1.xpose.msra.mxu0 0.0
  %1686 = vmatprep.subr.mxu0 0.0
  %1687 = vmatpush1.xpose.msra.mxu0 0.0
  %1688 = vmatprep.subr.mxu0 0.0
  %1689 = vmatpush1.xpose.msra.mxu0 0.0
  %1690 = vmatprep.subr.mxu0 0.0
  %1691 = vmatpush1.xpose.msra.mxu0 0.0
  %1692 = vmatprep.subr.mxu0 0.0
  %1693 = vmatpush1.xpose.msra.mxu0 0.0
  %1694 = vmatprep.subr.mxu0 0.0
  %1695 = vmatpush1.xpose.msra.mxu0 0.0
  %1696 = vmatprep.subr.mxu0 0.0
  %1697 = vmatpush1.xpose.msra.mxu0 0.0
  %1698 = vmatprep.subr.mxu0 0.0
  %1699 = vmatpush1.xpose.msra.mxu0 0.0
  %1700 = vmatprep.subr.mxu0 0.0
  %1701 = vmatpush1.xpose.msra.mxu0 0.0
  %1702 = vmatprep.subr.mxu0 0.0
  %1703 = vmatpush1.xpose.msra.mxu0 %v1670
  %1704 = vmatprep.subr.mxu0 0.0
  %1705 = vmatpush2.xpose.msra.mxu0 0.0
  %1706 = vmatprep.subr.mxu0 0.0
  %1707 = vmatpush2.xpose.msra.mxu0 0.0
  %1708 = vmatprep.subr.mxu0 0.0
  %1709 = vmatpush2.xpose.msra.mxu0 0.0
  %1710 = vmatprep.subr.mxu0 0.0
  %1711 = vmatpush2.xpose.msra.mxu0 0.0
  %1712 = vmatprep.subr.mxu0 0.0
  %1713 = vmatpush2.xpose.msra.mxu0 0.0
  %1714 = vmatprep.subr.mxu0 0.0
  %1715 = vmatpush2.xpose.msra.mxu0 0.0
  %1716 = vmatprep.subr.mxu0 0.0
  %1717 = vmatpush2.xpose.msra.mxu0 0.0
  %1718 = vmatprep.subr.mxu0 0.0
  %1719 = vmatpush2.xpose.msra.mxu0 0.0
  %1720 = vmatprep.subr.mxu0 0.0
  %1721 = vmatpush2.xpose.msra.mxu0 0.0
  %1722 = vmatprep.subr.mxu0 0.0
  %1723 = vmatpush2.xpose.msra.mxu0 0.0
  %1724 = vmatprep.subr.mxu0 0.0
  %1725 = vmatpush2.xpose.msra.mxu0 0.0
  %1726 = vmatprep.subr.mxu0 0.0
  %1727 = vmatpush2.xpose.msra.mxu0 0.0
  %1728 = vmatprep.subr.mxu0 0.0
  %1729 = vmatpush2.xpose.msra.mxu0 0.0
  %1730 = vmatprep.subr.mxu0 0.0
  %1731 = vmatpush2.xpose.msra.mxu0 0.0
  %1732 = vmatprep.subr.mxu0 0.0
  %1733 = vmatpush2.xpose.msra.mxu0 0.0
  %1734 = vmatprep.subr.mxu0 0.0
  %1735 = vmatpush2.xpose.msra.mxu0 0.0
  %1736 = vmatprep.mubr.f32.mxu0 0.0
  %1737 = vmatmul.mubr.f32.gmra.mxu0 %v1668
  %v1738 = vpop.f32.mrf.mxu0
  %v1739 = vadd.f32 0.0, %v1738
  %v1740 = vpop.f32.mrf.mxu0
  %1741 = vdwg.mxu0
  %v1742 = vsel %vm187, %v1739, -inf
  %1743 = vmax.xlane.f32.xlu0 %v1742
  %v1744 = vpop.xlane.xlu0 %1743
  %v1745 = vsub.f32 %v1739, %v1744
  %v1746 = vmul.f32 %v1745, 1.442695
  %v1747 = vpow.pop %v1746
  %v1748 = vsel %vm187, %v1747, 0.0
  %1749 = vadd.xlane.f32.xlu0 %v1748
  %v1750 = vpop.xlane.xlu0 %1749
  %v1751 = vrcp.pop %v1750
  %v1752 = vmul.f32 %v1747, %v1751
  %1753 = vrot.lane.b32.xlu0 %v1418, 56
  %v1754 = vpop.permute.xlu0 %1753
  %v1757 = vsel %vm187, %v1752, 0
  %1759 = vmatprep.subr.mxu0 0.0
  %1760 = vmatpush1.msra.mxu0 0.0
  %1761 = vmatprep.subr.mxu0 0.0
  %1762 = vmatpush1.msra.mxu0 0.0
  %1763 = vmatprep.subr.mxu0 0.0
  %1764 = vmatpush1.msra.mxu0 0.0
  %1765 = vmatprep.subr.mxu0 0.0
  %1766 = vmatpush1.msra.mxu0 0.0
  %1767 = vmatprep.subr.mxu0 0.0
  %1768 = vmatpush1.msra.mxu0 0.0
  %1769 = vmatprep.subr.mxu0 0.0
  %1770 = vmatpush1.msra.mxu0 0.0
  %1771 = vmatprep.subr.mxu0 0.0
  %1772 = vmatpush1.msra.mxu0 0.0
  %1773 = vmatprep.subr.mxu0 0.0
  %1774 = vmatpush1.msra.mxu0 0.0
  %1775 = vmatprep.subr.mxu0 0.0
  %1776 = vmatpush1.msra.mxu0 0.0
  %1777 = vmatprep.subr.mxu0 0.0
  %1778 = vmatpush1.msra.mxu0 0.0
  %1779 = vmatprep.subr.mxu0 0.0
  %1780 = vmatpush1.msra.mxu0 0.0
  %1781 = vmatprep.subr.mxu0 0.0
  %1782 = vmatpush1.msra.mxu0 0.0
  %1783 = vmatprep.subr.mxu0 0.0
  %1784 = vmatpush1.msra.mxu0 0.0
  %1785 = vmatprep.subr.mxu0 0.0
  %1786 = vmatpush1.msra.mxu0 0.0
  %1787 = vmatprep.subr.mxu0 0.0
  %1788 = vmatpush1.msra.mxu0 0.0
  %1789 = vmatprep.subr.mxu0 0.0
  %1790 = vmatpush1.msra.mxu0 %v1754
  %1791 = vmatprep.subr.mxu0 0.0
  %1792 = vmatpush2.msra.mxu0 0.0
  %1793 = vmatprep.subr.mxu0 0.0
  %1794 = vmatpush2.msra.mxu0 0.0
  %1795 = vmatprep.subr.mxu0 0.0
  %1796 = vmatpush2.msra.mxu0 0.0
  %1797 = vmatprep.subr.mxu0 0.0
  %1798 = vmatpush2.msra.mxu0 0.0
  %1799 = vmatprep.subr.mxu0 0.0
  %1800 = vmatpush2.msra.mxu0 0.0
  %1801 = vmatprep.subr.mxu0 0.0
  %1802 = vmatpush2.msra.mxu0 0.0
  %1803 = vmatprep.subr.mxu0 0.0
  %1804 = vmatpush2.msra.mxu0 0.0
  %1805 = vmatprep.subr.mxu0 0.0
  %1806 = vmatpush2.msra.mxu0 0.0
  %1807 = vmatprep.subr.mxu0 0.0
  %1808 = vmatpush2.msra.mxu0 0.0
  %1809 = vmatprep.subr.mxu0 0.0
  %1810 = vmatpush2.msra.mxu0 0.0
  %1811 = vmatprep.subr.mxu0 0.0
  %1812 = vmatpush2.msra.mxu0 0.0
  %1813 = vmatprep.subr.mxu0 0.0
  %1814 = vmatpush2.msra.mxu0 0.0
  %1815 = vmatprep.subr.mxu0 0.0
  %1816 = vmatpush2.msra.mxu0 0.0
  %1817 = vmatprep.subr.mxu0 0.0
  %1818 = vmatpush2.msra.mxu0 0.0
  %1819 = vmatprep.subr.mxu0 0.0
  %1820 = vmatpush2.msra.mxu0 0.0
  %1821 = vmatprep.subr.mxu0 0.0
  %1822 = vmatpush2.msra.mxu0 0.0
  %1823 = vmatprep.mubr.f32.mxu0 0.0
  %1824 = vmatmul.mubr.f32.gmra.mxu0 %v1757
  %v1825 = vpop.f32.mrf.mxu0
  %v1826 = vadd.f32 0.0, %v1825
  %v1827 = vpop.f32.mrf.mxu0
  %1828 = vdwg.mxu0
  %v1830 = vsel %vm187, %v1826, 0
  %1832 = vmatprep.subr.mxu0 0.0
  %1833 = vmatpush1.msra.mxu0 0.0
  %1834 = vmatprep.subr.mxu0 0.0
  %1835 = vmatpush1.msra.mxu0 0.0
  %1836 = vmatprep.subr.mxu0 0.0
  %1837 = vmatpush1.msra.mxu0 0.0
  %1838 = vmatprep.subr.mxu0 0.0
  %1839 = vmatpush1.msra.mxu0 0.0
  %1840 = vmatprep.subr.mxu0 0.0
  %1841 = vmatpush1.msra.mxu0 0.0
  %1842 = vmatprep.subr.mxu0 0.0
  %1843 = vmatpush1.msra.mxu0 0.0
  %1844 = vmatprep.subr.mxu0 0.0
  %1845 = vmatpush1.msra.mxu0 0.0
  %1846 = vmatprep.subr.mxu0 0.0
  %1847 = vmatpush1.msra.mxu0 0.0
  %1848 = vmatprep.subr.mxu0 0.0
  %1849 = vmatpush1.msra.mxu0 0.0
  %1850 = vmatprep.subr.mxu0 0.0
  %1851 = vmatpush1.msra.mxu0 0.0
  %1852 = vmatprep.subr.mxu0 0.0
  %1853 = vmatpush1.msra.mxu0 0.0
  %1854 = vmatprep.subr.mxu0 0.0
  %1855 = vmatpush1.msra.mxu0 0.0
  %1856 = vmatprep.subr.mxu0 0.0
  %1857 = vmatpush1.msra.mxu0 0.0
  %1858 = vmatprep.subr.mxu0 0.0
  %1859 = vmatpush1.msra.mxu0 0.0
  %1860 = vmatprep.subr.mxu0 0.0
  %1861 = vmatpush1.msra.mxu0 0.0
  %1862 = vmatprep.subr.mxu0 0.0
  %1863 = vmatpush1.msra.mxu0 %v1422
  %1864 = vmatprep.subr.mxu0 0.0
  %1865 = vmatpush2.msra.mxu0 0.0
  %1866 = vmatprep.subr.mxu0 0.0
  %1867 = vmatpush2.msra.mxu0 0.0
  %1868 = vmatprep.subr.mxu0 0.0
  %1869 = vmatpush2.msra.mxu0 0.0
  %1870 = vmatprep.subr.mxu0 0.0
  %1871 = vmatpush2.msra.mxu0 0.0
  %1872 = vmatprep.subr.mxu0 0.0
  %1873 = vmatpush2.msra.mxu0 0.0
  %1874 = vmatprep.subr.mxu0 0.0
  %1875 = vmatpush2.msra.mxu0 0.0
  %1876 = vmatprep.subr.mxu0 0.0
  %1877 = vmatpush2.msra.mxu0 0.0
  %1878 = vmatprep.subr.mxu0 0.0
  %1879 = vmatpush2.msra.mxu0 0.0
  %1880 = vmatprep.subr.mxu0 0.0
  %1881 = vmatpush2.msra.mxu0 0.0
  %1882 = vmatprep.subr.mxu0 0.0
  %1883 = vmatpush2.msra.mxu0 0.0
  %1884 = vmatprep.subr.mxu0 0.0
  %1885 = vmatpush2.msra.mxu0 0.0
  %1886 = vmatprep.subr.mxu0 0.0
  %1887 = vmatpush2.msra.mxu0 0.0
  %1888 = vmatprep.subr.mxu0 0.0
  %1889 = vmatpush2.msra.mxu0 0.0
  %1890 = vmatprep.subr.mxu0 0.0
  %1891 = vmatpush2.msra.mxu0 0.0
  %1892 = vmatprep.subr.mxu0 0.0
  %1893 = vmatpush2.msra.mxu0 0.0
  %1894 = vmatprep.subr.mxu0 0.0
  %1895 = vmatpush2.msra.mxu0 0.0
  %1896 = vmatprep.mubr.f32.mxu0 0.0
  %1897 = vmatmul.mubr.f32.gmra.mxu0 %v1830
  %v1898 = vpop.f32.mrf.mxu0
  %v1899 = vadd.f32 0.0, %v1898
  %v1900 = vpop.f32.mrf.mxu0
  %1901 = vdwg.mxu0
  %v1902 = vadd.f32 %v1663, %v1899
  %1903 = vrot.lane.b32.xlu0 %v1418, 112
  %v1904 = vpop.permute.xlu0 %1903
  %1905 = vrot.lane.b32.xlu0 %v1418, 80
  %v1906 = vpop.permute.xlu0 %1905
  %v1907 = vsel %vm187, %v1904, 0
  %v1909 = vsel %vm187, %v1906, 0
  %1911 = vmatprep.subr.mxu0 0.0
  %1912 = vmatpush1.xpose.msra.mxu0 0.0
  %1913 = vmatprep.subr.mxu0 0.0
  %1914 = vmatpush1.xpose.msra.mxu0 0.0
  %1915 = vmatprep.subr.mxu0 0.0
  %1916 = vmatpush1.xpose.msra.mxu0 0.0
  %1917 = vmatprep.subr.mxu0 0.0
  %1918 = vmatpush1.xpose.msra.mxu0 0.0
  %1919 = vmatprep.subr.mxu0 0.0
  %1920 = vmatpush1.xpose.msra.mxu0 0.0
  %1921 = vmatprep.subr.mxu0 0.0
  %1922 = vmatpush1.xpose.msra.mxu0 0.0
  %1923 = vmatprep.subr.mxu0 0.0
  %1924 = vmatpush1.xpose.msra.mxu0 0.0
  %1925 = vmatprep.subr.mxu0 0.0
  %1926 = vmatpush1.xpose.msra.mxu0 0.0
  %1927 = vmatprep.subr.mxu0 0.0
  %1928 = vmatpush1.xpose.msra.mxu0 0.0
  %1929 = vmatprep.subr.mxu0 0.0
  %1930 = vmatpush1.xpose.msra.mxu0 0.0
  %1931 = vmatprep.subr.mxu0 0.0
  %1932 = vmatpush1.xpose.msra.mxu0 0.0
  %1933 = vmatprep.subr.mxu0 0.0
  %1934 = vmatpush1.xpose.msra.mxu0 0.0
  %1935 = vmatprep.subr.mxu0 0.0
  %1936 = vmatpush1.xpose.msra.mxu0 0.0
  %1937 = vmatprep.subr.mxu0 0.0
  %1938 = vmatpush1.xpose.msra.mxu0 0.0
  %1939 = vmatprep.subr.mxu0 0.0
  %1940 = vmatpush1.xpose.msra.mxu0 0.0
  %1941 = vmatprep.subr.mxu0 0.0
  %1942 = vmatpush1.xpose.msra.mxu0 %v1909
  %1943 = vmatprep.subr.mxu0 0.0
  %1944 = vmatpush2.xpose.msra.mxu0 0.0
  %1945 = vmatprep.subr.mxu0 0.0
  %1946 = vmatpush2.xpose.msra.mxu0 0.0
  %1947 = vmatprep.subr.mxu0 0.0
  %1948 = vmatpush2.xpose.msra.mxu0 0.0
  %1949 = vmatprep.subr.mxu0 0.0
  %1950 = vmatpush2.xpose.msra.mxu0 0.0
  %1951 = vmatprep.subr.mxu0 0.0
  %1952 = vmatpush2.xpose.msra.mxu0 0.0
  %1953 = vmatprep.subr.mxu0 0.0
  %1954 = vmatpush2.xpose.msra.mxu0 0.0
  %1955 = vmatprep.subr.mxu0 0.0
  %1956 = vmatpush2.xpose.msra.mxu0 0.0
  %1957 = vmatprep.subr.mxu0 0.0
  %1958 = vmatpush2.xpose.msra.mxu0 0.0
  %1959 = vmatprep.subr.mxu0 0.0
  %1960 = vmatpush2.xpose.msra.mxu0 0.0
  %1961 = vmatprep.subr.mxu0 0.0
  %1962 = vmatpush2.xpose.msra.mxu0 0.0
  %1963 = vmatprep.subr.mxu0 0.0
  %1964 = vmatpush2.xpose.msra.mxu0 0.0
  %1965 = vmatprep.subr.mxu0 0.0
  %1966 = vmatpush2.xpose.msra.mxu0 0.0
  %1967 = vmatprep.subr.mxu0 0.0
  %1968 = vmatpush2.xpose.msra.mxu0 0.0
  %1969 = vmatprep.subr.mxu0 0.0
  %1970 = vmatpush2.xpose.msra.mxu0 0.0
  %1971 = vmatprep.subr.mxu0 0.0
  %1972 = vmatpush2.xpose.msra.mxu0 0.0
  %1973 = vmatprep.subr.mxu0 0.0
  %1974 = vmatpush2.xpose.msra.mxu0 0.0
  %1975 = vmatprep.mubr.f32.mxu0 0.0
  %1976 = vmatmul.mubr.f32.gmra.mxu0 %v1907
  %v1977 = vpop.f32.mrf.mxu0
  %v1978 = vadd.f32 0.0, %v1977
  %v1979 = vpop.f32.mrf.mxu0
  %1980 = vdwg.mxu0
  %v1981 = vsel %vm187, %v1978, -inf
  %1982 = vmax.xlane.f32.xlu0 %v1981
  %v1983 = vpop.xlane.xlu0 %1982
  %v1984 = vsub.f32 %v1978, %v1983
  %v1985 = vmul.f32 %v1984, 1.442695
  %v1986 = vpow.pop %v1985
  %v1987 = vsel %vm187, %v1986, 0.0
  %1988 = vadd.xlane.f32.xlu0 %v1987
  %v1989 = vpop.xlane.xlu0 %1988
  %v1990 = vrcp.pop %v1989
  %v1991 = vmul.f32 %v1986, %v1990
  %1992 = vrot.lane.b32.xlu0 %v1418, 48
  %v1993 = vpop.permute.xlu0 %1992
  %v1996 = vsel %vm187, %v1991, 0
  %1998 = vmatprep.subr.mxu0 0.0
  %1999 = vmatpush1.msra.mxu0 0.0
  %2000 = vmatprep.subr.mxu0 0.0
  %2001 = vmatpush1.msra.mxu0 0.0
  %2002 = vmatprep.subr.mxu0 0.0
  %2003 = vmatpush1.msra.mxu0 0.0
  %2004 = vmatprep.subr.mxu0 0.0
  %2005 = vmatpush1.msra.mxu0 0.0
  %2006 = vmatprep.subr.mxu0 0.0
  %2007 = vmatpush1.msra.mxu0 0.0
  %2008 = vmatprep.subr.mxu0 0.0
  %2009 = vmatpush1.msra.mxu0 0.0
  %2010 = vmatprep.subr.mxu0 0.0
  %2011 = vmatpush1.msra.mxu0 0.0
  %2012 = vmatprep.subr.mxu0 0.0
  %2013 = vmatpush1.msra.mxu0 0.0
  %2014 = vmatprep.subr.mxu0 0.0
  %2015 = vmatpush1.msra.mxu0 0.0
  %2016 = vmatprep.subr.mxu0 0.0
  %2017 = vmatpush1.msra.mxu0 0.0
  %2018 = vmatprep.subr.mxu0 0.0
  %2019 = vmatpush1.msra.mxu0 0.0
  %2020 = vmatprep.subr.mxu0 0.0
  %2021 = vmatpush1.msra.mxu0 0.0
  %2022 = vmatprep.subr.mxu0 0.0
  %2023 = vmatpush1.msra.mxu0 0.0
  %2024 = vmatprep.subr.mxu0 0.0
  %2025 = vmatpush1.msra.mxu0 0.0
  %2026 = vmatprep.subr.mxu0 0.0
  %2027 = vmatpush1.msra.mxu0 0.0
  %2028 = vmatprep.subr.mxu0 0.0
  %2029 = vmatpush1.msra.mxu0 %v1993
  %2030 = vmatprep.subr.mxu0 0.0
  %2031 = vmatpush2.msra.mxu0 0.0
  %2032 = vmatprep.subr.mxu0 0.0
  %2033 = vmatpush2.msra.mxu0 0.0
  %2034 = vmatprep.subr.mxu0 0.0
  %2035 = vmatpush2.msra.mxu0 0.0
  %2036 = vmatprep.subr.mxu0 0.0
  %2037 = vmatpush2.msra.mxu0 0.0
  %2038 = vmatprep.subr.mxu0 0.0
  %2039 = vmatpush2.msra.mxu0 0.0
  %2040 = vmatprep.subr.mxu0 0.0
  %2041 = vmatpush2.msra.mxu0 0.0
  %2042 = vmatprep.subr.mxu0 0.0
  %2043 = vmatpush2.msra.mxu0 0.0
  %2044 = vmatprep.subr.mxu0 0.0
  %2045 = vmatpush2.msra.mxu0 0.0
  %2046 = vmatprep.subr.mxu0 0.0
  %2047 = vmatpush2.msra.mxu0 0.0
  %2048 = vmatprep.subr.mxu0 0.0
  %2049 = vmatpush2.msra.mxu0 0.0
  %2050 = vmatprep.subr.mxu0 0.0
  %2051 = vmatpush2.msra.mxu0 0.0
  %2052 = vmatprep.subr.mxu0 0.0
  %2053 = vmatpush2.msra.mxu0 0.0
  %2054 = vmatprep.subr.mxu0 0.0
  %2055 = vmatpush2.msra.mxu0 0.0
  %2056 = vmatprep.subr.mxu0 0.0
  %2057 = vmatpush2.msra.mxu0 0.0
  %2058 = vmatprep.subr.mxu0 0.0
  %2059 = vmatpush2.msra.mxu0 0.0
  %2060 = vmatprep.subr.mxu0 0.0
  %2061 = vmatpush2.msra.mxu0 0.0
  %2062 = vmatprep.mubr.f32.mxu0 0.0
  %2063 = vmatmul.mubr.f32.gmra.mxu0 %v1996
  %v2064 = vpop.f32.mrf.mxu0
  %v2065 = vadd.f32 0.0, %v2064
  %v2066 = vpop.f32.mrf.mxu0
  %2067 = vdwg.mxu0
  %v2069 = vsel %vm187, %v2065, 0
  %2071 = vmatprep.subr.mxu0 0.0
  %2072 = vmatpush1.msra.mxu0 0.0
  %2073 = vmatprep.subr.mxu0 0.0
  %2074 = vmatpush1.msra.mxu0 0.0
  %2075 = vmatprep.subr.mxu0 0.0
  %2076 = vmatpush1.msra.mxu0 0.0
  %2077 = vmatprep.subr.mxu0 0.0
  %2078 = vmatpush1.msra.mxu0 0.0
  %2079 = vmatprep.subr.mxu0 0.0
  %2080 = vmatpush1.msra.mxu0 0.0
  %2081 = vmatprep.subr.mxu0 0.0
  %2082 = vmatpush1.msra.mxu0 0.0
  %2083 = vmatprep.subr.mxu0 0.0
  %2084 = vmatpush1.msra.mxu0 0.0
  %2085 = vmatprep.subr.mxu0 0.0
  %2086 = vmatpush1.msra.mxu0 0.0
  %2087 = vmatprep.subr.mxu0 0.0
  %2088 = vmatpush1.msra.mxu0 0.0
  %2089 = vmatprep.subr.mxu0 0.0
  %2090 = vmatpush1.msra.mxu0 0.0
  %2091 = vmatprep.subr.mxu0 0.0
  %2092 = vmatpush1.msra.mxu0 0.0
  %2093 = vmatprep.subr.mxu0 0.0
  %2094 = vmatpush1.msra.mxu0 0.0
  %2095 = vmatprep.subr.mxu0 0.0
  %2096 = vmatpush1.msra.mxu0 0.0
  %2097 = vmatprep.subr.mxu0 0.0
  %2098 = vmatpush1.msra.mxu0 0.0
  %2099 = vmatprep.subr.mxu0 0.0
  %2100 = vmatpush1.msra.mxu0 0.0
  %2101 = vmatprep.subr.mxu0 0.0
  %2102 = vmatpush1.msra.mxu0 %v1423
  %2103 = vmatprep.subr.mxu0 0.0
  %2104 = vmatpush2.msra.mxu0 0.0
  %2105 = vmatprep.subr.mxu0 0.0
  %2106 = vmatpush2.msra.mxu0 0.0
  %2107 = vmatprep.subr.mxu0 0.0
  %2108 = vmatpush2.msra.mxu0 0.0
  %2109 = vmatprep.subr.mxu0 0.0
  %2110 = vmatpush2.msra.mxu0 0.0
  %2111 = vmatprep.subr.mxu0 0.0
  %2112 = vmatpush2.msra.mxu0 0.0
  %2113 = vmatprep.subr.mxu0 0.0
  %2114 = vmatpush2.msra.mxu0 0.0
  %2115 = vmatprep.subr.mxu0 0.0
  %2116 = vmatpush2.msra.mxu0 0.0
  %2117 = vmatprep.subr.mxu0 0.0
  %2118 = vmatpush2.msra.mxu0 0.0
  %2119 = vmatprep.subr.mxu0 0.0
  %2120 = vmatpush2.msra.mxu0 0.0
  %2121 = vmatprep.subr.mxu0 0.0
  %2122 = vmatpush2.msra.mxu0 0.0
  %2123 = vmatprep.subr.mxu0 0.0
  %2124 = vmatpush2.msra.mxu0 0.0
  %2125 = vmatprep.subr.mxu0 0.0
  %2126 = vmatpush2.msra.mxu0 0.0
  %2127 = vmatprep.subr.mxu0 0.0
  %2128 = vmatpush2.msra.mxu0 0.0
  %2129 = vmatprep.subr.mxu0 0.0
  %2130 = vmatpush2.msra.mxu0 0.0
  %2131 = vmatprep.subr.mxu0 0.0
  %2132 = vmatpush2.msra.mxu0 0.0
  %2133 = vmatprep.subr.mxu0 0.0
  %2134 = vmatpush2.msra.mxu0 0.0
  %2135 = vmatprep.mubr.f32.mxu0 0.0
  %2136 = vmatmul.mubr.f32.gmra.mxu0 %v2069
  %v2137 = vpop.f32.mrf.mxu0
  %v2138 = vadd.f32 0.0, %v2137
  %v2139 = vpop.f32.mrf.mxu0
  %2140 = vdwg.mxu0
  %v2141 = vadd.f32 %v1902, %v2138
  %2142 = vrot.lane.b32.xlu0 %v1418, 104
  %v2143 = vpop.permute.xlu0 %2142
  %2144 = vrot.lane.b32.xlu0 %v1418, 72
  %v2145 = vpop.permute.xlu0 %2144
  %v2146 = vsel %vm187, %v2143, 0
  %v2148 = vsel %vm187, %v2145, 0
  %2150 = vmatprep.subr.mxu0 0.0
  %2151 = vmatpush1.xpose.msra.mxu0 0.0
  %2152 = vmatprep.subr.mxu0 0.0
  %2153 = vmatpush1.xpose.msra.mxu0 0.0
  %2154 = vmatprep.subr.mxu0 0.0
  %2155 = vmatpush1.xpose.msra.mxu0 0.0
  %2156 = vmatprep.subr.mxu0 0.0
  %2157 = vmatpush1.xpose.msra.mxu0 0.0
  %2158 = vmatprep.subr.mxu0 0.0
  %2159 = vmatpush1.xpose.msra.mxu0 0.0
  %2160 = vmatprep.subr.mxu0 0.0
  %2161 = vmatpush1.xpose.msra.mxu0 0.0
  %2162 = vmatprep.subr.mxu0 0.0
  %2163 = vmatpush1.xpose.msra.mxu0 0.0
  %2164 = vmatprep.subr.mxu0 0.0
  %2165 = vmatpush1.xpose.msra.mxu0 0.0
  %2166 = vmatprep.subr.mxu0 0.0
  %2167 = vmatpush1.xpose.msra.mxu0 0.0
  %2168 = vmatprep.subr.mxu0 0.0
  %2169 = vmatpush1.xpose.msra.mxu0 0.0
  %2170 = vmatprep.subr.mxu0 0.0
  %2171 = vmatpush1.xpose.msra.mxu0 0.0
  %2172 = vmatprep.subr.mxu0 0.0
  %2173 = vmatpush1.xpose.msra.mxu0 0.0
  %2174 = vmatprep.subr.mxu0 0.0
  %2175 = vmatpush1.xpose.msra.mxu0 0.0
  %2176 = vmatprep.subr.mxu0 0.0
  %2177 = vmatpush1.xpose.msra.mxu0 0.0
  %2178 = vmatprep.subr.mxu0 0.0
  %2179 = vmatpush1.xpose.msra.mxu0 0.0
  %2180 = vmatprep.subr.mxu0 0.0
  %2181 = vmatpush1.xpose.msra.mxu0 %v2148
  %2182 = vmatprep.subr.mxu0 0.0
  %2183 = vmatpush2.xpose.msra.mxu0 0.0
  %2184 = vmatprep.subr.mxu0 0.0
  %2185 = vmatpush2.xpose.msra.mxu0 0.0
  %2186 = vmatprep.subr.mxu0 0.0
  %2187 = vmatpush2.xpose.msra.mxu0 0.0
  %2188 = vmatprep.subr.mxu0 0.0
  %2189 = vmatpush2.xpose.msra.mxu0 0.0
  %2190 = vmatprep.subr.mxu0 0.0
  %2191 = vmatpush2.xpose.msra.mxu0 0.0
  %2192 = vmatprep.subr.mxu0 0.0
  %2193 = vmatpush2.xpose.msra.mxu0 0.0
  %2194 = vmatprep.subr.mxu0 0.0
  %2195 = vmatpush2.xpose.msra.mxu0 0.0
  %2196 = vmatprep.subr.mxu0 0.0
  %2197 = vmatpush2.xpose.msra.mxu0 0.0
  %2198 = vmatprep.subr.mxu0 0.0
  %2199 = vmatpush2.xpose.msra.mxu0 0.0
  %2200 = vmatprep.subr.mxu0 0.0
  %2201 = vmatpush2.xpose.msra.mxu0 0.0
  %2202 = vmatprep.subr.mxu0 0.0
  %2203 = vmatpush2.xpose.msra.mxu0 0.0
  %2204 = vmatprep.subr.mxu0 0.0
  %2205 = vmatpush2.xpose.msra.mxu0 0.0
  %2206 = vmatprep.subr.mxu0 0.0
  %2207 = vmatpush2.xpose.msra.mxu0 0.0
  %2208 = vmatprep.subr.mxu0 0.0
  %2209 = vmatpush2.xpose.msra.mxu0 0.0
  %2210 = vmatprep.subr.mxu0 0.0
  %2211 = vmatpush2.xpose.msra.mxu0 0.0
  %2212 = vmatprep.subr.mxu0 0.0
  %2213 = vmatpush2.xpose.msra.mxu0 0.0
  %2214 = vmatprep.mubr.f32.mxu0 0.0
  %2215 = vmatmul.mubr.f32.gmra.mxu0 %v2146
  %v2216 = vpop.f32.mrf.mxu0
  %v2217 = vadd.f32 0.0, %v2216
  %v2218 = vpop.f32.mrf.mxu0
  %2219 = vdwg.mxu0
  %v2220 = vsel %vm187, %v2217, -inf
  %2221 = vmax.xlane.f32.xlu0 %v2220
  %v2222 = vpop.xlane.xlu0 %2221
  %v2223 = vsub.f32 %v2217, %v2222
  %v2224 = vmul.f32 %v2223, 1.442695
  %v2225 = vpow.pop %v2224
  %v2226 = vsel %vm187, %v2225, 0.0
  %2227 = vadd.xlane.f32.xlu0 %v2226
  %v2228 = vpop.xlane.xlu0 %2227
  %v2229 = vrcp.pop %v2228
  %v2230 = vmul.f32 %v2225, %v2229
  %2231 = vrot.lane.b32.xlu0 %v1418, 40
  %v2232 = vpop.permute.xlu0 %2231
  %v2235 = vsel %vm187, %v2230, 0
  %2237 = vmatprep.subr.mxu0 0.0
  %2238 = vmatpush1.msra.mxu0 0.0
  %2239 = vmatprep.subr.mxu0 0.0
  %2240 = vmatpush1.msra.mxu0 0.0
  %2241 = vmatprep.subr.mxu0 0.0
  %2242 = vmatpush1.msra.mxu0 0.0
  %2243 = vmatprep.subr.mxu0 0.0
  %2244 = vmatpush1.msra.mxu0 0.0
  %2245 = vmatprep.subr.mxu0 0.0
  %2246 = vmatpush1.msra.mxu0 0.0
  %2247 = vmatprep.subr.mxu0 0.0
  %2248 = vmatpush1.msra.mxu0 0.0
  %2249 = vmatprep.subr.mxu0 0.0
  %2250 = vmatpush1.msra.mxu0 0.0
  %2251 = vmatprep.subr.mxu0 0.0
  %2252 = vmatpush1.msra.mxu0 0.0
  %2253 = vmatprep.subr.mxu0 0.0
  %2254 = vmatpush1.msra.mxu0 0.0
  %2255 = vmatprep.subr.mxu0 0.0
  %2256 = vmatpush1.msra.mxu0 0.0
  %2257 = vmatprep.subr.mxu0 0.0
  %2258 = vmatpush1.msra.mxu0 0.0
  %2259 = vmatprep.subr.mxu0 0.0
  %2260 = vmatpush1.msra.mxu0 0.0
  %2261 = vmatprep.subr.mxu0 0.0
  %2262 = vmatpush1.msra.mxu0 0.0
  %2263 = vmatprep.subr.mxu0 0.0
  %2264 = vmatpush1.msra.mxu0 0.0
  %2265 = vmatprep.subr.mxu0 0.0
  %2266 = vmatpush1.msra.mxu0 0.0
  %2267 = vmatprep.subr.mxu0 0.0
  %2268 = vmatpush1.msra.mxu0 %v2232
  %2269 = vmatprep.subr.mxu0 0.0
  %2270 = vmatpush2.msra.mxu0 0.0
  %2271 = vmatprep.subr.mxu0 0.0
  %2272 = vmatpush2.msra.mxu0 0.0
  %2273 = vmatprep.subr.mxu0 0.0
  %2274 = vmatpush2.msra.mxu0 0.0
  %2275 = vmatprep.subr.mxu0 0.0
  %2276 = vmatpush2.msra.mxu0 0.0
  %2277 = vmatprep.subr.mxu0 0.0
  %2278 = vmatpush2.msra.mxu0 0.0
  %2279 = vmatprep.subr.mxu0 0.0
  %2280 = vmatpush2.msra.mxu0 0.0
  %2281 = vmatprep.subr.mxu0 0.0
  %2282 = vmatpush2.msra.mxu0 0.0
  %2283 = vmatprep.subr.mxu0 0.0
  %2284 = vmatpush2.msra.mxu0 0.0
  %2285 = vmatprep.subr.mxu0 0.0
  %2286 = vmatpush2.msra.mxu0 0.0
  %2287 = vmatprep.subr.mxu0 0.0
  %2288 = vmatpush2.msra.mxu0 0.0
  %2289 = vmatprep.subr.mxu0 0.0
  %2290 = vmatpush2.msra.mxu0 0.0
  %2291 = vmatprep.subr.mxu0 0.0
  %2292 = vmatpush2.msra.mxu0 0.0
  %2293 = vmatprep.subr.mxu0 0.0
  %2294 = vmatpush2.msra.mxu0 0.0
  %2295 = vmatprep.subr.mxu0 0.0
  %2296 = vmatpush2.msra.mxu0 0.0
  %2297 = vmatprep.subr.mxu0 0.0
  %2298 = vmatpush2.msra.mxu0 0.0
  %2299 = vmatprep.subr.mxu0 0.0
  %2300 = vmatpush2.msra.mxu0 0.0
  %2301 = vmatprep.mubr.f32.mxu0 0.0
  %2302 = vmatmul.mubr.f32.gmra.mxu0 %v2235
  %v2303 = vpop.f32.mrf.mxu0
  %v2304 = vadd.f32 0.0, %v2303
  %v2305 = vpop.f32.mrf.mxu0
  %2306 = vdwg.mxu0
  %v2308 = vsel %vm187, %v2304, 0
  %2310 = vmatprep.subr.mxu0 0.0
  %2311 = vmatpush1.msra.mxu0 0.0
  %2312 = vmatprep.subr.mxu0 0.0
  %2313 = vmatpush1.msra.mxu0 0.0
  %2314 = vmatprep.subr.mxu0 0.0
  %2315 = vmatpush1.msra.mxu0 0.0
  %2316 = vmatprep.subr.mxu0 0.0
  %2317 = vmatpush1.msra.mxu0 0.0
  %2318 = vmatprep.subr.mxu0 0.0
  %2319 = vmatpush1.msra.mxu0 0.0
  %2320 = vmatprep.subr.mxu0 0.0
  %2321 = vmatpush1.msra.mxu0 0.0
  %2322 = vmatprep.subr.mxu0 0.0
  %2323 = vmatpush1.msra.mxu0 0.0
  %2324 = vmatprep.subr.mxu0 0.0
  %2325 = vmatpush1.msra.mxu0 0.0
  %2326 = vmatprep.subr.mxu0 0.0
  %2327 = vmatpush1.msra.mxu0 0.0
  %2328 = vmatprep.subr.mxu0 0.0
  %2329 = vmatpush1.msra.mxu0 0.0
  %2330 = vmatprep.subr.mxu0 0.0
  %2331 = vmatpush1.msra.mxu0 0.0
  %2332 = vmatprep.subr.mxu0 0.0
  %2333 = vmatpush1.msra.mxu0 0.0
  %2334 = vmatprep.subr.mxu0 0.0
  %2335 = vmatpush1.msra.mxu0 0.0
  %2336 = vmatprep.subr.mxu0 0.0
  %2337 = vmatpush1.msra.mxu0 0.0
  %2338 = vmatprep.subr.mxu0 0.0
  %2339 = vmatpush1.msra.mxu0 0.0
  %2340 = vmatprep.subr.mxu0 0.0
  %2341 = vmatpush1.msra.mxu0 %v1424
  %2342 = vmatprep.subr.mxu0 0.0
  %2343 = vmatpush2.msra.mxu0 0.0
  %2344 = vmatprep.subr.mxu0 0.0
  %2345 = vmatpush2.msra.mxu0 0.0
  %2346 = vmatprep.subr.mxu0 0.0
  %2347 = vmatpush2.msra.mxu0 0.0
  %2348 = vmatprep.subr.mxu0 0.0
  %2349 = vmatpush2.msra.mxu0 0.0
  %2350 = vmatprep.subr.mxu0 0.0
  %2351 = vmatpush2.msra.mxu0 0.0
  %2352 = vmatprep.subr.mxu0 0.0
  %2353 = vmatpush2.msra.mxu0 0.0
  %2354 = vmatprep.subr.mxu0 0.0
  %2355 = vmatpush2.msra.mxu0 0.0
  %2356 = vmatprep.subr.mxu0 0.0
  %2357 = vmatpush2.msra.mxu0 0.0
  %2358 = vmatprep.subr.mxu0 0.0
  %2359 = vmatpush2.msra.mxu0 0.0
  %2360 = vmatprep.subr.mxu0 0.0
  %2361 = vmatpush2.msra.mxu0 0.0
  %2362 = vmatprep.subr.mxu0 0.0
  %2363 = vmatpush2.msra.mxu0 0.0
  %2364 = vmatprep.subr.mxu0 0.0
  %2365 = vmatpush2.msra.mxu0 0.0
  %2366 = vmatprep.subr.mxu0 0.0
  %2367 = vmatpush2.msra.mxu0 0.0
  %2368 = vmatprep.subr.mxu0 0.0
  %2369 = vmatpush2.msra.mxu0 0.0
  %2370 = vmatprep.subr.mxu0 0.0
  %2371 = vmatpush2.msra.mxu0 0.0
  %2372 = vmatprep.subr.mxu0 0.0
  %2373 = vmatpush2.msra.mxu0 0.0
  %2374 = vmatprep.mubr.f32.mxu0 0.0
  %2375 = vmatmul.mubr.f32.gmra.mxu0 %v2308
  %v2376 = vpop.f32.mrf.mxu0
  %v2377 = vadd.f32 0.0, %v2376
  %v2378 = vpop.f32.mrf.mxu0
  %2379 = vdwg.mxu0
  %v2380 = vadd.f32 %v2141, %v2377
  %v2381 = vadd.f32 %v97, %v2380
  %v2382 = vld [vmem:[%s1 + $0x188] sm:$0xff]
  %v2383 = vld [vmem:[%s1 + $0x198] sm:$0xff]
  %v2384 = vsel %vm105, %v2381, 0.0
  %2385 = vadd.xlane.f32.xlu0 %v2384
  %v2386 = vpop.xlane.xlu0 %2385
  %v2387 = vmul.f32 %v2386, %v1146
  %v2388 = vsub.f32 %v2381, %v2387
  %v2389 = vmul.f32 %v2388, %v2388
  %v2390 = vsel %vm105, %v2389, 0.0
  %2391 = vadd.xlane.f32.xlu0 %v2390
  %v2392 = vpop.xlane.xlu0 %2391
  %v2393 = vmul.f32 %v2392, %v1146
  %v2394 = vadd.f32 %v2393, 1e-05
  %v2395 = vrsqrt.pop %v2394
  %v2396 = vmul.f32 %v2388, %v2395
  %v2397 = vmul.f32 %v2396, %v2382
  %v2398 = vadd.f32 %v2397, %v2383
  %v2399 = vld [vmem:[%s2 + $0x20] sm:$0xff]
  %v2400 = vld [vmem:[%s2 + $0x28] sm:$0xff]
  %v2401 = vld [vmem:[%s2 + $0x30] sm:$0xff]
  %v2402 = vld [vmem:[%s2 + $0x38] sm:$0xff]
  %v2403 = vld [vmem:[%s2 + $0x48] sm:$0xff]
  %v2405 = vsel %vm105, %v2398, 0
  %2407 = vmatprep.subr.mxu0 0.0
  %2408 = vmatpush1.msra.mxu0 0.0
  %2409 = vmatprep.subr.mxu0 0.0
  %2410 = vmatpush1.msra.mxu0 0.0
  %2411 = vmatprep.subr.mxu0 0.0
  %2412 = vmatpush1.msra.mxu0 0.0
  %2413 = vmatprep.subr.mxu0 0.0
  %2414 = vmatpush1.msra.mxu0 0.0
  %2415 = vmatprep.subr.mxu0 0.0
  %2416 = vmatpush1.msra.mxu0 0.0
  %2417 = vmatprep.subr.mxu0 0.0
  %2418 = vmatpush1.msra.mxu0 0.0
  %2419 = vmatprep.subr.mxu0 0.0
  %2420 = vmatpush1.msra.mxu0 0.0
  %2421 = vmatprep.subr.mxu0 0.0
  %2422 = vmatpush1.msra.mxu0 0.0
  %2423 = vmatprep.subr.mxu0 0.0
  %2424 = vmatpush1.msra.mxu0 0.0
  %2425 = vmatprep.subr.mxu0 0.0
  %2426 = vmatpush1.msra.mxu0 0.0
  %2427 = vmatprep.subr.mxu0 0.0
  %2428 = vmatpush1.msra.mxu0 0.0
  %2429 = vmatprep.subr.mxu0 0.0
  %2430 = vmatpush1.msra.mxu0 0.0
  %2431 = vmatprep.subr.mxu0 0.0
  %2432 = vmatpush1.msra.mxu0 %v2402
  %2433 = vmatprep.subr.mxu0 0.0
  %2434 = vmatpush1.msra.mxu0 %v2401
  %2435 = vmatprep.subr.mxu0 0.0
  %2436 = vmatpush1.msra.mxu0 %v2400
  %2437 = vmatprep.subr.mxu0 0.0
  %2438 = vmatpush1.msra.mxu0 %v2399
  %2439 = vmatprep.subr.mxu0 0.0
  %2440 = vmatpush2.msra.mxu0 0.0
  %2441 = vmatprep.subr.mxu0 0.0
  %2442 = vmatpush2.msra.mxu0 0.0
  %2443 = vmatprep.subr.mxu0 0.0
  %2444 = vmatpush2.msra.mxu0 0.0
  %2445 = vmatprep.subr.mxu0 0.0
  %2446 = vmatpush2.msra.mxu0 0.0
  %2447 = vmatprep.subr.mxu0 0.0
  %2448 = vmatpush2.msra.mxu0 0.0
  %2449 = vmatprep.subr.mxu0 0.0
  %2450 = vmatpush2.msra.mxu0 0.0
  %2451 = vmatprep.subr.mxu0 0.0
  %2452 = vmatpush2.msra.mxu0 0.0
  %2453 = vmatprep.subr.mxu0 0.0
  %2454 = vmatpush2.msra.mxu0 0.0
  %2455 = vmatprep.subr.mxu0 0.0
  %2456 = vmatpush2.msra.mxu0 0.0
  %2457 = vmatprep.subr.mxu0 0.0
  %2458 = vmatpush2.msra.mxu0 0.0
  %2459 = vmatprep.subr.mxu0 0.0
  %2460 = vmatpush2.msra.mxu0 0.0
  %2461 = vmatprep.subr.mxu0 0.0
  %2462 = vmatpush2.msra.mxu0 0.0
  %2463 = vmatprep.subr.mxu0 0.0
  %2464 = vmatpush2.msra.mxu0 0.0
  %2465 = vmatprep.subr.mxu0 0.0
  %2466 = vmatpush2.msra.mxu0 0.0
  %2467 = vmatprep.subr.mxu0 0.0
  %2468 = vmatpush2.msra.mxu0 0.0
  %2469 = vmatprep.subr.mxu0 0.0
  %2470 = vmatpush2.msra.mxu0 0.0
  %2471 = vmatprep.mubr.f32.mxu0 0.0
  %2472 = vmatmul.mubr.f32.gmra.mxu0 %v2405
  %v2473 = vpop.f32.mrf.mxu0
  %v2474 = vadd.f32 %v2403, %v2473
  %v2475 = vpop.f32.mrf.mxu0
  %2476 = vdwg.mxu0
  %v2477 = vmax.f32 %v2474, 0.0
  %v2478 = vld [vmem:[%s1 + $0xf0] sm:$0xff]
  %v2479 = vld [vmem:[%s1 + $0xf8] sm:$0xff]
  %v2480 = vld [vmem:[%s1 + $0x100] sm:$0xff]
  %v2481 = vld [vmem:[%s1 + $0x108] sm:$0xff]
  %v2482 = vld [vmem:[%s1 + $0x110] sm:$0xff]
  %v2483 = vld [vmem:[%s1 + $0x118] sm:$0xff]
  %v2484 = vld [vmem:[%s1 + $0x120] sm:$0xff]
  %v2485 = vld [vmem:[%s1 + $0x128] sm:$0xff]
  %v2486 = vld [vmem:[%s1 + $0x130] sm:$0xff]
  %v2487 = vld [vmem:[%s1 + $0x138] sm:$0xff]
  %v2488 = vld [vmem:[%s1 + $0x140] sm:$0xff]
  %v2489 = vld [vmem:[%s1 + $0x148] sm:$0xff]
  %v2490 = vld [vmem:[%s1 + $0x150] sm:$0xff]
  %v2491 = vld [vmem:[%s1 + $0x158] sm:$0xff]
  %v2492 = vld [vmem:[%s1 + $0x160] sm:$0xff]
  %v2493 = vld [vmem:[%s1 + $0x168] sm:$0xff]
  %v2494 = vld [vmem:[%s1 + $0x178] sm:$0xff]
  %2495 = vmatprep.subr.mxu0 0.0
  %2496 = vmatpush1.msra.mxu0 %v2493
  %2497 = vmatprep.subr.mxu0 0.0
  %2498 = vmatpush1.msra.mxu0 %v2492
  %2499 = vmatprep.subr.mxu0 0.0
  %2500 = vmatpush1.msra.mxu0 %v2491
  %2501 = vmatprep.subr.mxu0 0.0
  %2502 = vmatpush1.msra.mxu0 %v2490
  %2503 = vmatprep.subr.mxu0 0.0
  %2504 = vmatpush1.msra.mxu0 %v2489
  %2505 = vmatprep.subr.mxu0 0.0
  %2506 = vmatpush1.msra.mxu0 %v2488
  %2507 = vmatprep.subr.mxu0 0.0
  %2508 = vmatpush1.msra.mxu0 %v2487
  %2509 = vmatprep.subr.mxu0 0.0
  %2510 = vmatpush1.msra.mxu0 %v2486
  %2511 = vmatprep.subr.mxu0 0.0
  %2512 = vmatpush1.msra.mxu0 %v2485
  %2513 = vmatprep.subr.mxu0 0.0
  %2514 = vmatpush1.msra.mxu0 %v2484
  %2515 = vmatprep.subr.mxu0 0.0
  %2516 = vmatpush1.msra.mxu0 %v2483
  %2517 = vmatprep.subr.mxu0 0.0
  %2518 = vmatpush1.msra.mxu0 %v2482
  %2519 = vmatprep.subr.mxu0 0.0
  %2520 = vmatpush1.msra.mxu0 %v2481
  %2521 = vmatprep.subr.mxu0 0.0
  %2522 = vmatpush1.msra.mxu0 %v2480
  %2523 = vmatprep.subr.mxu0 0.0
  %2524 = vmatpush1.msra.mxu0 %v2479
  %2525 = vmatprep.subr.mxu0 0.0
  %2526 = vmatpush1.msra.mxu0 %v2478
  %2527 = vmatprep.subr.mxu0 0.0
  %2528 = vmatpush2.msra.mxu0 0.0
  %2529 = vmatprep.subr.mxu0 0.0
  %2530 = vmatpush2.msra.mxu0 0.0
  %2531 = vmatprep.subr.mxu0 0.0
  %2532 = vmatpush2.msra.mxu0 0.0
  %2533 = vmatprep.subr.mxu0 0.0
  %2534 = vmatpush2.msra.mxu0 0.0
  %2535 = vmatprep.subr.mxu0 0.0
  %2536 = vmatpush2.msra.mxu0 0.0
  %2537 = vmatprep.subr.mxu0 0.0
  %2538 = vmatpush2.msra.mxu0 0.0
  %2539 = vmatprep.subr.mxu0 0.0
  %2540 = vmatpush2.msra.mxu0 0.0
  %2541 = vmatprep.subr.mxu0 0.0
  %2542 = vmatpush2.msra.mxu0 0.0
  %2543 = vmatprep.subr.mxu0 0.0
  %2544 = vmatpush2.msra.mxu0 0.0
  %2545 = vmatprep.subr.mxu0 0.0
  %2546 = vmatpush2.msra.mxu0 0.0
  %2547 = vmatprep.subr.mxu0 0.0
  %2548 = vmatpush2.msra.mxu0 0.0
  %2549 = vmatprep.subr.mxu0 0.0
  %2550 = vmatpush2.msra.mxu0 0.0
  %2551 = vmatprep.subr.mxu0 0.0
  %2552 = vmatpush2.msra.mxu0 0.0
  %2553 = vmatprep.subr.mxu0 0.0
  %2554 = vmatpush2.msra.mxu0 0.0
  %2555 = vmatprep.subr.mxu0 0.0
  %2556 = vmatpush2.msra.mxu0 0.0
  %2557 = vmatprep.subr.mxu0 0.0
  %2558 = vmatpush2.msra.mxu0 0.0
  %2559 = vmatprep.mubr.f32.mxu0 0.0
  %2560 = vmatmul.mubr.f32.gmra.mxu0 %v2477
  %v2561 = vpop.f32.mrf.mxu0
  %v2562 = vadd.f32 %v2494, %v2561
  %v2563 = vpop.f32.mrf.mxu0
  %2564 = vdwg.mxu0
  %v2565 = vadd.f32 %v2398, %v2562
  %v2566 = vld [vmem:[%s1 + $0x1a8] sm:$0xff]
  %v2567 = vld [vmem:[%s1 + $0x1b8] sm:$0xff]
  %v2568 = vsel %vm105, %v2565, 0.0
  %2569 = vadd.xlane.f32.xlu0 %v2568
  %v2570 = vpop.xlane.xlu0 %2569
  %v2571 = vmul.f32 %v2570, %v1146
  %v2572 = vsub.f32 %v2565, %v2571
  %v2573 = vmul.f32 %v2572, %v2572
  %v2574 = vsel %vm105, %v2573, 0.0
  %2575 = vadd.xlane.f32.xlu0 %v2574
  %v2576 = vpop.xlane.xlu0 %2575
  %v2577 = vmul.f32 %v2576, %v1146
  %v2578 = vadd.f32 %v2577, 1e-05
  %v2579 = vrsqrt.pop %v2578
  %v2580 = vmul.f32 %v2572, %v2579
  %v2581 = vmul.f32 %v2580, %v2566
  %v2582 = vadd.f32 %v2581, %v2567
  %v2583 = vadd.f32 %v16, %v1342
  %v2584 = vadd.f32 %v17, %v2582
  %2585 = vmatprep.subr.mxu0 0.0
  %2586 = vmatpush1.msra.mxu0 0.0
  %2587 = vmatprep.subr.mxu0 0.0
  %2588 = vmatpush1.msra.mxu0 0.0
  %2589 = vmatprep.subr.mxu0 0.0
  %2590 = vmatpush1.msra.mxu0 0.0
  %2591 = vmatprep.subr.mxu0 0.0
  %2592 = vmatpush1.msra.mxu0 0.0
  %2593 = vmatprep.subr.mxu0 0.0
  %2594 = vmatpush1.msra.mxu0 0.0
  %2595 = vmatprep.subr.mxu0 0.0
  %2596 = vmatpush1.msra.mxu0 0.0
  %2597 = vmatprep.subr.mxu0 0.0
  %2598 = vmatpush1.msra.mxu0 0.0
  %2599 = vmatprep.subr.mxu0 0.0
  %2600 = vmatpush1.msra.mxu0 0.0
  %2601 = vmatprep.subr.mxu0 0.0
  %2602 = vmatpush1.msra.mxu0 0.0
  %2603 = vmatprep.subr.mxu0 0.0
  %2604 = vmatpush1.msra.mxu0 0.0
  %2605 = vmatprep.subr.mxu0 0.0
  %2606 = vmatpush1.msra.mxu0 0.0
  %2607 = vmatprep.subr.mxu0 0.0
  %2608 = vmatpush1.msra.mxu0 0.0
  %2609 = vmatprep.subr.mxu0 0.0
  %2610 = vmatpush1.msra.mxu0 0.0
  %2611 = vmatprep.subr.mxu0 0.0
  %2612 = vmatpush1.msra.mxu0 0.0
  %2613 = vmatprep.subr.mxu0 0.0
  %2614 = vmatpush1.msra.mxu0 %v2582
  %2615 = vmatprep.subr.mxu0 0.0
  %2616 = vmatpush1.msra.mxu0 %v1342
  %2617 = vmatprep.subr.mxu0 0.0
  %2618 = vmatpush2.msra.mxu0 0.0
  %2619 = vmatprep.subr.mxu0 0.0
  %2620 = vmatpush2.msra.mxu0 0.0
  %2621 = vmatprep.subr.mxu0 0.0
  %2622 = vmatpush2.msra.mxu0 0.0
  %2623 = vmatprep.subr.mxu0 0.0
  %2624 = vmatpush2.msra.mxu0 0.0
  %2625 = vmatprep.subr.mxu0 0.0
  %2626 = vmatpush2.msra.mxu0 0.0
  %2627 = vmatprep.subr.mxu0 0.0
  %2628 = vmatpush2.msra.mxu0 0.0
  %2629 = vmatprep.subr.mxu0 0.0
  %2630 = vmatpush2.msra.mxu0 0.0
  %2631 = vmatprep.subr.mxu0 0.0
  %2632 = vmatpush2.msra.mxu0 0.0
  %2633 = vmatprep.subr.mxu0 0.0
  %2634 = vmatpush2.msra.mxu0 0.0
  %2635 = vmatprep.subr.mxu0 0.0
  %2636 = vmatpush2.msra.mxu0 0.0
  %2637 = vmatprep.subr.mxu0 0.0
  %2638 = vmatpush2.msra.mxu0 0.0
  %2639 = vmatprep.subr.mxu0 0.0
  %2640 = vmatpush2.msra.mxu0 0.0
  %2641 = vmatprep.subr.mxu0 0.0
  %2642 = vmatpush2.msra.mxu0 0.0
  %2643 = vmatprep.subr.mxu0 0.0
  %2644 = vmatpush2.msra.mxu0 0.0
  %2645 = vmatprep.subr.mxu0 0.0
  %2646 = vmatpush2.msra.mxu0 0.0
  %2647 = vmatprep.subr.mxu0 0.0
  %2648 = vmatpush2.msra.mxu0 0.0
  %2649 = vmatprep.mubr.f32.mxu0 0.0
  %2650 = vmatmul.mubr.f32.gmra.mxu0 %v20
  %v2651 = vpop.f32.mrf.mxu0
  %v2652 = vadd.f32 0.0, %v2651
  %v2653 = vpop.f32.mrf.mxu0
  %2654 = vmatprep.mubr.f32.mxu0 0.0
  %2655 = vmatmul.mubr.f32.gmra.mxu0 %v23
  %v2656 = vpop.f32.mrf.mxu0
  %v2657 = vadd.f32 0.0, %v2656
  %v2658 = vpop.f32.mrf.mxu0
  %2659 = vdwg.mxu0
  %v2661 = vsel %vm105, %v2652, 0
  %2663 = vmatprep.subr.mxu0 0.0
  %2664 = vmatpush1.msra.mxu0 0.0
  %2665 = vmatprep.subr.mxu0 0.0
  %2666 = vmatpush1.msra.mxu0 0.0
  %2667 = vmatprep.subr.mxu0 0.0
  %2668 = vmatpush1.msra.mxu0 0.0
  %2669 = vmatprep.subr.mxu0 0.0
  %2670 = vmatpush1.msra.mxu0 0.0
  %2671 = vmatprep.subr.mxu0 0.0
  %2672 = vmatpush1.msra.mxu0 0.0
  %2673 = vmatprep.subr.mxu0 0.0
  %2674 = vmatpush1.msra.mxu0 0.0
  %2675 = vmatprep.subr.mxu0 0.0
  %2676 = vmatpush1.msra.mxu0 0.0
  %2677 = vmatprep.subr.mxu0 0.0
  %2678 = vmatpush1.msra.mxu0 0.0
  %2679 = vmatprep.subr.mxu0 0.0
  %2680 = vmatpush1.msra.mxu0 0.0
  %2681 = vmatprep.subr.mxu0 0.0
  %2682 = vmatpush1.msra.mxu0 0.0
  %2683 = vmatprep.subr.mxu0 0.0
  %2684 = vmatpush1.msra.mxu0 0.0
  %2685 = vmatprep.subr.mxu0 0.0
  %2686 = vmatpush1.msra.mxu0 0.0
  %2687 = vmatprep.subr.mxu0 0.0
  %2688 = vmatpush1.msra.mxu0 %v103
  %2689 = vmatprep.subr.mxu0 0.0
  %2690 = vmatpush1.msra.mxu0 %v102
  %2691 = vmatprep.subr.mxu0 0.0
  %2692 = vmatpush1.msra.mxu0 %v101
  %2693 = vmatprep.subr.mxu0 0.0
  %2694 = vmatpush1.msra.mxu0 %v100
  %2695 = vmatprep.subr.mxu0 0.0
  %2696 = vmatpush2.msra.mxu0 0.0
  %2697 = vmatprep.subr.mxu0 0.0
  %2698 = vmatpush2.msra.mxu0 0.0
  %2699 = vmatprep.subr.mxu0 0.0
  %2700 = vmatpush2.msra.mxu0 0.0
  %2701 = vmatprep.subr.mxu0 0.0
  %2702 = vmatpush2.msra.mxu0 0.0
  %2703 = vmatprep.subr.mxu0 0.0
  %2704 = vmatpush2.msra.mxu0 0.0
  %2705 = vmatprep.subr.mxu0 0.0
  %2706 = vmatpush2.msra.mxu0 0.0
  %2707 = vmatprep.subr.mxu0 0.0
  %2708 = vmatpush2.msra.mxu0 0.0
  %2709 = vmatprep.subr.mxu0 0.0
  %2710 = vmatpush2.msra.mxu0 0.0
  %2711 = vmatprep.subr.mxu0 0.0
  %2712 = vmatpush2.msra.mxu0 0.0
  %2713 = vmatprep.subr.mxu0 0.0
  %2714 = vmatpush2.msra.mxu0 0.0
  %2715 = vmatprep.subr.mxu0 0.0
  %2716 = vmatpush2.msra.mxu0 0.0
  %2717 = vmatprep.subr.mxu0 0.0
  %2718 = vmatpush2.msra.mxu0 0.0
  %2719 = vmatprep.subr.mxu0 0.0
  %2720 = vmatpush2.msra.mxu0 0.0
  %2721 = vmatprep.subr.mxu0 0.0
  %2722 = vmatpush2.msra.mxu0 0.0
  %2723 = vmatprep.subr.mxu0 0.0
  %2724 = vmatpush2.msra.mxu0 0.0
  %2725 = vmatprep.subr.mxu0 0.0
  %2726 = vmatpush2.msra.mxu0 0.0
  %2727 = vmatprep.mubr.f32.mxu0 0.0
  %2728 = vmatmul.mubr.f32.gmra.mxu0 %v2661
  %v2729 = vpop.f32.mrf.mxu0
  %v2730 = vadd.f32 %v104, %v2729
  %v2731 = vpop.f32.mrf.mxu0
  %2732 = vdwg.mxu0
  %2734 = vrot.lane.b32.xlu0 %v2730, 96
  %v2735 = vpop.permute.xlu0 %2734
  %v2736 = vsel %vm187, %v2730, 0
  %v2738 = vsel %vm187, %v2735, 0
  %2740 = vmatprep.subr.mxu0 0.0
  %2741 = vmatpush1.xpose.msra.mxu0 0.0
  %2742 = vmatprep.subr.mxu0 0.0
  %2743 = vmatpush1.xpose.msra.mxu0 0.0
  %2744 = vmatprep.subr.mxu0 0.0
  %2745 = vmatpush1.xpose.msra.mxu0 0.0
  %2746 = vmatprep.subr.mxu0 0.0
  %2747 = vmatpush1.xpose.msra.mxu0 0.0
  %2748 = vmatprep.subr.mxu0 0.0
  %2749 = vmatpush1.xpose.msra.mxu0 0.0
  %2750 = vmatprep.subr.mxu0 0.0
  %2751 = vmatpush1.xpose.msra.mxu0 0.0
  %2752 = vmatprep.subr.mxu0 0.0
  %2753 = vmatpush1.xpose.msra.mxu0 0.0
  %2754 = vmatprep.subr.mxu0 0.0
  %2755 = vmatpush1.xpose.msra.mxu0 0.0
  %2756 = vmatprep.subr.mxu0 0.0
  %2757 = vmatpush1.xpose.msra.mxu0 0.0
  %2758 = vmatprep.subr.mxu0 0.0
  %2759 = vmatpush1.xpose.msra.mxu0 0.0
  %2760 = vmatprep.subr.mxu0 0.0
  %2761 = vmatpush1.xpose.msra.mxu0 0.0
  %2762 = vmatprep.subr.mxu0 0.0
  %2763 = vmatpush1.xpose.msra.mxu0 0.0
  %2764 = vmatprep.subr.mxu0 0.0
  %2765 = vmatpush1.xpose.msra.mxu0 0.0
  %2766 = vmatprep.subr.mxu0 0.0
  %2767 = vmatpush1.xpose.msra.mxu0 0.0
  %2768 = vmatprep.subr.mxu0 0.0
  %2769 = vmatpush1.xpose.msra.mxu0 0.0
  %2770 = vmatprep.subr.mxu0 0.0
  %2771 = vmatpush1.xpose.msra.mxu0 %v2738
  %2772 = vmatprep.subr.mxu0 0.0
  %2773 = vmatpush2.xpose.msra.mxu0 0.0
  %2774 = vmatprep.subr.mxu0 0.0
  %2775 = vmatpush2.xpose.msra.mxu0 0.0
  %2776 = vmatprep.subr.mxu0 0.0
  %2777 = vmatpush2.xpose.msra.mxu0 0.0
  %2778 = vmatprep.subr.mxu0 0.0
  %2779 = vmatpush2.xpose.msra.mxu0 0.0
  %2780 = vmatprep.subr.mxu0 0.0
  %2781 = vmatpush2.xpose.msra.mxu0 0.0
  %2782 = vmatprep.subr.mxu0 0.0
  %2783 = vmatpush2.xpose.msra.mxu0 0.0
  %2784 = vmatprep.subr.mxu0 0.0
  %2785 = vmatpush2.xpose.msra.mxu0 0.0
  %2786 = vmatprep.subr.mxu0 0.0
  %2787 = vmatpush2.xpose.msra.mxu0 0.0
  %2788 = vmatprep.subr.mxu0 0.0
  %2789 = vmatpush2.xpose.msra.mxu0 0.0
  %2790 = vmatprep.subr.mxu0 0.0
  %2791 = vmatpush2.xpose.msra.mxu0 0.0
  %2792 = vmatprep.subr.mxu0 0.0
  %2793 = vmatpush2.xpose.msra.mxu0 0.0
  %2794 = vmatprep.subr.mxu0 0.0
  %2795 = vmatpush2.xpose.msra.mxu0 0.0
  %2796 = vmatprep.subr.mxu0 0.0
  %2797 = vmatpush2.xpose.msra.mxu0 0.0
  %2798 = vmatprep.subr.mxu0 0.0
  %2799 = vmatpush2.xpose.msra.mxu0 0.0
  %2800 = vmatprep.subr.mxu0 0.0
  %2801 = vmatpush2.xpose.msra.mxu0 0.0
  %2802 = vmatprep.subr.mxu0 0.0
  %2803 = vmatpush2.xpose.msra.mxu0 0.0
  %2804 = vmatprep.mubr.f32.mxu0 0.0
  %2805 = vmatmul.mubr.f32.gmra.mxu0 %v2736
  %v2806 = vpop.f32.mrf.mxu0
  %v2807 = vadd.f32 0.0, %v2806
  %v2808 = vpop.f32.mrf.mxu0
  %2809 = vdwg.mxu0
  %v2810 = vsel %vm187, %v2807, -inf
  %2811 = vmax.xlane.f32.xlu0 %v2810
  %v2812 = vpop.xlane.xlu0 %2811
  %v2813 = vsub.f32 %v2807, %v2812
  %v2814 = vmul.f32 %v2813, 1.442695
  %v2815 = vpow.pop %v2814
  %v2816 = vsel %vm187, %v2815, 0.0
  %2817 = vadd.xlane.f32.xlu0 %v2816
  %v2818 = vpop.xlane.xlu0 %2817
  %v2819 = vrcp.pop %v2818
  %v2820 = vmul.f32 %v2815, %v2819
  %2821 = vrot.lane.b32.xlu0 %v2730, 64
  %v2822 = vpop.permute.xlu0 %2821
  %v2825 = vsel %vm187, %v2820, 0
  %2827 = vmatprep.subr.mxu0 0.0
  %2828 = vmatpush1.msra.mxu0 0.0
  %2829 = vmatprep.subr.mxu0 0.0
  %2830 = vmatpush1.msra.mxu0 0.0
  %2831 = vmatprep.subr.mxu0 0.0
  %2832 = vmatpush1.msra.mxu0 0.0
  %2833 = vmatprep.subr.mxu0 0.0
  %2834 = vmatpush1.msra.mxu0 0.0
  %2835 = vmatprep.subr.mxu0 0.0
  %2836 = vmatpush1.msra.mxu0 0.0
  %2837 = vmatprep.subr.mxu0 0.0
  %2838 = vmatpush1.msra.mxu0 0.0
  %2839 = vmatprep.subr.mxu0 0.0
  %2840 = vmatpush1.msra.mxu0 0.0
  %2841 = vmatprep.subr.mxu0 0.0
  %2842 = vmatpush1.msra.mxu0 0.0
  %2843 = vmatprep.subr.mxu0 0.0
  %2844 = vmatpush1.msra.mxu0 0.0
  %2845 = vmatprep.subr.mxu0 0.0
  %2846 = vmatpush1.msra.mxu0 0.0
  %2847 = vmatprep.subr.mxu0 0.0
  %2848 = vmatpush1.msra.mxu0 0.0
  %2849 = vmatprep.subr.mxu0 0.0
  %2850 = vmatpush1.msra.mxu0 0.0
  %2851 = vmatprep.subr.mxu0 0.0
  %2852 = vmatpush1.msra.mxu0 0.0
  %2853 = vmatprep.subr.mxu0 0.0
  %2854 = vmatpush1.msra.mxu0 0.0
  %2855 = vmatprep.subr.mxu0 0.0
  %2856 = vmatpush1.msra.mxu0 0.0
  %2857 = vmatprep.subr.mxu0 0.0
  %2858 = vmatpush1.msra.mxu0 %v2822
  %2859 = vmatprep.subr.mxu0 0.0
  %2860 = vmatpush2.msra.mxu0 0.0
  %2861 = vmatprep.subr.mxu0 0.0
  %2862 = vmatpush2.msra.mxu0 0.0
  %2863 = vmatprep.subr.mxu0 0.0
  %2864 = vmatpush2.msra.mxu0 0.0
  %2865 = vmatprep.subr.mxu0 0.0
  %2866 = vmatpush2.msra.mxu0 0.0
  %2867 = vmatprep.subr.mxu0 0.0
  %2868 = vmatpush2.msra.mxu0 0.0
  %2869 = vmatprep.subr.mxu0 0.0
  %2870 = vmatpush2.msra.mxu0 0.0
  %2871 = vmatprep.subr.mxu0 0.0
  %2872 = vmatpush2.msra.mxu0 0.0
  %2873 = vmatprep.subr.mxu0 0.0
  %2874 = vmatpush2.msra.mxu0 0.0
  %2875 = vmatprep.subr.mxu0 0.0
  %2876 = vmatpush2.msra.mxu0 0.0
  %2877 = vmatprep.subr.mxu0 0.0
  %2878 = vmatpush2.msra.mxu0 0.0
  %2879 = vmatprep.subr.mxu0 0.0
  %2880 = vmatpush2.msra.mxu0 0.0
  %2881 = vmatprep.subr.mxu0 0.0
  %2882 = vmatpush2.msra.mxu0 0.0
  %2883 = vmatprep.subr.mxu0 0.0
  %2884 = vmatpush2.msra.mxu0 0.0
  %2885 = vmatprep.subr.mxu0 0.0
  %2886 = vmatpush2.msra.mxu0 0.0
  %2887 = vmatprep.subr.mxu0 0.0
  %2888 = vmatpush2.msra.mxu0 0.0
  %2889 = vmatprep.subr.mxu0 0.0
  %2890 = vmatpush2.msra.mxu0 0.0
  %2891 = vmatprep.mubr.f32.mxu0 0.0
  %2892 = vmatmul.mubr.f32.gmra.mxu0 %v2825
  %v2893 = vpop.f32.mrf.mxu0
  %v2894 = vadd.f32 0.0, %v2893
  %v2895 = vpop.f32.mrf.mxu0
  %2896 = vdwg.mxu0
  %v2898 = vsel %vm187, %v2894, 0
  %2900 = vmatprep.subr.mxu0 0.0
  %2901 = vmatpush1.msra.mxu0 0.0
  %2902 = vmatprep.subr.mxu0 0.0
  %2903 = vmatpush1.msra.mxu0 0.0
  %2904 = vmatprep.subr.mxu0 0.0
  %2905 = vmatpush1.msra.mxu0 0.0
  %2906 = vmatprep.subr.mxu0 0.0
  %2907 = vmatpush1.msra.mxu0 0.0
  %2908 = vmatprep.subr.mxu0 0.0
  %2909 = vmatpush1.msra.mxu0 0.0
  %2910 = vmatprep.subr.mxu0 0.0
  %2911 = vmatpush1.msra.mxu0 0.0
  %2912 = vmatprep.subr.mxu0 0.0
  %2913 = vmatpush1.msra.mxu0 0.0
  %2914 = vmatprep.subr.mxu0 0.0
  %2915 = vmatpush1.msra.mxu0 0.0
  %2916 = vmatprep.subr.mxu0 0.0
  %2917 = vmatpush1.msra.mxu0 0.0
  %2918 = vmatprep.subr.mxu0 0.0
  %2919 = vmatpush1.msra.mxu0 0.0
  %2920 = vmatprep.subr.mxu0 0.0
  %2921 = vmatpush1.msra.mxu0 0.0
  %2922 = vmatprep.subr.mxu0 0.0
  %2923 = vmatpush1.msra.mxu0 0.0
  %2924 = vmatprep.subr.mxu0 0.0
  %2925 = vmatpush1.msra.mxu0 0.0
  %2926 = vmatprep.subr.mxu0 0.0
  %2927 = vmatpush1.msra.mxu0 0.0
  %2928 = vmatprep.subr.mxu0 0.0
  %2929 = vmatpush1.msra.mxu0 0.0
  %2930 = vmatprep.subr.mxu0 0.0
  %2931 = vmatpush1.msra.mxu0 %v179
  %2932 = vmatprep.subr.mxu0 0.0
  %2933 = vmatpush2.msra.mxu0 0.0
  %2934 = vmatprep.subr.mxu0 0.0
  %2935 = vmatpush2.msra.mxu0 0.0
  %2936 = vmatprep.subr.mxu0 0.0
  %2937 = vmatpush2.msra.mxu0 0.0
  %2938 = vmatprep.subr.mxu0 0.0
  %2939 = vmatpush2.msra.mxu0 0.0
  %2940 = vmatprep.subr.mxu0 0.0
  %2941 = vmatpush2.msra.mxu0 0.0
  %2942 = vmatprep.subr.mxu0 0.0
  %2943 = vmatpush2.msra.mxu0 0.0
  %2944 = vmatprep.subr.mxu0 0.0
  %2945 = vmatpush2.msra.mxu0 0.0
  %2946 = vmatprep.subr.mxu0 0.0
  %2947 = vmatpush2.msra.mxu0 0.0
  %2948 = vmatprep.subr.mxu0 0.0
  %2949 = vmatpush2.msra.mxu0 0.0
  %2950 = vmatprep.subr.mxu0 0.0
  %2951 = vmatpush2.msra.mxu0 0.0
  %2952 = vmatprep.subr.mxu0 0.0
  %2953 = vmatpush2.msra.mxu0 0.0
  %2954 = vmatprep.subr.mxu0 0.0
  %2955 = vmatpush2.msra.mxu0 0.0
  %2956 = vmatprep.subr.mxu0 0.0
  %2957 = vmatpush2.msra.mxu0 0.0
  %2958 = vmatprep.subr.mxu0 0.0
  %2959 = vmatpush2.msra.mxu0 0.0
  %2960 = vmatprep.subr.mxu0 0.0
  %2961 = vmatpush2.msra.mxu0 0.0
  %2962 = vmatprep.subr.mxu0 0.0
  %2963 = vmatpush2.msra.mxu0 0.0
  %2964 = vmatprep.mubr.f32.mxu0 0.0
  %2965 = vmatmul.mubr.f32.gmra.mxu0 %v2898
  %v2966 = vpop.f32.mrf.mxu0
  %v2967 = vadd.f32 0.0, %v2966
  %v2968 = vpop.f32.mrf.mxu0
  %2969 = vdwg.mxu0
  %v2970 = vadd.f32 %v183, %v2967
  %2971 = vrot.lane.b32.xlu0 %v2730, 120
  %v2972 = vpop.permute.xlu0 %2971
  %2973 = vrot.lane.b32.xlu0 %v2730, 88
  %v2974 = vpop.permute.xlu0 %2973
  %v2975 = vsel %vm187, %v2972, 0
  %v2977 = vsel %vm187, %v2974, 0
  %2979 = vmatprep.subr.mxu0 0.0
  %2980 = vmatpush1.xpose.msra.mxu0 0.0
  %2981 = vmatprep.subr.mxu0 0.0
  %2982 = vmatpush1.xpose.msra.mxu0 0.0
  %2983 = vmatprep.subr.mxu0 0.0
  %2984 = vmatpush1.xpose.msra.mxu0 0.0
  %2985 = vmatprep.subr.mxu0 0.0
  %2986 = vmatpush1.xpose.msra.mxu0 0.0
  %2987 = vmatprep.subr.mxu0 0.0
  %2988 = vmatpush1.xpose.msra.mxu0 0.0
  %2989 = vmatprep.subr.mxu0 0.0
  %2990 = vmatpush1.xpose.msra.mxu0 0.0
  %2991 = vmatprep.subr.mxu0 0.0
  %2992 = vmatpush1.xpose.msra.mxu0 0.0
  %2993 = vmatprep.subr.mxu0 0.0
  %2994 = vmatpush1.xpose.msra.mxu0 0.0
  %2995 = vmatprep.subr.mxu0 0.0
  %2996 = vmatpush1.xpose.msra.mxu0 0.0
  %2997 = vmatprep.subr.mxu0 0.0
  %2998 = vmatpush1.xpose.msra.mxu0 0.0
  %2999 = vmatprep.subr.mxu0 0.0
  %3000 = vmatpush1.xpose.msra.mxu0 0.0
  %3001 = vmatprep.subr.mxu0 0.0
  %3002 = vmatpush1.xpose.msra.mxu0 0.0
  %3003 = vmatprep.subr.mxu0 0.0
  %3004 = vmatpush1.xpose.msra.mxu0 0.0
  %3005 = vmatprep.subr.mxu0 0.0
  %3006 = vmatpush1.xpose.msra.mxu0 0.0
  %3007 = vmatprep.subr.mxu0 0.0
  %3008 = vmatpush1.xpose.msra.mxu0 0.0
  %3009 = vmatprep.subr.mxu0 0.0
  %3010 = vmatpush1.xpose.msra.mxu0 %v2977
  %3011 = vmatprep.subr.mxu0 0.0
  %3012 = vmatpush2.xpose.msra.mxu0 0.0
  %3013 = vmatprep.subr.mxu0 0.0
  %3014 = vmatpush2.xpose.msra.mxu0 0.0
  %3015 = vmatprep.subr.mxu0 0.0
  %3016 = vmatpush2.xpose.msra.mxu0 0.0
  %3017 = vmatprep.subr.mxu0 0.0
  %3018 = vmatpush2.xpose.msra.mxu0 0.0
  %3019 = vmatprep.subr.mxu0 0.0
  %3020 = vmatpush2.xpose.msra.mxu0 0.0
  %3021 = vmatprep.subr.mxu0 0.0
  %3022 = vmatpush2.xpose.msra.mxu0 0.0
  %3023 = vmatprep.subr.mxu0 0.0
  %3024 = vmatpush2.xpose.msra.mxu0 0.0
  %3025 = vmatprep.subr.mxu0 0.0
  %3026 = vmatpush2.xpose.msra.mxu0 0.0
  %3027 = vmatprep.subr.mxu0 0.0
  %3028 = vmatpush2.xpose.msra.mxu0 0.0
  %3029 = vmatprep.subr.mxu0 0.0
  %3030 = vmatpush2.xpose.msra.mxu0 0.0
  %3031 = vmatprep.subr.mxu0 0.0
  %3032 = vmatpush2.xpose.msra.mxu0 0.0
  %3033 = vmatprep.subr.mxu0 0.0
  %3034 = vmatpush2.xpose.msra.mxu0 0.0
  %3035 = vmatprep.subr.mxu0 0.0
  %3036 = vmatpush2.xpose.msra.mxu0 0.0
  %3037 = vmatprep.subr.mxu0 0.0
  %3038 = vmatpush2.xpose.msra.mxu0 0.0
  %3039 = vmatprep.subr.mxu0 0.0
  %3040 = vmatpush2.xpose.msra.mxu0 0.0
  %3041 = vmatprep.subr.mxu0 0.0
  %3042 = vmatpush2.xpose.msra.mxu0 0.0
  %3043 = vmatprep.mubr.f32.mxu0 0.0
  %3044 = vmatmul.mubr.f32.gmra.mxu0 %v2975
  %v3045 = vpop.f32.mrf.mxu0
  %v3046 = vadd.f32 0.0, %v3045
  %v3047 = vpop.f32.mrf.mxu0
  %3048 = vdwg.mxu0
  %v3049 = vsel %vm187, %v3046, -inf
  %3050 = vmax.xlane.f32.xlu0 %v3049
  %v3051 = vpop.xlane.xlu0 %3050
  %v3052 = vsub.f32 %v3046, %v3051
  %v3053 = vmul.f32 %v3052, 1.442695
  %v3054 = vpow.pop %v3053
  %v3055 = vsel %vm187, %v3054, 0.0
  %3056 = vadd.xlane.f32.xlu0 %v3055
  %v3057 = vpop.xlane.xlu0 %3056
  %v3058 = vrcp.pop %v3057
  %v3059 = vmul.f32 %v3054, %v3058
  %3060 = vrot.lane.b32.xlu0 %v2730, 56
  %v3061 = vpop.permute.xlu0 %3060
  %v3064 = vsel %vm187, %v3059, 0
  %3066 = vmatprep.subr.mxu0 0.0
  %3067 = vmatpush1.msra.mxu0 0.0
  %3068 = vmatprep.subr.mxu0 0.0
  %3069 = vmatpush1.msra.mxu0 0.0
  %3070 = vmatprep.subr.mxu0 0.0
  %3071 = vmatpush1.msra.mxu0 0.0
  %3072 = vmatprep.subr.mxu0 0.0
  %3073 = vmatpush1.msra.mxu0 0.0
  %3074 = vmatprep.subr.mxu0 0.0
  %3075 = vmatpush1.msra.mxu0 0.0
  %3076 = vmatprep.subr.mxu0 0.0
  %3077 = vmatpush1.msra.mxu0 0.0
  %3078 = vmatprep.subr.mxu0 0.0
  %3079 = vmatpush1.msra.mxu0 0.0
  %3080 = vmatprep.subr.mxu0 0.0
  %3081 = vmatpush1.msra.mxu0 0.0
  %3082 = vmatprep.subr.mxu0 0.0
  %3083 = vmatpush1.msra.mxu0 0.0
  %3084 = vmatprep.subr.mxu0 0.0
  %3085 = vmatpush1.msra.mxu0 0.0
  %3086 = vmatprep.subr.mxu0 0.0
  %3087 = vmatpush1.msra.mxu0 0.0
  %3088 = vmatprep.subr.mxu0 0.0
  %3089 = vmatpush1.msra.mxu0 0.0
  %3090 = vmatprep.subr.mxu0 0.0
  %3091 = vmatpush1.msra.mxu0 0.0
  %3092 = vmatprep.subr.mxu0 0.0
  %3093 = vmatpush1.msra.mxu0 0.0
  %3094 = vmatprep.subr.mxu0 0.0
  %3095 = vmatpush1.msra.mxu0 0.0
  %3096 = vmatprep.subr.mxu0 0.0
  %3097 = vmatpush1.msra.mxu0 %v3061
  %3098 = vmatprep.subr.mxu0 0.0
  %3099 = vmatpush2.msra.mxu0 0.0
  %3100 = vmatprep.subr.mxu0 0.0
  %3101 = vmatpush2.msra.mxu0 0.0
  %3102 = vmatprep.subr.mxu0 0.0
  %3103 = vmatpush2.msra.mxu0 0.0
  %3104 = vmatprep.subr.mxu0 0.0
  %3105 = vmatpush2.msra.mxu0 0.0
  %3106 = vmatprep.subr.mxu0 0.0
  %3107 = vmatpush2.msra.mxu0 0.0
  %3108 = vmatprep.subr.mxu0 0.0
  %3109 = vmatpush2.msra.mxu0 0.0
  %3110 = vmatprep.subr.mxu0 0.0
  %3111 = vmatpush2.msra.mxu0 0.0
  %3112 = vmatprep.subr.mxu0 0.0
  %3113 = vmatpush2.msra.mxu0 0.0
  %3114 = vmatprep.subr.mxu0 0.0
  %3115 = vmatpush2.msra.mxu0 0.0
  %3116 = vmatprep.subr.mxu0 0.0
  %3117 = vmatpush2.msra.mxu0 0.0
  %3118 = vmatprep.subr.mxu0 0.0
  %3119 = vmatpush2.msra.mxu0 0.0
  %3120 = vmatprep.subr.mxu0 0.0
  %3121 = vmatpush2.msra.mxu0 0.0
  %3122 = vmatprep.subr.mxu0 0.0
  %3123 = vmatpush2.msra.mxu0 0.0
  %3124 = vmatprep.subr.mxu0 0.0
  %3125 = vmatpush2.msra.mxu0 0.0
  %3126 = vmatprep.subr.mxu0 0.0
  %3127 = vmatpush2.msra.mxu0 0.0
  %3128 = vmatprep.subr.mxu0 0.0
  %3129 = vmatpush2.msra.mxu0 0.0
  %3130 = vmatprep.mubr.f32.mxu0 0.0
  %3131 = vmatmul.mubr.f32.gmra.mxu0 %v3064
  %v3132 = vpop.f32.mrf.mxu0
  %v3133 = vadd.f32 0.0, %v3132
  %v3134 = vpop.f32.mrf.mxu0
  %3135 = vdwg.mxu0
  %v3137 = vsel %vm187, %v3133, 0
  %3139 = vmatprep.subr.mxu0 0.0
  %3140 = vmatpush1.msra.mxu0 0.0
  %3141 = vmatprep.subr.mxu0 0.0
  %3142 = vmatpush1.msra.mxu0 0.0
  %3143 = vmatprep.subr.mxu0 0.0
  %3144 = vmatpush1.msra.mxu0 0.0
  %3145 = vmatprep.subr.mxu0 0.0
  %3146 = vmatpush1.msra.mxu0 0.0
  %3147 = vmatprep.subr.mxu0 0.0
  %3148 = vmatpush1.msra.mxu0 0.0
  %3149 = vmatprep.subr.mxu0 0.0
  %3150 = vmatpush1.msra.mxu0 0.0
  %3151 = vmatprep.subr.mxu0 0.0
  %3152 = vmatpush1.msra.mxu0 0.0
  %3153 = vmatprep.subr.mxu0 0.0
  %3154 = vmatpush1.msra.mxu0 0.0
  %3155 = vmatprep.subr.mxu0 0.0
  %3156 = vmatpush1.msra.mxu0 0.0
  %3157 = vmatprep.subr.mxu0 0.0
  %3158 = vmatpush1.msra.mxu0 0.0
  %3159 = vmatprep.subr.mxu0 0.0
  %3160 = vmatpush1.msra.mxu0 0.0
  %3161 = vmatprep.subr.mxu0 0.0
  %3162 = vmatpush1.msra.mxu0 0.0
  %3163 = vmatprep.subr.mxu0 0.0
  %3164 = vmatpush1.msra.mxu0 0.0
  %3165 = vmatprep.subr.mxu0 0.0
  %3166 = vmatpush1.msra.mxu0 0.0
  %3167 = vmatprep.subr.mxu0 0.0
  %3168 = vmatpush1.msra.mxu0 0.0
  %3169 = vmatprep.subr.mxu0 0.0
  %3170 = vmatpush1.msra.mxu0 %v180
  %3171 = vmatprep.subr.mxu0 0.0
  %3172 = vmatpush2.msra.mxu0 0.0
  %3173 = vmatprep.subr.mxu0 0.0
  %3174 = vmatpush2.msra.mxu0 0.0
  %3175 = vmatprep.subr.mxu0 0.0
  %3176 = vmatpush2.msra.mxu0 0.0
  %3177 = vmatprep.subr.mxu0 0.0
  %3178 = vmatpush2.msra.mxu0 0.0
  %3179 = vmatprep.subr.mxu0 0.0
  %3180 = vmatpush2.msra.mxu0 0.0
  %3181 = vmatprep.subr.mxu0 0.0
  %3182 = vmatpush2.msra.mxu0 0.0
  %3183 = vmatprep.subr.mxu0 0.0
  %3184 = vmatpush2.msra.mxu0 0.0
  %3185 = vmatprep.subr.mxu0 0.0
  %3186 = vmatpush2.msra.mxu0 0.0
  %3187 = vmatprep.subr.mxu0 0.0
  %3188 = vmatpush2.msra.mxu0 0.0
  %3189 = vmatprep.subr.mxu0 0.0
  %3190 = vmatpush2.msra.mxu0 0.0
  %3191 = vmatprep.subr.mxu0 0.0
  %3192 = vmatpush2.msra.mxu0 0.0
  %3193 = vmatprep.subr.mxu0 0.0
  %3194 = vmatpush2.msra.mxu0 0.0
  %3195 = vmatprep.subr.mxu0 0.0
  %3196 = vmatpush2.msra.mxu0 0.0
  %3197 = vmatprep.subr.mxu0 0.0
  %3198 = vmatpush2.msra.mxu0 0.0
  %3199 = vmatprep.subr.mxu0 0.0
  %3200 = vmatpush2.msra.mxu0 0.0
  %3201 = vmatprep.subr.mxu0 0.0
  %3202 = vmatpush2.msra.mxu0 0.0
  %3203 = vmatprep.mubr.f32.mxu0 0.0
  %3204 = vmatmul.mubr.f32.gmra.mxu0 %v3137
  %v3205 = vpop.f32.mrf.mxu0
  %v3206 = vadd.f32 0.0, %v3205
  %v3207 = vpop.f32.mrf.mxu0
  %3208 = vdwg.mxu0
  %v3209 = vadd.f32 %v2970, %v3206
  %3210 = vrot.lane.b32.xlu0 %v2730, 112
  %v3211 = vpop.permute.xlu0 %3210
  %3212 = vrot.lane.b32.xlu0 %v2730, 80
  %v3213 = vpop.permute.xlu0 %3212
  %v3214 = vsel %vm187, %v3211, 0
  %v3216 = vsel %vm187, %v3213, 0
  %3218 = vmatprep.subr.mxu0 0.0
  %3219 = vmatpush1.xpose.msra.mxu0 0.0
  %3220 = vmatprep.subr.mxu0 0.0
  %3221 = vmatpush1.xpose.msra.mxu0 0.0
  %3222 = vmatprep.subr.mxu0 0.0
  %3223 = vmatpush1.xpose.msra.mxu0 0.0
  %3224 = vmatprep.subr.mxu0 0.0
  %3225 = vmatpush1.xpose.msra.mxu0 0.0
  %3226 = vmatprep.subr.mxu0 0.0
  %3227 = vmatpush1.xpose.msra.mxu0 0.0
  %3228 = vmatprep.subr.mxu0 0.0
  %3229 = vmatpush1.xpose.msra.mxu0 0.0
  %3230 = vmatprep.subr.mxu0 0.0
  %3231 = vmatpush1.xpose.msra.mxu0 0.0
  %3232 = vmatprep.subr.mxu0 0.0
  %3233 = vmatpush1.xpose.msra.mxu0 0.0
  %3234 = vmatprep.subr.mxu0 0.0
  %3235 = vmatpush1.xpose.msra.mxu0 0.0
  %3236 = vmatprep.subr.mxu0 0.0
  %3237 = vmatpush1.xpose.msra.mxu0 0.0
  %3238 = vmatprep.subr.mxu0 0.0
  %3239 = vmatpush1.xpose.msra.mxu0 0.0
  %3240 = vmatprep.subr.mxu0 0.0
  %3241 = vmatpush1.xpose.msra.mxu0 0.0
  %3242 = vmatprep.subr.mxu0 0.0
  %3243 = vmatpush1.xpose.msra.mxu0 0.0
  %3244 = vmatprep.subr.mxu0 0.0
  %3245 = vmatpush1.xpose.msra.mxu0 0.0
  %3246 = vmatprep.subr.mxu0 0.0
  %3247 = vmatpush1.xpose.msra.mxu0 0.0
  %3248 = vmatprep.subr.mxu0 0.0
  %3249 = vmatpush1.xpose.msra.mxu0 %v3216
  %3250 = vmatprep.subr.mxu0 0.0
  %3251 = vmatpush2.xpose.msra.mxu0 0.0
  %3252 = vmatprep.subr.mxu0 0.0
  %3253 = vmatpush2.xpose.msra.mxu0 0.0
  %3254 = vmatprep.subr.mxu0 0.0
  %3255 = vmatpush2.xpose.msra.mxu0 0.0
  %3256 = vmatprep.subr.mxu0 0.0
  %3257 = vmatpush2.xpose.msra.mxu0 0.0
  %3258 = vmatprep.subr.mxu0 0.0
  %3259 = vmatpush2.xpose.msra.mxu0 0.0
  %3260 = vmatprep.subr.mxu0 0.0
  %3261 = vmatpush2.xpose.msra.mxu0 0.0
  %3262 = vmatprep.subr.mxu0 0.0
  %3263 = vmatpush2.xpose.msra.mxu0 0.0
  %3264 = vmatprep.subr.mxu0 0.0
  %3265 = vmatpush2.xpose.msra.mxu0 0.0
  %3266 = vmatprep.subr.mxu0 0.0
  %3267 = vmatpush2.xpose.msra.mxu0 0.0
  %3268 = vmatprep.subr.mxu0 0.0
  %3269 = vmatpush2.xpose.msra.mxu0 0.0
  %3270 = vmatprep.subr.mxu0 0.0
  %3271 = vmatpush2.xpose.msra.mxu0 0.0
  %3272 = vmatprep.subr.mxu0 0.0
  %3273 = vmatpush2.xpose.msra.mxu0 0.0
  %3274 = vmatprep.subr.mxu0 0.0
  %3275 = vmatpush2.xpose.msra.mxu0 0.0
  %3276 = vmatprep.subr.mxu0 0.0
  %3277 = vmatpush2.xpose.msra.mxu0 0.0
  %3278 = vmatprep.subr.mxu0 0.0
  %3279 = vmatpush2.xpose.msra.mxu0 0.0
  %3280 = vmatprep.subr.mxu0 0.0
  %3281 = vmatpush2.xpose.msra.mxu0 0.0
  %3282 = vmatprep.mubr.f32.mxu0 0.0
  %3283 = vmatmul.mubr.f32.gmra.mxu0 %v3214
  %v3284 = vpop.f32.mrf.mxu0
  %v3285 = vadd.f32 0.0, %v3284
  %v3286 = vpop.f32.mrf.mxu0
  %3287 = vdwg.mxu0
  %v3288 = vsel %vm187, %v3285, -inf
  %3289 = vmax.xlane.f32.xlu0 %v3288
  %v3290 = vpop.xlane.xlu0 %3289
  %v3291 = vsub.f32 %v3285, %v3290
  %v3292 = vmul.f32 %v3291, 1.442695
  %v3293 = vpow.pop %v3292
  %v3294 = vsel %vm187, %v3293, 0.0
  %3295 = vadd.xlane.f32.xlu0 %v3294
  %v3296 = vpop.xlane.xlu0 %3295
  %v3297 = vrcp.pop %v3296
  %v3298 = vmul.f32 %v3293, %v3297
  %3299 = vrot.lane.b32.xlu0 %v2730, 48
  %v3300 = vpop.permute.xlu0 %3299
  %v3303 = vsel %vm187, %v3298, 0
  %3305 = vmatprep.subr.mxu0 0.0
  %3306 = vmatpush1.msra.mxu0 0.0
  %3307 = vmatprep.subr.mxu0 0.0
  %3308 = vmatpush1.msra.mxu0 0.0
  %3309 = vmatprep.subr.mxu0 0.0
  %3310 = vmatpush1.msra.mxu0 0.0
  %3311 = vmatprep.subr.mxu0 0.0
  %3312 = vmatpush1.msra.mxu0 0.0
  %3313 = vmatprep.subr.mxu0 0.0
  %3314 = vmatpush1.msra.mxu0 0.0
  %3315 = vmatprep.subr.mxu0 0.0
  %3316 = vmatpush1.msra.mxu0 0.0
  %3317 = vmatprep.subr.mxu0 0.0
  %3318 = vmatpush1.msra.mxu0 0.0
  %3319 = vmatprep.subr.mxu0 0.0
  %3320 = vmatpush1.msra.mxu0 0.0
  %3321 = vmatprep.subr.mxu0 0.0
  %3322 = vmatpush1.msra.mxu0 0.0
  %3323 = vmatprep.subr.mxu0 0.0
  %3324 = vmatpush1.msra.mxu0 0.0
  %3325 = vmatprep.subr.mxu0 0.0
  %3326 = vmatpush1.msra.mxu0 0.0
  %3327 = vmatprep.subr.mxu0 0.0
  %3328 = vmatpush1.msra.mxu0 0.0
  %3329 = vmatprep.subr.mxu0 0.0
  %3330 = vmatpush1.msra.mxu0 0.0
  %3331 = vmatprep.subr.mxu0 0.0
  %3332 = vmatpush1.msra.mxu0 0.0
  %3333 = vmatprep.subr.mxu0 0.0
  %3334 = vmatpush1.msra.mxu0 0.0
  %3335 = vmatprep.subr.mxu0 0.0
  %3336 = vmatpush1.msra.mxu0 %v3300
  %3337 = vmatprep.subr.mxu0 0.0
  %3338 = vmatpush2.msra.mxu0 0.0
  %3339 = vmatprep.subr.mxu0 0.0
  %3340 = vmatpush2.msra.mxu0 0.0
  %3341 = vmatprep.subr.mxu0 0.0
  %3342 = vmatpush2.msra.mxu0 0.0
  %3343 = vmatprep.subr.mxu0 0.0
  %3344 = vmatpush2.msra.mxu0 0.0
  %3345 = vmatprep.subr.mxu0 0.0
  %3346 = vmatpush2.msra.mxu0 0.0
  %3347 = vmatprep.subr.mxu0 0.0
  %3348 = vmatpush2.msra.mxu0 0.0
  %3349 = vmatprep.subr.mxu0 0.0
  %3350 = vmatpush2.msra.mxu0 0.0
  %3351 = vmatprep.subr.mxu0 0.0
  %3352 = vmatpush2.msra.mxu0 0.0
  %3353 = vmatprep.subr.mxu0 0.0
  %3354 = vmatpush2.msra.mxu0 0.0
  %3355 = vmatprep.subr.mxu0 0.0
  %3356 = vmatpush2.msra.mxu0 0.0
  %3357 = vmatprep.subr.mxu0 0.0
  %3358 = vmatpush2.msra.mxu0 0.0
  %3359 = vmatprep.subr.mxu0 0.0
  %3360 = vmatpush2.msra.mxu0 0.0
  %3361 = vmatprep.subr.mxu0 0.0
  %3362 = vmatpush2.msra.mxu0 0.0
  %3363 = vmatprep.subr.mxu0 0.0
  %3364 = vmatpush2.msra.mxu0 0.0
  %3365 = vmatprep.subr.mxu0 0.0
  %3366 = vmatpush2.msra.mxu0 0.0
  %3367 = vmatprep.subr.mxu0 0.0
  %3368 = vmatpush2.msra.mxu0 0.0
  %3369 = vmatprep.mubr.f32.mxu0 0.0
  %3370 = vmatmul.mubr.f32.gmra.mxu0 %v3303
  %v3371 = vpop.f32.mrf.mxu0
  %v3372 = vadd.f32 0.0, %v3371
  %v3373 = vpop.f32.mrf.mxu0
  %3374 = vdwg.mxu0
  %v3376 = vsel %vm187, %v3372, 0
  %3378 = vmatprep.subr.mxu0 0.0
  %3379 = vmatpush1.msra.mxu0 0.0
  %3380 = vmatprep.subr.mxu0 0.0
  %3381 = vmatpush1.msra.mxu0 0.0
  %3382 = vmatprep.subr.mxu0 0.0
  %3383 = vmatpush1.msra.mxu0 0.0
  %3384 = vmatprep.subr.mxu0 0.0
  %3385 = vmatpush1.msra.mxu0 0.0
  %3386 = vmatprep.subr.mxu0 0.0
  %3387 = vmatpush1.msra.mxu0 0.0
  %3388 = vmatprep.subr.mxu0 0.0
  %3389 = vmatpush1.msra.mxu0 0.0
  %3390 = vmatprep.subr.mxu0 0.0
  %3391 = vmatpush1.msra.mxu0 0.0
  %3392 = vmatprep.subr.mxu0 0.0
  %3393 = vmatpush1.msra.mxu0 0.0
  %3394 = vmatprep.subr.mxu0 0.0
  %3395 = vmatpush1.msra.mxu0 0.0
  %3396 = vmatprep.subr.mxu0 0.0
  %3397 = vmatpush1.msra.mxu0 0.0
  %3398 = vmatprep.subr.mxu0 0.0
  %3399 = vmatpush1.msra.mxu0 0.0
  %3400 = vmatprep.subr.mxu0 0.0
  %3401 = vmatpush1.msra.mxu0 0.0
  %3402 = vmatprep.subr.mxu0 0.0
  %3403 = vmatpush1.msra.mxu0 0.0
  %3404 = vmatprep.subr.mxu0 0.0
  %3405 = vmatpush1.msra.mxu0 0.0
  %3406 = vmatprep.subr.mxu0 0.0
  %3407 = vmatpush1.msra.mxu0 0.0
  %3408 = vmatprep.subr.mxu0 0.0
  %3409 = vmatpush1.msra.mxu0 %v181
  %3410 = vmatprep.subr.mxu0 0.0
  %3411 = vmatpush2.msra.mxu0 0.0
  %3412 = vmatprep.subr.mxu0 0.0
  %3413 = vmatpush2.msra.mxu0 0.0
  %3414 = vmatprep.subr.mxu0 0.0
  %3415 = vmatpush2.msra.mxu0 0.0
  %3416 = vmatprep.subr.mxu0 0.0
  %3417 = vmatpush2.msra.mxu0 0.0
  %3418 = vmatprep.subr.mxu0 0.0
  %3419 = vmatpush2.msra.mxu0 0.0
  %3420 = vmatprep.subr.mxu0 0.0
  %3421 = vmatpush2.msra.mxu0 0.0
  %3422 = vmatprep.subr.mxu0 0.0
  %3423 = vmatpush2.msra.mxu0 0.0
  %3424 = vmatprep.subr.mxu0 0.0
  %3425 = vmatpush2.msra.mxu0 0.0
  %3426 = vmatprep.subr.mxu0 0.0
  %3427 = vmatpush2.msra.mxu0 0.0
  %3428 = vmatprep.subr.mxu0 0.0
  %3429 = vmatpush2.msra.mxu0 0.0
  %3430 = vmatprep.subr.mxu0 0.0
  %3431 = vmatpush2.msra.mxu0 0.0
  %3432 = vmatprep.subr.mxu0 0.0
  %3433 = vmatpush2.msra.mxu0 0.0
  %3434 = vmatprep.subr.mxu0 0.0
  %3435 = vmatpush2.msra.mxu0 0.0
  %3436 = vmatprep.subr.mxu0 0.0
  %3437 = vmatpush2.msra.mxu0 0.0
  %3438 = vmatprep.subr.mxu0 0.0
  %3439 = vmatpush2.msra.mxu0 0.0
  %3440 = vmatprep.subr.mxu0 0.0
  %3441 = vmatpush2.msra.mxu0 0.0
  %3442 = vmatprep.mubr.f32.mxu0 0.0
  %3443 = vmatmul.mubr.f32.gmra.mxu0 %v3376
  %v3444 = vpop.f32.mrf.mxu0
  %v3445 = vadd.f32 0.0, %v3444
  %v3446 = vpop.f32.mrf.mxu0
  %3447 = vdwg.mxu0
  %v3448 = vadd.f32 %v3209, %v3445
  %3449 = vrot.lane.b32.xlu0 %v2730, 104
  %v3450 = vpop.permute.xlu0 %3449
  %3451 = vrot.lane.b32.xlu0 %v2730, 72
  %v3452 = vpop.permute.xlu0 %3451
  %v3453 = vsel %vm187, %v3450, 0
  %v3455 = vsel %vm187, %v3452, 0
  %3457 = vmatprep.subr.mxu0 0.0
  %3458 = vmatpush1.xpose.msra.mxu0 0.0
  %3459 = vmatprep.subr.mxu0 0.0
  %3460 = vmatpush1.xpose.msra.mxu0 0.0
  %3461 = vmatprep.subr.mxu0 0.0
  %3462 = vmatpush1.xpose.msra.mxu0 0.0
  %3463 = vmatprep.subr.mxu0 0.0
  %3464 = vmatpush1.xpose.msra.mxu0 0.0
  %3465 = vmatprep.subr.mxu0 0.0
  %3466 = vmatpush1.xpose.msra.mxu0 0.0
  %3467 = vmatprep.subr.mxu0 0.0
  %3468 = vmatpush1.xpose.msra.mxu0 0.0
  %3469 = vmatprep.subr.mxu0 0.0
  %3470 = vmatpush1.xpose.msra.mxu0 0.0
  %3471 = vmatprep.subr.mxu0 0.0
  %3472 = vmatpush1.xpose.msra.mxu0 0.0
  %3473 = vmatprep.subr.mxu0 0.0
  %3474 = vmatpush1.xpose.msra.mxu0 0.0
  %3475 = vmatprep.subr.mxu0 0.0
  %3476 = vmatpush1.xpose.msra.mxu0 0.0
  %3477 = vmatprep.subr.mxu0 0.0
  %3478 = vmatpush1.xpose.msra.mxu0 0.0
  %3479 = vmatprep.subr.mxu0 0.0
  %3480 = vmatpush1.xpose.msra.mxu0 0.0
  %3481 = vmatprep.subr.mxu0 0.0
  %3482 = vmatpush1.xpose.msra.mxu0 0.0
  %3483 = vmatprep.subr.mxu0 0.0
  %3484 = vmatpush1.xpose.msra.mxu0 0.0
  %3485 = vmatprep.subr.mxu0 0.0
  %3486 = vmatpush1.xpose.msra.mxu0 0.0
  %3487 = vmatprep.subr.mxu0 0.0
  %3488 = vmatpush1.xpose.msra.mxu0 %v3455
  %3489 = vmatprep.subr.mxu0 0.0
  %3490 = vmatpush2.xpose.msra.mxu0 0.0
  %3491 = vmatprep.subr.mxu0 0.0
  %3492 = vmatpush2.xpose.msra.mxu0 0.0
  %3493 = vmatprep.subr.mxu0 0.0
  %3494 = vmatpush2.xpose.msra.mxu0 0.0
  %3495 = vmatprep.subr.mxu0 0.0
  %3496 = vmatpush2.xpose.msra.mxu0 0.0
  %3497 = vmatprep.subr.mxu0 0.0
  %3498 = vmatpush2.xpose.msra.mxu0 0.0
  %3499 = vmatprep.subr.mxu0 0.0
  %3500 = vmatpush2.xpose.msra.mxu0 0.0
  %3501 = vmatprep.subr.mxu0 0.0
  %3502 = vmatpush2.xpose.msra.mxu0 0.0
  %3503 = vmatprep.subr.mxu0 0.0
  %3504 = vmatpush2.xpose.msra.mxu0 0.0
  %3505 = vmatprep.subr.mxu0 0.0
  %3506 = vmatpush2.xpose.msra.mxu0 0.0
  %3507 = vmatprep.subr.mxu0 0.0
  %3508 = vmatpush2.xpose.msra.mxu0 0.0
  %3509 = vmatprep.subr.mxu0 0.0
  %3510 = vmatpush2.xpose.msra.mxu0 0.0
  %3511 = vmatprep.subr.mxu0 0.0
  %3512 = vmatpush2.xpose.msra.mxu0 0.0
  %3513 = vmatprep.subr.mxu0 0.0
  %3514 = vmatpush2.xpose.msra.mxu0 0.0
  %3515 = vmatprep.subr.mxu0 0.0
  %3516 = vmatpush2.xpose.msra.mxu0 0.0
  %3517 = vmatprep.subr.mxu0 0.0
  %3518 = vmatpush2.xpose.msra.mxu0 0.0
  %3519 = vmatprep.subr.mxu0 0.0
  %3520 = vmatpush2.xpose.msra.mxu0 0.0
  %3521 = vmatprep.mubr.f32.mxu0 0.0
  %3522 = vmatmul.mubr.f32.gmra.mxu0 %v3453
  %v3523 = vpop.f32.mrf.mxu0
  %v3524 = vadd.f32 0.0, %v3523
  %v3525 = vpop.f32.mrf.mxu0
  %3526 = vdwg.mxu0
  %v3527 = vsel %vm187, %v3524, -inf
  %3528 = vmax.xlane.f32.xlu0 %v3527
  %v3529 = vpop.xlane.xlu0 %3528
  %v3530 = vsub.f32 %v3524, %v3529
  %v3531 = vmul.f32 %v3530, 1.442695
  %v3532 = vpow.pop %v3531
  %v3533 = vsel %vm187, %v3532, 0.0
  %3534 = vadd.xlane.f32.xlu0 %v3533
  %v3535 = vpop.xlane.xlu0 %3534
  %v3536 = vrcp.pop %v3535
  %v3537 = vmul.f32 %v3532, %v3536
  %3538 = vrot.lane.b32.xlu0 %v2730, 40
  %v3539 = vpop.permute.xlu0 %3538
  %v3542 = vsel %vm187, %v3537, 0
  %3544 = vmatprep.subr.mxu0 0.0
  %3545 = vmatpush1.msra.mxu0 0.0
  %3546 = vmatprep.subr.mxu0 0.0
  %3547 = vmatpush1.msra.mxu0 0.0
  %3548 = vmatprep.subr.mxu0 0.0
  %3549 = vmatpush1.msra.mxu0 0.0
  %3550 = vmatprep.subr.mxu0 0.0
  %3551 = vmatpush1.msra.mxu0 0.0
  %3552 = vmatprep.subr.mxu0 0.0
  %3553 = vmatpush1.msra.mxu0 0.0
  %3554 = vmatprep.subr.mxu0 0.0
  %3555 = vmatpush1.msra.mxu0 0.0
  %3556 = vmatprep.subr.mxu0 0.0
  %3557 = vmatpush1.msra.mxu0 0.0
  %3558 = vmatprep.subr.mxu0 0.0
  %3559 = vmatpush1.msra.mxu0 0.0
  %3560 = vmatprep.subr.mxu0 0.0
  %3561 = vmatpush1.msra.mxu0 0.0
  %3562 = vmatprep.subr.mxu0 0.0
  %3563 = vmatpush1.msra.mxu0 0.0
  %3564 = vmatprep.subr.mxu0 0.0
  %3565 = vmatpush1.msra.mxu0 0.0
  %3566 = vmatprep.subr.mxu0 0.0
  %3567 = vmatpush1.msra.mxu0 0.0
  %3568 = vmatprep.subr.mxu0 0.0
  %3569 = vmatpush1.msra.mxu0 0.0
  %3570 = vmatprep.subr.mxu0 0.0
  %3571 = vmatpush1.msra.mxu0 0.0
  %3572 = vmatprep.subr.mxu0 0.0
  %3573 = vmatpush1.msra.mxu0 0.0
  %3574 = vmatprep.subr.mxu0 0.0
  %3575 = vmatpush1.msra.mxu0 %v3539
  %3576 = vmatprep.subr.mxu0 0.0
  %3577 = vmatpush2.msra.mxu0 0.0
  %3578 = vmatprep.subr.mxu0 0.0
  %3579 = vmatpush2.msra.mxu0 0.0
  %3580 = vmatprep.subr.mxu0 0.0
  %3581 = vmatpush2.msra.mxu0 0.0
  %3582 = vmatprep.subr.mxu0 0.0
  %3583 = vmatpush2.msra.mxu0 0.0
  %3584 = vmatprep.subr.mxu0 0.0
  %3585 = vmatpush2.msra.mxu0 0.0
  %3586 = vmatprep.subr.mxu0 0.0
  %3587 = vmatpush2.msra.mxu0 0.0
  %3588 = vmatprep.subr.mxu0 0.0
  %3589 = vmatpush2.msra.mxu0 0.0
  %3590 = vmatprep.subr.mxu0 0.0
  %3591 = vmatpush2.msra.mxu0 0.0
  %3592 = vmatprep.subr.mxu0 0.0
  %3593 = vmatpush2.msra.mxu0 0.0
  %3594 = vmatprep.subr.mxu0 0.0
  %3595 = vmatpush2.msra.mxu0 0.0
  %3596 = vmatprep.subr.mxu0 0.0
  %3597 = vmatpush2.msra.mxu0 0.0
  %3598 = vmatprep.subr.mxu0 0.0
  %3599 = vmatpush2.msra.mxu0 0.0
  %3600 = vmatprep.subr.mxu0 0.0
  %3601 = vmatpush2.msra.mxu0 0.0
  %3602 = vmatprep.subr.mxu0 0.0
  %3603 = vmatpush2.msra.mxu0 0.0
  %3604 = vmatprep.subr.mxu0 0.0
  %3605 = vmatpush2.msra.mxu0 0.0
  %3606 = vmatprep.subr.mxu0 0.0
  %3607 = vmatpush2.msra.mxu0 0.0
  %3608 = vmatprep.mubr.f32.mxu0 0.0
  %3609 = vmatmul.mubr.f32.gmra.mxu0 %v3542
  %v3610 = vpop.f32.mrf.mxu0
  %v3611 = vadd.f32 0.0, %v3610
  %v3612 = vpop.f32.mrf.mxu0
  %3613 = vdwg.mxu0
  %v3615 = vsel %vm187, %v3611, 0
  %3617 = vmatprep.subr.mxu0 0.0
  %3618 = vmatpush1.msra.mxu0 0.0
  %3619 = vmatprep.subr.mxu0 0.0
  %3620 = vmatpush1.msra.mxu0 0.0
  %3621 = vmatprep.subr.mxu0 0.0
  %3622 = vmatpush1.msra.mxu0 0.0
  %3623 = vmatprep.subr.mxu0 0.0
  %3624 = vmatpush1.msra.mxu0 0.0
  %3625 = vmatprep.subr.mxu0 0.0
  %3626 = vmatpush1.msra.mxu0 0.0
  %3627 = vmatprep.subr.mxu0 0.0
  %3628 = vmatpush1.msra.mxu0 0.0
  %3629 = vmatprep.subr.mxu0 0.0
  %3630 = vmatpush1.msra.mxu0 0.0
  %3631 = vmatprep.subr.mxu0 0.0
  %3632 = vmatpush1.msra.mxu0 0.0
  %3633 = vmatprep.subr.mxu0 0.0
  %3634 = vmatpush1.msra.mxu0 0.0
  %3635 = vmatprep.subr.mxu0 0.0
  %3636 = vmatpush1.msra.mxu0 0.0
  %3637 = vmatprep.subr.mxu0 0.0
  %3638 = vmatpush1.msra.mxu0 0.0
  %3639 = vmatprep.subr.mxu0 0.0
  %3640 = vmatpush1.msra.mxu0 0.0
  %3641 = vmatprep.subr.mxu0 0.0
  %3642 = vmatpush1.msra.mxu0 0.0
  %3643 = vmatprep.subr.mxu0 0.0
  %3644 = vmatpush1.msra.mxu0 0.0
  %3645 = vmatprep.subr.mxu0 0.0
  %3646 = vmatpush1.msra.mxu0 0.0
  %3647 = vmatprep.subr.mxu0 0.0
  %3648 = vmatpush1.msra.mxu0 %v182
  %3649 = vmatprep.subr.mxu0 0.0
  %3650 = vmatpush2.msra.mxu0 0.0
  %3651 = vmatprep.subr.mxu0 0.0
  %3652 = vmatpush2.msra.mxu0 0.0
  %3653 = vmatprep.subr.mxu0 0.0
  %3654 = vmatpush2.msra.mxu0 0.0
  %3655 = vmatprep.subr.mxu0 0.0
  %3656 = vmatpush2.msra.mxu0 0.0
  %3657 = vmatprep.subr.mxu0 0.0
  %3658 = vmatpush2.msra.mxu0 0.0
  %3659 = vmatprep.subr.mxu0 0.0
  %3660 = vmatpush2.msra.mxu0 0.0
  %3661 = vmatprep.subr.mxu0 0.0
  %3662 = vmatpush2.msra.mxu0 0.0
  %3663 = vmatprep.subr.mxu0 0.0
  %3664 = vmatpush2.msra.mxu0 0.0
  %3665 = vmatprep.subr.mxu0 0.0
  %3666 = vmatpush2.msra.mxu0 0.0
  %3667 = vmatprep.subr.mxu0 0.0
  %3668 = vmatpush2.msra.mxu0 0.0
  %3669 = vmatprep.subr.mxu0 0.0
  %3670 = vmatpush2.msra.mxu0 0.0
  %3671 = vmatprep.subr.mxu0 0.0
  %3672 = vmatpush2.msra.mxu0 0.0
  %3673 = vmatprep.subr.mxu0 0.0
  %3674 = vmatpush2.msra.mxu0 0.0
  %3675 = vmatprep.subr.mxu0 0.0
  %3676 = vmatpush2.msra.mxu0 0.0
  %3677 = vmatprep.subr.mxu0 0.0
  %3678 = vmatpush2.msra.mxu0 0.0
  %3679 = vmatprep.subr.mxu0 0.0
  %3680 = vmatpush2.msra.mxu0 0.0
  %3681 = vmatprep.mubr.f32.mxu0 0.0
  %3682 = vmatmul.mubr.f32.gmra.mxu0 %v3615
  %v3683 = vpop.f32.mrf.mxu0
  %v3684 = vadd.f32 0.0, %v3683
  %v3685 = vpop.f32.mrf.mxu0
  %3686 = vdwg.mxu0
  %v3687 = vadd.f32 %v3448, %v3684
  %v3688 = vadd.f32 %v2652, %v3687
  %v3689 = vsel %vm105, %v3688, 0.0
  %3690 = vadd.xlane.f32.xlu0 %v3689
  %v3691 = vpop.xlane.xlu0 %3690
  %v3692 = vmul.f32 %v3691, %v1146
  %v3693 = vsub.f32 %v3688, %v3692
  %v3694 = vmul.f32 %v3693, %v3693
  %v3695 = vsel %vm105, %v3694, 0.0
  %3696 = vadd.xlane.f32.xlu0 %v3695
  %v3697 = vpop.xlane.xlu0 %3696
  %v3698 = vmul.f32 %v3697, %v1146
  %v3699 = vadd.f32 %v3698, 1e-05
  %v3700 = vrsqrt.pop %v3699
  %v3701 = vmul.f32 %v3693, %v3700
  %v3702 = vmul.f32 %v3701, %v1141
  %v3703 = vadd.f32 %v3702, %v1142
  %v3705 = vsel %vm105, %v3703, 0
  %3707 = vmatprep.subr.mxu0 0.0
  %3708 = vmatpush1.msra.mxu0 0.0
  %3709 = vmatprep.subr.mxu0 0.0
  %3710 = vmatpush1.msra.mxu0 0.0
  %3711 = vmatprep.subr.mxu0 0.0
  %3712 = vmatpush1.msra.mxu0 0.0
  %3713 = vmatprep.subr.mxu0 0.0
  %3714 = vmatpush1.msra.mxu0 0.0
  %3715 = vmatprep.subr.mxu0 0.0
  %3716 = vmatpush1.msra.mxu0 0.0
  %3717 = vmatprep.subr.mxu0 0.0
  %3718 = vmatpush1.msra.mxu0 0.0
  %3719 = vmatprep.subr.mxu0 0.0
  %3720 = vmatpush1.msra.mxu0 0.0
  %3721 = vmatprep.subr.mxu0 0.0
  %3722 = vmatpush1.msra.mxu0 0.0
  %3723 = vmatprep.subr.mxu0 0.0
  %3724 = vmatpush1.msra.mxu0 0.0
  %3725 = vmatprep.subr.mxu0 0.0
  %3726 = vmatpush1.msra.mxu0 0.0
  %3727 = vmatprep.subr.mxu0 0.0
  %3728 = vmatpush1.msra.mxu0 0.0
  %3729 = vmatprep.subr.mxu0 0.0
  %3730 = vmatpush1.msra.mxu0 0.0
  %3731 = vmatprep.subr.mxu0 0.0
  %3732 = vmatpush1.msra.mxu0 %v1162
  %3733 = vmatprep.subr.mxu0 0.0
  %3734 = vmatpush1.msra.mxu0 %v1161
  %3735 = vmatprep.subr.mxu0 0.0
  %3736 = vmatpush1.msra.mxu0 %v1160
  %3737 = vmatprep.subr.mxu0 0.0
  %3738 = vmatpush1.msra.mxu0 %v1159
  %3739 = vmatprep.subr.mxu0 0.0
  %3740 = vmatpush2.msra.mxu0 0.0
  %3741 = vmatprep.subr.mxu0 0.0
  %3742 = vmatpush2.msra.mxu0 0.0
  %3743 = vmatprep.subr.mxu0 0.0
  %3744 = vmatpush2.msra.mxu0 0.0
  %3745 = vmatprep.subr.mxu0 0.0
  %3746 = vmatpush2.msra.mxu0 0.0
  %3747 = vmatprep.subr.mxu0 0.0
  %3748 = vmatpush2.msra.mxu0 0.0
  %3749 = vmatprep.subr.mxu0 0.0
  %3750 = vmatpush2.msra.mxu0 0.0
  %3751 = vmatprep.subr.mxu0 0.0
  %3752 = vmatpush2.msra.mxu0 0.0
  %3753 = vmatprep.subr.mxu0 0.0
  %3754 = vmatpush2.msra.mxu0 0.0
  %3755 = vmatprep.subr.mxu0 0.0
  %3756 = vmatpush2.msra.mxu0 0.0
  %3757 = vmatprep.subr.mxu0 0.0
  %3758 = vmatpush2.msra.mxu0 0.0
  %3759 = vmatprep.subr.mxu0 0.0
  %3760 = vmatpush2.msra.mxu0 0.0
  %3761 = vmatprep.subr.mxu0 0.0
  %3762 = vmatpush2.msra.mxu0 0.0
  %3763 = vmatprep.subr.mxu0 0.0
  %3764 = vmatpush2.msra.mxu0 0.0
  %3765 = vmatprep.subr.mxu0 0.0
  %3766 = vmatpush2.msra.mxu0 0.0
  %3767 = vmatprep.subr.mxu0 0.0
  %3768 = vmatpush2.msra.mxu0 0.0
  %3769 = vmatprep.subr.mxu0 0.0
  %3770 = vmatpush2.msra.mxu0 0.0
  %3771 = vmatprep.mubr.f32.mxu0 0.0
  %3772 = vmatmul.mubr.f32.gmra.mxu0 %v3705
  %v3773 = vpop.f32.mrf.mxu0
  %v3774 = vadd.f32 %v1163, %v3773
  %v3775 = vpop.f32.mrf.mxu0
  %3776 = vdwg.mxu0
  %v3777 = vmax.f32 %v3774, 0.0
  %3778 = vmatprep.subr.mxu0 0.0
  %3779 = vmatpush1.msra.mxu0 %v1253
  %3780 = vmatprep.subr.mxu0 0.0
  %3781 = vmatpush1.msra.mxu0 %v1252
  %3782 = vmatprep.subr.mxu0 0.0
  %3783 = vmatpush1.msra.mxu0 %v1251
  %3784 = vmatprep.subr.mxu0 0.0
  %3785 = vmatpush1.msra.mxu0 %v1250
  %3786 = vmatprep.subr.mxu0 0.0
  %3787 = vmatpush1.msra.mxu0 %v1249
  %3788 = vmatprep.subr.mxu0 0.0
  %3789 = vmatpush1.msra.mxu0 %v1248
  %3790 = vmatprep.subr.mxu0 0.0
  %3791 = vmatpush1.msra.mxu0 %v1247
  %3792 = vmatprep.subr.mxu0 0.0
  %3793 = vmatpush1.msra.mxu0 %v1246
  %3794 = vmatprep.subr.mxu0 0.0
  %3795 = vmatpush1.msra.mxu0 %v1245
  %3796 = vmatprep.subr.mxu0 0.0
  %3797 = vmatpush1.msra.mxu0 %v1244
  %3798 = vmatprep.subr.mxu0 0.0
  %3799 = vmatpush1.msra.mxu0 %v1243
  %3800 = vmatprep.subr.mxu0 0.0
  %3801 = vmatpush1.msra.mxu0 %v1242
  %3802 = vmatprep.subr.mxu0 0.0
  %3803 = vmatpush1.msra.mxu0 %v1241
  %3804 = vmatprep.subr.mxu0 0.0
  %3805 = vmatpush1.msra.mxu0 %v1240
  %3806 = vmatprep.subr.mxu0 0.0
  %3807 = vmatpush1.msra.mxu0 %v1239
  %3808 = vmatprep.subr.mxu0 0.0
  %3809 = vmatpush1.msra.mxu0 %v1238
  %3810 = vmatprep.subr.mxu0 0.0
  %3811 = vmatpush2.msra.mxu0 0.0
  %3812 = vmatprep.subr.mxu0 0.0
  %3813 = vmatpush2.msra.mxu0 0.0
  %3814 = vmatprep.subr.mxu0 0.0
  %3815 = vmatpush2.msra.mxu0 0.0
  %3816 = vmatprep.subr.mxu0 0.0
  %3817 = vmatpush2.msra.mxu0 0.0
  %3818 = vmatprep.subr.mxu0 0.0
  %3819 = vmatpush2.msra.mxu0 0.0
  %3820 = vmatprep.subr.mxu0 0.0
  %3821 = vmatpush2.msra.mxu0 0.0
  %3822 = vmatprep.subr.mxu0 0.0
  %3823 = vmatpush2.msra.mxu0 0.0
  %3824 = vmatprep.subr.mxu0 0.0
  %3825 = vmatpush2.msra.mxu0 0.0
  %3826 = vmatprep.subr.mxu0 0.0
  %3827 = vmatpush2.msra.mxu0 0.0
  %3828 = vmatprep.subr.mxu0 0.0
  %3829 = vmatpush2.msra.mxu0 0.0
  %3830 = vmatprep.subr.mxu0 0.0
  %3831 = vmatpush2.msra.mxu0 0.0
  %3832 = vmatprep.subr.mxu0 0.0
  %3833 = vmatpush2.msra.mxu0 0.0
  %3834 = vmatprep.subr.mxu0 0.0
  %3835 = vmatpush2.msra.mxu0 0.0
  %3836 = vmatprep.subr.mxu0 0.0
  %3837 = vmatpush2.msra.mxu0 0.0
  %3838 = vmatprep.subr.mxu0 0.0
  %3839 = vmatpush2.msra.mxu0 0.0
  %3840 = vmatprep.subr.mxu0 0.0
  %3841 = vmatpush2.msra.mxu0 0.0
  %3842 = vmatprep.mubr.f32.mxu0 0.0
  %3843 = vmatmul.mubr.f32.gmra.mxu0 %v3777
  %v3844 = vpop.f32.mrf.mxu0
  %v3845 = vadd.f32 %v1254, %v3844
  %v3846 = vpop.f32.mrf.mxu0
  %3847 = vdwg.mxu0
  %v3848 = vadd.f32 %v3703, %v3845
  %v3849 = vsel %vm105, %v3848, 0.0
  %3850 = vadd.xlane.f32.xlu0 %v3849
  %v3851 = vpop.xlane.xlu0 %3850
  %v3852 = vmul.f32 %v3851, %v1146
  %v3853 = vsub.f32 %v3848, %v3852
  %v3854 = vmul.f32 %v3853, %v3853
  %v3855 = vsel %vm105, %v3854, 0.0
  %3856 = vadd.xlane.f32.xlu0 %v3855
  %v3857 = vpop.xlane.xlu0 %3856
  %v3858 = vmul.f32 %v3857, %v1146
  %v3859 = vadd.f32 %v3858, 1e-05
  %v3860 = vrsqrt.pop %v3859
  %v3861 = vmul.f32 %v3853, %v3860
  %v3862 = vmul.f32 %v3861, %v1326
  %v3863 = vadd.f32 %v3862, %v1327
  %v3865 = vsel %vm105, %v2657, 0
  %3867 = vmatprep.subr.mxu0 0.0
  %3868 = vmatpush1.msra.mxu0 0.0
  %3869 = vmatprep.subr.mxu0 0.0
  %3870 = vmatpush1.msra.mxu0 0.0
  %3871 = vmatprep.subr.mxu0 0.0
  %3872 = vmatpush1.msra.mxu0 0.0
  %3873 = vmatprep.subr.mxu0 0.0
  %3874 = vmatpush1.msra.mxu0 0.0
  %3875 = vmatprep.subr.mxu0 0.0
  %3876 = vmatpush1.msra.mxu0 0.0
  %3877 = vmatprep.subr.mxu0 0.0
  %3878 = vmatpush1.msra.mxu0 0.0
  %3879 = vmatprep.subr.mxu0 0.0
  %3880 = vmatpush1.msra.mxu0 0.0
  %3881 = vmatprep.subr.mxu0 0.0
  %3882 = vmatpush1.msra.mxu0 0.0
  %3883 = vmatprep.subr.mxu0 0.0
  %3884 = vmatpush1.msra.mxu0 0.0
  %3885 = vmatprep.subr.mxu0 0.0
  %3886 = vmatpush1.msra.mxu0 0.0
  %3887 = vmatprep.subr.mxu0 0.0
  %3888 = vmatpush1.msra.mxu0 0.0
  %3889 = vmatprep.subr.mxu0 0.0
  %3890 = vmatpush1.msra.mxu0 0.0
  %3891 = vmatprep.subr.mxu0 0.0
  %3892 = vmatpush1.msra.mxu0 %v1346
  %3893 = vmatprep.subr.mxu0 0.0
  %3894 = vmatpush1.msra.mxu0 %v1345
  %3895 = vmatprep.subr.mxu0 0.0
  %3896 = vmatpush1.msra.mxu0 %v1344
  %3897 = vmatprep.subr.mxu0 0.0
  %3898 = vmatpush1.msra.mxu0 %v1343
  %3899 = vmatprep.subr.mxu0 0.0
  %3900 = vmatpush2.msra.mxu0 0.0
  %3901 = vmatprep.subr.mxu0 0.0
  %3902 = vmatpush2.msra.mxu0 0.0
  %3903 = vmatprep.subr.mxu0 0.0
  %3904 = vmatpush2.msra.mxu0 0.0
  %3905 = vmatprep.subr.mxu0 0.0
  %3906 = vmatpush2.msra.mxu0 0.0
  %3907 = vmatprep.subr.mxu0 0.0
  %3908 = vmatpush2.msra.mxu0 0.0
  %3909 = vmatprep.subr.mxu0 0.0
  %3910 = vmatpush2.msra.mxu0 0.0
  %3911 = vmatprep.subr.mxu0 0.0
  %3912 = vmatpush2.msra.mxu0 0.0
  %3913 = vmatprep.subr.mxu0 0.0
  %3914 = vmatpush2.msra.mxu0 0.0
  %3915 = vmatprep.subr.mxu0 0.0
  %3916 = vmatpush2.msra.mxu0 0.0
  %3917 = vmatprep.subr.mxu0 0.0
  %3918 = vmatpush2.msra.mxu0 0.0
  %3919 = vmatprep.subr.mxu0 0.0
  %3920 = vmatpush2.msra.mxu0 0.0
  %3921 = vmatprep.subr.mxu0 0.0
  %3922 = vmatpush2.msra.mxu0 0.0
  %3923 = vmatprep.subr.mxu0 0.0
  %3924 = vmatpush2.msra.mxu0 0.0
  %3925 = vmatprep.subr.mxu0 0.0
  %3926 = vmatpush2.msra.mxu0 0.0
  %3927 = vmatprep.subr.mxu0 0.0
  %3928 = vmatpush2.msra.mxu0 0.0
  %3929 = vmatprep.subr.mxu0 0.0
  %3930 = vmatpush2.msra.mxu0 0.0
  %3931 = vmatprep.mubr.f32.mxu0 0.0
  %3932 = vmatmul.mubr.f32.gmra.mxu0 %v3865
  %v3933 = vpop.f32.mrf.mxu0
  %v3934 = vadd.f32 %v1347, %v3933
  %v3935 = vpop.f32.mrf.mxu0
  %3936 = vdwg.mxu0
  %3938 = vrot.lane.b32.xlu0 %v3934, 96
  %v3939 = vpop.permute.xlu0 %3938
  %v3940 = vsel %vm187, %v3934, 0
  %v3942 = vsel %vm187, %v3939, 0
  %3944 = vmatprep.subr.mxu0 0.0
  %3945 = vmatpush1.xpose.msra.mxu0 0.0
  %3946 = vmatprep.subr.mxu0 0.0
  %3947 = vmatpush1.xpose.msra.mxu0 0.0
  %3948 = vmatprep.subr.mxu0 0.0
  %3949 = vmatpush1.xpose.msra.mxu0 0.0
  %3950 = vmatprep.subr.mxu0 0.0
  %3951 = vmatpush1.xpose.msra.mxu0 0.0
  %3952 = vmatprep.subr.mxu0 0.0
  %3953 = vmatpush1.xpose.msra.mxu0 0.0
  %3954 = vmatprep.subr.mxu0 0.0
  %3955 = vmatpush1.xpose.msra.mxu0 0.0
  %3956 = vmatprep.subr.mxu0 0.0
  %3957 = vmatpush1.xpose.msra.mxu0 0.0
  %3958 = vmatprep.subr.mxu0 0.0
  %3959 = vmatpush1.xpose.msra.mxu0 0.0
  %3960 = vmatprep.subr.mxu0 0.0
  %3961 = vmatpush1.xpose.msra.mxu0 0.0
  %3962 = vmatprep.subr.mxu0 0.0
  %3963 = vmatpush1.xpose.msra.mxu0 0.0
  %3964 = vmatprep.subr.mxu0 0.0
  %3965 = vmatpush1.xpose.msra.mxu0 0.0
  %3966 = vmatprep.subr.mxu0 0.0
  %3967 = vmatpush1.xpose.msra.mxu0 0.0
  %3968 = vmatprep.subr.mxu0 0.0
  %3969 = vmatpush1.xpose.msra.mxu0 0.0
  %3970 = vmatprep.subr.mxu0 0.0
  %3971 = vmatpush1.xpose.msra.mxu0 0.0
  %3972 = vmatprep.subr.mxu0 0.0
  %3973 = vmatpush1.xpose.msra.mxu0 0.0
  %3974 = vmatprep.subr.mxu0 0.0
  %3975 = vmatpush1.xpose.msra.mxu0 %v3942
  %3976 = vmatprep.subr.mxu0 0.0
  %3977 = vmatpush2.xpose.msra.mxu0 0.0
  %3978 = vmatprep.subr.mxu0 0.0
  %3979 = vmatpush2.xpose.msra.mxu0 0.0
  %3980 = vmatprep.subr.mxu0 0.0
  %3981 = vmatpush2.xpose.msra.mxu0 0.0
  %3982 = vmatprep.subr.mxu0 0.0
  %3983 = vmatpush2.xpose.msra.mxu0 0.0
  %3984 = vmatprep.subr.mxu0 0.0
  %3985 = vmatpush2.xpose.msra.mxu0 0.0
  %3986 = vmatprep.subr.mxu0 0.0
  %3987 = vmatpush2.xpose.msra.mxu0 0.0
  %3988 = vmatprep.subr.mxu0 0.0
  %3989 = vmatpush2.xpose.msra.mxu0 0.0
  %3990 = vmatprep.subr.mxu0 0.0
  %3991 = vmatpush2.xpose.msra.mxu0 0.0
  %3992 = vmatprep.subr.mxu0 0.0
  %3993 = vmatpush2.xpose.msra.mxu0 0.0
  %3994 = vmatprep.subr.mxu0 0.0
  %3995 = vmatpush2.xpose.msra.mxu0 0.0
  %3996 = vmatprep.subr.mxu0 0.0
  %3997 = vmatpush2.xpose.msra.mxu0 0.0
  %3998 = vmatprep.subr.mxu0 0.0
  %3999 = vmatpush2.xpose.msra.mxu0 0.0
  %4000 = vmatprep.subr.mxu0 0.0
  %4001 = vmatpush2.xpose.msra.mxu0 0.0
  %4002 = vmatprep.subr.mxu0 0.0
  %4003 = vmatpush2.xpose.msra.mxu0 0.0
  %4004 = vmatprep.subr.mxu0 0.0
  %4005 = vmatpush2.xpose.msra.mxu0 0.0
  %4006 = vmatprep.subr.mxu0 0.0
  %4007 = vmatpush2.xpose.msra.mxu0 0.0
  %4008 = vmatprep.mubr.f32.mxu0 0.0
  %4009 = vmatmul.mubr.f32.gmra.mxu0 %v3940
  %v4010 = vpop.f32.mrf.mxu0
  %v4011 = vadd.f32 0.0, %v4010
  %v4012 = vpop.f32.mrf.mxu0
  %4013 = vdwg.mxu0
  %v4014 = vsel %vm187, %v4011, -inf
  %4015 = vmax.xlane.f32.xlu0 %v4014
  %v4016 = vpop.xlane.xlu0 %4015
  %v4017 = vsub.f32 %v4011, %v4016
  %v4018 = vmul.f32 %v4017, 1.442695
  %v4019 = vpow.pop %v4018
  %v4020 = vsel %vm187, %v4019, 0.0
  %4021 = vadd.xlane.f32.xlu0 %v4020
  %v4022 = vpop.xlane.xlu0 %4021
  %v4023 = vrcp.pop %v4022
  %v4024 = vmul.f32 %v4019, %v4023
  %4025 = vrot.lane.b32.xlu0 %v3934, 64
  %v4026 = vpop.permute.xlu0 %4025
  %v4029 = vsel %vm187, %v4024, 0
  %4031 = vmatprep.subr.mxu0 0.0
  %4032 = vmatpush1.msra.mxu0 0.0
  %4033 = vmatprep.subr.mxu0 0.0
  %4034 = vmatpush1.msra.mxu0 0.0
  %4035 = vmatprep.subr.mxu0 0.0
  %4036 = vmatpush1.msra.mxu0 0.0
  %4037 = vmatprep.subr.mxu0 0.0
  %4038 = vmatpush1.msra.mxu0 0.0
  %4039 = vmatprep.subr.mxu0 0.0
  %4040 = vmatpush1.msra.mxu0 0.0
  %4041 = vmatprep.subr.mxu0 0.0
  %4042 = vmatpush1.msra.mxu0 0.0
  %4043 = vmatprep.subr.mxu0 0.0
  %4044 = vmatpush1.msra.mxu0 0.0
  %4045 = vmatprep.subr.mxu0 0.0
  %4046 = vmatpush1.msra.mxu0 0.0
  %4047 = vmatprep.subr.mxu0 0.0
  %4048 = vmatpush1.msra.mxu0 0.0
  %4049 = vmatprep.subr.mxu0 0.0
  %4050 = vmatpush1.msra.mxu0 0.0
  %4051 = vmatprep.subr.mxu0 0.0
  %4052 = vmatpush1.msra.mxu0 0.0
  %4053 = vmatprep.subr.mxu0 0.0
  %4054 = vmatpush1.msra.mxu0 0.0
  %4055 = vmatprep.subr.mxu0 0.0
  %4056 = vmatpush1.msra.mxu0 0.0
  %4057 = vmatprep.subr.mxu0 0.0
  %4058 = vmatpush1.msra.mxu0 0.0
  %4059 = vmatprep.subr.mxu0 0.0
  %4060 = vmatpush1.msra.mxu0 0.0
  %4061 = vmatprep.subr.mxu0 0.0
  %4062 = vmatpush1.msra.mxu0 %v4026
  %4063 = vmatprep.subr.mxu0 0.0
  %4064 = vmatpush2.msra.mxu0 0.0
  %4065 = vmatprep.subr.mxu0 0.0
  %4066 = vmatpush2.msra.mxu0 0.0
  %4067 = vmatprep.subr.mxu0 0.0
  %4068 = vmatpush2.msra.mxu0 0.0
  %4069 = vmatprep.subr.mxu0 0.0
  %4070 = vmatpush2.msra.mxu0 0.0
  %4071 = vmatprep.subr.mxu0 0.0
  %4072 = vmatpush2.msra.mxu0 0.0
  %4073 = vmatprep.subr.mxu0 0.0
  %4074 = vmatpush2.msra.mxu0 0.0
  %4075 = vmatprep.subr.mxu0 0.0
  %4076 = vmatpush2.msra.mxu0 0.0
  %4077 = vmatprep.subr.mxu0 0.0
  %4078 = vmatpush2.msra.mxu0 0.0
  %4079 = vmatprep.subr.mxu0 0.0
  %4080 = vmatpush2.msra.mxu0 0.0
  %4081 = vmatprep.subr.mxu0 0.0
  %4082 = vmatpush2.msra.mxu0 0.0
  %4083 = vmatprep.subr.mxu0 0.0
  %4084 = vmatpush2.msra.mxu0 0.0
  %4085 = vmatprep.subr.mxu0 0.0
  %4086 = vmatpush2.msra.mxu0 0.0
  %4087 = vmatprep.subr.mxu0 0.0
  %4088 = vmatpush2.msra.mxu0 0.0
  %4089 = vmatprep.subr.mxu0 0.0
  %4090 = vmatpush2.msra.mxu0 0.0
  %4091 = vmatprep.subr.mxu0 0.0
  %4092 = vmatpush2.msra.mxu0 0.0
  %4093 = vmatprep.subr.mxu0 0.0
  %4094 = vmatpush2.msra.mxu0 0.0
  %4095 = vmatprep.mubr.f32.mxu0 0.0
  %4096 = vmatmul.mubr.f32.gmra.mxu0 %v4029
  %v4097 = vpop.f32.mrf.mxu0
  %v4098 = vadd.f32 0.0, %v4097
  %v4099 = vpop.f32.mrf.mxu0
  %4100 = vdwg.mxu0
  %v4102 = vsel %vm187, %v4098, 0
  %4104 = vmatprep.subr.mxu0 0.0
  %4105 = vmatpush1.msra.mxu0 0.0
  %4106 = vmatprep.subr.mxu0 0.0
  %4107 = vmatpush1.msra.mxu0 0.0
  %4108 = vmatprep.subr.mxu0 0.0
  %4109 = vmatpush1.msra.mxu0 0.0
  %4110 = vmatprep.subr.mxu0 0.0
  %4111 = vmatpush1.msra.mxu0 0.0
  %4112 = vmatprep.subr.mxu0 0.0
  %4113 = vmatpush1.msra.mxu0 0.0
  %4114 = vmatprep.subr.mxu0 0.0
  %4115 = vmatpush1.msra.mxu0 0.0
  %4116 = vmatprep.subr.mxu0 0.0
  %4117 = vmatpush1.msra.mxu0 0.0
  %4118 = vmatprep.subr.mxu0 0.0
  %4119 = vmatpush1.msra.mxu0 0.0
  %4120 = vmatprep.subr.mxu0 0.0
  %4121 = vmatpush1.msra.mxu0 0.0
  %4122 = vmatprep.subr.mxu0 0.0
  %4123 = vmatpush1.msra.mxu0 0.0
  %4124 = vmatprep.subr.mxu0 0.0
  %4125 = vmatpush1.msra.mxu0 0.0
  %4126 = vmatprep.subr.mxu0 0.0
  %4127 = vmatpush1.msra.mxu0 0.0
  %4128 = vmatprep.subr.mxu0 0.0
  %4129 = vmatpush1.msra.mxu0 0.0
  %4130 = vmatprep.subr.mxu0 0.0
  %4131 = vmatpush1.msra.mxu0 0.0
  %4132 = vmatprep.subr.mxu0 0.0
  %4133 = vmatpush1.msra.mxu0 0.0
  %4134 = vmatprep.subr.mxu0 0.0
  %4135 = vmatpush1.msra.mxu0 %v1421
  %4136 = vmatprep.subr.mxu0 0.0
  %4137 = vmatpush2.msra.mxu0 0.0
  %4138 = vmatprep.subr.mxu0 0.0
  %4139 = vmatpush2.msra.mxu0 0.0
  %4140 = vmatprep.subr.mxu0 0.0
  %4141 = vmatpush2.msra.mxu0 0.0
  %4142 = vmatprep.subr.mxu0 0.0
  %4143 = vmatpush2.msra.mxu0 0.0
  %4144 = vmatprep.subr.mxu0 0.0
  %4145 = vmatpush2.msra.mxu0 0.0
  %4146 = vmatprep.subr.mxu0 0.0
  %4147 = vmatpush2.msra.mxu0 0.0
  %4148 = vmatprep.subr.mxu0 0.0
  %4149 = vmatpush2.msra.mxu0 0.0
  %4150 = vmatprep.subr.mxu0 0.0
  %4151 = vmatpush2.msra.mxu0 0.0
  %4152 = vmatprep.subr.mxu0 0.0
  %4153 = vmatpush2.msra.mxu0 0.0
  %4154 = vmatprep.subr.mxu0 0.0
  %4155 = vmatpush2.msra.mxu0 0.0
  %4156 = vmatprep.subr.mxu0 0.0
  %4157 = vmatpush2.msra.mxu0 0.0
  %4158 = vmatprep.subr.mxu0 0.0
  %4159 = vmatpush2.msra.mxu0 0.0
  %4160 = vmatprep.subr.mxu0 0.0
  %4161 = vmatpush2.msra.mxu0 0.0
  %4162 = vmatprep.subr.mxu0 0.0
  %4163 = vmatpush2.msra.mxu0 0.0
  %4164 = vmatprep.subr.mxu0 0.0
  %4165 = vmatpush2.msra.mxu0 0.0
  %4166 = vmatprep.subr.mxu0 0.0
  %4167 = vmatpush2.msra.mxu0 0.0
  %4168 = vmatprep.mubr.f32.mxu0 0.0
  %4169 = vmatmul.mubr.f32.gmra.mxu0 %v4102
  %v4170 = vpop.f32.mrf.mxu0
  %v4171 = vadd.f32 0.0, %v4170
  %v4172 = vpop.f32.mrf.mxu0
  %4173 = vdwg.mxu0
  %v4174 = vadd.f32 %v1425, %v4171
  %4175 = vrot.lane.b32.xlu0 %v3934, 120
  %v4176 = vpop.permute.xlu0 %4175
  %4177 = vrot.lane.b32.xlu0 %v3934, 88
  %v4178 = vpop.permute.xlu0 %4177
  %v4179 = vsel %vm187, %v4176, 0
  %v4181 = vsel %vm187, %v4178, 0
  %4183 = vmatprep.subr.mxu0 0.0
  %4184 = vmatpush1.xpose.msra.mxu0 0.0
  %4185 = vmatprep.subr.mxu0 0.0
  %4186 = vmatpush1.xpose.msra.mxu0 0.0
  %4187 = vmatprep.subr.mxu0 0.0
  %4188 = vmatpush1.xpose.msra.mxu0 0.0
  %4189 = vmatprep.subr.mxu0 0.0
  %4190 = vmatpush1.xpose.msra.mxu0 0.0
  %4191 = vmatprep.subr.mxu0 0.0
  %4192 = vmatpush1.xpose.msra.mxu0 0.0
  %4193 = vmatprep.subr.mxu0 0.0
  %4194 = vmatpush1.xpose.msra.mxu0 0.0
  %4195 = vmatprep.subr.mxu0 0.0
  %4196 = vmatpush1.xpose.msra.mxu0 0.0
  %4197 = vmatprep.subr.mxu0 0.0
  %4198 = vmatpush1.xpose.msra.mxu0 0.0
  %4199 = vmatprep.subr.mxu0 0.0
  %4200 = vmatpush1.xpose.msra.mxu0 0.0
  %4201 = vmatprep.subr.mxu0 0.0
  %4202 = vmatpush1.xpose.msra.mxu0 0.0
  %4203 = vmatprep.subr.mxu0 0.0
  %4204 = vmatpush1.xpose.msra.mxu0 0.0
  %4205 = vmatprep.subr.mxu0 0.0
  %4206 = vmatpush1.xpose.msra.mxu0 0.0
  %4207 = vmatprep.subr.mxu0 0.0
  %4208 = vmatpush1.xpose.msra.mxu0 0.0
  %4209 = vmatprep.subr.mxu0 0.0
  %4210 = vmatpush1.xpose.msra.mxu0 0.0
  %4211 = vmatprep.subr.mxu0 0.0
  %4212 = vmatpush1.xpose.msra.mxu0 0.0
  %4213 = vmatprep.subr.mxu0 0.0
  %4214 = vmatpush1.xpose.msra.mxu0 %v4181
  %4215 = vmatprep.subr.mxu0 0.0
  %4216 = vmatpush2.xpose.msra.mxu0 0.0
  %4217 = vmatprep.subr.mxu0 0.0
  %4218 = vmatpush2.xpose.msra.mxu0 0.0
  %4219 = vmatprep.subr.mxu0 0.0
  %4220 = vmatpush2.xpose.msra.mxu0 0.0
  %4221 = vmatprep.subr.mxu0 0.0
  %4222 = vmatpush2.xpose.msra.mxu0 0.0
  %4223 = vmatprep.subr.mxu0 0.0
  %4224 = vmatpush2.xpose.msra.mxu0 0.0
  %4225 = vmatprep.subr.mxu0 0.0
  %4226 = vmatpush2.xpose.msra.mxu0 0.0
  %4227 = vmatprep.subr.mxu0 0.0
  %4228 = vmatpush2.xpose.msra.mxu0 0.0
  %4229 = vmatprep.subr.mxu0 0.0
  %4230 = vmatpush2.xpose.msra.mxu0 0.0
  %4231 = vmatprep.subr.mxu0 0.0
  %4232 = vmatpush2.xpose.msra.mxu0 0.0
  %4233 = vmatprep.subr.mxu0 0.0
  %4234 = vmatpush2.xpose.msra.mxu0 0.0
  %4235 = vmatprep.subr.mxu0 0.0
  %4236 = vmatpush2.xpose.msra.mxu0 0.0
  %4237 = vmatprep.subr.mxu0 0.0
  %4238 = vmatpush2.xpose.msra.mxu0 0.0
  %4239 = vmatprep.subr.mxu0 0.0
  %4240 = vmatpush2.xpose.msra.mxu0 0.0
  %4241 = vmatprep.subr.mxu0 0.0
  %4242 = vmatpush2.xpose.msra.mxu0 0.0
  %4243 = vmatprep.subr.mxu0 0.0
  %4244 = vmatpush2.xpose.msra.mxu0 0.0
  %4245 = vmatprep.subr.mxu0 0.0
  %4246 = vmatpush2.xpose.msra.mxu0 0.0
  %4247 = vmatprep.mubr.f32.mxu0 0.0
  %4248 = vmatmul.mubr.f32.gmra.mxu0 %v4179
  %v4249 = vpop.f32.mrf.mxu0
  %v4250 = vadd.f32 0.0, %v4249
  %v4251 = vpop.f32.mrf.mxu0
  %4252 = vdwg.mxu0
  %v4253 = vsel %vm187, %v4250, -inf
  %4254 = vmax.xlane.f32.xlu0 %v4253
  %v4255 = vpop.xlane.xlu0 %4254
  %v4256 = vsub.f32 %v4250, %v4255
  %v4257 = vmul.f32 %v4256, 1.442695
  %v4258 = vpow.pop %v4257
  %v4259 = vsel %vm187, %v4258, 0.0
  %4260 = vadd.xlane.f32.xlu0 %v4259
  %v4261 = vpop.xlane.xlu0 %4260
  %v4262 = vrcp.pop %v4261
  %v4263 = vmul.f32 %v4258, %v4262
  %4264 = vrot.lane.b32.xlu0 %v3934, 56
  %v4265 = vpop.permute.xlu0 %4264
  %v4268 = vsel %vm187, %v4263, 0
  %4270 = vmatprep.subr.mxu0 0.0
  %4271 = vmatpush1.msra.mxu0 0.0
  %4272 = vmatprep.subr.mxu0 0.0
  %4273 = vmatpush1.msra.mxu0 0.0
  %4274 = vmatprep.subr.mxu0 0.0
  %4275 = vmatpush1.msra.mxu0 0.0
  %4276 = vmatprep.subr.mxu0 0.0
  %4277 = vmatpush1.msra.mxu0 0.0
  %4278 = vmatprep.subr.mxu0 0.0
  %4279 = vmatpush1.msra.mxu0 0.0
  %4280 = vmatprep.subr.mxu0 0.0
  %4281 = vmatpush1.msra.mxu0 0.0
  %4282 = vmatprep.subr.mxu0 0.0
  %4283 = vmatpush1.msra.mxu0 0.0
  %4284 = vmatprep.subr.mxu0 0.0
  %4285 = vmatpush1.msra.mxu0 0.0
  %4286 = vmatprep.subr.mxu0 0.0
  %4287 = vmatpush1.msra.mxu0 0.0
  %4288 = vmatprep.subr.mxu0 0.0
  %4289 = vmatpush1.msra.mxu0 0.0
  %4290 = vmatprep.subr.mxu0 0.0
  %4291 = vmatpush1.msra.mxu0 0.0
  %4292 = vmatprep.subr.mxu0 0.0
  %4293 = vmatpush1.msra.mxu0 0.0
  %4294 = vmatprep.subr.mxu0 0.0
  %4295 = vmatpush1.msra.mxu0 0.0
  %4296 = vmatprep.subr.mxu0 0.0
  %4297 = vmatpush1.msra.mxu0 0.0
  %4298 = vmatprep.subr.mxu0 0.0
  %4299 = vmatpush1.msra.mxu0 0.0
  %4300 = vmatprep.subr.mxu0 0.0
  %4301 = vmatpush1.msra.mxu0 %v4265
  %4302 = vmatprep.subr.mxu0 0.0
  %4303 = vmatpush2.msra.mxu0 0.0
  %4304 = vmatprep.subr.mxu0 0.0
  %4305 = vmatpush2.msra.mxu0 0.0
  %4306 = vmatprep.subr.mxu0 0.0
  %4307 = vmatpush2.msra.mxu0 0.0
  %4308 = vmatprep.subr.mxu0 0.0
  %4309 = vmatpush2.msra.mxu0 0.0
  %4310 = vmatprep.subr.mxu0 0.0
  %4311 = vmatpush2.msra.mxu0 0.0
  %4312 = vmatprep.subr.mxu0 0.0
  %4313 = vmatpush2.msra.mxu0 0.0
  %4314 = vmatprep.subr.mxu0 0.0
  %4315 = vmatpush2.msra.mxu0 0.0
  %4316 = vmatprep.subr.mxu0 0.0
  %4317 = vmatpush2.msra.mxu0 0.0
  %4318 = vmatprep.subr.mxu0 0.0
  %4319 = vmatpush2.msra.mxu0 0.0
  %4320 = vmatprep.subr.mxu0 0.0
  %4321 = vmatpush2.msra.mxu0 0.0
  %4322 = vmatprep.subr.mxu0 0.0
  %4323 = vmatpush2.msra.mxu0 0.0
  %4324 = vmatprep.subr.mxu0 0.0
  %4325 = vmatpush2.msra.mxu0 0.0
  %4326 = vmatprep.subr.mxu0 0.0
  %4327 = vmatpush2.msra.mxu0 0.0
  %4328 = vmatprep.subr.mxu0 0.0
  %4329 = vmatpush2.msra.mxu0 0.0
  %4330 = vmatprep.subr.mxu0 0.0
  %4331 = vmatpush2.msra.mxu0 0.0
  %4332 = vmatprep.subr.mxu0 0.0
  %4333 = vmatpush2.msra.mxu0 0.0
  %4334 = vmatprep.mubr.f32.mxu0 0.0
  %4335 = vmatmul.mubr.f32.gmra.mxu0 %v4268
  %v4336 = vpop.f32.mrf.mxu0
  %v4337 = vadd.f32 0.0, %v4336
  %v4338 = vpop.f32.mrf.mxu0
  %4339 = vdwg.mxu0
  %v4341 = vsel %vm187, %v4337, 0
  %4343 = vmatprep.subr.mxu0 0.0
  %4344 = vmatpush1.msra.mxu0 0.0
  %4345 = vmatprep.subr.mxu0 0.0
  %4346 = vmatpush1.msra.mxu0 0.0
  %4347 = vmatprep.subr.mxu0 0.0
  %4348 = vmatpush1.msra.mxu0 0.0
  %4349 = vmatprep.subr.mxu0 0.0
  %4350 = vmatpush1.msra.mxu0 0.0
  %4351 = vmatprep.subr.mxu0 0.0
  %4352 = vmatpush1.msra.mxu0 0.0
  %4353 = vmatprep.subr.mxu0 0.0
  %4354 = vmatpush1.msra.mxu0 0.0
  %4355 = vmatprep.subr.mxu0 0.0
  %4356 = vmatpush1.msra.mxu0 0.0
  %4357 = vmatprep.subr.mxu0 0.0
  %4358 = vmatpush1.msra.mxu0 0.0
  %4359 = vmatprep.subr.mxu0 0.0
  %4360 = vmatpush1.msra.mxu0 0.0
  %4361 = vmatprep.subr.mxu0 0.0
  %4362 = vmatpush1.msra.mxu0 0.0
  %4363 = vmatprep.subr.mxu0 0.0
  %4364 = vmatpush1.msra.mxu0 0.0
  %4365 = vmatprep.subr.mxu0 0.0
  %4366 = vmatpush1.msra.mxu0 0.0
  %4367 = vmatprep.subr.mxu0 0.0
  %4368 = vmatpush1.msra.mxu0 0.0
  %4369 = vmatprep.subr.mxu0 0.0
  %4370 = vmatpush1.msra.mxu0 0.0
  %4371 = vmatprep.subr.mxu0 0.0
  %4372 = vmatpush1.msra.mxu0 0.0
  %4373 = vmatprep.subr.mxu0 0.0
  %4374 = vmatpush1.msra.mxu0 %v1422
  %4375 = vmatprep.subr.mxu0 0.0
  %4376 = vmatpush2.msra.mxu0 0.0
  %4377 = vmatprep.subr.mxu0 0.0
  %4378 = vmatpush2.msra.mxu0 0.0
  %4379 = vmatprep.subr.mxu0 0.0
  %4380 = vmatpush2.msra.mxu0 0.0
  %4381 = vmatprep.subr.mxu0 0.0
  %4382 = vmatpush2.msra.mxu0 0.0
  %4383 = vmatprep.subr.mxu0 0.0
  %4384 = vmatpush2.msra.mxu0 0.0
  %4385 = vmatprep.subr.mxu0 0.0
  %4386 = vmatpush2.msra.mxu0 0.0
  %4387 = vmatprep.subr.mxu0 0.0
  %4388 = vmatpush2.msra.mxu0 0.0
  %4389 = vmatprep.subr.mxu0 0.0
  %4390 = vmatpush2.msra.mxu0 0.0
  %4391 = vmatprep.subr.mxu0 0.0
  %4392 = vmatpush2.msra.mxu0 0.0
  %4393 = vmatprep.subr.mxu0 0.0
  %4394 = vmatpush2.msra.mxu0 0.0
  %4395 = vmatprep.subr.mxu0 0.0
  %4396 = vmatpush2.msra.mxu0 0.0
  %4397 = vmatprep.subr.mxu0 0.0
  %4398 = vmatpush2.msra.mxu0 0.0
  %4399 = vmatprep.subr.mxu0 0.0
  %4400 = vmatpush2.msra.mxu0 0.0
  %4401 = vmatprep.subr.mxu0 0.0
  %4402 = vmatpush2.msra.mxu0 0.0
  %4403 = vmatprep.subr.mxu0 0.0
  %4404 = vmatpush2.msra.mxu0 0.0
  %4405 = vmatprep.subr.mxu0 0.0
  %4406 = vmatpush2.msra.mxu0 0.0
  %4407 = vmatprep.mubr.f32.mxu0 0.0
  %4408 = vmatmul.mubr.f32.gmra.mxu0 %v4341
  %v4409 = vpop.f32.mrf.mxu0
  %v4410 = vadd.f32 0.0, %v4409
  %v4411 = vpop.f32.mrf.mxu0
  %4412 = vdwg.mxu0
  %v4413 = vadd.f32 %v4174, %v4410
  %4414 = vrot.lane.b32.xlu0 %v3934, 112
  %v4415 = vpop.permute.xlu0 %4414
  %4416 = vrot.lane.b32.xlu0 %v3934, 80
  %v4417 = vpop.permute.xlu0 %4416
  %v4418 = vsel %vm187, %v4415, 0
  %v4420 = vsel %vm187, %v4417, 0
  %4422 = vmatprep.subr.mxu0 0.0
  %4423 = vmatpush1.xpose.msra.mxu0 0.0
  %4424 = vmatprep.subr.mxu0 0.0
  %4425 = vmatpush1.xpose.msra.mxu0 0.0
  %4426 = vmatprep.subr.mxu0 0.0
  %4427 = vmatpush1.xpose.msra.mxu0 0.0
  %4428 = vmatprep.subr.mxu0 0.0
  %4429 = vmatpush1.xpose.msra.mxu0 0.0
  %4430 = vmatprep.subr.mxu0 0.0
  %4431 = vmatpush1.xpose.msra.mxu0 0.0
  %4432 = vmatprep.subr.mxu0 0.0
  %4433 = vmatpush1.xpose.msra.mxu0 0.0
  %4434 = vmatprep.subr.mxu0 0.0
  %4435 = vmatpush1.xpose.msra.mxu0 0.0
  %4436 = vmatprep.subr.mxu0 0.0
  %4437 = vmatpush1.xpose.msra.mxu0 0.0
  %4438 = vmatprep.subr.mxu0 0.0
  %4439 = vmatpush1.xpose.msra.mxu0 0.0
  %4440 = vmatprep.subr.mxu0 0.0
  %4441 = vmatpush1.xpose.msra.mxu0 0.0
  %4442 = vmatprep.subr.mxu0 0.0
  %4443 = vmatpush1.xpose.msra.mxu0 0.0
  %4444 = vmatprep.subr.mxu0 0.0
  %4445 = vmatpush1.xpose.msra.mxu0 0.0
  %4446 = vmatprep.subr.mxu0 0.0
  %4447 = vmatpush1.xpose.msra.mxu0 0.0
  %4448 = vmatprep.subr.mxu0 0.0
  %4449 = vmatpush1.xpose.msra.mxu0 0.0
  %4450 = vmatprep.subr.mxu0 0.0
  %4451 = vmatpush1.xpose.msra.mxu0 0.0
  %4452 = vmatprep.subr.mxu0 0.0
  %4453 = vmatpush1.xpose.msra.mxu0 %v4420
  %4454 = vmatprep.subr.mxu0 0.0
  %4455 = vmatpush2.xpose.msra.mxu0 0.0
  %4456 = vmatprep.subr.mxu0 0.0
  %4457 = vmatpush2.xpose.msra.mxu0 0.0
  %4458 = vmatprep.subr.mxu0 0.0
  %4459 = vmatpush2.xpose.msra.mxu0 0.0
  %4460 = vmatprep.subr.mxu0 0.0
  %4461 = vmatpush2.xpose.msra.mxu0 0.0
  %4462 = vmatprep.subr.mxu0 0.0
  %4463 = vmatpush2.xpose.msra.mxu0 0.0
  %4464 = vmatprep.subr.mxu0 0.0
  %4465 = vmatpush2.xpose.msra.mxu0 0.0
  %4466 = vmatprep.subr.mxu0 0.0
  %4467 = vmatpush2.xpose.msra.mxu0 0.0
  %4468 = vmatprep.subr.mxu0 0.0
  %4469 = vmatpush2.xpose.msra.mxu0 0.0
  %4470 = vmatprep.subr.mxu0 0.0
  %4471 = vmatpush2.xpose.msra.mxu0 0.0
  %4472 = vmatprep.subr.mxu0 0.0
  %4473 = vmatpush2.xpose.msra.mxu0 0.0
  %4474 = vmatprep.subr.mxu0 0.0
  %4475 = vmatpush2.xpose.msra.mxu0 0.0
  %4476 = vmatprep.subr.mxu0 0.0
  %4477 = vmatpush2.xpose.msra.mxu0 0.0
  %4478 = vmatprep.subr.mxu0 0.0
  %4479 = vmatpush2.xpose.msra.mxu0 0.0
  %4480 = vmatprep.subr.mxu0 0.0
  %4481 = vmatpush2.xpose.msra.mxu0 0.0
  %4482 = vmatprep.subr.mxu0 0.0
  %4483 = vmatpush2.xpose.msra.mxu0 0.0
  %4484 = vmatprep.subr.mxu0 0.0
  %4485 = vmatpush2.xpose.msra.mxu0 0.0
  %4486 = vmatprep.mubr.f32.mxu0 0.0
  %4487 = vmatmul.mubr.f32.gmra.mxu0 %v4418
  %v4488 = vpop.f32.mrf.mxu0
  %v4489 = vadd.f32 0.0, %v4488
  %v4490 = vpop.f32.mrf.mxu0
  %4491 = vdwg.mxu0
  %v4492 = vsel %vm187, %v4489, -inf
  %4493 = vmax.xlane.f32.xlu0 %v4492
  %v4494 = vpop.xlane.xlu0 %4493
  %v4495 = vsub.f32 %v4489, %v4494
  %v4496 = vmul.f32 %v4495, 1.442695
  %v4497 = vpow.pop %v4496
  %v4498 = vsel %vm187, %v4497, 0.0
  %4499 = vadd.xlane.f32.xlu0 %v4498
  %v4500 = vpop.xlane.xlu0 %4499
  %v4501 = vrcp.pop %v4500
  %v4502 = vmul.f32 %v4497, %v4501
  %4503 = vrot.lane.b32.xlu0 %v3934, 48
  %v4504 = vpop.permute.xlu0 %4503
  %v4507 = vsel %vm187, %v4502, 0
  %4509 = vmatprep.subr.mxu0 0.0
  %4510 = vmatpush1.msra.mxu0 0.0
  %4511 = vmatprep.subr.mxu0 0.0
  %4512 = vmatpush1.msra.mxu0 0.0
  %4513 = vmatprep.subr.mxu0 0.0
  %4514 = vmatpush1.msra.mxu0 0.0
  %4515 = vmatprep.subr.mxu0 0.0
  %4516 = vmatpush1.msra.mxu0 0.0
  %4517 = vmatprep.subr.mxu0 0.0
  %4518 = vmatpush1.msra.mxu0 0.0
  %4519 = vmatprep.subr.mxu0 0.0
  %4520 = vmatpush1.msra.mxu0 0.0
  %4521 = vmatprep.subr.mxu0 0.0
  %4522 = vmatpush1.msra.mxu0 0.0
  %4523 = vmatprep.subr.mxu0 0.0
  %4524 = vmatpush1.msra.mxu0 0.0
  %4525 = vmatprep.subr.mxu0 0.0
  %4526 = vmatpush1.msra.mxu0 0.0
  %4527 = vmatprep.subr.mxu0 0.0
  %4528 = vmatpush1.msra.mxu0 0.0
  %4529 = vmatprep.subr.mxu0 0.0
  %4530 = vmatpush1.msra.mxu0 0.0
  %4531 = vmatprep.subr.mxu0 0.0
  %4532 = vmatpush1.msra.mxu0 0.0
  %4533 = vmatprep.subr.mxu0 0.0
  %4534 = vmatpush1.msra.mxu0 0.0
  %4535 = vmatprep.subr.mxu0 0.0
  %4536 = vmatpush1.msra.mxu0 0.0
  %4537 = vmatprep.subr.mxu0 0.0
  %4538 = vmatpush1.msra.mxu0 0.0
  %4539 = vmatprep.subr.mxu0 0.0
  %4540 = vmatpush1.msra.mxu0 %v4504
  %4541 = vmatprep.subr.mxu0 0.0
  %4542 = vmatpush2.msra.mxu0 0.0
  %4543 = vmatprep.subr.mxu0 0.0
  %4544 = vmatpush2.msra.mxu0 0.0
  %4545 = vmatprep.subr.mxu0 0.0
  %4546 = vmatpush2.msra.mxu0 0.0
  %4547 = vmatprep.subr.mxu0 0.0
  %4548 = vmatpush2.msra.mxu0 0.0
  %4549 = vmatprep.subr.mxu0 0.0
  %4550 = vmatpush2.msra.mxu0 0.0
  %4551 = vmatprep.subr.mxu0 0.0
  %4552 = vmatpush2.msra.mxu0 0.0
  %4553 = vmatprep.subr.mxu0 0.0
  %4554 = vmatpush2.msra.mxu0 0.0
  %4555 = vmatprep.subr.mxu0 0.0
  %4556 = vmatpush2.msra.mxu0 0.0
  %4557 = vmatprep.subr.mxu0 0.0
  %4558 = vmatpush2.msra.mxu0 0.0
  %4559 = vmatprep.subr.mxu0 0.0
  %4560 = vmatpush2.msra.mxu0 0.0
  %4561 = vmatprep.subr.mxu0 0.0
  %4562 = vmatpush2.msra.mxu0 0.0
  %4563 = vmatprep.subr.mxu0 0.0
  %4564 = vmatpush2.msra.mxu0 0.0
  %4565 = vmatprep.subr.mxu0 0.0
  %4566 = vmatpush2.msra.mxu0 0.0
  %4567 = vmatprep.subr.mxu0 0.0
  %4568 = vmatpush2.msra.mxu0 0.0
  %4569 = vmatprep.subr.mxu0 0.0
  %4570 = vmatpush2.msra.mxu0 0.0
  %4571 = vmatprep.subr.mxu0 0.0
  %4572 = vmatpush2.msra.mxu0 0.0
  %4573 = vmatprep.mubr.f32.mxu0 0.0
  %4574 = vmatmul.mubr.f32.gmra.mxu0 %v4507
  %v4575 = vpop.f32.mrf.mxu0
  %v4576 = vadd.f32 0.0, %v4575
  %v4577 = vpop.f32.mrf.mxu0
  %4578 = vdwg.mxu0
  %v4580 = vsel %vm187, %v4576, 0
  %4582 = vmatprep.subr.mxu0 0.0
  %4583 = vmatpush1.msra.mxu0 0.0
  %4584 = vmatprep.subr.mxu0 0.0
  %4585 = vmatpush1.msra.mxu0 0.0
  %4586 = vmatprep.subr.mxu0 0.0
  %4587 = vmatpush1.msra.mxu0 0.0
  %4588 = vmatprep.subr.mxu0 0.0
  %4589 = vmatpush1.msra.mxu0 0.0
  %4590 = vmatprep.subr.mxu0 0.0
  %4591 = vmatpush1.msra.mxu0 0.0
  %4592 = vmatprep.subr.mxu0 0.0
  %4593 = vmatpush1.msra.mxu0 0.0
  %4594 = vmatprep.subr.mxu0 0.0
  %4595 = vmatpush1.msra.mxu0 0.0
  %4596 = vmatprep.subr.mxu0 0.0
  %4597 = vmatpush1.msra.mxu0 0.0
  %4598 = vmatprep.subr.mxu0 0.0
  %4599 = vmatpush1.msra.mxu0 0.0
  %4600 = vmatprep.subr.mxu0 0.0
  %4601 = vmatpush1.msra.mxu0 0.0
  %4602 = vmatprep.subr.mxu0 0.0
  %4603 = vmatpush1.msra.mxu0 0.0
  %4604 = vmatprep.subr.mxu0 0.0
  %4605 = vmatpush1.msra.mxu0 0.0
  %4606 = vmatprep.subr.mxu0 0.0
  %4607 = vmatpush1.msra.mxu0 0.0
  %4608 = vmatprep.subr.mxu0 0.0
  %4609 = vmatpush1.msra.mxu0 0.0
  %4610 = vmatprep.subr.mxu0 0.0
  %4611 = vmatpush1.msra.mxu0 0.0
  %4612 = vmatprep.subr.mxu0 0.0
  %4613 = vmatpush1.msra.mxu0 %v1423
  %4614 = vmatprep.subr.mxu0 0.0
  %4615 = vmatpush2.msra.mxu0 0.0
  %4616 = vmatprep.subr.mxu0 0.0
  %4617 = vmatpush2.msra.mxu0 0.0
  %4618 = vmatprep.subr.mxu0 0.0
  %4619 = vmatpush2.msra.mxu0 0.0
  %4620 = vmatprep.subr.mxu0 0.0
  %4621 = vmatpush2.msra.mxu0 0.0
  %4622 = vmatprep.subr.mxu0 0.0
  %4623 = vmatpush2.msra.mxu0 0.0
  %4624 = vmatprep.subr.mxu0 0.0
  %4625 = vmatpush2.msra.mxu0 0.0
  %4626 = vmatprep.subr.mxu0 0.0
  %4627 = vmatpush2.msra.mxu0 0.0
  %4628 = vmatprep.subr.mxu0 0.0
  %4629 = vmatpush2.msra.mxu0 0.0
  %4630 = vmatprep.subr.mxu0 0.0
  %4631 = vmatpush2.msra.mxu0 0.0
  %4632 = vmatprep.subr.mxu0 0.0
  %4633 = vmatpush2.msra.mxu0 0.0
  %4634 = vmatprep.subr.mxu0 0.0
  %4635 = vmatpush2.msra.mxu0 0.0
  %4636 = vmatprep.subr.mxu0 0.0
  %4637 = vmatpush2.msra.mxu0 0.0
  %4638 = vmatprep.subr.mxu0 0.0
  %4639 = vmatpush2.msra.mxu0 0.0
  %4640 = vmatprep.subr.mxu0 0.0
  %4641 = vmatpush2.msra.mxu0 0.0
  %4642 = vmatprep.subr.mxu0 0.0
  %4643 = vmatpush2.msra.mxu0 0.0
  %4644 = vmatprep.subr.mxu0 0.0
  %4645 = vmatpush2.msra.mxu0 0.0
  %4646 = vmatprep.mubr.f32.mxu0 0.0
  %4647 = vmatmul.mubr.f32.gmra.mxu0 %v4580
  %v4648 = vpop.f32.mrf.mxu0
  %v4649 = vadd.f32 0.0, %v4648
  %v4650 = vpop.f32.mrf.mxu0
  %4651 = vdwg.mxu0
  %v4652 = vadd.f32 %v4413, %v4649
  %4653 = vrot.lane.b32.xlu0 %v3934, 104
  %v4654 = vpop.permute.xlu0 %4653
  %4655 = vrot.lane.b32.xlu0 %v3934, 72
  %v4656 = vpop.permute.xlu0 %4655
  %v4657 = vsel %vm187, %v4654, 0
  %v4659 = vsel %vm187, %v4656, 0
  %4661 = vmatprep.subr.mxu0 0.0
  %4662 = vmatpush1.xpose.msra.mxu0 0.0
  %4663 = vmatprep.subr.mxu0 0.0
  %4664 = vmatpush1.xpose.msra.mxu0 0.0
  %4665 = vmatprep.subr.mxu0 0.0
  %4666 = vmatpush1.xpose.msra.mxu0 0.0
  %4667 = vmatprep.subr.mxu0 0.0
  %4668 = vmatpush1.xpose.msra.mxu0 0.0
  %4669 = vmatprep.subr.mxu0 0.0
  %4670 = vmatpush1.xpose.msra.mxu0 0.0
  %4671 = vmatprep.subr.mxu0 0.0
  %4672 = vmatpush1.xpose.msra.mxu0 0.0
  %4673 = vmatprep.subr.mxu0 0.0
  %4674 = vmatpush1.xpose.msra.mxu0 0.0
  %4675 = vmatprep.subr.mxu0 0.0
  %4676 = vmatpush1.xpose.msra.mxu0 0.0
  %4677 = vmatprep.subr.mxu0 0.0
  %4678 = vmatpush1.xpose.msra.mxu0 0.0
  %4679 = vmatprep.subr.mxu0 0.0
  %4680 = vmatpush1.xpose.msra.mxu0 0.0
  %4681 = vmatprep.subr.mxu0 0.0
  %4682 = vmatpush1.xpose.msra.mxu0 0.0
  %4683 = vmatprep.subr.mxu0 0.0
  %4684 = vmatpush1.xpose.msra.mxu0 0.0
  %4685 = vmatprep.subr.mxu0 0.0
  %4686 = vmatpush1.xpose.msra.mxu0 0.0
  %4687 = vmatprep.subr.mxu0 0.0
  %4688 = vmatpush1.xpose.msra.mxu0 0.0
  %4689 = vmatprep.subr.mxu0 0.0
  %4690 = vmatpush1.xpose.msra.mxu0 0.0
  %4691 = vmatprep.subr.mxu0 0.0
  %4692 = vmatpush1.xpose.msra.mxu0 %v4659
  %4693 = vmatprep.subr.mxu0 0.0
  %4694 = vmatpush2.xpose.msra.mxu0 0.0
  %4695 = vmatprep.subr.mxu0 0.0
  %4696 = vmatpush2.xpose.msra.mxu0 0.0
  %4697 = vmatprep.subr.mxu0 0.0
  %4698 = vmatpush2.xpose.msra.mxu0 0.0
  %4699 = vmatprep.subr.mxu0 0.0
  %4700 = vmatpush2.xpose.msra.mxu0 0.0
  %4701 = vmatprep.subr.mxu0 0.0
  %4702 = vmatpush2.xpose.msra.mxu0 0.0
  %4703 = vmatprep.subr.mxu0 0.0
  %4704 = vmatpush2.xpose.msra.mxu0 0.0
  %4705 = vmatprep.subr.mxu0 0.0
  %4706 = vmatpush2.xpose.msra.mxu0 0.0
  %4707 = vmatprep.subr.mxu0 0.0
  %4708 = vmatpush2.xpose.msra.mxu0 0.0
  %4709 = vmatprep.subr.mxu0 0.0
  %4710 = vmatpush2.xpose.msra.mxu0 0.0
  %4711 = vmatprep.subr.mxu0 0.0
  %4712 = vmatpush2.xpose.msra.mxu0 0.0
  %4713 = vmatprep.subr.mxu0 0.0
  %4714 = vmatpush2.xpose.msra.mxu0 0.0
  %4715 = vmatprep.subr.mxu0 0.0
  %4716 = vmatpush2.xpose.msra.mxu0 0.0
  %4717 = vmatprep.subr.mxu0 0.0
  %4718 = vmatpush2.xpose.msra.mxu0 0.0
  %4719 = vmatprep.subr.mxu0 0.0
  %4720 = vmatpush2.xpose.msra.mxu0 0.0
  %4721 = vmatprep.subr.mxu0 0.0
  %4722 = vmatpush2.xpose.msra.mxu0 0.0
  %4723 = vmatprep.subr.mxu0 0.0
  %4724 = vmatpush2.xpose.msra.mxu0 0.0
  %4725 = vmatprep.mubr.f32.mxu0 0.0
  %4726 = vmatmul.mubr.f32.gmra.mxu0 %v4657
  %v4727 = vpop.f32.mrf.mxu0
  %v4728 = vadd.f32 0.0, %v4727
  %v4729 = vpop.f32.mrf.mxu0
  %4730 = vdwg.mxu0
  %v4731 = vsel %vm187, %v4728, -inf
  %4732 = vmax.xlane.f32.xlu0 %v4731
  %v4733 = vpop.xlane.xlu0 %4732
  %v4734 = vsub.f32 %v4728, %v4733
  %v4735 = vmul.f32 %v4734, 1.442695
  %v4736 = vpow.pop %v4735
  %v4737 = vsel %vm187, %v4736, 0.0
  %4738 = vadd.xlane.f32.xlu0 %v4737
  %v4739 = vpop.xlane.xlu0 %4738
  %v4740 = vrcp.pop %v4739
  %v4741 = vmul.f32 %v4736, %v4740
  %4742 = vrot.lane.b32.xlu0 %v3934, 40
  %v4743 = vpop.permute.xlu0 %4742
  %v4746 = vsel %vm187, %v4741, 0
  %4748 = vmatprep.subr.mxu0 0.0
  %4749 = vmatpush1.msra.mxu0 0.0
  %4750 = vmatprep.subr.mxu0 0.0
  %4751 = vmatpush1.msra.mxu0 0.0
  %4752 = vmatprep.subr.mxu0 0.0
  %4753 = vmatpush1.msra.mxu0 0.0
  %4754 = vmatprep.subr.mxu0 0.0
  %4755 = vmatpush1.msra.mxu0 0.0
  %4756 = vmatprep.subr.mxu0 0.0
  %4757 = vmatpush1.msra.mxu0 0.0
  %4758 = vmatprep.subr.mxu0 0.0
  %4759 = vmatpush1.msra.mxu0 0.0
  %4760 = vmatprep.subr.mxu0 0.0
  %4761 = vmatpush1.msra.mxu0 0.0
  %4762 = vmatprep.subr.mxu0 0.0
  %4763 = vmatpush1.msra.mxu0 0.0
  %4764 = vmatprep.subr.mxu0 0.0
  %4765 = vmatpush1.msra.mxu0 0.0
  %4766 = vmatprep.subr.mxu0 0.0
  %4767 = vmatpush1.msra.mxu0 0.0
  %4768 = vmatprep.subr.mxu0 0.0
  %4769 = vmatpush1.msra.mxu0 0.0
  %4770 = vmatprep.subr.mxu0 0.0
  %4771 = vmatpush1.msra.mxu0 0.0
  %4772 = vmatprep.subr.mxu0 0.0
  %4773 = vmatpush1.msra.mxu0 0.0
  %4774 = vmatprep.subr.mxu0 0.0
  %4775 = vmatpush1.msra.mxu0 0.0
  %4776 = vmatprep.subr.mxu0 0.0
  %4777 = vmatpush1.msra.mxu0 0.0
  %4778 = vmatprep.subr.mxu0 0.0
  %4779 = vmatpush1.msra.mxu0 %v4743
  %4780 = vmatprep.subr.mxu0 0.0
  %4781 = vmatpush2.msra.mxu0 0.0
  %4782 = vmatprep.subr.mxu0 0.0
  %4783 = vmatpush2.msra.mxu0 0.0
  %4784 = vmatprep.subr.mxu0 0.0
  %4785 = vmatpush2.msra.mxu0 0.0
  %4786 = vmatprep.subr.mxu0 0.0
  %4787 = vmatpush2.msra.mxu0 0.0
  %4788 = vmatprep.subr.mxu0 0.0
  %4789 = vmatpush2.msra.mxu0 0.0
  %4790 = vmatprep.subr.mxu0 0.0
  %4791 = vmatpush2.msra.mxu0 0.0
  %4792 = vmatprep.subr.mxu0 0.0
  %4793 = vmatpush2.msra.mxu0 0.0
  %4794 = vmatprep.subr.mxu0 0.0
  %4795 = vmatpush2.msra.mxu0 0.0
  %4796 = vmatprep.subr.mxu0 0.0
  %4797 = vmatpush2.msra.mxu0 0.0
  %4798 = vmatprep.subr.mxu0 0.0
  %4799 = vmatpush2.msra.mxu0 0.0
  %4800 = vmatprep.subr.mxu0 0.0
  %4801 = vmatpush2.msra.mxu0 0.0
  %4802 = vmatprep.subr.mxu0 0.0
  %4803 = vmatpush2.msra.mxu0 0.0
  %4804 = vmatprep.subr.mxu0 0.0
  %4805 = vmatpush2.msra.mxu0 0.0
  %4806 = vmatprep.subr.mxu0 0.0
  %4807 = vmatpush2.msra.mxu0 0.0
  %4808 = vmatprep.subr.mxu0 0.0
  %4809 = vmatpush2.msra.mxu0 0.0
  %4810 = vmatprep.subr.mxu0 0.0
  %4811 = vmatpush2.msra.mxu0 0.0
  %4812 = vmatprep.mubr.f32.mxu0 0.0
  %4813 = vmatmul.mubr.f32.gmra.mxu0 %v4746
  %v4814 = vpop.f32.mrf.mxu0
  %v4815 = vadd.f32 0.0, %v4814
  %v4816 = vpop.f32.mrf.mxu0
  %4817 = vdwg.mxu0
  %v4819 = vsel %vm187, %v4815, 0
  %4821 = vmatprep.subr.mxu0 0.0
  %4822 = vmatpush1.msra.mxu0 0.0
  %4823 = vmatprep.subr.mxu0 0.0
  %4824 = vmatpush1.msra.mxu0 0.0
  %4825 = vmatprep.subr.mxu0 0.0
  %4826 = vmatpush1.msra.mxu0 0.0
  %4827 = vmatprep.subr.mxu0 0.0
  %4828 = vmatpush1.msra.mxu0 0.0
  %4829 = vmatprep.subr.mxu0 0.0
  %4830 = vmatpush1.msra.mxu0 0.0
  %4831 = vmatprep.subr.mxu0 0.0
  %4832 = vmatpush1.msra.mxu0 0.0
  %4833 = vmatprep.subr.mxu0 0.0
  %4834 = vmatpush1.msra.mxu0 0.0
  %4835 = vmatprep.subr.mxu0 0.0
  %4836 = vmatpush1.msra.mxu0 0.0
  %4837 = vmatprep.subr.mxu0 0.0
  %4838 = vmatpush1.msra.mxu0 0.0
  %4839 = vmatprep.subr.mxu0 0.0
  %4840 = vmatpush1.msra.mxu0 0.0
  %4841 = vmatprep.subr.mxu0 0.0
  %4842 = vmatpush1.msra.mxu0 0.0
  %4843 = vmatprep.subr.mxu0 0.0
  %4844 = vmatpush1.msra.mxu0 0.0
  %4845 = vmatprep.subr.mxu0 0.0
  %4846 = vmatpush1.msra.mxu0 0.0
  %4847 = vmatprep.subr.mxu0 0.0
  %4848 = vmatpush1.msra.mxu0 0.0
  %4849 = vmatprep.subr.mxu0 0.0
  %4850 = vmatpush1.msra.mxu0 0.0
  %4851 = vmatprep.subr.mxu0 0.0
  %4852 = vmatpush1.msra.mxu0 %v1424
  %4853 = vmatprep.subr.mxu0 0.0
  %4854 = vmatpush2.msra.mxu0 0.0
  %4855 = vmatprep.subr.mxu0 0.0
  %4856 = vmatpush2.msra.mxu0 0.0
  %4857 = vmatprep.subr.mxu0 0.0
  %4858 = vmatpush2.msra.mxu0 0.0
  %4859 = vmatprep.subr.mxu0 0.0
  %4860 = vmatpush2.msra.mxu0 0.0
  %4861 = vmatprep.subr.mxu0 0.0
  %4862 = vmatpush2.msra.mxu0 0.0
  %4863 = vmatprep.subr.mxu0 0.0
  %4864 = vmatpush2.msra.mxu0 0.0
  %4865 = vmatprep.subr.mxu0 0.0
  %4866 = vmatpush2.msra.mxu0 0.0
  %4867 = vmatprep.subr.mxu0 0.0
  %4868 = vmatpush2.msra.mxu0 0.0
  %4869 = vmatprep.subr.mxu0 0.0
  %4870 = vmatpush2.msra.mxu0 0.0
  %4871 = vmatprep.subr.mxu0 0.0
  %4872 = vmatpush2.msra.mxu0 0.0
  %4873 = vmatprep.subr.mxu0 0.0
  %4874 = vmatpush2.msra.mxu0 0.0
  %4875 = vmatprep.subr.mxu0 0.0
  %4876 = vmatpush2.msra.mxu0 0.0
  %4877 = vmatprep.subr.mxu0 0.0
  %4878 = vmatpush2.msra.mxu0 0.0
  %4879 = vmatprep.subr.mxu0 0.0
  %4880 = vmatpush2.msra.mxu0 0.0
  %4881 = vmatprep.subr.mxu0 0.0
  %4882 = vmatpush2.msra.mxu0 0.0
  %4883 = vmatprep.subr.mxu0 0.0
  %4884 = vmatpush2.msra.mxu0 0.0
  %4885 = vmatprep.mubr.f32.mxu0 0.0
  %4886 = vmatmul.mubr.f32.gmra.mxu0 %v4819
  %v4887 = vpop.f32.mrf.mxu0
  %v4888 = vadd.f32 0.0, %v4887
  %v4889 = vpop.f32.mrf.mxu0
  %4890 = vdwg.mxu0
  %v4891 = vadd.f32 %v4652, %v4888
  %v4892 = vadd.f32 %v2657, %v4891
  %v4893 = vsel %vm105, %v4892, 0.0
  %4894 = vadd.xlane.f32.xlu0 %v4893
  %v4895 = vpop.xlane.xlu0 %4894
  %v4896 = vmul.f32 %v4895, %v1146
  %v4897 = vsub.f32 %v4892, %v4896
  %v4898 = vmul.f32 %v4897, %v4897
  %v4899 = vsel %vm105, %v4898, 0.0
  %4900 = vadd.xlane.f32.xlu0 %v4899
  %v4901 = vpop.xlane.xlu0 %4900
  %v4902 = vmul.f32 %v4901, %v1146
  %v4903 = vadd.f32 %v4902, 1e-05
  %v4904 = vrsqrt.pop %v4903
  %v4905 = vmul.f32 %v4897, %v4904
  %v4906 = vmul.f32 %v4905, %v2382
  %v4907 = vadd.f32 %v4906, %v2383
  %v4909 = vsel %vm105, %v4907, 0
  %4911 = vmatprep.subr.mxu0 0.0
  %4912 = vmatpush1.msra.mxu0 0.0
  %4913 = vmatprep.subr.mxu0 0.0
  %4914 = vmatpush1.msra.mxu0 0.0
  %4915 = vmatprep.subr.mxu0 0.0
  %4916 = vmatpush1.msra.mxu0 0.0
  %4917 = vmatprep.subr.mxu0 0.0
  %4918 = vmatpush1.msra.mxu0 0.0
  %4919 = vmatprep.subr.mxu0 0.0
  %4920 = vmatpush1.msra.mxu0 0.0
  %4921 = vmatprep.subr.mxu0 0.0
  %4922 = vmatpush1.msra.mxu0 0.0
  %4923 = vmatprep.subr.mxu0 0.0
  %4924 = vmatpush1.msra.mxu0 0.0
  %4925 = vmatprep.subr.mxu0 0.0
  %4926 = vmatpush1.msra.mxu0 0.0
  %4927 = vmatprep.subr.mxu0 0.0
  %4928 = vmatpush1.msra.mxu0 0.0
  %4929 = vmatprep.subr.mxu0 0.0
  %4930 = vmatpush1.msra.mxu0 0.0
  %4931 = vmatprep.subr.mxu0 0.0
  %4932 = vmatpush1.msra.mxu0 0.0
  %4933 = vmatprep.subr.mxu0 0.0
  %4934 = vmatpush1.msra.mxu0 0.0
  %4935 = vmatprep.subr.mxu0 0.0
  %4936 = vmatpush1.msra.mxu0 %v2402
  %4937 = vmatprep.subr.mxu0 0.0
  %4938 = vmatpush1.msra.mxu0 %v2401
  %4939 = vmatprep.subr.mxu0 0.0
  %4940 = vmatpush1.msra.mxu0 %v2400
  %4941 = vmatprep.subr.mxu0 0.0
  %4942 = vmatpush1.msra.mxu0 %v2399
  %4943 = vmatprep.subr.mxu0 0.0
  %4944 = vmatpush2.msra.mxu0 0.0
  %4945 = vmatprep.subr.mxu0 0.0
  %4946 = vmatpush2.msra.mxu0 0.0
  %4947 = vmatprep.subr.mxu0 0.0
  %4948 = vmatpush2.msra.mxu0 0.0
  %4949 = vmatprep.subr.mxu0 0.0
  %4950 = vmatpush2.msra.mxu0 0.0
  %4951 = vmatprep.subr.mxu0 0.0
  %4952 = vmatpush2.msra.mxu0 0.0
  %4953 = vmatprep.subr.mxu0 0.0
  %4954 = vmatpush2.msra.mxu0 0.0
  %4955 = vmatprep.subr.mxu0 0.0
  %4956 = vmatpush2.msra.mxu0 0.0
  %4957 = vmatprep.subr.mxu0 0.0
  %4958 = vmatpush2.msra.mxu0 0.0
  %4959 = vmatprep.subr.mxu0 0.0
  %4960 = vmatpush2.msra.mxu0 0.0
  %4961 = vmatprep.subr.mxu0 0.0
  %4962 = vmatpush2.msra.mxu0 0.0
  %4963 = vmatprep.subr.mxu0 0.0
  %4964 = vmatpush2.msra.mxu0 0.0
  %4965 = vmatprep.subr.mxu0 0.0
  %4966 = vmatpush2.msra.mxu0 0.0
  %4967 = vmatprep.subr.mxu0 0.0
  %4968 = vmatpush2.msra.mxu0 0.0
  %4969 = vmatprep.subr.mxu0 0.0
  %4970 = vmatpush2.msra.mxu0 0.0
  %4971 = vmatprep.subr.mxu0 0.0
  %4972 = vmatpush2.msra.mxu0 0.0
  %4973 = vmatprep.subr.mxu0 0.0
  %4974 = vmatpush2.msra.mxu0 0.0
  %4975 = vmatprep.mubr.f32.mxu0 0.0
  %4976 = vmatmul.mubr.f32.gmra.mxu0 %v4909
  %v4977 = vpop.f32.mrf.mxu0
  %v4978 = vadd.f32 %v2403, %v4977
  %v4979 = vpop.f32.mrf.mxu0
  %4980 = vdwg.mxu0
  %v4981 = vmax.f32 %v4978, 0.0
  %4982 = vmatprep.subr.mxu0 0.0
  %4983 = vmatpush1.msra.mxu0 %v2493
  %4984 = vmatprep.subr.mxu0 0.0
  %4985 = vmatpush1.msra.mxu0 %v2492
  %4986 = vmatprep.subr.mxu0 0.0
  %4987 = vmatpush1.msra.mxu0 %v2491
  %4988 = vmatprep.subr.mxu0 0.0
  %4989 = vmatpush1.msra.mxu0 %v2490
  %4990 = vmatprep.subr.mxu0 0.0
  %4991 = vmatpush1.msra.mxu0 %v2489
  %4992 = vmatprep.subr.mxu0 0.0
  %4993 = vmatpush1.msra.mxu0 %v2488
  %4994 = vmatprep.subr.mxu0 0.0
  %4995 = vmatpush1.msra.mxu0 %v2487
  %4996 = vmatprep.subr.mxu0 0.0
  %4997 = vmatpush1.msra.mxu0 %v2486
  %4998 = vmatprep.subr.mxu0 0.0
  %4999 = vmatpush1.msra.mxu0 %v2485
  %5000 = vmatprep.subr.mxu0 0.0
  %5001 = vmatpush1.msra.mxu0 %v2484
  %5002 = vmatprep.subr.mxu0 0.0
  %5003 = vmatpush1.msra.mxu0 %v2483
  %5004 = vmatprep.subr.mxu0 0.0
  %5005 = vmatpush1.msra.mxu0 %v2482
  %5006 = vmatprep.subr.mxu0 0.0
  %5007 = vmatpush1.msra.mxu0 %v2481
  %5008 = vmatprep.subr.mxu0 0.0
  %5009 = vmatpush1.msra.mxu0 %v2480
  %5010 = vmatprep.subr.mxu0 0.0
  %5011 = vmatpush1.msra.mxu0 %v2479
  %5012 = vmatprep.subr.mxu0 0.0
  %5013 = vmatpush1.msra.mxu0 %v2478
  %5014 = vmatprep.subr.mxu0 0.0
  %5015 = vmatpush2.msra.mxu0 0.0
  %5016 = vmatprep.subr.mxu0 0.0
  %5017 = vmatpush2.msra.mxu0 0.0
  %5018 = vmatprep.subr.mxu0 0.0
  %5019 = vmatpush2.msra.mxu0 0.0
  %5020 = vmatprep.subr.mxu0 0.0
  %5021 = vmatpush2.msra.mxu0 0.0
  %5022 = vmatprep.subr.mxu0 0.0
  %5023 = vmatpush2.msra.mxu0 0.0
  %5024 = vmatprep.subr.mxu0 0.0
  %5025 = vmatpush2.msra.mxu0 0.0
  %5026 = vmatprep.subr.mxu0 0.0
  %5027 = vmatpush2.msra.mxu0 0.0
  %5028 = vmatprep.subr.mxu0 0.0
  %5029 = vmatpush2.msra.mxu0 0.0
  %5030 = vmatprep.subr.mxu0 0.0
  %5031 = vmatpush2.msra.mxu0 0.0
  %5032 = vmatprep.subr.mxu0 0.0
  %5033 = vmatpush2.msra.mxu0 0.0
  %5034 = vmatprep.subr.mxu0 0.0
  %5035 = vmatpush2.msra.mxu0 0.0
  %5036 = vmatprep.subr.mxu0 0.0
  %5037 = vmatpush2.msra.mxu0 0.0
  %5038 = vmatprep.subr.mxu0 0.0
  %5039 = vmatpush2.msra.mxu0 0.0
  %5040 = vmatprep.subr.mxu0 0.0
  %5041 = vmatpush2.msra.mxu0 0.0
  %5042 = vmatprep.subr.mxu0 0.0
  %5043 = vmatpush2.msra.mxu0 0.0
  %5044 = vmatprep.subr.mxu0 0.0
  %5045 = vmatpush2.msra.mxu0 0.0
  %5046 = vmatprep.mubr.f32.mxu0 0.0
  %5047 = vmatmul.mubr.f32.gmra.mxu0 %v4981
  %v5048 = vpop.f32.mrf.mxu0
  %v5049 = vadd.f32 %v2494, %v5048
  %v5050 = vpop.f32.mrf.mxu0
  %5051 = vdwg.mxu0
  %v5052 = vadd.f32 %v4907, %v5049
  %v5053 = vsel %vm105, %v5052, 0.0
  %5054 = vadd.xlane.f32.xlu0 %v5053
  %v5055 = vpop.xlane.xlu0 %5054
  %v5056 = vmul.f32 %v5055, %v1146
  %v5057 = vsub.f32 %v5052, %v5056
  %v5058 = vmul.f32 %v5057, %v5057
  %v5059 = vsel %vm105, %v5058, 0.0
  %5060 = vadd.xlane.f32.xlu0 %v5059
  %v5061 = vpop.xlane.xlu0 %5060
  %v5062 = vmul.f32 %v5061, %v1146
  %v5063 = vadd.f32 %v5062, 1e-05
  %v5064 = vrsqrt.pop %v5063
  %v5065 = vmul.f32 %v5057, %v5064
  %v5066 = vmul.f32 %v5065, %v2566
  %v5067 = vadd.f32 %v5066, %v2567
  %v5068 = vadd.f32 %v2583, %v3863
  %v5069 = vadd.f32 %v2584, %v5067
  %v5070 = vld [vmem:[%s1 + $0x10] sm:$0xff]
  %v5071 = vld [vmem:[%s1 + $0x18] sm:$0xff]
  %v5073 = vsel %vm105, %v5068, 0
  %v5076 = vsel %vm105, %v5070, 0
  %5078 = vmatprep.subr.mxu0 0.0
  %5079 = vmatpush1.xpose.msra.mxu0 0.0
  %5080 = vmatprep.subr.mxu0 0.0
  %5081 = vmatpush1.xpose.msra.mxu0 0.0
  %5082 = vmatprep.subr.mxu0 0.0
  %5083 = vmatpush1.xpose.msra.mxu0 0.0
  %5084 = vmatprep.subr.mxu0 0.0
  %5085 = vmatpush1.xpose.msra.mxu0 0.0
  %5086 = vmatprep.subr.mxu0 0.0
  %5087 = vmatpush1.xpose.msra.mxu0 0.0
  %5088 = vmatprep.subr.mxu0 0.0
  %5089 = vmatpush1.xpose.msra.mxu0 0.0
  %5090 = vmatprep.subr.mxu0 0.0
  %5091 = vmatpush1.xpose.msra.mxu0 0.0
  %5092 = vmatprep.subr.mxu0 0.0
  %5093 = vmatpush1.xpose.msra.mxu0 0.0
  %5094 = vmatprep.subr.mxu0 0.0
  %5095 = vmatpush1.xpose.msra.mxu0 0.0
  %5096 = vmatprep.subr.mxu0 0.0
  %5097 = vmatpush1.xpose.msra.mxu0 0.0
  %5098 = vmatprep.subr.mxu0 0.0
  %5099 = vmatpush1.xpose.msra.mxu0 0.0
  %5100 = vmatprep.subr.mxu0 0.0
  %5101 = vmatpush1.xpose.msra.mxu0 0.0
  %5102 = vmatprep.subr.mxu0 0.0
  %5103 = vmatpush1.xpose.msra.mxu0 0.0
  %5104 = vmatprep.subr.mxu0 0.0
  %5105 = vmatpush1.xpose.msra.mxu0 0.0
  %5106 = vmatprep.subr.mxu0 0.0
  %5107 = vmatpush1.xpose.msra.mxu0 0.0
  %5108 = vmatprep.subr.mxu0 0.0
  %5109 = vmatpush1.xpose.msra.mxu0 %v5076
  %5110 = vmatprep.subr.mxu0 0.0
  %5111 = vmatpush2.xpose.msra.mxu0 0.0
  %5112 = vmatprep.subr.mxu0 0.0
  %5113 = vmatpush2.xpose.msra.mxu0 0.0
  %5114 = vmatprep.subr.mxu0 0.0
  %5115 = vmatpush2.xpose.msra.mxu0 0.0
  %5116 = vmatprep.subr.mxu0 0.0
  %5117 = vmatpush2.xpose.msra.mxu0 0.0
  %5118 = vmatprep.subr.mxu0 0.0
  %5119 = vmatpush2.xpose.msra.mxu0 0.0
  %5120 = vmatprep.subr.mxu0 0.0
  %5121 = vmatpush2.xpose.msra.mxu0 0.0
  %5122 = vmatprep.subr.mxu0 0.0
  %5123 = vmatpush2.xpose.msra.mxu0 0.0
  %5124 = vmatprep.subr.mxu0 0.0
  %5125 = vmatpush2.xpose.msra.mxu0 0.0
  %5126 = vmatprep.subr.mxu0 0.0
  %5127 = vmatpush2.xpose.msra.mxu0 0.0
  %5128 = vmatprep.subr.mxu0 0.0
  %5129 = vmatpush2.xpose.msra.mxu0 0.0
  %5130 = vmatprep.subr.mxu0 0.0
  %5131 = vmatpush2.xpose.msra.mxu0 0.0
  %5132 = vmatprep.subr.mxu0 0.0
  %5133 = vmatpush2.xpose.msra.mxu0 0.0
  %5134 = vmatprep.subr.mxu0 0.0
  %5135 = vmatpush2.xpose.msra.mxu0 0.0
  %5136 = vmatprep.subr.mxu0 0.0
  %5137 = vmatpush2.xpose.msra.mxu0 0.0
  %5138 = vmatprep.subr.mxu0 0.0
  %5139 = vmatpush2.xpose.msra.mxu0 0.0
  %5140 = vmatprep.subr.mxu0 0.0
  %5141 = vmatpush2.xpose.msra.mxu0 0.0
  %5142 = vmatprep.mubr.f32.mxu0 0.0
  %5143 = vmatmul.mubr.f32.gmra.mxu0 %v5073
  %v5144 = vpop.f32.mrf.mxu0
  %v5145 = vadd.f32 0.0, %v5144
  %v5146 = vpop.f32.mrf.mxu0
  %5147 = vdwg.mxu0
  %v5149 = vsel %vm105, %v5069, 0
  %v5152 = vsel %vm105, %v5071, 0
  %5154 = vmatprep.subr.mxu0 0.0
  %5155 = vmatpush1.xpose.msra.mxu0 0.0
  %5156 = vmatprep.subr.mxu0 0.0
  %5157 = vmatpush1.xpose.msra.mxu0 0.0
  %5158 = vmatprep.subr.mxu0 0.0
  %5159 = vmatpush1.xpose.msra.mxu0 0.0
  %5160 = vmatprep.subr.mxu0 0.0
  %5161 = vmatpush1.xpose.msra.mxu0 0.0
  %5162 = vmatprep.subr.mxu0 0.0
  %5163 = vmatpush1.xpose.msra.mxu0 0.0
  %5164 = vmatprep.subr.mxu0 0.0
  %5165 = vmatpush1.xpose.msra.mxu0 0.0
  %5166 = vmatprep.subr.mxu0 0.0
  %5167 = vmatpush1.xpose.msra.mxu0 0.0
  %5168 = vmatprep.subr.mxu0 0.0
  %5169 = vmatpush1.xpose.msra.mxu0 0.0
  %5170 = vmatprep.subr.mxu0 0.0
  %5171 = vmatpush1.xpose.msra.mxu0 0.0
  %5172 = vmatprep.subr.mxu0 0.0
  %5173 = vmatpush1.xpose.msra.mxu0 0.0
  %5174 = vmatprep.subr.mxu0 0.0
  %5175 = vmatpush1.xpose.msra.mxu0 0.0
  %5176 = vmatprep.subr.mxu0 0.0
  %5177 = vmatpush1.xpose.msra.mxu0 0.0
  %5178 = vmatprep.subr.mxu0 0.0
  %5179 = vmatpush1.xpose.msra.mxu0 0.0
  %5180 = vmatprep.subr.mxu0 0.0
  %5181 = vmatpush1.xpose.msra.mxu0 0.0
  %5182 = vmatprep.subr.mxu0 0.0
  %5183 = vmatpush1.xpose.msra.mxu0 0.0
  %5184 = vmatprep.subr.mxu0 0.0
  %5185 = vmatpush1.xpose.msra.mxu0 %v5152
  %5186 = vmatprep.subr.mxu0 0.0
  %5187 = vmatpush2.xpose.msra.mxu0 0.0
  %5188 = vmatprep.subr.mxu0 0.0
  %5189 = vmatpush2.xpose.msra.mxu0 0.0
  %5190 = vmatprep.subr.mxu0 0.0
  %5191 = vmatpush2.xpose.msra.mxu0 0.0
  %5192 = vmatprep.subr.mxu0 0.0
  %5193 = vmatpush2.xpose.msra.mxu0 0.0
  %5194 = vmatprep.subr.mxu0 0.0
  %5195 = vmatpush2.xpose.msra.mxu0 0.0
  %5196 = vmatprep.subr.mxu0 0.0
  %5197 = vmatpush2.xpose.msra.mxu0 0.0
  %5198 = vmatprep.subr.mxu0 0.0
  %5199 = vmatpush2.xpose.msra.mxu0 0.0
  %5200 = vmatprep.subr.mxu0 0.0
  %5201 = vmatpush2.xpose.msra.mxu0 0.0
  %5202 = vmatprep.subr.mxu0 0.0
  %5203 = vmatpush2.xpose.msra.mxu0 0.0
  %5204 = vmatprep.subr.mxu0 0.0
  %5205 = vmatpush2.xpose.msra.mxu0 0.0
  %5206 = vmatprep.subr.mxu0 0.0
  %5207 = vmatpush2.xpose.msra.mxu0 0.0
  %5208 = vmatprep.subr.mxu0 0.0
  %5209 = vmatpush2.xpose.msra.mxu0 0.0
  %5210 = vmatprep.subr.mxu0 0.0
  %5211 = vmatpush2.xpose.msra.mxu0 0.0
  %5212 = vmatprep.subr.mxu0 0.0
  %5213 = vmatpush2.xpose.msra.mxu0 0.0
  %5214 = vmatprep.subr.mxu0 0.0
  %5215 = vmatpush2.xpose.msra.mxu0 0.0
  %5216 = vmatprep.subr.mxu0 0.0
  %5217 = vmatpush2.xpose.msra.mxu0 0.0
  %5218 = vmatprep.mubr.f32.mxu0 0.0
  %5219 = vmatmul.mubr.f32.gmra.mxu0 %v5149
  %v5220 = vpop.f32.mrf.mxu0
  %v5221 = vadd.f32 0.0, %v5220
  %v5222 = vpop.f32.mrf.mxu0
  %5223 = vdwg.mxu0
  %5224 = vst.msk [vmem:[%s3] sm:$0xff] %vm105, %v5068
  %5225 = vst.msk [vmem:[%s3 + $0x8] sm:$0xff] %vm105, %v5069
  %v5227 = vsel %vm187, %v5145, 0
  %5229 = vmatprep.subr.mxu0 0.0
  %5230 = vmatpush1.msra.mxu0 0.0
  %5231 = vmatprep.subr.mxu0 0.0
  %5232 = vmatpush1.msra.mxu0 0.0
  %5233 = vmatprep.subr.mxu0 0.0
  %5234 = vmatpush1.msra.mxu0 0.0
  %5235 = vmatprep.subr.mxu0 0.0
  %5236 = vmatpush1.msra.mxu0 0.0
  %5237 = vmatprep.subr.mxu0 0.0
  %5238 = vmatpush1.msra.mxu0 0.0
  %5239 = vmatprep.subr.mxu0 0.0
  %5240 = vmatpush1.msra.mxu0 0.0
  %5241 = vmatprep.subr.mxu0 0.0
  %5242 = vmatpush1.msra.mxu0 0.0
  %5243 = vmatprep.subr.mxu0 0.0
  %5244 = vmatpush1.msra.mxu0 0.0
  %5245 = vmatprep.subr.mxu0 0.0
  %5246 = vmatpush1.msra.mxu0 0.0
  %5247 = vmatprep.subr.mxu0 0.0
  %5248 = vmatpush1.msra.mxu0 0.0
  %5249 = vmatprep.subr.mxu0 0.0
  %5250 = vmatpush1.msra.mxu0 0.0
  %5251 = vmatprep.subr.mxu0 0.0
  %5252 = vmatpush1.msra.mxu0 0.0
  %5253 = vmatprep.subr.mxu0 0.0
  %5254 = vmatpush1.msra.mxu0 0.0
  %5255 = vmatprep.subr.mxu0 0.0
  %5256 = vmatpush1.msra.mxu0 0.0
  %5257 = vmatprep.subr.mxu0 0.0
  %5258 = vmatpush1.msra.mxu0 0.0
  %5259 = vmatprep.subr.mxu0 0.0
  %5260 = vmatpush1.msra.mxu0 %v5070
  %5261 = vmatprep.subr.mxu0 0.0
  %5262 = vmatpush2.msra.mxu0 0.0
  %5263 = vmatprep.subr.mxu0 0.0
  %5264 = vmatpush2.msra.mxu0 0.0
  %5265 = vmatprep.subr.mxu0 0.0
  %5266 = vmatpush2.msra.mxu0 0.0
  %5267 = vmatprep.subr.mxu0 0.0
  %5268 = vmatpush2.msra.mxu0 0.0
  %5269 = vmatprep.subr.mxu0 0.0
  %5270 = vmatpush2.msra.mxu0 0.0
  %5271 = vmatprep.subr.mxu0 0.0
  %5272 = vmatpush2.msra.mxu0 0.0
  %5273 = vmatprep.subr.mxu0 0.0
  %5274 = vmatpush2.msra.mxu0 0.0
  %5275 = vmatprep.subr.mxu0 0.0
  %5276 = vmatpush2.msra.mxu0 0.0
  %5277 = vmatprep.subr.mxu0 0.0
  %5278 = vmatpush2.msra.mxu0 0.0
  %5279 = vmatprep.subr.mxu0 0.0
  %5280 = vmatpush2.msra.mxu0 0.0
  %5281 = vmatprep.subr.mxu0 0.0
  %5282 = vmatpush2.msra.mxu0 0.0
  %5283 = vmatprep.subr.mxu0 0.0
  %5284 = vmatpush2.msra.mxu0 0.0
  %5285 = vmatprep.subr.mxu0 0.0
  %5286 = vmatpush2.msra.mxu0 0.0
  %5287 = vmatprep.subr.mxu0 0.0
  %5288 = vmatpush2.msra.mxu0 0.0
  %5289 = vmatprep.subr.mxu0 0.0
  %5290 = vmatpush2.msra.mxu0 0.0
  %5291 = vmatprep.subr.mxu0 0.0
  %5292 = vmatpush2.msra.mxu0 0.0
  %5293 = vmatprep.mubr.f32.mxu0 0.0
  %5294 = vmatmul.mubr.f32.gmra.mxu0 %v5227
  %v5295 = vpop.f32.mrf.mxu0
  %v5296 = vadd.f32 0.0, %v5295
  %v5297 = vpop.f32.mrf.mxu0
  %5298 = vdwg.mxu0
  %5299 = vst.msk [vmem:[%s3 + $0x10] sm:$0xff] %vm105, %v5296
  %v5301 = vsel %vm187, %v5221, 0
  %5303 = vmatprep.subr.mxu0 0.0
  %5304 = vmatpush1.msra.mxu0 0.0
  %5305 = vmatprep.subr.mxu0 0.0
  %5306 = vmatpush1.msra.mxu0 0.0
  %5307 = vmatprep.subr.mxu0 0.0
  %5308 = vmatpush1.msra.mxu0 0.0
  %5309 = vmatprep.subr.mxu0 0.0
  %5310 = vmatpush1.msra.mxu0 0.0
  %5311 = vmatprep.subr.mxu0 0.0
  %5312 = vmatpush1.msra.mxu0 0.0
  %5313 = vmatprep.subr.mxu0 0.0
  %5314 = vmatpush1.msra.mxu0 0.0
  %5315 = vmatprep.subr.mxu0 0.0
  %5316 = vmatpush1.msra.mxu0 0.0
  %5317 = vmatprep.subr.mxu0 0.0
  %5318 = vmatpush1.msra.mxu0 0.0
  %5319 = vmatprep.subr.mxu0 0.0
  %5320 = vmatpush1.msra.mxu0 0.0
  %5321 = vmatprep.subr.mxu0 0.0
  %5322 = vmatpush1.msra.mxu0 0.0
  %5323 = vmatprep.subr.mxu0 0.0
  %5324 = vmatpush1.msra.mxu0 0.0
  %5325 = vmatprep.subr.mxu0 0.0
  %5326 = vmatpush1.msra.mxu0 0.0
  %5327 = vmatprep.subr.mxu0 0.0
  %5328 = vmatpush1.msra.mxu0 0.0
  %5329 = vmatprep.subr.mxu0 0.0
  %5330 = vmatpush1.msra.mxu0 0.0
  %5331 = vmatprep.subr.mxu0 0.0
  %5332 = vmatpush1.msra.mxu0 0.0
  %5333 = vmatprep.subr.mxu0 0.0
  %5334 = vmatpush1.msra.mxu0 %v5071
  %5335 = vmatprep.subr.mxu0 0.0
  %5336 = vmatpush2.msra.mxu0 0.0
  %5337 = vmatprep.subr.mxu0 0.0
  %5338 = vmatpush2.msra.mxu0 0.0
  %5339 = vmatprep.subr.mxu0 0.0
  %5340 = vmatpush2.msra.mxu0 0.0
  %5341 = vmatprep.subr.mxu0 0.0
  %5342 = vmatpush2.msra.mxu0 0.0
  %5343 = vmatprep.subr.mxu0 0.0
  %5344 = vmatpush2.msra.mxu0 0.0
  %5345 = vmatprep.subr.mxu0 0.0
  %5346 = vmatpush2.msra.mxu0 0.0
  %5347 = vmatprep.subr.mxu0 0.0
  %5348 = vmatpush2.msra.mxu0 0.0
  %5349 = vmatprep.subr.mxu0 0.0
  %5350 = vmatpush2.msra.mxu0 0.0
  %5351 = vmatprep.subr.mxu0 0.0
  %5352 = vmatpush2.msra.mxu0 0.0
  %5353 = vmatprep.subr.mxu0 0.0
  %5354 = vmatpush2.msra.mxu0 0.0
  %5355 = vmatprep.subr.mxu0 0.0
  %5356 = vmatpush2.msra.mxu0 0.0
  %5357 = vmatprep.subr.mxu0 0.0
  %5358 = vmatpush2.msra.mxu0 0.0
  %5359 = vmatprep.subr.mxu0 0.0
  %5360 = vmatpush2.msra.mxu0 0.0
  %5361 = vmatprep.subr.mxu0 0.0
  %5362 = vmatpush2.msra.mxu0 0.0
  %5363 = vmatprep.subr.mxu0 0.0
  %5364 = vmatpush2.msra.mxu0 0.0
  %5365 = vmatprep.subr.mxu0 0.0
  %5366 = vmatpush2.msra.mxu0 0.0
  %5367 = vmatprep.mubr.f32.mxu0 0.0
  %5368 = vmatmul.mubr.f32.gmra.mxu0 %v5301
  %v5369 = vpop.f32.mrf.mxu0
  %v5370 = vadd.f32 0.0, %v5369
  %v5371 = vpop.f32.mrf.mxu0
  %5372 = vdwg.mxu0
  %5373 = vst.msk [vmem:[%s3 + $0x18] sm:$0xff] %vm105, %v5370
  // Predicated region
  $region14: #{model_forward.1} parent=0 // pred_check
    _
  $region15: #{model_forward.1} parent=0 // pred_check_branch
    %5375 = sbr.rel (0) target = $region17
  $region16: #{model_forward.1} parent=0 // pred_region
    _
  $region17: #{model_forward.1} parent=0 // pred_fallthru
    _
  // Predicated region
  $region18: #{model_forward.1} parent=0 // pred_check
    _
  $region19: #{model_forward.1} parent=0 // pred_check_branch
    %5377 = sbr.rel (0) target = $region21
  $region20: #{model_forward.1} parent=0 // pred_region
    _
  $region21: #{model_forward.1} parent=0 // pred_fallthru
    _

</llo_original>
